<compile_context>
chip_gen: v6e
topology: v6e:2x2x1
jax: 0.10.0
libtpu: 0.0.40
codegen_flags: <defaults>
</compile_context>

<pallas_src>
import functools
import math

import jax
import jax.numpy as jnp
from jax.experimental import pallas as pl
from jax.experimental.pallas import tpu as pltpu


# ----------------------------------------------------------------------------
# Fused decoder kernel (one grid step per batch element)
# ----------------------------------------------------------------------------

def _fused_decoder_kernel(
    x_ref, mem_ref,
    sa_wqkv_ref, sa_bqkv_ref, sa_wo_ref, sa_bo_ref,
    ca_wq_ref, ca_bq_ref, ca_wkv_ref, ca_bkv_ref, ca_wo_ref, ca_bo_ref,
    w1_ref, b1_ref, w2_ref, b2_ref,
    ln_g_ref, ln_b_ref,
    wout_ref, bout_ref,
    logits_ref,
    *, num_heads, num_layers, eps,
):
    x = x_ref[0]      # (L, D)
    mem = mem_ref[0]  # (S, D)
    L, D = x.shape
    dh = D // num_heads

    # Causal additive bias from iota (computed in-register, nothing DMA'd).
    row = jax.lax.broadcasted_iota(jnp.int32, (L, L), 0)
    col = jax.lax.broadcasted_iota(jnp.int32, (L, L), 1)
    causal_bias = jnp.where(col > row, jnp.float32(-1e30), jnp.float32(0.0))

    def layer_norm(z, g, b):
        mu = jnp.mean(z, axis=-1, keepdims=True)
        var = jnp.mean((z - mu) * (z - mu), axis=-1, keepdims=True)
        return (z - mu) * jax.lax.rsqrt(var + eps) * g + b

    def attention(q_all, k_all, v_all, wo, bo, bias):
        # q_all: (Lq, D) already scaled by 1/sqrt(dh); k_all, v_all: (Lk, D).
        # out = sum_h softmax(q_h k_h^T + bias) v_h @ Wo[h*dh:(h+1)*dh, :] + bo
        out = None
        for h in range(num_heads):
            lo = h * dh
            q = q_all[:, lo:lo + dh]
            k = k_all[:, lo:lo + dh]
            v = v_all[:, lo:lo + dh]
            # q @ k^T without materializing a transpose.
            s = jax.lax.dot_general(q, k, (((1,), (1,)), ((), ())),
                                    preferred_element_type=jnp.float32)
            if bias is not None:
                s = s + bias
            s = s - jnp.max(s, axis=-1, keepdims=True)
            p = jnp.exp(s)
            p = p * pl.reciprocal(jnp.sum(p, axis=-1, keepdims=True), approx=True)
            pv = jnp.dot(p, v, preferred_element_type=jnp.float32)          # (Lq, dh)
            contrib = jnp.dot(pv, wo[lo:lo + dh, :],
                              preferred_element_type=jnp.float32)           # (Lq, D)
            out = contrib if out is None else out + contrib
        return out + bo

    for li in range(num_layers):
        lng = ln_g_ref[li]   # (3, D): ln1/ln2/ln3 gamma
        lnb = ln_b_ref[li]   # (3, D): ln1/ln2/ln3 beta

        # ---- self-attention (packed QKV matmul; Wq pre-scaled) ----
        qkv = (jnp.dot(x, sa_wqkv_ref[li], preferred_element_type=jnp.float32)
               + sa_bqkv_ref[li])                                           # (L, 3D)
        sa = attention(qkv[:, :D], qkv[:, D:2 * D], qkv[:, 2 * D:],
                       sa_wo_ref[li], sa_bo_ref[li], causal_bias)
        x = layer_norm(x + sa, lng[0:1, :], lnb[0:1, :])

        # ---- cross-attention over memory ----
        qc = (jnp.dot(x, ca_wq_ref[li], preferred_element_type=jnp.float32)
              + ca_bq_ref[li])                                              # (L, D)
        kvc = (jnp.dot(mem, ca_wkv_ref[li], preferred_element_type=jnp.float32)
               + ca_bkv_ref[li])                                            # (S, 2D)
        ca = attention(qc, kvc[:, :D], kvc[:, D:],
                       ca_wo_ref[li], ca_bo_ref[li], None)
        x = layer_norm(x + ca, lng[1:2, :], lnb[1:2, :])

        # ---- feed-forward ----
        h1 = (jnp.dot(x, w1_ref[li], preferred_element_type=jnp.float32)
              + b1_ref[li])
        h1 = jnp.maximum(h1, 0.0)
        ff = (jnp.dot(h1, w2_ref[li], preferred_element_type=jnp.float32)
              + b2_ref[li])
        x = layer_norm(x + ff, lng[2:3, :], lnb[2:3, :])

    # ---- output projection ----
    logits_ref[0] = (jnp.dot(x, wout_ref[...], preferred_element_type=jnp.float32)
                     + bout_ref[...])


# ----------------------------------------------------------------------------
# Forward wrapper (embedding gather is glue in plain JAX; everything else fused)
# ----------------------------------------------------------------------------

def transformer_seq_gen_forward(packed, input_embedding_seq, target_ids,
                                *, num_heads, num_layers):
    B, L = target_ids.shape
    D = packed["tok_emb"].shape[1]
    S = input_embedding_seq.shape[1]
    V = packed["wout"].shape[1]
    F = packed["w1"].shape[2]
    NL = num_layers

    tok = jnp.take(packed["tok_emb"], target_ids, axis=0)      # (B, L, D)
    pos = packed["pos_emb"][:L][None, :, :]                    # (1, L, D)
    x = (tok + pos).astype(jnp.float32)
    mem = input_embedding_seq.astype(jnp.float32)

    def full3(shape):
        return pl.BlockSpec(shape, lambda b: (0, 0, 0))

    def full2(shape):
        return pl.BlockSpec(shape, lambda b: (0, 0))

    kernel = functools.partial(_fused_decoder_kernel,
                               num_heads=num_heads, num_layers=num_layers,
                               eps=1e-5)

    logits = pl.pallas_call(
        kernel,
        out_shape=jax.ShapeDtypeStruct((B, L, V), jnp.float32),
        grid=(B,),
        in_specs=[
            pl.BlockSpec((1, L, D), lambda b: (b, 0, 0)),   # x (target embeddings)
            pl.BlockSpec((1, S, D), lambda b: (b, 0, 0)),   # memory
            full3((NL, D, 3 * D)),   # sa_wqkv
            full3((NL, 1, 3 * D)),   # sa_bqkv
            full3((NL, D, D)),       # sa_wo
            full3((NL, 1, D)),       # sa_bo
            full3((NL, D, D)),       # ca_wq
            full3((NL, 1, D)),       # ca_bq
            full3((NL, D, 2 * D)),   # ca_wkv
            full3((NL, 1, 2 * D)),   # ca_bkv
            full3((NL, D, D)),       # ca_wo
            full3((NL, 1, D)),       # ca_bo
            full3((NL, D, F)),       # w1
            full3((NL, 1, F)),       # b1
            full3((NL, F, D)),       # w2
            full3((NL, 1, D)),       # b2
            full3((NL, 3, D)),       # ln gamma (ln1/ln2/ln3)
            full3((NL, 3, D)),       # ln beta
            full2((D, V)),           # out proj weight
            full2((1, V)),           # out proj bias
        ],
        out_specs=pl.BlockSpec((1, L, V), lambda b: (b, 0, 0)),
        compiler_params=pltpu.CompilerParams(
            dimension_semantics=("parallel",)),
    )(x, mem,
      packed["sa_wqkv"], packed["sa_bqkv"], packed["sa_wo"], packed["sa_bo"],
      packed["ca_wq"], packed["ca_bq"], packed["ca_wkv"], packed["ca_bkv"],
      packed["ca_wo"], packed["ca_bo"],
      packed["w1"], packed["b1"], packed["w2"], packed["b2"],
      packed["ln_g"], packed["ln_b"],
      packed["wout"], packed["bout"])
    return logits


# ----------------------------------------------------------------------------
# Parameter init (torch layout) + one-time packing (transpose / stack / scale)
# ----------------------------------------------------------------------------

def init_params(key, *, hidden_dim, vocab_size, max_len, num_layers, dim_feedforward):
    def nrm(k, shape, scale):
        return (scale * jax.random.normal(k, shape)).astype(jnp.float32)

    keys = jax.random.split(key, 4 + num_layers)
    params = {
        "token_embedding": nrm(keys[0], (vocab_size, hidden_dim), 0.02),
        "pos_embedding": nrm(keys[1], (max_len, hidden_dim), 0.02),
        "out_w": nrm(keys[2], (vocab_size, hidden_dim), 1.0 / math.sqrt(hidden_dim)),
        "out_b": jnp.zeros((vocab_size,), jnp.float32),
        "layers": [],
    }
    for li in range(num_layers):
        lk = jax.random.split(keys[4 + li], 8)
        s = 1.0 / math.sqrt(hidden_dim)
        layer = {
            "self_attn": {
                "in_w": nrm(lk[0], (3 * hidden_dim, hidden_dim), s),
                "in_b": jnp.zeros((3 * hidden_dim,), jnp.float32),
                "out_w": nrm(lk[1], (hidden_dim, hidden_dim), s),
                "out_b": jnp.zeros((hidden_dim,), jnp.float32),
            },
            "cross_attn": {
                "in_w": nrm(lk[2], (3 * hidden_dim, hidden_dim), s),
                "in_b": jnp.zeros((3 * hidden_dim,), jnp.float32),
                "out_w": nrm(lk[3], (hidden_dim, hidden_dim), s),
                "out_b": jnp.zeros((hidden_dim,), jnp.float32),
            },
            "w1": nrm(lk[4], (dim_feedforward, hidden_dim), s),
            "b1": jnp.zeros((dim_feedforward,), jnp.float32),
            "w2": nrm(lk[5], (hidden_dim, dim_feedforward), 1.0 / math.sqrt(dim_feedforward)),
            "b2": jnp.zeros((hidden_dim,), jnp.float32),
            "ln1_g": jnp.ones((hidden_dim,), jnp.float32),
            "ln1_b": jnp.zeros((hidden_dim,), jnp.float32),
            "ln2_g": jnp.ones((hidden_dim,), jnp.float32),
            "ln2_b": jnp.zeros((hidden_dim,), jnp.float32),
            "ln3_g": jnp.ones((hidden_dim,), jnp.float32),
            "ln3_b": jnp.zeros((hidden_dim,), jnp.float32),
        }
        params["layers"].append(layer)
    return params


def pack_params(params, num_heads):
    """One-time: transpose weights to (K, N), pack QKV, stack layers, fold 1/sqrt(dh)."""
    D = params["token_embedding"].shape[1]
    dh = D // num_heads
    qscale = jnp.float32(1.0 / math.sqrt(dh))

    sa_wqkv, sa_bqkv, sa_wo, sa_bo = [], [], [], []
    ca_wq, ca_bq, ca_wkv, ca_bkv, ca_wo, ca_bo = [], [], [], [], [], []
    w1, b1, w2, b2, ln_g, ln_b = [], [], [], [], [], []

    for p in params["layers"]:
        sw, sb = p["self_attn"]["in_w"], p["self_attn"]["in_b"]
        sa_wqkv.append(jnp.concatenate(
            [sw[:D].T * qscale, sw[D:2 * D].T, sw[2 * D:].T], axis=1))      # (D, 3D)
        sa_bqkv.append(jnp.concatenate([sb[:D] * qscale, sb[D:]])[None, :])  # (1, 3D)
        sa_wo.append(p["self_attn"]["out_w"].T)                              # (D, D)
        sa_bo.append(p["self_attn"]["out_b"][None, :])                       # (1, D)

        cw, cb = p["cross_attn"]["in_w"], p["cross_attn"]["in_b"]
        ca_wq.append(cw[:D].T * qscale)                                      # (D, D)
        ca_bq.append((cb[:D] * qscale)[None, :])                             # (1, D)
        ca_wkv.append(cw[D:].T)                                              # (D, 2D) = [Wk.T | Wv.T]
        ca_bkv.append(cb[D:][None, :])                                       # (1, 2D)
        ca_wo.append(p["cross_attn"]["out_w"].T)
        ca_bo.append(p["cross_attn"]["out_b"][None, :])

        w1.append(p["w1"].T)                                                 # (D, F)
        b1.append(p["b1"][None, :])
        w2.append(p["w2"].T)                                                 # (F, D)
        b2.append(p["b2"][None, :])
        ln_g.append(jnp.stack([p["ln1_g"], p["ln2_g"], p["ln3_g"]]))         # (3, D)
        ln_b.append(jnp.stack([p["ln1_b"], p["ln2_b"], p["ln3_b"]]))

    stack = lambda xs: jnp.stack(xs, axis=0)
    return {
        "tok_emb": params["token_embedding"],
        "pos_emb": params["pos_embedding"],
        "sa_wqkv": stack(sa_wqkv), "sa_bqkv": stack(sa_bqkv),
        "sa_wo": stack(sa_wo), "sa_bo": stack(sa_bo),
        "ca_wq": stack(ca_wq), "ca_bq": stack(ca_bq),
        "ca_wkv": stack(ca_wkv), "ca_bkv": stack(ca_bkv),
        "ca_wo": stack(ca_wo), "ca_bo": stack(ca_bo),
        "w1": stack(w1), "b1": stack(b1),
        "w2": stack(w2), "b2": stack(b2),
        "ln_g": stack(ln_g), "ln_b": stack(ln_b),
        "wout": params["out_w"].T,                    # (D, V)
        "bout": params["out_b"][None, :],             # (1, V)
    }


# ----------------------------------------------------------------------------
# Main
# ----------------------------------------------------------------------------

if __name__ == "__main__":
    config = dict(hidden_dim=32, vocab_size=64, max_len=16,
                  num_layers=2, num_heads=4, dim_feedforward=64, dropout=0.0)
    # TODO(synk): dropout implemented as eval-mode no-op (config dropout unused).

    B, L, S_MEM = 2, 8, 6

    key = jax.random.PRNGKey(0)
    k_param, k_mem, k_ids = jax.random.split(key, 3)

    params = init_params(
        k_param,
        hidden_dim=config["hidden_dim"],
        vocab_size=config["vocab_size"],
        max_len=config["max_len"],
        num_layers=config["num_layers"],
        dim_feedforward=config["dim_feedforward"],
    )
    packed = jax.tree_util.tree_map(jax.block_until_ready,
                                    pack_params(params, config["num_heads"]))

    input_embedding_seq = jax.random.normal(
        k_mem, (B, S_MEM, config["hidden_dim"]), dtype=jnp.float32)
    target_ids = jax.random.randint(
        k_ids, (B, L), 0, config["vocab_size"], dtype=jnp.int32)

    fwd = jax.jit(functools.partial(
        transformer_seq_gen_forward,
        num_heads=config["num_heads"], num_layers=config["num_layers"]))
    logits = fwd(packed, input_embedding_seq, target_ids)
    jax.block_until_ready(logits)

    assert logits.shape == (B, L, config["vocab_size"])
    assert bool(jnp.all(jnp.isfinite(logits)))
    print("KERNEL_OK")
</pallas_src>

<mosaic_0001>
module attributes {stable_mosaic.version = 11 : i64} {
  func.func @_fused_decoder_kernel(%arg0: i32, %arg1: memref<1x8x32xf32, #tpu.memory_space<vmem>>, %arg2: memref<1x6x32xf32, #tpu.memory_space<vmem>>, %arg3: memref<2x32x96xf32, #tpu.memory_space<vmem>>, %arg4: memref<2x1x96xf32, #tpu.memory_space<vmem>>, %arg5: memref<2x32x32xf32, #tpu.memory_space<vmem>>, %arg6: memref<2x1x32xf32, #tpu.memory_space<vmem>>, %arg7: memref<2x32x32xf32, #tpu.memory_space<vmem>>, %arg8: memref<2x1x32xf32, #tpu.memory_space<vmem>>, %arg9: memref<2x32x64xf32, #tpu.memory_space<vmem>>, %arg10: memref<2x1x64xf32, #tpu.memory_space<vmem>>, %arg11: memref<2x32x32xf32, #tpu.memory_space<vmem>>, %arg12: memref<2x1x32xf32, #tpu.memory_space<vmem>>, %arg13: memref<2x32x64xf32, #tpu.memory_space<vmem>>, %arg14: memref<2x1x64xf32, #tpu.memory_space<vmem>>, %arg15: memref<2x64x32xf32, #tpu.memory_space<vmem>>, %arg16: memref<2x1x32xf32, #tpu.memory_space<vmem>>, %arg17: memref<2x3x32xf32, #tpu.memory_space<vmem>>, %arg18: memref<2x3x32xf32, #tpu.memory_space<vmem>>, %arg19: memref<32x64xf32, #tpu.memory_space<vmem>>, %arg20: memref<1x64xf32, #tpu.memory_space<vmem>>, %arg21: memref<1x8x64xf32, #tpu.memory_space<vmem>>) attributes {dimension_semantics = [#tpu.dimension_semantics<parallel>], iteration_bounds = array<i64: 2>, scalar_prefetch = 0 : i64, scratch_operands = 0 : i64, tpu.core_type = #tpu.core_type<tc>, window_params = [{transform_indices = @transform_0, window_bounds = array<i64: 1, 8, 32>}, {transform_indices = @transform_1, window_bounds = array<i64: 1, 6, 32>}, {pipeline_mode = #tpu.pipeline_mode<synchronous>, transform_indices = @transform_2, window_bounds = array<i64: 2, 32, 96>}, {pipeline_mode = #tpu.pipeline_mode<synchronous>, transform_indices = @transform_3, window_bounds = array<i64: 2, 1, 96>}, {pipeline_mode = #tpu.pipeline_mode<synchronous>, transform_indices = @transform_4, window_bounds = array<i64: 2, 32, 32>}, {pipeline_mode = #tpu.pipeline_mode<synchronous>, transform_indices = @transform_5, window_bounds = array<i64: 2, 1, 32>}, {pipeline_mode = #tpu.pipeline_mode<synchronous>, transform_indices = @transform_6, window_bounds = array<i64: 2, 32, 32>}, {pipeline_mode = #tpu.pipeline_mode<synchronous>, transform_indices = @transform_7, window_bounds = array<i64: 2, 1, 32>}, {pipeline_mode = #tpu.pipeline_mode<synchronous>, transform_indices = @transform_8, window_bounds = array<i64: 2, 32, 64>}, {pipeline_mode = #tpu.pipeline_mode<synchronous>, transform_indices = @transform_9, window_bounds = array<i64: 2, 1, 64>}, {pipeline_mode = #tpu.pipeline_mode<synchronous>, transform_indices = @transform_10, window_bounds = array<i64: 2, 32, 32>}, {pipeline_mode = #tpu.pipeline_mode<synchronous>, transform_indices = @transform_11, window_bounds = array<i64: 2, 1, 32>}, {pipeline_mode = #tpu.pipeline_mode<synchronous>, transform_indices = @transform_12, window_bounds = array<i64: 2, 32, 64>}, {pipeline_mode = #tpu.pipeline_mode<synchronous>, transform_indices = @transform_13, window_bounds = array<i64: 2, 1, 64>}, {pipeline_mode = #tpu.pipeline_mode<synchronous>, transform_indices = @transform_14, window_bounds = array<i64: 2, 64, 32>}, {pipeline_mode = #tpu.pipeline_mode<synchronous>, transform_indices = @transform_15, window_bounds = array<i64: 2, 1, 32>}, {pipeline_mode = #tpu.pipeline_mode<synchronous>, transform_indices = @transform_16, window_bounds = array<i64: 2, 3, 32>}, {pipeline_mode = #tpu.pipeline_mode<synchronous>, transform_indices = @transform_17, window_bounds = array<i64: 2, 3, 32>}, {pipeline_mode = #tpu.pipeline_mode<synchronous>, transform_indices = @transform_18, window_bounds = array<i64: 32, 64>}, {pipeline_mode = #tpu.pipeline_mode<synchronous>, transform_indices = @transform_19, window_bounds = array<i64: 1, 64>}, {transform_indices = @transform_20, window_bounds = array<i64: 1, 8, 64>}]} {
    %c0 = arith.constant 0 : index
    %c0_0 = arith.constant 0 : index
    %c0_1 = arith.constant 0 : index
    %0 = vector.load %arg1[%c0, %c0_0, %c0_1] : memref<1x8x32xf32, #tpu.memory_space<vmem>>, vector<1x8x32xf32>
    %1 = vector.shape_cast %0 : vector<1x8x32xf32> to vector<8x32xf32>
    %c0_2 = arith.constant 0 : index
    %c0_3 = arith.constant 0 : index
    %c0_4 = arith.constant 0 : index
    %2 = vector.load %arg2[%c0_2, %c0_3, %c0_4] : memref<1x6x32xf32, #tpu.memory_space<vmem>>, vector<1x6x32xf32>
    %3 = vector.shape_cast %2 : vector<1x6x32xf32> to vector<6x32xf32>
    %4 = tpu.iota {dimensions = array<i32: 0>} : vector<8x8xi32>
    %5 = tpu.iota {dimensions = array<i32: 1>} : vector<8x8xi32>
    %6 = arith.cmpi sgt, %5, %4 : vector<8x8xi32>
    %cst = arith.constant -1.000000e+30 : f32
    %cst_5 = arith.constant 0.000000e+00 : f32
    %7 = vector.broadcast %cst : f32 to vector<8x8xf32>
    %8 = vector.broadcast %cst_5 : f32 to vector<8x8xf32>
    %9 = arith.select %6, %7, %8 : vector<8x8xi1>, vector<8x8xf32>
    %c0_6 = arith.constant 0 : index
    %c0_7 = arith.constant 0 : index
    %c0_8 = arith.constant 0 : index
    %10 = vector.load %arg17[%c0_6, %c0_7, %c0_8] : memref<2x3x32xf32, #tpu.memory_space<vmem>>, vector<1x3x32xf32>
    %11 = vector.shape_cast %10 : vector<1x3x32xf32> to vector<3x32xf32>
    %c0_9 = arith.constant 0 : index
    %c0_10 = arith.constant 0 : index
    %c0_11 = arith.constant 0 : index
    %12 = vector.load %arg18[%c0_9, %c0_10, %c0_11] : memref<2x3x32xf32, #tpu.memory_space<vmem>>, vector<1x3x32xf32>
    %13 = vector.shape_cast %12 : vector<1x3x32xf32> to vector<3x32xf32>
    %c0_12 = arith.constant 0 : index
    %c0_13 = arith.constant 0 : index
    %c0_14 = arith.constant 0 : index
    %14 = vector.load %arg3[%c0_12, %c0_13, %c0_14] : memref<2x32x96xf32, #tpu.memory_space<vmem>>, vector<1x32x96xf32>
    %15 = vector.shape_cast %14 : vector<1x32x96xf32> to vector<32x96xf32>
    %cst_15 = arith.constant dense<0.000000e+00> : vector<8x96xf32>
    %16 = tpu.matmul %1, %15, %cst_15 {dimension_numbers = #tpu.dot_dimension_numbers<[1], [0], [0], [1], [0, 0, 1, 1], [], []>} : vector<8x32xf32>, vector<32x96xf32>, vector<8x96xf32> -> vector<8x96xf32>
    %c0_16 = arith.constant 0 : index
    %c0_17 = arith.constant 0 : index
    %c0_18 = arith.constant 0 : index
    %17 = vector.load %arg4[%c0_16, %c0_17, %c0_18] : memref<2x1x96xf32, #tpu.memory_space<vmem>>, vector<1x1x96xf32>
    %18 = vector.shape_cast %17 : vector<1x1x96xf32> to vector<1x96xf32>
    %19 = vector.broadcast %18 : vector<1x96xf32> to vector<8x96xf32>
    %20 = arith.addf %16, %19 : vector<8x96xf32>
    %21 = vector.extract_strided_slice %20 {offsets = [0, 0], sizes = [8, 32], strides = [1, 1]} : vector<8x96xf32> to vector<8x32xf32>
    %22 = vector.extract_strided_slice %20 {offsets = [0, 32], sizes = [8, 32], strides = [1, 1]} : vector<8x96xf32> to vector<8x32xf32>
    %23 = vector.extract_strided_slice %20 {offsets = [0, 64], sizes = [8, 32], strides = [1, 1]} : vector<8x96xf32> to vector<8x32xf32>
    %c0_19 = arith.constant 0 : index
    %c0_20 = arith.constant 0 : index
    %c0_21 = arith.constant 0 : index
    %24 = vector.load %arg5[%c0_19, %c0_20, %c0_21] : memref<2x32x32xf32, #tpu.memory_space<vmem>>, vector<1x32x32xf32>
    %25 = vector.shape_cast %24 : vector<1x32x32xf32> to vector<32x32xf32>
    %c0_22 = arith.constant 0 : index
    %c0_23 = arith.constant 0 : index
    %c0_24 = arith.constant 0 : index
    %26 = vector.load %arg6[%c0_22, %c0_23, %c0_24] : memref<2x1x32xf32, #tpu.memory_space<vmem>>, vector<1x1x32xf32>
    %27 = vector.shape_cast %26 : vector<1x1x32xf32> to vector<1x32xf32>
    %28 = vector.extract_strided_slice %21 {offsets = [0, 0], sizes = [8, 8], strides = [1, 1]} : vector<8x32xf32> to vector<8x8xf32>
    %29 = vector.extract_strided_slice %22 {offsets = [0, 0], sizes = [8, 8], strides = [1, 1]} : vector<8x32xf32> to vector<8x8xf32>
    %30 = vector.extract_strided_slice %23 {offsets = [0, 0], sizes = [8, 8], strides = [1, 1]} : vector<8x32xf32> to vector<8x8xf32>
    %cst_25 = arith.constant dense<0.000000e+00> : vector<8x8xf32>
    %31 = tpu.matmul %28, %29, %cst_25 {dimension_numbers = #tpu.dot_dimension_numbers<[1], [1], [0], [0], [0, 0, 1, 0], [], []>} : vector<8x8xf32>, vector<8x8xf32>, vector<8x8xf32> -> vector<8x8xf32>
    %32 = arith.addf %31, %9 : vector<8x8xf32>
    %cst_26 = arith.constant dense<0xFF800000> : vector<8xf32>
    %33 = vector.multi_reduction <maximumf>, %32, %cst_26 [1] : vector<8x8xf32> to vector<8xf32>
    %34 = vector.shape_cast %33 : vector<8xf32> to vector<8x1xf32>
    %35 = vector.broadcast %34 : vector<8x1xf32> to vector<8x8xf32>
    %36 = arith.subf %32, %35 : vector<8x8xf32>
    %37 = math.exp %36 : vector<8x8xf32>
    %cst_27 = arith.constant dense<0.000000e+00> : vector<8xf32>
    %38 = vector.multi_reduction <add>, %37, %cst_27 [1] : vector<8x8xf32> to vector<8xf32>
    %39 = vector.shape_cast %38 : vector<8xf32> to vector<8x1xf32>
    %40 = tpu.reciprocal %39 {approx = true} : vector<8x1xf32> -> vector<8x1xf32>
    %41 = vector.broadcast %40 : vector<8x1xf32> to vector<8x8xf32>
    %42 = arith.mulf %37, %41 : vector<8x8xf32>
    %cst_28 = arith.constant dense<0.000000e+00> : vector<8x8xf32>
    %43 = tpu.matmul %42, %30, %cst_28 {dimension_numbers = #tpu.dot_dimension_numbers<[1], [0], [0], [1], [0, 0, 1, 1], [], []>} : vector<8x8xf32>, vector<8x8xf32>, vector<8x8xf32> -> vector<8x8xf32>
    %44 = vector.extract_strided_slice %25 {offsets = [0, 0], sizes = [8, 32], strides = [1, 1]} : vector<32x32xf32> to vector<8x32xf32>
    %cst_29 = arith.constant dense<0.000000e+00> : vector<8x32xf32>
    %45 = tpu.matmul %43, %44, %cst_29 {dimension_numbers = #tpu.dot_dimension_numbers<[1], [0], [0], [1], [0, 0, 1, 1], [], []>} : vector<8x8xf32>, vector<8x32xf32>, vector<8x32xf32> -> vector<8x32xf32>
    %46 = vector.extract_strided_slice %21 {offsets = [0, 8], sizes = [8, 8], strides = [1, 1]} : vector<8x32xf32> to vector<8x8xf32>
    %47 = vector.extract_strided_slice %22 {offsets = [0, 8], sizes = [8, 8], strides = [1, 1]} : vector<8x32xf32> to vector<8x8xf32>
    %48 = vector.extract_strided_slice %23 {offsets = [0, 8], sizes = [8, 8], strides = [1, 1]} : vector<8x32xf32> to vector<8x8xf32>
    %cst_30 = arith.constant dense<0.000000e+00> : vector<8x8xf32>
    %49 = tpu.matmul %46, %47, %cst_30 {dimension_numbers = #tpu.dot_dimension_numbers<[1], [1], [0], [0], [0, 0, 1, 0], [], []>} : vector<8x8xf32>, vector<8x8xf32>, vector<8x8xf32> -> vector<8x8xf32>
    %50 = arith.addf %49, %9 : vector<8x8xf32>
    %cst_31 = arith.constant dense<0xFF800000> : vector<8xf32>
    %51 = vector.multi_reduction <maximumf>, %50, %cst_31 [1] : vector<8x8xf32> to vector<8xf32>
    %52 = vector.shape_cast %51 : vector<8xf32> to vector<8x1xf32>
    %53 = vector.broadcast %52 : vector<8x1xf32> to vector<8x8xf32>
    %54 = arith.subf %50, %53 : vector<8x8xf32>
    %55 = math.exp %54 : vector<8x8xf32>
    %cst_32 = arith.constant dense<0.000000e+00> : vector<8xf32>
    %56 = vector.multi_reduction <add>, %55, %cst_32 [1] : vector<8x8xf32> to vector<8xf32>
    %57 = vector.shape_cast %56 : vector<8xf32> to vector<8x1xf32>
    %58 = tpu.reciprocal %57 {approx = true} : vector<8x1xf32> -> vector<8x1xf32>
    %59 = vector.broadcast %58 : vector<8x1xf32> to vector<8x8xf32>
    %60 = arith.mulf %55, %59 : vector<8x8xf32>
    %cst_33 = arith.constant dense<0.000000e+00> : vector<8x8xf32>
    %61 = tpu.matmul %60, %48, %cst_33 {dimension_numbers = #tpu.dot_dimension_numbers<[1], [0], [0], [1], [0, 0, 1, 1], [], []>} : vector<8x8xf32>, vector<8x8xf32>, vector<8x8xf32> -> vector<8x8xf32>
    %62 = vector.extract_strided_slice %25 {offsets = [8, 0], sizes = [8, 32], strides = [1, 1]} : vector<32x32xf32> to vector<8x32xf32>
    %cst_34 = arith.constant dense<0.000000e+00> : vector<8x32xf32>
    %63 = tpu.matmul %61, %62, %cst_34 {dimension_numbers = #tpu.dot_dimension_numbers<[1], [0], [0], [1], [0, 0, 1, 1], [], []>} : vector<8x8xf32>, vector<8x32xf32>, vector<8x32xf32> -> vector<8x32xf32>
    %64 = arith.addf %45, %63 : vector<8x32xf32>
    %65 = vector.extract_strided_slice %21 {offsets = [0, 16], sizes = [8, 8], strides = [1, 1]} : vector<8x32xf32> to vector<8x8xf32>
    %66 = vector.extract_strided_slice %22 {offsets = [0, 16], sizes = [8, 8], strides = [1, 1]} : vector<8x32xf32> to vector<8x8xf32>
    %67 = vector.extract_strided_slice %23 {offsets = [0, 16], sizes = [8, 8], strides = [1, 1]} : vector<8x32xf32> to vector<8x8xf32>
    %cst_35 = arith.constant dense<0.000000e+00> : vector<8x8xf32>
    %68 = tpu.matmul %65, %66, %cst_35 {dimension_numbers = #tpu.dot_dimension_numbers<[1], [1], [0], [0], [0, 0, 1, 0], [], []>} : vector<8x8xf32>, vector<8x8xf32>, vector<8x8xf32> -> vector<8x8xf32>
    %69 = arith.addf %68, %9 : vector<8x8xf32>
    %cst_36 = arith.constant dense<0xFF800000> : vector<8xf32>
    %70 = vector.multi_reduction <maximumf>, %69, %cst_36 [1] : vector<8x8xf32> to vector<8xf32>
    %71 = vector.shape_cast %70 : vector<8xf32> to vector<8x1xf32>
    %72 = vector.broadcast %71 : vector<8x1xf32> to vector<8x8xf32>
    %73 = arith.subf %69, %72 : vector<8x8xf32>
    %74 = math.exp %73 : vector<8x8xf32>
    %cst_37 = arith.constant dense<0.000000e+00> : vector<8xf32>
    %75 = vector.multi_reduction <add>, %74, %cst_37 [1] : vector<8x8xf32> to vector<8xf32>
    %76 = vector.shape_cast %75 : vector<8xf32> to vector<8x1xf32>
    %77 = tpu.reciprocal %76 {approx = true} : vector<8x1xf32> -> vector<8x1xf32>
    %78 = vector.broadcast %77 : vector<8x1xf32> to vector<8x8xf32>
    %79 = arith.mulf %74, %78 : vector<8x8xf32>
    %cst_38 = arith.constant dense<0.000000e+00> : vector<8x8xf32>
    %80 = tpu.matmul %79, %67, %cst_38 {dimension_numbers = #tpu.dot_dimension_numbers<[1], [0], [0], [1], [0, 0, 1, 1], [], []>} : vector<8x8xf32>, vector<8x8xf32>, vector<8x8xf32> -> vector<8x8xf32>
    %81 = vector.extract_strided_slice %25 {offsets = [16, 0], sizes = [8, 32], strides = [1, 1]} : vector<32x32xf32> to vector<8x32xf32>
    %cst_39 = arith.constant dense<0.000000e+00> : vector<8x32xf32>
    %82 = tpu.matmul %80, %81, %cst_39 {dimension_numbers = #tpu.dot_dimension_numbers<[1], [0], [0], [1], [0, 0, 1, 1], [], []>} : vector<8x8xf32>, vector<8x32xf32>, vector<8x32xf32> -> vector<8x32xf32>
    %83 = arith.addf %64, %82 : vector<8x32xf32>
    %84 = vector.extract_strided_slice %21 {offsets = [0, 24], sizes = [8, 8], strides = [1, 1]} : vector<8x32xf32> to vector<8x8xf32>
    %85 = vector.extract_strided_slice %22 {offsets = [0, 24], sizes = [8, 8], strides = [1, 1]} : vector<8x32xf32> to vector<8x8xf32>
    %86 = vector.extract_strided_slice %23 {offsets = [0, 24], sizes = [8, 8], strides = [1, 1]} : vector<8x32xf32> to vector<8x8xf32>
    %cst_40 = arith.constant dense<0.000000e+00> : vector<8x8xf32>
    %87 = tpu.matmul %84, %85, %cst_40 {dimension_numbers = #tpu.dot_dimension_numbers<[1], [1], [0], [0], [0, 0, 1, 0], [], []>} : vector<8x8xf32>, vector<8x8xf32>, vector<8x8xf32> -> vector<8x8xf32>
    %88 = arith.addf %87, %9 : vector<8x8xf32>
    %cst_41 = arith.constant dense<0xFF800000> : vector<8xf32>
    %89 = vector.multi_reduction <maximumf>, %88, %cst_41 [1] : vector<8x8xf32> to vector<8xf32>
    %90 = vector.shape_cast %89 : vector<8xf32> to vector<8x1xf32>
    %91 = vector.broadcast %90 : vector<8x1xf32> to vector<8x8xf32>
    %92 = arith.subf %88, %91 : vector<8x8xf32>
    %93 = math.exp %92 : vector<8x8xf32>
    %cst_42 = arith.constant dense<0.000000e+00> : vector<8xf32>
    %94 = vector.multi_reduction <add>, %93, %cst_42 [1] : vector<8x8xf32> to vector<8xf32>
    %95 = vector.shape_cast %94 : vector<8xf32> to vector<8x1xf32>
    %96 = tpu.reciprocal %95 {approx = true} : vector<8x1xf32> -> vector<8x1xf32>
    %97 = vector.broadcast %96 : vector<8x1xf32> to vector<8x8xf32>
    %98 = arith.mulf %93, %97 : vector<8x8xf32>
    %cst_43 = arith.constant dense<0.000000e+00> : vector<8x8xf32>
    %99 = tpu.matmul %98, %86, %cst_43 {dimension_numbers = #tpu.dot_dimension_numbers<[1], [0], [0], [1], [0, 0, 1, 1], [], []>} : vector<8x8xf32>, vector<8x8xf32>, vector<8x8xf32> -> vector<8x8xf32>
    %100 = vector.extract_strided_slice %25 {offsets = [24, 0], sizes = [8, 32], strides = [1, 1]} : vector<32x32xf32> to vector<8x32xf32>
    %cst_44 = arith.constant dense<0.000000e+00> : vector<8x32xf32>
    %101 = tpu.matmul %99, %100, %cst_44 {dimension_numbers = #tpu.dot_dimension_numbers<[1], [0], [0], [1], [0, 0, 1, 1], [], []>} : vector<8x8xf32>, vector<8x32xf32>, vector<8x32xf32> -> vector<8x32xf32>
    %102 = arith.addf %83, %101 : vector<8x32xf32>
    %103 = vector.broadcast %27 : vector<1x32xf32> to vector<8x32xf32>
    %104 = arith.addf %102, %103 : vector<8x32xf32>
    %105 = arith.addf %1, %104 : vector<8x32xf32>
    %106 = vector.extract_strided_slice %11 {offsets = [0, 0], sizes = [1, 32], strides = [1, 1]} : vector<3x32xf32> to vector<1x32xf32>
    %107 = vector.extract_strided_slice %13 {offsets = [0, 0], sizes = [1, 32], strides = [1, 1]} : vector<3x32xf32> to vector<1x32xf32>
    %cst_45 = arith.constant dense<0.000000e+00> : vector<8xf32>
    %108 = vector.multi_reduction <add>, %105, %cst_45 [1] : vector<8x32xf32> to vector<8xf32>
    %109 = vector.shape_cast %108 : vector<8xf32> to vector<8x1xf32>
    %cst_46 = arith.constant 3.200000e+01 : f32
    %110 = vector.broadcast %cst_46 : f32 to vector<8x1xf32>
    %111 = arith.divf %109, %110 : vector<8x1xf32>
    %112 = vector.broadcast %111 : vector<8x1xf32> to vector<8x32xf32>
    %113 = arith.subf %105, %112 : vector<8x32xf32>
    %114 = vector.broadcast %111 : vector<8x1xf32> to vector<8x32xf32>
    %115 = arith.subf %105, %114 : vector<8x32xf32>
    %116 = arith.mulf %113, %115 : vector<8x32xf32>
    %cst_47 = arith.constant dense<0.000000e+00> : vector<8xf32>
    %117 = vector.multi_reduction <add>, %116, %cst_47 [1] : vector<8x32xf32> to vector<8xf32>
    %118 = vector.shape_cast %117 : vector<8xf32> to vector<8x1xf32>
    %cst_48 = arith.constant 3.200000e+01 : f32
    %119 = vector.broadcast %cst_48 : f32 to vector<8x1xf32>
    %120 = arith.divf %118, %119 : vector<8x1xf32>
    %121 = vector.broadcast %111 : vector<8x1xf32> to vector<8x32xf32>
    %122 = arith.subf %105, %121 : vector<8x32xf32>
    %cst_49 = arith.constant 9.99999974E-6 : f32
    %123 = vector.broadcast %cst_49 : f32 to vector<8x1xf32>
    %124 = arith.addf %120, %123 : vector<8x1xf32>
    %125 = math.rsqrt %124 : vector<8x1xf32>
    %126 = vector.broadcast %125 : vector<8x1xf32> to vector<8x32xf32>
    %127 = arith.mulf %122, %126 : vector<8x32xf32>
    %128 = vector.broadcast %106 : vector<1x32xf32> to vector<8x32xf32>
    %129 = arith.mulf %127, %128 : vector<8x32xf32>
    %130 = vector.broadcast %107 : vector<1x32xf32> to vector<8x32xf32>
    %131 = arith.addf %129, %130 : vector<8x32xf32>
    %c0_50 = arith.constant 0 : index
    %c0_51 = arith.constant 0 : index
    %c0_52 = arith.constant 0 : index
    %132 = vector.load %arg7[%c0_50, %c0_51, %c0_52] : memref<2x32x32xf32, #tpu.memory_space<vmem>>, vector<1x32x32xf32>
    %133 = vector.shape_cast %132 : vector<1x32x32xf32> to vector<32x32xf32>
    %cst_53 = arith.constant dense<0.000000e+00> : vector<8x32xf32>
    %134 = tpu.matmul %131, %133, %cst_53 {dimension_numbers = #tpu.dot_dimension_numbers<[1], [0], [0], [1], [0, 0, 1, 1], [], []>} : vector<8x32xf32>, vector<32x32xf32>, vector<8x32xf32> -> vector<8x32xf32>
    %c0_54 = arith.constant 0 : index
    %c0_55 = arith.constant 0 : index
    %c0_56 = arith.constant 0 : index
    %135 = vector.load %arg8[%c0_54, %c0_55, %c0_56] : memref<2x1x32xf32, #tpu.memory_space<vmem>>, vector<1x1x32xf32>
    %136 = vector.shape_cast %135 : vector<1x1x32xf32> to vector<1x32xf32>
    %137 = vector.broadcast %136 : vector<1x32xf32> to vector<8x32xf32>
    %138 = arith.addf %134, %137 : vector<8x32xf32>
    %c0_57 = arith.constant 0 : index
    %c0_58 = arith.constant 0 : index
    %c0_59 = arith.constant 0 : index
    %139 = vector.load %arg9[%c0_57, %c0_58, %c0_59] : memref<2x32x64xf32, #tpu.memory_space<vmem>>, vector<1x32x64xf32>
    %140 = vector.shape_cast %139 : vector<1x32x64xf32> to vector<32x64xf32>
    %cst_60 = arith.constant dense<0.000000e+00> : vector<6x64xf32>
    %141 = tpu.matmul %3, %140, %cst_60 {dimension_numbers = #tpu.dot_dimension_numbers<[1], [0], [0], [1], [0, 0, 1, 1], [], []>} : vector<6x32xf32>, vector<32x64xf32>, vector<6x64xf32> -> vector<6x64xf32>
    %c0_61 = arith.constant 0 : index
    %c0_62 = arith.constant 0 : index
    %c0_63 = arith.constant 0 : index
    %142 = vector.load %arg10[%c0_61, %c0_62, %c0_63] : memref<2x1x64xf32, #tpu.memory_space<vmem>>, vector<1x1x64xf32>
    %143 = vector.shape_cast %142 : vector<1x1x64xf32> to vector<1x64xf32>
    %144 = vector.broadcast %143 : vector<1x64xf32> to vector<6x64xf32>
    %145 = arith.addf %141, %144 : vector<6x64xf32>
    %146 = vector.extract_strided_slice %145 {offsets = [0, 0], sizes = [6, 32], strides = [1, 1]} : vector<6x64xf32> to vector<6x32xf32>
    %147 = vector.extract_strided_slice %145 {offsets = [0, 32], sizes = [6, 32], strides = [1, 1]} : vector<6x64xf32> to vector<6x32xf32>
    %c0_64 = arith.constant 0 : index
    %c0_65 = arith.constant 0 : index
    %c0_66 = arith.constant 0 : index
    %148 = vector.load %arg11[%c0_64, %c0_65, %c0_66] : memref<2x32x32xf32, #tpu.memory_space<vmem>>, vector<1x32x32xf32>
    %149 = vector.shape_cast %148 : vector<1x32x32xf32> to vector<32x32xf32>
    %c0_67 = arith.constant 0 : index
    %c0_68 = arith.constant 0 : index
    %c0_69 = arith.constant 0 : index
    %150 = vector.load %arg12[%c0_67, %c0_68, %c0_69] : memref<2x1x32xf32, #tpu.memory_space<vmem>>, vector<1x1x32xf32>
    %151 = vector.shape_cast %150 : vector<1x1x32xf32> to vector<1x32xf32>
    %152 = vector.extract_strided_slice %138 {offsets = [0, 0], sizes = [8, 8], strides = [1, 1]} : vector<8x32xf32> to vector<8x8xf32>
    %153 = vector.extract_strided_slice %146 {offsets = [0, 0], sizes = [6, 8], strides = [1, 1]} : vector<6x32xf32> to vector<6x8xf32>
    %154 = vector.extract_strided_slice %147 {offsets = [0, 0], sizes = [6, 8], strides = [1, 1]} : vector<6x32xf32> to vector<6x8xf32>
    %cst_70 = arith.constant dense<0.000000e+00> : vector<8x6xf32>
    %155 = tpu.matmul %152, %153, %cst_70 {dimension_numbers = #tpu.dot_dimension_numbers<[1], [1], [0], [0], [0, 0, 1, 0], [], []>} : vector<8x8xf32>, vector<6x8xf32>, vector<8x6xf32> -> vector<8x6xf32>
    %cst_71 = arith.constant dense<0xFF800000> : vector<8xf32>
    %156 = vector.multi_reduction <maximumf>, %155, %cst_71 [1] : vector<8x6xf32> to vector<8xf32>
    %157 = vector.shape_cast %156 : vector<8xf32> to vector<8x1xf32>
    %158 = vector.broadcast %157 : vector<8x1xf32> to vector<8x6xf32>
    %159 = arith.subf %155, %158 : vector<8x6xf32>
    %160 = math.exp %159 : vector<8x6xf32>
    %cst_72 = arith.constant dense<0.000000e+00> : vector<8xf32>
    %161 = vector.multi_reduction <add>, %160, %cst_72 [1] : vector<8x6xf32> to vector<8xf32>
    %162 = vector.shape_cast %161 : vector<8xf32> to vector<8x1xf32>
    %163 = tpu.reciprocal %162 {approx = true} : vector<8x1xf32> -> vector<8x1xf32>
    %164 = vector.broadcast %163 : vector<8x1xf32> to vector<8x6xf32>
    %165 = arith.mulf %160, %164 : vector<8x6xf32>
    %cst_73 = arith.constant dense<0.000000e+00> : vector<8x8xf32>
    %166 = tpu.matmul %165, %154, %cst_73 {dimension_numbers = #tpu.dot_dimension_numbers<[1], [0], [0], [1], [0, 0, 1, 1], [], []>} : vector<8x6xf32>, vector<6x8xf32>, vector<8x8xf32> -> vector<8x8xf32>
    %167 = vector.extract_strided_slice %149 {offsets = [0, 0], sizes = [8, 32], strides = [1, 1]} : vector<32x32xf32> to vector<8x32xf32>
    %cst_74 = arith.constant dense<0.000000e+00> : vector<8x32xf32>
    %168 = tpu.matmul %166, %167, %cst_74 {dimension_numbers = #tpu.dot_dimension_numbers<[1], [0], [0], [1], [0, 0, 1, 1], [], []>} : vector<8x8xf32>, vector<8x32xf32>, vector<8x32xf32> -> vector<8x32xf32>
    %169 = vector.extract_strided_slice %138 {offsets = [0, 8], sizes = [8, 8], strides = [1, 1]} : vector<8x32xf32> to vector<8x8xf32>
    %170 = vector.extract_strided_slice %146 {offsets = [0, 8], sizes = [6, 8], strides = [1, 1]} : vector<6x32xf32> to vector<6x8xf32>
    %171 = vector.extract_strided_slice %147 {offsets = [0, 8], sizes = [6, 8], strides = [1, 1]} : vector<6x32xf32> to vector<6x8xf32>
    %cst_75 = arith.constant dense<0.000000e+00> : vector<8x6xf32>
    %172 = tpu.matmul %169, %170, %cst_75 {dimension_numbers = #tpu.dot_dimension_numbers<[1], [1], [0], [0], [0, 0, 1, 0], [], []>} : vector<8x8xf32>, vector<6x8xf32>, vector<8x6xf32> -> vector<8x6xf32>
    %cst_76 = arith.constant dense<0xFF800000> : vector<8xf32>
    %173 = vector.multi_reduction <maximumf>, %172, %cst_76 [1] : vector<8x6xf32> to vector<8xf32>
    %174 = vector.shape_cast %173 : vector<8xf32> to vector<8x1xf32>
    %175 = vector.broadcast %174 : vector<8x1xf32> to vector<8x6xf32>
    %176 = arith.subf %172, %175 : vector<8x6xf32>
    %177 = math.exp %176 : vector<8x6xf32>
    %cst_77 = arith.constant dense<0.000000e+00> : vector<8xf32>
    %178 = vector.multi_reduction <add>, %177, %cst_77 [1] : vector<8x6xf32> to vector<8xf32>
    %179 = vector.shape_cast %178 : vector<8xf32> to vector<8x1xf32>
    %180 = tpu.reciprocal %179 {approx = true} : vector<8x1xf32> -> vector<8x1xf32>
    %181 = vector.broadcast %180 : vector<8x1xf32> to vector<8x6xf32>
    %182 = arith.mulf %177, %181 : vector<8x6xf32>
    %cst_78 = arith.constant dense<0.000000e+00> : vector<8x8xf32>
    %183 = tpu.matmul %182, %171, %cst_78 {dimension_numbers = #tpu.dot_dimension_numbers<[1], [0], [0], [1], [0, 0, 1, 1], [], []>} : vector<8x6xf32>, vector<6x8xf32>, vector<8x8xf32> -> vector<8x8xf32>
    %184 = vector.extract_strided_slice %149 {offsets = [8, 0], sizes = [8, 32], strides = [1, 1]} : vector<32x32xf32> to vector<8x32xf32>
    %cst_79 = arith.constant dense<0.000000e+00> : vector<8x32xf32>
    %185 = tpu.matmul %183, %184, %cst_79 {dimension_numbers = #tpu.dot_dimension_numbers<[1], [0], [0], [1], [0, 0, 1, 1], [], []>} : vector<8x8xf32>, vector<8x32xf32>, vector<8x32xf32> -> vector<8x32xf32>
    %186 = arith.addf %168, %185 : vector<8x32xf32>
    %187 = vector.extract_strided_slice %138 {offsets = [0, 16], sizes = [8, 8], strides = [1, 1]} : vector<8x32xf32> to vector<8x8xf32>
    %188 = vector.extract_strided_slice %146 {offsets = [0, 16], sizes = [6, 8], strides = [1, 1]} : vector<6x32xf32> to vector<6x8xf32>
    %189 = vector.extract_strided_slice %147 {offsets = [0, 16], sizes = [6, 8], strides = [1, 1]} : vector<6x32xf32> to vector<6x8xf32>
    %cst_80 = arith.constant dense<0.000000e+00> : vector<8x6xf32>
    %190 = tpu.matmul %187, %188, %cst_80 {dimension_numbers = #tpu.dot_dimension_numbers<[1], [1], [0], [0], [0, 0, 1, 0], [], []>} : vector<8x8xf32>, vector<6x8xf32>, vector<8x6xf32> -> vector<8x6xf32>
    %cst_81 = arith.constant dense<0xFF800000> : vector<8xf32>
    %191 = vector.multi_reduction <maximumf>, %190, %cst_81 [1] : vector<8x6xf32> to vector<8xf32>
    %192 = vector.shape_cast %191 : vector<8xf32> to vector<8x1xf32>
    %193 = vector.broadcast %192 : vector<8x1xf32> to vector<8x6xf32>
    %194 = arith.subf %190, %193 : vector<8x6xf32>
    %195 = math.exp %194 : vector<8x6xf32>
    %cst_82 = arith.constant dense<0.000000e+00> : vector<8xf32>
    %196 = vector.multi_reduction <add>, %195, %cst_82 [1] : vector<8x6xf32> to vector<8xf32>
    %197 = vector.shape_cast %196 : vector<8xf32> to vector<8x1xf32>
    %198 = tpu.reciprocal %197 {approx = true} : vector<8x1xf32> -> vector<8x1xf32>
    %199 = vector.broadcast %198 : vector<8x1xf32> to vector<8x6xf32>
    %200 = arith.mulf %195, %199 : vector<8x6xf32>
    %cst_83 = arith.constant dense<0.000000e+00> : vector<8x8xf32>
    %201 = tpu.matmul %200, %189, %cst_83 {dimension_numbers = #tpu.dot_dimension_numbers<[1], [0], [0], [1], [0, 0, 1, 1], [], []>} : vector<8x6xf32>, vector<6x8xf32>, vector<8x8xf32> -> vector<8x8xf32>
    %202 = vector.extract_strided_slice %149 {offsets = [16, 0], sizes = [8, 32], strides = [1, 1]} : vector<32x32xf32> to vector<8x32xf32>
    %cst_84 = arith.constant dense<0.000000e+00> : vector<8x32xf32>
    %203 = tpu.matmul %201, %202, %cst_84 {dimension_numbers = #tpu.dot_dimension_numbers<[1], [0], [0], [1], [0, 0, 1, 1], [], []>} : vector<8x8xf32>, vector<8x32xf32>, vector<8x32xf32> -> vector<8x32xf32>
    %204 = arith.addf %186, %203 : vector<8x32xf32>
    %205 = vector.extract_strided_slice %138 {offsets = [0, 24], sizes = [8, 8], strides = [1, 1]} : vector<8x32xf32> to vector<8x8xf32>
    %206 = vector.extract_strided_slice %146 {offsets = [0, 24], sizes = [6, 8], strides = [1, 1]} : vector<6x32xf32> to vector<6x8xf32>
    %207 = vector.extract_strided_slice %147 {offsets = [0, 24], sizes = [6, 8], strides = [1, 1]} : vector<6x32xf32> to vector<6x8xf32>
    %cst_85 = arith.constant dense<0.000000e+00> : vector<8x6xf32>
    %208 = tpu.matmul %205, %206, %cst_85 {dimension_numbers = #tpu.dot_dimension_numbers<[1], [1], [0], [0], [0, 0, 1, 0], [], []>} : vector<8x8xf32>, vector<6x8xf32>, vector<8x6xf32> -> vector<8x6xf32>
    %cst_86 = arith.constant dense<0xFF800000> : vector<8xf32>
    %209 = vector.multi_reduction <maximumf>, %208, %cst_86 [1] : vector<8x6xf32> to vector<8xf32>
    %210 = vector.shape_cast %209 : vector<8xf32> to vector<8x1xf32>
    %211 = vector.broadcast %210 : vector<8x1xf32> to vector<8x6xf32>
    %212 = arith.subf %208, %211 : vector<8x6xf32>
    %213 = math.exp %212 : vector<8x6xf32>
    %cst_87 = arith.constant dense<0.000000e+00> : vector<8xf32>
    %214 = vector.multi_reduction <add>, %213, %cst_87 [1] : vector<8x6xf32> to vector<8xf32>
    %215 = vector.shape_cast %214 : vector<8xf32> to vector<8x1xf32>
    %216 = tpu.reciprocal %215 {approx = true} : vector<8x1xf32> -> vector<8x1xf32>
    %217 = vector.broadcast %216 : vector<8x1xf32> to vector<8x6xf32>
    %218 = arith.mulf %213, %217 : vector<8x6xf32>
    %cst_88 = arith.constant dense<0.000000e+00> : vector<8x8xf32>
    %219 = tpu.matmul %218, %207, %cst_88 {dimension_numbers = #tpu.dot_dimension_numbers<[1], [0], [0], [1], [0, 0, 1, 1], [], []>} : vector<8x6xf32>, vector<6x8xf32>, vector<8x8xf32> -> vector<8x8xf32>
    %220 = vector.extract_strided_slice %149 {offsets = [24, 0], sizes = [8, 32], strides = [1, 1]} : vector<32x32xf32> to vector<8x32xf32>
    %cst_89 = arith.constant dense<0.000000e+00> : vector<8x32xf32>
    %221 = tpu.matmul %219, %220, %cst_89 {dimension_numbers = #tpu.dot_dimension_numbers<[1], [0], [0], [1], [0, 0, 1, 1], [], []>} : vector<8x8xf32>, vector<8x32xf32>, vector<8x32xf32> -> vector<8x32xf32>
    %222 = arith.addf %204, %221 : vector<8x32xf32>
    %223 = vector.broadcast %151 : vector<1x32xf32> to vector<8x32xf32>
    %224 = arith.addf %222, %223 : vector<8x32xf32>
    %225 = arith.addf %131, %224 : vector<8x32xf32>
    %226 = vector.extract_strided_slice %11 {offsets = [1, 0], sizes = [1, 32], strides = [1, 1]} : vector<3x32xf32> to vector<1x32xf32>
    %227 = vector.extract_strided_slice %13 {offsets = [1, 0], sizes = [1, 32], strides = [1, 1]} : vector<3x32xf32> to vector<1x32xf32>
    %cst_90 = arith.constant dense<0.000000e+00> : vector<8xf32>
    %228 = vector.multi_reduction <add>, %225, %cst_90 [1] : vector<8x32xf32> to vector<8xf32>
    %229 = vector.shape_cast %228 : vector<8xf32> to vector<8x1xf32>
    %cst_91 = arith.constant 3.200000e+01 : f32
    %230 = vector.broadcast %cst_91 : f32 to vector<8x1xf32>
    %231 = arith.divf %229, %230 : vector<8x1xf32>
    %232 = vector.broadcast %231 : vector<8x1xf32> to vector<8x32xf32>
    %233 = arith.subf %225, %232 : vector<8x32xf32>
    %234 = vector.broadcast %231 : vector<8x1xf32> to vector<8x32xf32>
    %235 = arith.subf %225, %234 : vector<8x32xf32>
    %236 = arith.mulf %233, %235 : vector<8x32xf32>
    %cst_92 = arith.constant dense<0.000000e+00> : vector<8xf32>
    %237 = vector.multi_reduction <add>, %236, %cst_92 [1] : vector<8x32xf32> to vector<8xf32>
    %238 = vector.shape_cast %237 : vector<8xf32> to vector<8x1xf32>
    %cst_93 = arith.constant 3.200000e+01 : f32
    %239 = vector.broadcast %cst_93 : f32 to vector<8x1xf32>
    %240 = arith.divf %238, %239 : vector<8x1xf32>
    %241 = vector.broadcast %231 : vector<8x1xf32> to vector<8x32xf32>
    %242 = arith.subf %225, %241 : vector<8x32xf32>
    %cst_94 = arith.constant 9.99999974E-6 : f32
    %243 = vector.broadcast %cst_94 : f32 to vector<8x1xf32>
    %244 = arith.addf %240, %243 : vector<8x1xf32>
    %245 = math.rsqrt %244 : vector<8x1xf32>
    %246 = vector.broadcast %245 : vector<8x1xf32> to vector<8x32xf32>
    %247 = arith.mulf %242, %246 : vector<8x32xf32>
    %248 = vector.broadcast %226 : vector<1x32xf32> to vector<8x32xf32>
    %249 = arith.mulf %247, %248 : vector<8x32xf32>
    %250 = vector.broadcast %227 : vector<1x32xf32> to vector<8x32xf32>
    %251 = arith.addf %249, %250 : vector<8x32xf32>
    %c0_95 = arith.constant 0 : index
    %c0_96 = arith.constant 0 : index
    %c0_97 = arith.constant 0 : index
    %252 = vector.load %arg13[%c0_95, %c0_96, %c0_97] : memref<2x32x64xf32, #tpu.memory_space<vmem>>, vector<1x32x64xf32>
    %253 = vector.shape_cast %252 : vector<1x32x64xf32> to vector<32x64xf32>
    %cst_98 = arith.constant dense<0.000000e+00> : vector<8x64xf32>
    %254 = tpu.matmul %251, %253, %cst_98 {dimension_numbers = #tpu.dot_dimension_numbers<[1], [0], [0], [1], [0, 0, 1, 1], [], []>} : vector<8x32xf32>, vector<32x64xf32>, vector<8x64xf32> -> vector<8x64xf32>
    %c0_99 = arith.constant 0 : index
    %c0_100 = arith.constant 0 : index
    %c0_101 = arith.constant 0 : index
    %255 = vector.load %arg14[%c0_99, %c0_100, %c0_101] : memref<2x1x64xf32, #tpu.memory_space<vmem>>, vector<1x1x64xf32>
    %256 = vector.shape_cast %255 : vector<1x1x64xf32> to vector<1x64xf32>
    %257 = vector.broadcast %256 : vector<1x64xf32> to vector<8x64xf32>
    %258 = arith.addf %254, %257 : vector<8x64xf32>
    %cst_102 = arith.constant 0.000000e+00 : f32
    %259 = vector.broadcast %cst_102 : f32 to vector<8x64xf32>
    %260 = arith.maximumf %258, %259 : vector<8x64xf32>
    %c0_103 = arith.constant 0 : index
    %c0_104 = arith.constant 0 : index
    %c0_105 = arith.constant 0 : index
    %261 = vector.load %arg15[%c0_103, %c0_104, %c0_105] : memref<2x64x32xf32, #tpu.memory_space<vmem>>, vector<1x64x32xf32>
    %262 = vector.shape_cast %261 : vector<1x64x32xf32> to vector<64x32xf32>
    %cst_106 = arith.constant dense<0.000000e+00> : vector<8x32xf32>
    %263 = tpu.matmul %260, %262, %cst_106 {dimension_numbers = #tpu.dot_dimension_numbers<[1], [0], [0], [1], [0, 0, 1, 1], [], []>} : vector<8x64xf32>, vector<64x32xf32>, vector<8x32xf32> -> vector<8x32xf32>
    %c0_107 = arith.constant 0 : index
    %c0_108 = arith.constant 0 : index
    %c0_109 = arith.constant 0 : index
    %264 = vector.load %arg16[%c0_107, %c0_108, %c0_109] : memref<2x1x32xf32, #tpu.memory_space<vmem>>, vector<1x1x32xf32>
    %265 = vector.shape_cast %264 : vector<1x1x32xf32> to vector<1x32xf32>
    %266 = vector.broadcast %265 : vector<1x32xf32> to vector<8x32xf32>
    %267 = arith.addf %263, %266 : vector<8x32xf32>
    %268 = arith.addf %251, %267 : vector<8x32xf32>
    %269 = vector.extract_strided_slice %11 {offsets = [2, 0], sizes = [1, 32], strides = [1, 1]} : vector<3x32xf32> to vector<1x32xf32>
    %270 = vector.extract_strided_slice %13 {offsets = [2, 0], sizes = [1, 32], strides = [1, 1]} : vector<3x32xf32> to vector<1x32xf32>
    %cst_110 = arith.constant dense<0.000000e+00> : vector<8xf32>
    %271 = vector.multi_reduction <add>, %268, %cst_110 [1] : vector<8x32xf32> to vector<8xf32>
    %272 = vector.shape_cast %271 : vector<8xf32> to vector<8x1xf32>
    %cst_111 = arith.constant 3.200000e+01 : f32
    %273 = vector.broadcast %cst_111 : f32 to vector<8x1xf32>
    %274 = arith.divf %272, %273 : vector<8x1xf32>
    %275 = vector.broadcast %274 : vector<8x1xf32> to vector<8x32xf32>
    %276 = arith.subf %268, %275 : vector<8x32xf32>
    %277 = vector.broadcast %274 : vector<8x1xf32> to vector<8x32xf32>
    %278 = arith.subf %268, %277 : vector<8x32xf32>
    %279 = arith.mulf %276, %278 : vector<8x32xf32>
    %cst_112 = arith.constant dense<0.000000e+00> : vector<8xf32>
    %280 = vector.multi_reduction <add>, %279, %cst_112 [1] : vector<8x32xf32> to vector<8xf32>
    %281 = vector.shape_cast %280 : vector<8xf32> to vector<8x1xf32>
    %cst_113 = arith.constant 3.200000e+01 : f32
    %282 = vector.broadcast %cst_113 : f32 to vector<8x1xf32>
    %283 = arith.divf %281, %282 : vector<8x1xf32>
    %284 = vector.broadcast %274 : vector<8x1xf32> to vector<8x32xf32>
    %285 = arith.subf %268, %284 : vector<8x32xf32>
    %cst_114 = arith.constant 9.99999974E-6 : f32
    %286 = vector.broadcast %cst_114 : f32 to vector<8x1xf32>
    %287 = arith.addf %283, %286 : vector<8x1xf32>
    %288 = math.rsqrt %287 : vector<8x1xf32>
    %289 = vector.broadcast %288 : vector<8x1xf32> to vector<8x32xf32>
    %290 = arith.mulf %285, %289 : vector<8x32xf32>
    %291 = vector.broadcast %269 : vector<1x32xf32> to vector<8x32xf32>
    %292 = arith.mulf %290, %291 : vector<8x32xf32>
    %293 = vector.broadcast %270 : vector<1x32xf32> to vector<8x32xf32>
    %294 = arith.addf %292, %293 : vector<8x32xf32>
    %c1 = arith.constant 1 : index
    %c0_115 = arith.constant 0 : index
    %c0_116 = arith.constant 0 : index
    %295 = vector.load %arg17[%c1, %c0_115, %c0_116] : memref<2x3x32xf32, #tpu.memory_space<vmem>>, vector<1x3x32xf32>
    %296 = vector.shape_cast %295 : vector<1x3x32xf32> to vector<3x32xf32>
    %c1_117 = arith.constant 1 : index
    %c0_118 = arith.constant 0 : index
    %c0_119 = arith.constant 0 : index
    %297 = vector.load %arg18[%c1_117, %c0_118, %c0_119] : memref<2x3x32xf32, #tpu.memory_space<vmem>>, vector<1x3x32xf32>
    %298 = vector.shape_cast %297 : vector<1x3x32xf32> to vector<3x32xf32>
    %c1_120 = arith.constant 1 : index
    %c0_121 = arith.constant 0 : index
    %c0_122 = arith.constant 0 : index
    %299 = vector.load %arg3[%c1_120, %c0_121, %c0_122] : memref<2x32x96xf32, #tpu.memory_space<vmem>>, vector<1x32x96xf32>
    %300 = vector.shape_cast %299 : vector<1x32x96xf32> to vector<32x96xf32>
    %cst_123 = arith.constant dense<0.000000e+00> : vector<8x96xf32>
    %301 = tpu.matmul %294, %300, %cst_123 {dimension_numbers = #tpu.dot_dimension_numbers<[1], [0], [0], [1], [0, 0, 1, 1], [], []>} : vector<8x32xf32>, vector<32x96xf32>, vector<8x96xf32> -> vector<8x96xf32>
    %c1_124 = arith.constant 1 : index
    %c0_125 = arith.constant 0 : index
    %c0_126 = arith.constant 0 : index
    %302 = vector.load %arg4[%c1_124, %c0_125, %c0_126] : memref<2x1x96xf32, #tpu.memory_space<vmem>>, vector<1x1x96xf32>
    %303 = vector.shape_cast %302 : vector<1x1x96xf32> to vector<1x96xf32>
    %304 = vector.broadcast %303 : vector<1x96xf32> to vector<8x96xf32>
    %305 = arith.addf %301, %304 : vector<8x96xf32>
    %306 = vector.extract_strided_slice %305 {offsets = [0, 0], sizes = [8, 32], strides = [1, 1]} : vector<8x96xf32> to vector<8x32xf32>
    %307 = vector.extract_strided_slice %305 {offsets = [0, 32], sizes = [8, 32], strides = [1, 1]} : vector<8x96xf32> to vector<8x32xf32>
    %308 = vector.extract_strided_slice %305 {offsets = [0, 64], sizes = [8, 32], strides = [1, 1]} : vector<8x96xf32> to vector<8x32xf32>
    %c1_127 = arith.constant 1 : index
    %c0_128 = arith.constant 0 : index
    %c0_129 = arith.constant 0 : index
    %309 = vector.load %arg5[%c1_127, %c0_128, %c0_129] : memref<2x32x32xf32, #tpu.memory_space<vmem>>, vector<1x32x32xf32>
    %310 = vector.shape_cast %309 : vector<1x32x32xf32> to vector<32x32xf32>
    %c1_130 = arith.constant 1 : index
    %c0_131 = arith.constant 0 : index
    %c0_132 = arith.constant 0 : index
    %311 = vector.load %arg6[%c1_130, %c0_131, %c0_132] : memref<2x1x32xf32, #tpu.memory_space<vmem>>, vector<1x1x32xf32>
    %312 = vector.shape_cast %311 : vector<1x1x32xf32> to vector<1x32xf32>
    %313 = vector.extract_strided_slice %306 {offsets = [0, 0], sizes = [8, 8], strides = [1, 1]} : vector<8x32xf32> to vector<8x8xf32>
    %314 = vector.extract_strided_slice %307 {offsets = [0, 0], sizes = [8, 8], strides = [1, 1]} : vector<8x32xf32> to vector<8x8xf32>
    %315 = vector.extract_strided_slice %308 {offsets = [0, 0], sizes = [8, 8], strides = [1, 1]} : vector<8x32xf32> to vector<8x8xf32>
    %cst_133 = arith.constant dense<0.000000e+00> : vector<8x8xf32>
    %316 = tpu.matmul %313, %314, %cst_133 {dimension_numbers = #tpu.dot_dimension_numbers<[1], [1], [0], [0], [0, 0, 1, 0], [], []>} : vector<8x8xf32>, vector<8x8xf32>, vector<8x8xf32> -> vector<8x8xf32>
    %317 = arith.addf %316, %9 : vector<8x8xf32>
    %cst_134 = arith.constant dense<0xFF800000> : vector<8xf32>
    %318 = vector.multi_reduction <maximumf>, %317, %cst_134 [1] : vector<8x8xf32> to vector<8xf32>
    %319 = vector.shape_cast %318 : vector<8xf32> to vector<8x1xf32>
    %320 = vector.broadcast %319 : vector<8x1xf32> to vector<8x8xf32>
    %321 = arith.subf %317, %320 : vector<8x8xf32>
    %322 = math.exp %321 : vector<8x8xf32>
    %cst_135 = arith.constant dense<0.000000e+00> : vector<8xf32>
    %323 = vector.multi_reduction <add>, %322, %cst_135 [1] : vector<8x8xf32> to vector<8xf32>
    %324 = vector.shape_cast %323 : vector<8xf32> to vector<8x1xf32>
    %325 = tpu.reciprocal %324 {approx = true} : vector<8x1xf32> -> vector<8x1xf32>
    %326 = vector.broadcast %325 : vector<8x1xf32> to vector<8x8xf32>
    %327 = arith.mulf %322, %326 : vector<8x8xf32>
    %cst_136 = arith.constant dense<0.000000e+00> : vector<8x8xf32>
    %328 = tpu.matmul %327, %315, %cst_136 {dimension_numbers = #tpu.dot_dimension_numbers<[1], [0], [0], [1], [0, 0, 1, 1], [], []>} : vector<8x8xf32>, vector<8x8xf32>, vector<8x8xf32> -> vector<8x8xf32>
    %329 = vector.extract_strided_slice %310 {offsets = [0, 0], sizes = [8, 32], strides = [1, 1]} : vector<32x32xf32> to vector<8x32xf32>
    %cst_137 = arith.constant dense<0.000000e+00> : vector<8x32xf32>
    %330 = tpu.matmul %328, %329, %cst_137 {dimension_numbers = #tpu.dot_dimension_numbers<[1], [0], [0], [1], [0, 0, 1, 1], [], []>} : vector<8x8xf32>, vector<8x32xf32>, vector<8x32xf32> -> vector<8x32xf32>
    %331 = vector.extract_strided_slice %306 {offsets = [0, 8], sizes = [8, 8], strides = [1, 1]} : vector<8x32xf32> to vector<8x8xf32>
    %332 = vector.extract_strided_slice %307 {offsets = [0, 8], sizes = [8, 8], strides = [1, 1]} : vector<8x32xf32> to vector<8x8xf32>
    %333 = vector.extract_strided_slice %308 {offsets = [0, 8], sizes = [8, 8], strides = [1, 1]} : vector<8x32xf32> to vector<8x8xf32>
    %cst_138 = arith.constant dense<0.000000e+00> : vector<8x8xf32>
    %334 = tpu.matmul %331, %332, %cst_138 {dimension_numbers = #tpu.dot_dimension_numbers<[1], [1], [0], [0], [0, 0, 1, 0], [], []>} : vector<8x8xf32>, vector<8x8xf32>, vector<8x8xf32> -> vector<8x8xf32>
    %335 = arith.addf %334, %9 : vector<8x8xf32>
    %cst_139 = arith.constant dense<0xFF800000> : vector<8xf32>
    %336 = vector.multi_reduction <maximumf>, %335, %cst_139 [1] : vector<8x8xf32> to vector<8xf32>
    %337 = vector.shape_cast %336 : vector<8xf32> to vector<8x1xf32>
    %338 = vector.broadcast %337 : vector<8x1xf32> to vector<8x8xf32>
    %339 = arith.subf %335, %338 : vector<8x8xf32>
    %340 = math.exp %339 : vector<8x8xf32>
    %cst_140 = arith.constant dense<0.000000e+00> : vector<8xf32>
    %341 = vector.multi_reduction <add>, %340, %cst_140 [1] : vector<8x8xf32> to vector<8xf32>
    %342 = vector.shape_cast %341 : vector<8xf32> to vector<8x1xf32>
    %343 = tpu.reciprocal %342 {approx = true} : vector<8x1xf32> -> vector<8x1xf32>
    %344 = vector.broadcast %343 : vector<8x1xf32> to vector<8x8xf32>
    %345 = arith.mulf %340, %344 : vector<8x8xf32>
    %cst_141 = arith.constant dense<0.000000e+00> : vector<8x8xf32>
    %346 = tpu.matmul %345, %333, %cst_141 {dimension_numbers = #tpu.dot_dimension_numbers<[1], [0], [0], [1], [0, 0, 1, 1], [], []>} : vector<8x8xf32>, vector<8x8xf32>, vector<8x8xf32> -> vector<8x8xf32>
    %347 = vector.extract_strided_slice %310 {offsets = [8, 0], sizes = [8, 32], strides = [1, 1]} : vector<32x32xf32> to vector<8x32xf32>
    %cst_142 = arith.constant dense<0.000000e+00> : vector<8x32xf32>
    %348 = tpu.matmul %346, %347, %cst_142 {dimension_numbers = #tpu.dot_dimension_numbers<[1], [0], [0], [1], [0, 0, 1, 1], [], []>} : vector<8x8xf32>, vector<8x32xf32>, vector<8x32xf32> -> vector<8x32xf32>
    %349 = arith.addf %330, %348 : vector<8x32xf32>
    %350 = vector.extract_strided_slice %306 {offsets = [0, 16], sizes = [8, 8], strides = [1, 1]} : vector<8x32xf32> to vector<8x8xf32>
    %351 = vector.extract_strided_slice %307 {offsets = [0, 16], sizes = [8, 8], strides = [1, 1]} : vector<8x32xf32> to vector<8x8xf32>
    %352 = vector.extract_strided_slice %308 {offsets = [0, 16], sizes = [8, 8], strides = [1, 1]} : vector<8x32xf32> to vector<8x8xf32>
    %cst_143 = arith.constant dense<0.000000e+00> : vector<8x8xf32>
    %353 = tpu.matmul %350, %351, %cst_143 {dimension_numbers = #tpu.dot_dimension_numbers<[1], [1], [0], [0], [0, 0, 1, 0], [], []>} : vector<8x8xf32>, vector<8x8xf32>, vector<8x8xf32> -> vector<8x8xf32>
    %354 = arith.addf %353, %9 : vector<8x8xf32>
    %cst_144 = arith.constant dense<0xFF800000> : vector<8xf32>
    %355 = vector.multi_reduction <maximumf>, %354, %cst_144 [1] : vector<8x8xf32> to vector<8xf32>
    %356 = vector.shape_cast %355 : vector<8xf32> to vector<8x1xf32>
    %357 = vector.broadcast %356 : vector<8x1xf32> to vector<8x8xf32>
    %358 = arith.subf %354, %357 : vector<8x8xf32>
    %359 = math.exp %358 : vector<8x8xf32>
    %cst_145 = arith.constant dense<0.000000e+00> : vector<8xf32>
    %360 = vector.multi_reduction <add>, %359, %cst_145 [1] : vector<8x8xf32> to vector<8xf32>
    %361 = vector.shape_cast %360 : vector<8xf32> to vector<8x1xf32>
    %362 = tpu.reciprocal %361 {approx = true} : vector<8x1xf32> -> vector<8x1xf32>
    %363 = vector.broadcast %362 : vector<8x1xf32> to vector<8x8xf32>
    %364 = arith.mulf %359, %363 : vector<8x8xf32>
    %cst_146 = arith.constant dense<0.000000e+00> : vector<8x8xf32>
    %365 = tpu.matmul %364, %352, %cst_146 {dimension_numbers = #tpu.dot_dimension_numbers<[1], [0], [0], [1], [0, 0, 1, 1], [], []>} : vector<8x8xf32>, vector<8x8xf32>, vector<8x8xf32> -> vector<8x8xf32>
    %366 = vector.extract_strided_slice %310 {offsets = [16, 0], sizes = [8, 32], strides = [1, 1]} : vector<32x32xf32> to vector<8x32xf32>
    %cst_147 = arith.constant dense<0.000000e+00> : vector<8x32xf32>
    %367 = tpu.matmul %365, %366, %cst_147 {dimension_numbers = #tpu.dot_dimension_numbers<[1], [0], [0], [1], [0, 0, 1, 1], [], []>} : vector<8x8xf32>, vector<8x32xf32>, vector<8x32xf32> -> vector<8x32xf32>
    %368 = arith.addf %349, %367 : vector<8x32xf32>
    %369 = vector.extract_strided_slice %306 {offsets = [0, 24], sizes = [8, 8], strides = [1, 1]} : vector<8x32xf32> to vector<8x8xf32>
    %370 = vector.extract_strided_slice %307 {offsets = [0, 24], sizes = [8, 8], strides = [1, 1]} : vector<8x32xf32> to vector<8x8xf32>
    %371 = vector.extract_strided_slice %308 {offsets = [0, 24], sizes = [8, 8], strides = [1, 1]} : vector<8x32xf32> to vector<8x8xf32>
    %cst_148 = arith.constant dense<0.000000e+00> : vector<8x8xf32>
    %372 = tpu.matmul %369, %370, %cst_148 {dimension_numbers = #tpu.dot_dimension_numbers<[1], [1], [0], [0], [0, 0, 1, 0], [], []>} : vector<8x8xf32>, vector<8x8xf32>, vector<8x8xf32> -> vector<8x8xf32>
    %373 = arith.addf %372, %9 : vector<8x8xf32>
    %cst_149 = arith.constant dense<0xFF800000> : vector<8xf32>
    %374 = vector.multi_reduction <maximumf>, %373, %cst_149 [1] : vector<8x8xf32> to vector<8xf32>
    %375 = vector.shape_cast %374 : vector<8xf32> to vector<8x1xf32>
    %376 = vector.broadcast %375 : vector<8x1xf32> to vector<8x8xf32>
    %377 = arith.subf %373, %376 : vector<8x8xf32>
    %378 = math.exp %377 : vector<8x8xf32>
    %cst_150 = arith.constant dense<0.000000e+00> : vector<8xf32>
    %379 = vector.multi_reduction <add>, %378, %cst_150 [1] : vector<8x8xf32> to vector<8xf32>
    %380 = vector.shape_cast %379 : vector<8xf32> to vector<8x1xf32>
    %381 = tpu.reciprocal %380 {approx = true} : vector<8x1xf32> -> vector<8x1xf32>
    %382 = vector.broadcast %381 : vector<8x1xf32> to vector<8x8xf32>
    %383 = arith.mulf %378, %382 : vector<8x8xf32>
    %cst_151 = arith.constant dense<0.000000e+00> : vector<8x8xf32>
    %384 = tpu.matmul %383, %371, %cst_151 {dimension_numbers = #tpu.dot_dimension_numbers<[1], [0], [0], [1], [0, 0, 1, 1], [], []>} : vector<8x8xf32>, vector<8x8xf32>, vector<8x8xf32> -> vector<8x8xf32>
    %385 = vector.extract_strided_slice %310 {offsets = [24, 0], sizes = [8, 32], strides = [1, 1]} : vector<32x32xf32> to vector<8x32xf32>
    %cst_152 = arith.constant dense<0.000000e+00> : vector<8x32xf32>
    %386 = tpu.matmul %384, %385, %cst_152 {dimension_numbers = #tpu.dot_dimension_numbers<[1], [0], [0], [1], [0, 0, 1, 1], [], []>} : vector<8x8xf32>, vector<8x32xf32>, vector<8x32xf32> -> vector<8x32xf32>
    %387 = arith.addf %368, %386 : vector<8x32xf32>
    %388 = vector.broadcast %312 : vector<1x32xf32> to vector<8x32xf32>
    %389 = arith.addf %387, %388 : vector<8x32xf32>
    %390 = arith.addf %294, %389 : vector<8x32xf32>
    %391 = vector.extract_strided_slice %296 {offsets = [0, 0], sizes = [1, 32], strides = [1, 1]} : vector<3x32xf32> to vector<1x32xf32>
    %392 = vector.extract_strided_slice %298 {offsets = [0, 0], sizes = [1, 32], strides = [1, 1]} : vector<3x32xf32> to vector<1x32xf32>
    %cst_153 = arith.constant dense<0.000000e+00> : vector<8xf32>
    %393 = vector.multi_reduction <add>, %390, %cst_153 [1] : vector<8x32xf32> to vector<8xf32>
    %394 = vector.shape_cast %393 : vector<8xf32> to vector<8x1xf32>
    %cst_154 = arith.constant 3.200000e+01 : f32
    %395 = vector.broadcast %cst_154 : f32 to vector<8x1xf32>
    %396 = arith.divf %394, %395 : vector<8x1xf32>
    %397 = vector.broadcast %396 : vector<8x1xf32> to vector<8x32xf32>
    %398 = arith.subf %390, %397 : vector<8x32xf32>
    %399 = vector.broadcast %396 : vector<8x1xf32> to vector<8x32xf32>
    %400 = arith.subf %390, %399 : vector<8x32xf32>
    %401 = arith.mulf %398, %400 : vector<8x32xf32>
    %cst_155 = arith.constant dense<0.000000e+00> : vector<8xf32>
    %402 = vector.multi_reduction <add>, %401, %cst_155 [1] : vector<8x32xf32> to vector<8xf32>
    %403 = vector.shape_cast %402 : vector<8xf32> to vector<8x1xf32>
    %cst_156 = arith.constant 3.200000e+01 : f32
    %404 = vector.broadcast %cst_156 : f32 to vector<8x1xf32>
    %405 = arith.divf %403, %404 : vector<8x1xf32>
    %406 = vector.broadcast %396 : vector<8x1xf32> to vector<8x32xf32>
    %407 = arith.subf %390, %406 : vector<8x32xf32>
    %cst_157 = arith.constant 9.99999974E-6 : f32
    %408 = vector.broadcast %cst_157 : f32 to vector<8x1xf32>
    %409 = arith.addf %405, %408 : vector<8x1xf32>
    %410 = math.rsqrt %409 : vector<8x1xf32>
    %411 = vector.broadcast %410 : vector<8x1xf32> to vector<8x32xf32>
    %412 = arith.mulf %407, %411 : vector<8x32xf32>
    %413 = vector.broadcast %391 : vector<1x32xf32> to vector<8x32xf32>
    %414 = arith.mulf %412, %413 : vector<8x32xf32>
    %415 = vector.broadcast %392 : vector<1x32xf32> to vector<8x32xf32>
    %416 = arith.addf %414, %415 : vector<8x32xf32>
    %c1_158 = arith.constant 1 : index
    %c0_159 = arith.constant 0 : index
    %c0_160 = arith.constant 0 : index
    %417 = vector.load %arg7[%c1_158, %c0_159, %c0_160] : memref<2x32x32xf32, #tpu.memory_space<vmem>>, vector<1x32x32xf32>
    %418 = vector.shape_cast %417 : vector<1x32x32xf32> to vector<32x32xf32>
    %cst_161 = arith.constant dense<0.000000e+00> : vector<8x32xf32>
    %419 = tpu.matmul %416, %418, %cst_161 {dimension_numbers = #tpu.dot_dimension_numbers<[1], [0], [0], [1], [0, 0, 1, 1], [], []>} : vector<8x32xf32>, vector<32x32xf32>, vector<8x32xf32> -> vector<8x32xf32>
    %c1_162 = arith.constant 1 : index
    %c0_163 = arith.constant 0 : index
    %c0_164 = arith.constant 0 : index
    %420 = vector.load %arg8[%c1_162, %c0_163, %c0_164] : memref<2x1x32xf32, #tpu.memory_space<vmem>>, vector<1x1x32xf32>
    %421 = vector.shape_cast %420 : vector<1x1x32xf32> to vector<1x32xf32>
    %422 = vector.broadcast %421 : vector<1x32xf32> to vector<8x32xf32>
    %423 = arith.addf %419, %422 : vector<8x32xf32>
    %c1_165 = arith.constant 1 : index
    %c0_166 = arith.constant 0 : index
    %c0_167 = arith.constant 0 : index
    %424 = vector.load %arg9[%c1_165, %c0_166, %c0_167] : memref<2x32x64xf32, #tpu.memory_space<vmem>>, vector<1x32x64xf32>
    %425 = vector.shape_cast %424 : vector<1x32x64xf32> to vector<32x64xf32>
    %cst_168 = arith.constant dense<0.000000e+00> : vector<6x64xf32>
    %426 = tpu.matmul %3, %425, %cst_168 {dimension_numbers = #tpu.dot_dimension_numbers<[1], [0], [0], [1], [0, 0, 1, 1], [], []>} : vector<6x32xf32>, vector<32x64xf32>, vector<6x64xf32> -> vector<6x64xf32>
    %c1_169 = arith.constant 1 : index
    %c0_170 = arith.constant 0 : index
    %c0_171 = arith.constant 0 : index
    %427 = vector.load %arg10[%c1_169, %c0_170, %c0_171] : memref<2x1x64xf32, #tpu.memory_space<vmem>>, vector<1x1x64xf32>
    %428 = vector.shape_cast %427 : vector<1x1x64xf32> to vector<1x64xf32>
    %429 = vector.broadcast %428 : vector<1x64xf32> to vector<6x64xf32>
    %430 = arith.addf %426, %429 : vector<6x64xf32>
    %431 = vector.extract_strided_slice %430 {offsets = [0, 0], sizes = [6, 32], strides = [1, 1]} : vector<6x64xf32> to vector<6x32xf32>
    %432 = vector.extract_strided_slice %430 {offsets = [0, 32], sizes = [6, 32], strides = [1, 1]} : vector<6x64xf32> to vector<6x32xf32>
    %c1_172 = arith.constant 1 : index
    %c0_173 = arith.constant 0 : index
    %c0_174 = arith.constant 0 : index
    %433 = vector.load %arg11[%c1_172, %c0_173, %c0_174] : memref<2x32x32xf32, #tpu.memory_space<vmem>>, vector<1x32x32xf32>
    %434 = vector.shape_cast %433 : vector<1x32x32xf32> to vector<32x32xf32>
    %c1_175 = arith.constant 1 : index
    %c0_176 = arith.constant 0 : index
    %c0_177 = arith.constant 0 : index
    %435 = vector.load %arg12[%c1_175, %c0_176, %c0_177] : memref<2x1x32xf32, #tpu.memory_space<vmem>>, vector<1x1x32xf32>
    %436 = vector.shape_cast %435 : vector<1x1x32xf32> to vector<1x32xf32>
    %437 = vector.extract_strided_slice %423 {offsets = [0, 0], sizes = [8, 8], strides = [1, 1]} : vector<8x32xf32> to vector<8x8xf32>
    %438 = vector.extract_strided_slice %431 {offsets = [0, 0], sizes = [6, 8], strides = [1, 1]} : vector<6x32xf32> to vector<6x8xf32>
    %439 = vector.extract_strided_slice %432 {offsets = [0, 0], sizes = [6, 8], strides = [1, 1]} : vector<6x32xf32> to vector<6x8xf32>
    %cst_178 = arith.constant dense<0.000000e+00> : vector<8x6xf32>
    %440 = tpu.matmul %437, %438, %cst_178 {dimension_numbers = #tpu.dot_dimension_numbers<[1], [1], [0], [0], [0, 0, 1, 0], [], []>} : vector<8x8xf32>, vector<6x8xf32>, vector<8x6xf32> -> vector<8x6xf32>
    %cst_179 = arith.constant dense<0xFF800000> : vector<8xf32>
    %441 = vector.multi_reduction <maximumf>, %440, %cst_179 [1] : vector<8x6xf32> to vector<8xf32>
    %442 = vector.shape_cast %441 : vector<8xf32> to vector<8x1xf32>
    %443 = vector.broadcast %442 : vector<8x1xf32> to vector<8x6xf32>
    %444 = arith.subf %440, %443 : vector<8x6xf32>
    %445 = math.exp %444 : vector<8x6xf32>
    %cst_180 = arith.constant dense<0.000000e+00> : vector<8xf32>
    %446 = vector.multi_reduction <add>, %445, %cst_180 [1] : vector<8x6xf32> to vector<8xf32>
    %447 = vector.shape_cast %446 : vector<8xf32> to vector<8x1xf32>
    %448 = tpu.reciprocal %447 {approx = true} : vector<8x1xf32> -> vector<8x1xf32>
    %449 = vector.broadcast %448 : vector<8x1xf32> to vector<8x6xf32>
    %450 = arith.mulf %445, %449 : vector<8x6xf32>
    %cst_181 = arith.constant dense<0.000000e+00> : vector<8x8xf32>
    %451 = tpu.matmul %450, %439, %cst_181 {dimension_numbers = #tpu.dot_dimension_numbers<[1], [0], [0], [1], [0, 0, 1, 1], [], []>} : vector<8x6xf32>, vector<6x8xf32>, vector<8x8xf32> -> vector<8x8xf32>
    %452 = vector.extract_strided_slice %434 {offsets = [0, 0], sizes = [8, 32], strides = [1, 1]} : vector<32x32xf32> to vector<8x32xf32>
    %cst_182 = arith.constant dense<0.000000e+00> : vector<8x32xf32>
    %453 = tpu.matmul %451, %452, %cst_182 {dimension_numbers = #tpu.dot_dimension_numbers<[1], [0], [0], [1], [0, 0, 1, 1], [], []>} : vector<8x8xf32>, vector<8x32xf32>, vector<8x32xf32> -> vector<8x32xf32>
    %454 = vector.extract_strided_slice %423 {offsets = [0, 8], sizes = [8, 8], strides = [1, 1]} : vector<8x32xf32> to vector<8x8xf32>
    %455 = vector.extract_strided_slice %431 {offsets = [0, 8], sizes = [6, 8], strides = [1, 1]} : vector<6x32xf32> to vector<6x8xf32>
    %456 = vector.extract_strided_slice %432 {offsets = [0, 8], sizes = [6, 8], strides = [1, 1]} : vector<6x32xf32> to vector<6x8xf32>
    %cst_183 = arith.constant dense<0.000000e+00> : vector<8x6xf32>
    %457 = tpu.matmul %454, %455, %cst_183 {dimension_numbers = #tpu.dot_dimension_numbers<[1], [1], [0], [0], [0, 0, 1, 0], [], []>} : vector<8x8xf32>, vector<6x8xf32>, vector<8x6xf32> -> vector<8x6xf32>
    %cst_184 = arith.constant dense<0xFF800000> : vector<8xf32>
    %458 = vector.multi_reduction <maximumf>, %457, %cst_184 [1] : vector<8x6xf32> to vector<8xf32>
    %459 = vector.shape_cast %458 : vector<8xf32> to vector<8x1xf32>
    %460 = vector.broadcast %459 : vector<8x1xf32> to vector<8x6xf32>
    %461 = arith.subf %457, %460 : vector<8x6xf32>
    %462 = math.exp %461 : vector<8x6xf32>
    %cst_185 = arith.constant dense<0.000000e+00> : vector<8xf32>
    %463 = vector.multi_reduction <add>, %462, %cst_185 [1] : vector<8x6xf32> to vector<8xf32>
    %464 = vector.shape_cast %463 : vector<8xf32> to vector<8x1xf32>
    %465 = tpu.reciprocal %464 {approx = true} : vector<8x1xf32> -> vector<8x1xf32>
    %466 = vector.broadcast %465 : vector<8x1xf32> to vector<8x6xf32>
    %467 = arith.mulf %462, %466 : vector<8x6xf32>
    %cst_186 = arith.constant dense<0.000000e+00> : vector<8x8xf32>
    %468 = tpu.matmul %467, %456, %cst_186 {dimension_numbers = #tpu.dot_dimension_numbers<[1], [0], [0], [1], [0, 0, 1, 1], [], []>} : vector<8x6xf32>, vector<6x8xf32>, vector<8x8xf32> -> vector<8x8xf32>
    %469 = vector.extract_strided_slice %434 {offsets = [8, 0], sizes = [8, 32], strides = [1, 1]} : vector<32x32xf32> to vector<8x32xf32>
    %cst_187 = arith.constant dense<0.000000e+00> : vector<8x32xf32>
    %470 = tpu.matmul %468, %469, %cst_187 {dimension_numbers = #tpu.dot_dimension_numbers<[1], [0], [0], [1], [0, 0, 1, 1], [], []>} : vector<8x8xf32>, vector<8x32xf32>, vector<8x32xf32> -> vector<8x32xf32>
    %471 = arith.addf %453, %470 : vector<8x32xf32>
    %472 = vector.extract_strided_slice %423 {offsets = [0, 16], sizes = [8, 8], strides = [1, 1]} : vector<8x32xf32> to vector<8x8xf32>
    %473 = vector.extract_strided_slice %431 {offsets = [0, 16], sizes = [6, 8], strides = [1, 1]} : vector<6x32xf32> to vector<6x8xf32>
    %474 = vector.extract_strided_slice %432 {offsets = [0, 16], sizes = [6, 8], strides = [1, 1]} : vector<6x32xf32> to vector<6x8xf32>
    %cst_188 = arith.constant dense<0.000000e+00> : vector<8x6xf32>
    %475 = tpu.matmul %472, %473, %cst_188 {dimension_numbers = #tpu.dot_dimension_numbers<[1], [1], [0], [0], [0, 0, 1, 0], [], []>} : vector<8x8xf32>, vector<6x8xf32>, vector<8x6xf32> -> vector<8x6xf32>
    %cst_189 = arith.constant dense<0xFF800000> : vector<8xf32>
    %476 = vector.multi_reduction <maximumf>, %475, %cst_189 [1] : vector<8x6xf32> to vector<8xf32>
    %477 = vector.shape_cast %476 : vector<8xf32> to vector<8x1xf32>
    %478 = vector.broadcast %477 : vector<8x1xf32> to vector<8x6xf32>
    %479 = arith.subf %475, %478 : vector<8x6xf32>
    %480 = math.exp %479 : vector<8x6xf32>
    %cst_190 = arith.constant dense<0.000000e+00> : vector<8xf32>
    %481 = vector.multi_reduction <add>, %480, %cst_190 [1] : vector<8x6xf32> to vector<8xf32>
    %482 = vector.shape_cast %481 : vector<8xf32> to vector<8x1xf32>
    %483 = tpu.reciprocal %482 {approx = true} : vector<8x1xf32> -> vector<8x1xf32>
    %484 = vector.broadcast %483 : vector<8x1xf32> to vector<8x6xf32>
    %485 = arith.mulf %480, %484 : vector<8x6xf32>
    %cst_191 = arith.constant dense<0.000000e+00> : vector<8x8xf32>
    %486 = tpu.matmul %485, %474, %cst_191 {dimension_numbers = #tpu.dot_dimension_numbers<[1], [0], [0], [1], [0, 0, 1, 1], [], []>} : vector<8x6xf32>, vector<6x8xf32>, vector<8x8xf32> -> vector<8x8xf32>
    %487 = vector.extract_strided_slice %434 {offsets = [16, 0], sizes = [8, 32], strides = [1, 1]} : vector<32x32xf32> to vector<8x32xf32>
    %cst_192 = arith.constant dense<0.000000e+00> : vector<8x32xf32>
    %488 = tpu.matmul %486, %487, %cst_192 {dimension_numbers = #tpu.dot_dimension_numbers<[1], [0], [0], [1], [0, 0, 1, 1], [], []>} : vector<8x8xf32>, vector<8x32xf32>, vector<8x32xf32> -> vector<8x32xf32>
    %489 = arith.addf %471, %488 : vector<8x32xf32>
    %490 = vector.extract_strided_slice %423 {offsets = [0, 24], sizes = [8, 8], strides = [1, 1]} : vector<8x32xf32> to vector<8x8xf32>
    %491 = vector.extract_strided_slice %431 {offsets = [0, 24], sizes = [6, 8], strides = [1, 1]} : vector<6x32xf32> to vector<6x8xf32>
    %492 = vector.extract_strided_slice %432 {offsets = [0, 24], sizes = [6, 8], strides = [1, 1]} : vector<6x32xf32> to vector<6x8xf32>
    %cst_193 = arith.constant dense<0.000000e+00> : vector<8x6xf32>
    %493 = tpu.matmul %490, %491, %cst_193 {dimension_numbers = #tpu.dot_dimension_numbers<[1], [1], [0], [0], [0, 0, 1, 0], [], []>} : vector<8x8xf32>, vector<6x8xf32>, vector<8x6xf32> -> vector<8x6xf32>
    %cst_194 = arith.constant dense<0xFF800000> : vector<8xf32>
    %494 = vector.multi_reduction <maximumf>, %493, %cst_194 [1] : vector<8x6xf32> to vector<8xf32>
    %495 = vector.shape_cast %494 : vector<8xf32> to vector<8x1xf32>
    %496 = vector.broadcast %495 : vector<8x1xf32> to vector<8x6xf32>
    %497 = arith.subf %493, %496 : vector<8x6xf32>
    %498 = math.exp %497 : vector<8x6xf32>
    %cst_195 = arith.constant dense<0.000000e+00> : vector<8xf32>
    %499 = vector.multi_reduction <add>, %498, %cst_195 [1] : vector<8x6xf32> to vector<8xf32>
    %500 = vector.shape_cast %499 : vector<8xf32> to vector<8x1xf32>
    %501 = tpu.reciprocal %500 {approx = true} : vector<8x1xf32> -> vector<8x1xf32>
    %502 = vector.broadcast %501 : vector<8x1xf32> to vector<8x6xf32>
    %503 = arith.mulf %498, %502 : vector<8x6xf32>
    %cst_196 = arith.constant dense<0.000000e+00> : vector<8x8xf32>
    %504 = tpu.matmul %503, %492, %cst_196 {dimension_numbers = #tpu.dot_dimension_numbers<[1], [0], [0], [1], [0, 0, 1, 1], [], []>} : vector<8x6xf32>, vector<6x8xf32>, vector<8x8xf32> -> vector<8x8xf32>
    %505 = vector.extract_strided_slice %434 {offsets = [24, 0], sizes = [8, 32], strides = [1, 1]} : vector<32x32xf32> to vector<8x32xf32>
    %cst_197 = arith.constant dense<0.000000e+00> : vector<8x32xf32>
    %506 = tpu.matmul %504, %505, %cst_197 {dimension_numbers = #tpu.dot_dimension_numbers<[1], [0], [0], [1], [0, 0, 1, 1], [], []>} : vector<8x8xf32>, vector<8x32xf32>, vector<8x32xf32> -> vector<8x32xf32>
    %507 = arith.addf %489, %506 : vector<8x32xf32>
    %508 = vector.broadcast %436 : vector<1x32xf32> to vector<8x32xf32>
    %509 = arith.addf %507, %508 : vector<8x32xf32>
    %510 = arith.addf %416, %509 : vector<8x32xf32>
    %511 = vector.extract_strided_slice %296 {offsets = [1, 0], sizes = [1, 32], strides = [1, 1]} : vector<3x32xf32> to vector<1x32xf32>
    %512 = vector.extract_strided_slice %298 {offsets = [1, 0], sizes = [1, 32], strides = [1, 1]} : vector<3x32xf32> to vector<1x32xf32>
    %cst_198 = arith.constant dense<0.000000e+00> : vector<8xf32>
    %513 = vector.multi_reduction <add>, %510, %cst_198 [1] : vector<8x32xf32> to vector<8xf32>
    %514 = vector.shape_cast %513 : vector<8xf32> to vector<8x1xf32>
    %cst_199 = arith.constant 3.200000e+01 : f32
    %515 = vector.broadcast %cst_199 : f32 to vector<8x1xf32>
    %516 = arith.divf %514, %515 : vector<8x1xf32>
    %517 = vector.broadcast %516 : vector<8x1xf32> to vector<8x32xf32>
    %518 = arith.subf %510, %517 : vector<8x32xf32>
    %519 = vector.broadcast %516 : vector<8x1xf32> to vector<8x32xf32>
    %520 = arith.subf %510, %519 : vector<8x32xf32>
    %521 = arith.mulf %518, %520 : vector<8x32xf32>
    %cst_200 = arith.constant dense<0.000000e+00> : vector<8xf32>
    %522 = vector.multi_reduction <add>, %521, %cst_200 [1] : vector<8x32xf32> to vector<8xf32>
    %523 = vector.shape_cast %522 : vector<8xf32> to vector<8x1xf32>
    %cst_201 = arith.constant 3.200000e+01 : f32
    %524 = vector.broadcast %cst_201 : f32 to vector<8x1xf32>
    %525 = arith.divf %523, %524 : vector<8x1xf32>
    %526 = vector.broadcast %516 : vector<8x1xf32> to vector<8x32xf32>
    %527 = arith.subf %510, %526 : vector<8x32xf32>
    %cst_202 = arith.constant 9.99999974E-6 : f32
    %528 = vector.broadcast %cst_202 : f32 to vector<8x1xf32>
    %529 = arith.addf %525, %528 : vector<8x1xf32>
    %530 = math.rsqrt %529 : vector<8x1xf32>
    %531 = vector.broadcast %530 : vector<8x1xf32> to vector<8x32xf32>
    %532 = arith.mulf %527, %531 : vector<8x32xf32>
    %533 = vector.broadcast %511 : vector<1x32xf32> to vector<8x32xf32>
    %534 = arith.mulf %532, %533 : vector<8x32xf32>
    %535 = vector.broadcast %512 : vector<1x32xf32> to vector<8x32xf32>
    %536 = arith.addf %534, %535 : vector<8x32xf32>
    %c1_203 = arith.constant 1 : index
    %c0_204 = arith.constant 0 : index
    %c0_205 = arith.constant 0 : index
    %537 = vector.load %arg13[%c1_203, %c0_204, %c0_205] : memref<2x32x64xf32, #tpu.memory_space<vmem>>, vector<1x32x64xf32>
    %538 = vector.shape_cast %537 : vector<1x32x64xf32> to vector<32x64xf32>
    %cst_206 = arith.constant dense<0.000000e+00> : vector<8x64xf32>
    %539 = tpu.matmul %536, %538, %cst_206 {dimension_numbers = #tpu.dot_dimension_numbers<[1], [0], [0], [1], [0, 0, 1, 1], [], []>} : vector<8x32xf32>, vector<32x64xf32>, vector<8x64xf32> -> vector<8x64xf32>
    %c1_207 = arith.constant 1 : index
    %c0_208 = arith.constant 0 : index
    %c0_209 = arith.constant 0 : index
    %540 = vector.load %arg14[%c1_207, %c0_208, %c0_209] : memref<2x1x64xf32, #tpu.memory_space<vmem>>, vector<1x1x64xf32>
    %541 = vector.shape_cast %540 : vector<1x1x64xf32> to vector<1x64xf32>
    %542 = vector.broadcast %541 : vector<1x64xf32> to vector<8x64xf32>
    %543 = arith.addf %539, %542 : vector<8x64xf32>
    %cst_210 = arith.constant 0.000000e+00 : f32
    %544 = vector.broadcast %cst_210 : f32 to vector<8x64xf32>
    %545 = arith.maximumf %543, %544 : vector<8x64xf32>
    %c1_211 = arith.constant 1 : index
    %c0_212 = arith.constant 0 : index
    %c0_213 = arith.constant 0 : index
    %546 = vector.load %arg15[%c1_211, %c0_212, %c0_213] : memref<2x64x32xf32, #tpu.memory_space<vmem>>, vector<1x64x32xf32>
    %547 = vector.shape_cast %546 : vector<1x64x32xf32> to vector<64x32xf32>
    %cst_214 = arith.constant dense<0.000000e+00> : vector<8x32xf32>
    %548 = tpu.matmul %545, %547, %cst_214 {dimension_numbers = #tpu.dot_dimension_numbers<[1], [0], [0], [1], [0, 0, 1, 1], [], []>} : vector<8x64xf32>, vector<64x32xf32>, vector<8x32xf32> -> vector<8x32xf32>
    %c1_215 = arith.constant 1 : index
    %c0_216 = arith.constant 0 : index
    %c0_217 = arith.constant 0 : index
    %549 = vector.load %arg16[%c1_215, %c0_216, %c0_217] : memref<2x1x32xf32, #tpu.memory_space<vmem>>, vector<1x1x32xf32>
    %550 = vector.shape_cast %549 : vector<1x1x32xf32> to vector<1x32xf32>
    %551 = vector.broadcast %550 : vector<1x32xf32> to vector<8x32xf32>
    %552 = arith.addf %548, %551 : vector<8x32xf32>
    %553 = arith.addf %536, %552 : vector<8x32xf32>
    %554 = vector.extract_strided_slice %296 {offsets = [2, 0], sizes = [1, 32], strides = [1, 1]} : vector<3x32xf32> to vector<1x32xf32>
    %555 = vector.extract_strided_slice %298 {offsets = [2, 0], sizes = [1, 32], strides = [1, 1]} : vector<3x32xf32> to vector<1x32xf32>
    %cst_218 = arith.constant dense<0.000000e+00> : vector<8xf32>
    %556 = vector.multi_reduction <add>, %553, %cst_218 [1] : vector<8x32xf32> to vector<8xf32>
    %557 = vector.shape_cast %556 : vector<8xf32> to vector<8x1xf32>
    %cst_219 = arith.constant 3.200000e+01 : f32
    %558 = vector.broadcast %cst_219 : f32 to vector<8x1xf32>
    %559 = arith.divf %557, %558 : vector<8x1xf32>
    %560 = vector.broadcast %559 : vector<8x1xf32> to vector<8x32xf32>
    %561 = arith.subf %553, %560 : vector<8x32xf32>
    %562 = vector.broadcast %559 : vector<8x1xf32> to vector<8x32xf32>
    %563 = arith.subf %553, %562 : vector<8x32xf32>
    %564 = arith.mulf %561, %563 : vector<8x32xf32>
    %cst_220 = arith.constant dense<0.000000e+00> : vector<8xf32>
    %565 = vector.multi_reduction <add>, %564, %cst_220 [1] : vector<8x32xf32> to vector<8xf32>
    %566 = vector.shape_cast %565 : vector<8xf32> to vector<8x1xf32>
    %cst_221 = arith.constant 3.200000e+01 : f32
    %567 = vector.broadcast %cst_221 : f32 to vector<8x1xf32>
    %568 = arith.divf %566, %567 : vector<8x1xf32>
    %569 = vector.broadcast %559 : vector<8x1xf32> to vector<8x32xf32>
    %570 = arith.subf %553, %569 : vector<8x32xf32>
    %cst_222 = arith.constant 9.99999974E-6 : f32
    %571 = vector.broadcast %cst_222 : f32 to vector<8x1xf32>
    %572 = arith.addf %568, %571 : vector<8x1xf32>
    %573 = math.rsqrt %572 : vector<8x1xf32>
    %574 = vector.broadcast %573 : vector<8x1xf32> to vector<8x32xf32>
    %575 = arith.mulf %570, %574 : vector<8x32xf32>
    %576 = vector.broadcast %554 : vector<1x32xf32> to vector<8x32xf32>
    %577 = arith.mulf %575, %576 : vector<8x32xf32>
    %578 = vector.broadcast %555 : vector<1x32xf32> to vector<8x32xf32>
    %579 = arith.addf %577, %578 : vector<8x32xf32>
    %c0_223 = arith.constant 0 : index
    %c0_224 = arith.constant 0 : index
    %580 = vector.load %arg19[%c0_223, %c0_224] : memref<32x64xf32, #tpu.memory_space<vmem>>, vector<32x64xf32>
    %cst_225 = arith.constant dense<0.000000e+00> : vector<8x64xf32>
    %581 = tpu.matmul %579, %580, %cst_225 {dimension_numbers = #tpu.dot_dimension_numbers<[1], [0], [0], [1], [0, 0, 1, 1], [], []>} : vector<8x32xf32>, vector<32x64xf32>, vector<8x64xf32> -> vector<8x64xf32>
    %c0_226 = arith.constant 0 : index
    %c0_227 = arith.constant 0 : index
    %582 = vector.load %arg20[%c0_226, %c0_227] : memref<1x64xf32, #tpu.memory_space<vmem>>, vector<1x64xf32>
    %583 = vector.broadcast %582 : vector<1x64xf32> to vector<8x64xf32>
    %584 = arith.addf %581, %583 : vector<8x64xf32>
    %c0_228 = arith.constant 0 : index
    %c0_229 = arith.constant 0 : index
    %c0_230 = arith.constant 0 : index
    %585 = vector.load %arg21[%c0_228, %c0_229, %c0_230] : memref<1x8x64xf32, #tpu.memory_space<vmem>>, vector<1x8x64xf32>
    %586 = vector.shape_cast %585 : vector<1x8x64xf32> to vector<8x64xf32>
    %587 = vector.shape_cast %584 : vector<8x64xf32> to vector<1x8x64xf32>
    tpu.vector_store %arg21[%c0_228, %c0_229, %c0_230], %587 {strides = array<i32>} : memref<1x8x64xf32, #tpu.memory_space<vmem>>, vector<1x8x64xf32>,
    return
  }
  func.func @transform_0(%arg0: i32) -> (i32, i32, i32) {
    %c0_i32 = arith.constant 0 : i32
    %c0_i32_0 = arith.constant 0 : i32
    %c0_i32_1 = arith.constant 0 : i32
    return %arg0, %c0_i32, %c0_i32_0 : i32, i32, i32
  }
  func.func @transform_1(%arg0: i32) -> (i32, i32, i32) {
    %c0_i32 = arith.constant 0 : i32
    %c0_i32_0 = arith.constant 0 : i32
    %c0_i32_1 = arith.constant 0 : i32
    return %arg0, %c0_i32, %c0_i32_0 : i32, i32, i32
  }
  func.func @transform_2(%arg0: i32) -> (i32, i32, i32) {
    %c0_i32 = arith.constant 0 : i32
    %c0_i32_0 = arith.constant 0 : i32
    %c0_i32_1 = arith.constant 0 : i32
    %c0_i32_2 = arith.constant 0 : i32
    return %c0_i32, %c0_i32_0, %c0_i32_1 : i32, i32, i32
  }
  func.func @transform_3(%arg0: i32) -> (i32, i32, i32) {
    %c0_i32 = arith.constant 0 : i32
    %c0_i32_0 = arith.constant 0 : i32
    %c0_i32_1 = arith.constant 0 : i32
    %c0_i32_2 = arith.constant 0 : i32
    return %c0_i32, %c0_i32_0, %c0_i32_1 : i32, i32, i32
  }
  func.func @transform_4(%arg0: i32) -> (i32, i32, i32) {
    %c0_i32 = arith.constant 0 : i32
    %c0_i32_0 = arith.constant 0 : i32
    %c0_i32_1 = arith.constant 0 : i32
    %c0_i32_2 = arith.constant 0 : i32
    return %c0_i32, %c0_i32_0, %c0_i32_1 : i32, i32, i32
  }
  func.func @transform_5(%arg0: i32) -> (i32, i32, i32) {
    %c0_i32 = arith.constant 0 : i32
    %c0_i32_0 = arith.constant 0 : i32
    %c0_i32_1 = arith.constant 0 : i32
    %c0_i32_2 = arith.constant 0 : i32
    return %c0_i32, %c0_i32_0, %c0_i32_1 : i32, i32, i32
  }
  func.func @transform_6(%arg0: i32) -> (i32, i32, i32) {
    %c0_i32 = arith.constant 0 : i32
    %c0_i32_0 = arith.constant 0 : i32
    %c0_i32_1 = arith.constant 0 : i32
    %c0_i32_2 = arith.constant 0 : i32
    return %c0_i32, %c0_i32_0, %c0_i32_1 : i32, i32, i32
  }
  func.func @transform_7(%arg0: i32) -> (i32, i32, i32) {
    %c0_i32 = arith.constant 0 : i32
    %c0_i32_0 = arith.constant 0 : i32
    %c0_i32_1 = arith.constant 0 : i32
    %c0_i32_2 = arith.constant 0 : i32
    return %c0_i32, %c0_i32_0, %c0_i32_1 : i32, i32, i32
  }
  func.func @transform_8(%arg0: i32) -> (i32, i32, i32) {
    %c0_i32 = arith.constant 0 : i32
    %c0_i32_0 = arith.constant 0 : i32
    %c0_i32_1 = arith.constant 0 : i32
    %c0_i32_2 = arith.constant 0 : i32
    return %c0_i32, %c0_i32_0, %c0_i32_1 : i32, i32, i32
  }
  func.func @transform_9(%arg0: i32) -> (i32, i32, i32) {
    %c0_i32 = arith.constant 0 : i32
    %c0_i32_0 = arith.constant 0 : i32
    %c0_i32_1 = arith.constant 0 : i32
    %c0_i32_2 = arith.constant 0 : i32
    return %c0_i32, %c0_i32_0, %c0_i32_1 : i32, i32, i32
  }
  func.func @transform_10(%arg0: i32) -> (i32, i32, i32) {
    %c0_i32 = arith.constant 0 : i32
    %c0_i32_0 = arith.constant 0 : i32
    %c0_i32_1 = arith.constant 0 : i32
    %c0_i32_2 = arith.constant 0 : i32
    return %c0_i32, %c0_i32_0, %c0_i32_1 : i32, i32, i32
  }
  func.func @transform_11(%arg0: i32) -> (i32, i32, i32) {
    %c0_i32 = arith.constant 0 : i32
    %c0_i32_0 = arith.constant 0 : i32
    %c0_i32_1 = arith.constant 0 : i32
    %c0_i32_2 = arith.constant 0 : i32
    return %c0_i32, %c0_i32_0, %c0_i32_1 : i32, i32, i32
  }
  func.func @transform_12(%arg0: i32) -> (i32, i32, i32) {
    %c0_i32 = arith.constant 0 : i32
    %c0_i32_0 = arith.constant 0 : i32
    %c0_i32_1 = arith.constant 0 : i32
    %c0_i32_2 = arith.constant 0 : i32
    return %c0_i32, %c0_i32_0, %c0_i32_1 : i32, i32, i32
  }
  func.func @transform_13(%arg0: i32) -> (i32, i32, i32) {
    %c0_i32 = arith.constant 0 : i32
    %c0_i32_0 = arith.constant 0 : i32
    %c0_i32_1 = arith.constant 0 : i32
    %c0_i32_2 = arith.constant 0 : i32
    return %c0_i32, %c0_i32_0, %c0_i32_1 : i32, i32, i32
  }
  func.func @transform_14(%arg0: i32) -> (i32, i32, i32) {
    %c0_i32 = arith.constant 0 : i32
    %c0_i32_0 = arith.constant 0 : i32
    %c0_i32_1 = arith.constant 0 : i32
    %c0_i32_2 = arith.constant 0 : i32
    return %c0_i32, %c0_i32_0, %c0_i32_1 : i32, i32, i32
  }
  func.func @transform_15(%arg0: i32) -> (i32, i32, i32) {
    %c0_i32 = arith.constant 0 : i32
    %c0_i32_0 = arith.constant 0 : i32
    %c0_i32_1 = arith.constant 0 : i32
    %c0_i32_2 = arith.constant 0 : i32
    return %c0_i32, %c0_i32_0, %c0_i32_1 : i32, i32, i32
  }
  func.func @transform_16(%arg0: i32) -> (i32, i32, i32) {
    %c0_i32 = arith.constant 0 : i32
    %c0_i32_0 = arith.constant 0 : i32
    %c0_i32_1 = arith.constant 0 : i32
    %c0_i32_2 = arith.constant 0 : i32
    return %c0_i32, %c0_i32_0, %c0_i32_1 : i32, i32, i32
  }
  func.func @transform_17(%arg0: i32) -> (i32, i32, i32) {
    %c0_i32 = arith.constant 0 : i32
    %c0_i32_0 = arith.constant 0 : i32
    %c0_i32_1 = arith.constant 0 : i32
    %c0_i32_2 = arith.constant 0 : i32
    return %c0_i32, %c0_i32_0, %c0_i32_1 : i32, i32, i32
  }
  func.func @transform_18(%arg0: i32) -> (i32, i32) {
    %c0_i32 = arith.constant 0 : i32
    %c0_i32_0 = arith.constant 0 : i32
    %c0_i32_1 = arith.constant 0 : i32
    return %c0_i32, %c0_i32_0 : i32, i32
  }
  func.func @transform_19(%arg0: i32) -> (i32, i32) {
    %c0_i32 = arith.constant 0 : i32
    %c0_i32_0 = arith.constant 0 : i32
    %c0_i32_1 = arith.constant 0 : i32
    return %c0_i32, %c0_i32_0 : i32, i32
  }
  func.func @transform_20(%arg0: i32) -> (i32, i32, i32) {
    %c0_i32 = arith.constant 0 : i32
    %c0_i32_0 = arith.constant 0 : i32
    %c0_i32_1 = arith.constant 0 : i32
    return %arg0, %c0_i32, %c0_i32_0 : i32, i32, i32
  }
}

</mosaic_0001>

<llo_original>
// kernel: transformer_seq_gen_forward.1
$region0: #{transformer_seq_gen_forward.1}
  #allocation0 [shape = 'u32[]', space=smem, size = 0x4, offset = 0x4, fixed_abs, tag = 'smem constant byte address 0x4 - core index']
  #allocation1 [shape = 'u32[144,128]{1,0:T(1,128)}', space=vmem, size = 0x12000, scoped, tag = 'internal scratch']
  %s0 = inlined_call_operand.vmem [shape: f32[2,8,32], index: 0, kind: input, shape index: {}]
  %s1 = inlined_call_operand.vmem [shape: f32[2,6,32], index: 1, kind: input, shape index: {}]
  %s2 = inlined_call_operand.vmem [shape: f32[2,32,96], index: 2, kind: input, shape index: {}]
  %s3 = inlined_call_operand.vmem [shape: f32[2,1,96], index: 3, kind: input, shape index: {}]
  %s4 = inlined_call_operand.vmem [shape: f32[2,32,32], index: 4, kind: input, shape index: {}]
  %s5 = inlined_call_operand.vmem [shape: f32[2,1,32], index: 5, kind: input, shape index: {}]
  %s6 = inlined_call_operand.vmem [shape: f32[2,32,32], index: 6, kind: input, shape index: {}]
  %s7 = inlined_call_operand.vmem [shape: f32[2,1,32], index: 7, kind: input, shape index: {}]
  %s8 = inlined_call_operand.vmem [shape: f32[2,32,64], index: 8, kind: input, shape index: {}]
  %s9 = inlined_call_operand.vmem [shape: f32[2,1,64], index: 9, kind: input, shape index: {}]
  %s10 = inlined_call_operand.vmem [shape: f32[2,32,32], index: 10, kind: input, shape index: {}]
  %s11 = inlined_call_operand.vmem [shape: f32[2,1,32], index: 11, kind: input, shape index: {}]
  %s12 = inlined_call_operand.vmem [shape: f32[2,32,64], index: 12, kind: input, shape index: {}]
  %s13 = inlined_call_operand.vmem [shape: f32[2,1,64], index: 13, kind: input, shape index: {}]
  %s14 = inlined_call_operand.vmem [shape: f32[2,64,32], index: 14, kind: input, shape index: {}]
  %s15 = inlined_call_operand.vmem [shape: f32[2,1,32], index: 15, kind: input, shape index: {}]
  %s16 = inlined_call_operand.vmem [shape: f32[2,3,32], index: 16, kind: input, shape index: {}]
  %s17 = inlined_call_operand.vmem [shape: f32[2,3,32], index: 17, kind: input, shape index: {}]
  %s18 = inlined_call_operand.vmem [shape: f32[32,64], index: 18, kind: input, shape index: {}]
  %s19 = inlined_call_operand.vmem [shape: f32[1,64], index: 19, kind: input, shape index: {}]
  %s20 = inlined_call_operand.hbm [shape: f32[2,8,64], index: 20, kind: output, shape index: {}]
  %s21 = sld [smem:[#allocation0]]
  $region113: #{transformer_seq_gen_forward.1} parent=0
    _
  %s23 = ssub.s32 1, %s21
  %s24 = scalar_select 0, %s23, %s21
  $region1: #{transformer_seq_gen_forward.1} parent=0
    #allocation2 [shape = 'u8[8192]{0}', space=vmem, size = 0x2000, scoped, tag = 'output window, operand 0']
    #allocation3 [shape = 's32[2]{0}', space=sflag, size = 0x8, scoped, tag = 'scoped memory for transformer_seq_gen_forward.1']
    %25 = vsyncpa [#allocation3], 0
    %s26 = scalar_lea.sflag [#allocation3], 1
    %27 = vsyncpa %s26, 0
    loop: start=0, step=1, limit=4
    $region2: #{transformer_seq_gen_forward.1} parent=1 // loop_pre_header
      _
    $region3: #{transformer_seq_gen_forward.1} parent=1 // loop_header
      %s29 = sphi 0, %s33
      %p30 = scmp.ge.s32.totalorder %s29, 4
      %s39 = sphi 0, %s41
      %s42 = sphi 0, %s39
      %s43 = sphi 0, %s42
      %s59 = sphi 0, %s43
      %s65 = sphi 0, %s67
      %s68 = sphi 0, %s65
      %s69 = sphi 0, %s68
      %s85 = sphi 0, %s69
      %s89 = sphi 0, %s89
      %s91 = sphi 0, %s89
      %s92 = sphi 0, %s91
      %s106 = sphi 0, %s92
      %s110 = sphi 0, %s110
      %s112 = sphi 0, %s110
      %s113 = sphi 0, %s112
      %s127 = sphi 0, %s113
      %s131 = sphi 0, %s131
      %s133 = sphi 0, %s131
      %s134 = sphi 0, %s133
      %s148 = sphi 0, %s134
      %s152 = sphi 0, %s152
      %s154 = sphi 0, %s152
      %s155 = sphi 0, %s154
      %s169 = sphi 0, %s155
      %s173 = sphi 0, %s173
      %s175 = sphi 0, %s173
      %s176 = sphi 0, %s175
      %s190 = sphi 0, %s176
      %s194 = sphi 0, %s194
      %s196 = sphi 0, %s194
      %s197 = sphi 0, %s196
      %s211 = sphi 0, %s197
      %s215 = sphi 0, %s215
      %s217 = sphi 0, %s215
      %s218 = sphi 0, %s217
      %s232 = sphi 0, %s218
      %s236 = sphi 0, %s236
      %s238 = sphi 0, %s236
      %s239 = sphi 0, %s238
      %s253 = sphi 0, %s239
      %s257 = sphi 0, %s257
      %s259 = sphi 0, %s257
      %s260 = sphi 0, %s259
      %s274 = sphi 0, %s260
      %s278 = sphi 0, %s278
      %s280 = sphi 0, %s278
      %s281 = sphi 0, %s280
      %s295 = sphi 0, %s281
      %s299 = sphi 0, %s299
      %s301 = sphi 0, %s299
      %s302 = sphi 0, %s301
      %s316 = sphi 0, %s302
      %s320 = sphi 0, %s320
      %s322 = sphi 0, %s320
      %s323 = sphi 0, %s322
      %s337 = sphi 0, %s323
      %s341 = sphi 0, %s341
      %s343 = sphi 0, %s341
      %s344 = sphi 0, %s343
      %s358 = sphi 0, %s344
      %s362 = sphi 0, %s362
      %s364 = sphi 0, %s362
      %s365 = sphi 0, %s364
      %s379 = sphi 0, %s365
      %s383 = sphi 0, %s383
      %s385 = sphi 0, %s383
      %s386 = sphi 0, %s385
      %s400 = sphi 0, %s386
      %s404 = sphi 0, %s404
      %s406 = sphi 0, %s404
      %s407 = sphi 0, %s406
      %s421 = sphi 0, %s407
      %s425 = sphi 0, %s425
      %s427 = sphi 0, %s425
      %s428 = sphi 0, %s427
      %s442 = sphi 0, %s428
      %s446 = sphi 0, %s446
      %s448 = sphi 0, %s446
      %s449 = sphi 0, %s448
      %s463 = sphi 0, %s449
      %s469 = sphi 0, %s471
      %s472 = sphi 0, %s469
      %s473 = sphi 0, %s472
      %s489 = sphi 0, %s473
    $region4: #{transformer_seq_gen_forward.1} parent=1 // loop_header_branch
      %32 = sbr.rel (%p30) target = $region8
    $region5: #{transformer_seq_gen_forward.1} parent=1 // loop_body
      %s34 = ssub.s32 %s29, 1
      %s35 = ssub.s32 %s29, 2
      %s36 = sadd.s32 %s29, 1
      %s37 = ssub.s32 %s29, %s36
      %p38 = scmp.eq.s32.totalorder %s37, 0
      %s40 = sadd.s32 %s39, 1
      %s41 = scalar_select %p38, %s39, %s40
      %p44 = pneg %p38
      %p45 = scmp.eq.s32.totalorder %s29, 1
      %p46 = por %p44, %p45
      %p47 = scmp.ne.s32.totalorder %s39, %s42
      %p48 = scmp.eq.s32.totalorder %s29, 0
      %p49 = por %p47, %p48
      %p50 = scmp.ne.s32.totalorder %s39, %s42
      %p51 = scmp.eq.s32.totalorder %s34, 1
      %p52 = por %p50, %p51
      %p53 = scmp.ne.s32.totalorder %s42, %s43
      %p54 = scmp.eq.s32.totalorder %s34, 0
      %p55 = por %p53, %p54
      %p56 = scmp.ne.s32.totalorder %s42, %s43
      %p57 = scmp.eq.s32.totalorder %s35, 1
      %p58 = por %p56, %p57
      %p60 = scmp.ne.s32.totalorder %s43, %s59
      %p61 = scmp.eq.s32.totalorder %s35, 0
      %p62 = por %p60, %p61
      %s63 = ssub.s32 %s29, %s36
      %p64 = scmp.eq.s32.totalorder %s63, 0
      %s66 = sadd.s32 %s65, 1
      %s67 = scalar_select %p64, %s65, %s66
      %p70 = pneg %p64
      %p71 = scmp.eq.s32.totalorder %s29, 1
      %p72 = por %p70, %p71
      %p73 = scmp.ne.s32.totalorder %s65, %s68
      %p74 = scmp.eq.s32.totalorder %s29, 0
      %p75 = por %p73, %p74
      %p76 = scmp.ne.s32.totalorder %s65, %s68
      %p77 = scmp.eq.s32.totalorder %s34, 1
      %p78 = por %p76, %p77
      %p79 = scmp.ne.s32.totalorder %s68, %s69
      %p80 = scmp.eq.s32.totalorder %s34, 0
      %p81 = por %p79, %p80
      %p82 = scmp.ne.s32.totalorder %s68, %s69
      %p83 = scmp.eq.s32.totalorder %s35, 1
      %p84 = por %p82, %p83
      %p86 = scmp.ne.s32.totalorder %s69, %s85
      %p87 = scmp.eq.s32.totalorder %s35, 0
      %p88 = por %p86, %p87
      %s90 = sadd.s32 %s89, 1
      %p93 = scmp.eq.s32.totalorder %s29, 1
      %p94 = scmp.ne.s32.totalorder %s89, %s91
      %p95 = scmp.eq.s32.totalorder %s29, 0
      %p96 = por %p94, %p95
      %p97 = scmp.ne.s32.totalorder %s89, %s91
      %p98 = scmp.eq.s32.totalorder %s34, 1
      %p99 = por %p97, %p98
      %p100 = scmp.ne.s32.totalorder %s91, %s92
      %p101 = scmp.eq.s32.totalorder %s34, 0
      %p102 = por %p100, %p101
      %p103 = scmp.ne.s32.totalorder %s91, %s92
      %p104 = scmp.eq.s32.totalorder %s35, 1
      %p105 = por %p103, %p104
      %p107 = scmp.ne.s32.totalorder %s92, %s106
      %p108 = scmp.eq.s32.totalorder %s35, 0
      %p109 = por %p107, %p108
      %s111 = sadd.s32 %s110, 1
      %p114 = scmp.eq.s32.totalorder %s29, 1
      %p115 = scmp.ne.s32.totalorder %s110, %s112
      %p116 = scmp.eq.s32.totalorder %s29, 0
      %p117 = por %p115, %p116
      %p118 = scmp.ne.s32.totalorder %s110, %s112
      %p119 = scmp.eq.s32.totalorder %s34, 1
      %p120 = por %p118, %p119
      %p121 = scmp.ne.s32.totalorder %s112, %s113
      %p122 = scmp.eq.s32.totalorder %s34, 0
      %p123 = por %p121, %p122
      %p124 = scmp.ne.s32.totalorder %s112, %s113
      %p125 = scmp.eq.s32.totalorder %s35, 1
      %p126 = por %p124, %p125
      %p128 = scmp.ne.s32.totalorder %s113, %s127
      %p129 = scmp.eq.s32.totalorder %s35, 0
      %p130 = por %p128, %p129
      %s132 = sadd.s32 %s131, 1
      %p135 = scmp.eq.s32.totalorder %s29, 1
      %p136 = scmp.ne.s32.totalorder %s131, %s133
      %p137 = scmp.eq.s32.totalorder %s29, 0
      %p138 = por %p136, %p137
      %p139 = scmp.ne.s32.totalorder %s131, %s133
      %p140 = scmp.eq.s32.totalorder %s34, 1
      %p141 = por %p139, %p140
      %p142 = scmp.ne.s32.totalorder %s133, %s134
      %p143 = scmp.eq.s32.totalorder %s34, 0
      %p144 = por %p142, %p143
      %p145 = scmp.ne.s32.totalorder %s133, %s134
      %p146 = scmp.eq.s32.totalorder %s35, 1
      %p147 = por %p145, %p146
      %p149 = scmp.ne.s32.totalorder %s134, %s148
      %p150 = scmp.eq.s32.totalorder %s35, 0
      %p151 = por %p149, %p150
      %s153 = sadd.s32 %s152, 1
      %p156 = scmp.eq.s32.totalorder %s29, 1
      %p157 = scmp.ne.s32.totalorder %s152, %s154
      %p158 = scmp.eq.s32.totalorder %s29, 0
      %p159 = por %p157, %p158
      %p160 = scmp.ne.s32.totalorder %s152, %s154
      %p161 = scmp.eq.s32.totalorder %s34, 1
      %p162 = por %p160, %p161
      %p163 = scmp.ne.s32.totalorder %s154, %s155
      %p164 = scmp.eq.s32.totalorder %s34, 0
      %p165 = por %p163, %p164
      %p166 = scmp.ne.s32.totalorder %s154, %s155
      %p167 = scmp.eq.s32.totalorder %s35, 1
      %p168 = por %p166, %p167
      %p170 = scmp.ne.s32.totalorder %s155, %s169
      %p171 = scmp.eq.s32.totalorder %s35, 0
      %p172 = por %p170, %p171
      %s174 = sadd.s32 %s173, 1
      %p177 = scmp.eq.s32.totalorder %s29, 1
      %p178 = scmp.ne.s32.totalorder %s173, %s175
      %p179 = scmp.eq.s32.totalorder %s29, 0
      %p180 = por %p178, %p179
      %p181 = scmp.ne.s32.totalorder %s173, %s175
      %p182 = scmp.eq.s32.totalorder %s34, 1
      %p183 = por %p181, %p182
      %p184 = scmp.ne.s32.totalorder %s175, %s176
      %p185 = scmp.eq.s32.totalorder %s34, 0
      %p186 = por %p184, %p185
      %p187 = scmp.ne.s32.totalorder %s175, %s176
      %p188 = scmp.eq.s32.totalorder %s35, 1
      %p189 = por %p187, %p188
      %p191 = scmp.ne.s32.totalorder %s176, %s190
      %p192 = scmp.eq.s32.totalorder %s35, 0
      %p193 = por %p191, %p192
      %s195 = sadd.s32 %s194, 1
      %p198 = scmp.eq.s32.totalorder %s29, 1
      %p199 = scmp.ne.s32.totalorder %s194, %s196
      %p200 = scmp.eq.s32.totalorder %s29, 0
      %p201 = por %p199, %p200
      %p202 = scmp.ne.s32.totalorder %s194, %s196
      %p203 = scmp.eq.s32.totalorder %s34, 1
      %p204 = por %p202, %p203
      %p205 = scmp.ne.s32.totalorder %s196, %s197
      %p206 = scmp.eq.s32.totalorder %s34, 0
      %p207 = por %p205, %p206
      %p208 = scmp.ne.s32.totalorder %s196, %s197
      %p209 = scmp.eq.s32.totalorder %s35, 1
      %p210 = por %p208, %p209
      %p212 = scmp.ne.s32.totalorder %s197, %s211
      %p213 = scmp.eq.s32.totalorder %s35, 0
      %p214 = por %p212, %p213
      %s216 = sadd.s32 %s215, 1
      %p219 = scmp.eq.s32.totalorder %s29, 1
      %p220 = scmp.ne.s32.totalorder %s215, %s217
      %p221 = scmp.eq.s32.totalorder %s29, 0
      %p222 = por %p220, %p221
      %p223 = scmp.ne.s32.totalorder %s215, %s217
      %p224 = scmp.eq.s32.totalorder %s34, 1
      %p225 = por %p223, %p224
      %p226 = scmp.ne.s32.totalorder %s217, %s218
      %p227 = scmp.eq.s32.totalorder %s34, 0
      %p228 = por %p226, %p227
      %p229 = scmp.ne.s32.totalorder %s217, %s218
      %p230 = scmp.eq.s32.totalorder %s35, 1
      %p231 = por %p229, %p230
      %p233 = scmp.ne.s32.totalorder %s218, %s232
      %p234 = scmp.eq.s32.totalorder %s35, 0
      %p235 = por %p233, %p234
      %s237 = sadd.s32 %s236, 1
      %p240 = scmp.eq.s32.totalorder %s29, 1
      %p241 = scmp.ne.s32.totalorder %s236, %s238
      %p242 = scmp.eq.s32.totalorder %s29, 0
      %p243 = por %p241, %p242
      %p244 = scmp.ne.s32.totalorder %s236, %s238
      %p245 = scmp.eq.s32.totalorder %s34, 1
      %p246 = por %p244, %p245
      %p247 = scmp.ne.s32.totalorder %s238, %s239
      %p248 = scmp.eq.s32.totalorder %s34, 0
      %p249 = por %p247, %p248
      %p250 = scmp.ne.s32.totalorder %s238, %s239
      %p251 = scmp.eq.s32.totalorder %s35, 1
      %p252 = por %p250, %p251
      %p254 = scmp.ne.s32.totalorder %s239, %s253
      %p255 = scmp.eq.s32.totalorder %s35, 0
      %p256 = por %p254, %p255
      %s258 = sadd.s32 %s257, 1
      %p261 = scmp.eq.s32.totalorder %s29, 1
      %p262 = scmp.ne.s32.totalorder %s257, %s259
      %p263 = scmp.eq.s32.totalorder %s29, 0
      %p264 = por %p262, %p263
      %p265 = scmp.ne.s32.totalorder %s257, %s259
      %p266 = scmp.eq.s32.totalorder %s34, 1
      %p267 = por %p265, %p266
      %p268 = scmp.ne.s32.totalorder %s259, %s260
      %p269 = scmp.eq.s32.totalorder %s34, 0
      %p270 = por %p268, %p269
      %p271 = scmp.ne.s32.totalorder %s259, %s260
      %p272 = scmp.eq.s32.totalorder %s35, 1
      %p273 = por %p271, %p272
      %p275 = scmp.ne.s32.totalorder %s260, %s274
      %p276 = scmp.eq.s32.totalorder %s35, 0
      %p277 = por %p275, %p276
      %s279 = sadd.s32 %s278, 1
      %p282 = scmp.eq.s32.totalorder %s29, 1
      %p283 = scmp.ne.s32.totalorder %s278, %s280
      %p284 = scmp.eq.s32.totalorder %s29, 0
      %p285 = por %p283, %p284
      %p286 = scmp.ne.s32.totalorder %s278, %s280
      %p287 = scmp.eq.s32.totalorder %s34, 1
      %p288 = por %p286, %p287
      %p289 = scmp.ne.s32.totalorder %s280, %s281
      %p290 = scmp.eq.s32.totalorder %s34, 0
      %p291 = por %p289, %p290
      %p292 = scmp.ne.s32.totalorder %s280, %s281
      %p293 = scmp.eq.s32.totalorder %s35, 1
      %p294 = por %p292, %p293
      %p296 = scmp.ne.s32.totalorder %s281, %s295
      %p297 = scmp.eq.s32.totalorder %s35, 0
      %p298 = por %p296, %p297
      %s300 = sadd.s32 %s299, 1
      %p303 = scmp.eq.s32.totalorder %s29, 1
      %p304 = scmp.ne.s32.totalorder %s299, %s301
      %p305 = scmp.eq.s32.totalorder %s29, 0
      %p306 = por %p304, %p305
      %p307 = scmp.ne.s32.totalorder %s299, %s301
      %p308 = scmp.eq.s32.totalorder %s34, 1
      %p309 = por %p307, %p308
      %p310 = scmp.ne.s32.totalorder %s301, %s302
      %p311 = scmp.eq.s32.totalorder %s34, 0
      %p312 = por %p310, %p311
      %p313 = scmp.ne.s32.totalorder %s301, %s302
      %p314 = scmp.eq.s32.totalorder %s35, 1
      %p315 = por %p313, %p314
      %p317 = scmp.ne.s32.totalorder %s302, %s316
      %p318 = scmp.eq.s32.totalorder %s35, 0
      %p319 = por %p317, %p318
      %s321 = sadd.s32 %s320, 1
      %p324 = scmp.eq.s32.totalorder %s29, 1
      %p325 = scmp.ne.s32.totalorder %s320, %s322
      %p326 = scmp.eq.s32.totalorder %s29, 0
      %p327 = por %p325, %p326
      %p328 = scmp.ne.s32.totalorder %s320, %s322
      %p329 = scmp.eq.s32.totalorder %s34, 1
      %p330 = por %p328, %p329
      %p331 = scmp.ne.s32.totalorder %s322, %s323
      %p332 = scmp.eq.s32.totalorder %s34, 0
      %p333 = por %p331, %p332
      %p334 = scmp.ne.s32.totalorder %s322, %s323
      %p335 = scmp.eq.s32.totalorder %s35, 1
      %p336 = por %p334, %p335
      %p338 = scmp.ne.s32.totalorder %s323, %s337
      %p339 = scmp.eq.s32.totalorder %s35, 0
      %p340 = por %p338, %p339
      %s342 = sadd.s32 %s341, 1
      %p345 = scmp.eq.s32.totalorder %s29, 1
      %p346 = scmp.ne.s32.totalorder %s341, %s343
      %p347 = scmp.eq.s32.totalorder %s29, 0
      %p348 = por %p346, %p347
      %p349 = scmp.ne.s32.totalorder %s341, %s343
      %p350 = scmp.eq.s32.totalorder %s34, 1
      %p351 = por %p349, %p350
      %p352 = scmp.ne.s32.totalorder %s343, %s344
      %p353 = scmp.eq.s32.totalorder %s34, 0
      %p354 = por %p352, %p353
      %p355 = scmp.ne.s32.totalorder %s343, %s344
      %p356 = scmp.eq.s32.totalorder %s35, 1
      %p357 = por %p355, %p356
      %p359 = scmp.ne.s32.totalorder %s344, %s358
      %p360 = scmp.eq.s32.totalorder %s35, 0
      %p361 = por %p359, %p360
      %s363 = sadd.s32 %s362, 1
      %p366 = scmp.eq.s32.totalorder %s29, 1
      %p367 = scmp.ne.s32.totalorder %s362, %s364
      %p368 = scmp.eq.s32.totalorder %s29, 0
      %p369 = por %p367, %p368
      %p370 = scmp.ne.s32.totalorder %s362, %s364
      %p371 = scmp.eq.s32.totalorder %s34, 1
      %p372 = por %p370, %p371
      %p373 = scmp.ne.s32.totalorder %s364, %s365
      %p374 = scmp.eq.s32.totalorder %s34, 0
      %p375 = por %p373, %p374
      %p376 = scmp.ne.s32.totalorder %s364, %s365
      %p377 = scmp.eq.s32.totalorder %s35, 1
      %p378 = por %p376, %p377
      %p380 = scmp.ne.s32.totalorder %s365, %s379
      %p381 = scmp.eq.s32.totalorder %s35, 0
      %p382 = por %p380, %p381
      %s384 = sadd.s32 %s383, 1
      %p387 = scmp.eq.s32.totalorder %s29, 1
      %p388 = scmp.ne.s32.totalorder %s383, %s385
      %p389 = scmp.eq.s32.totalorder %s29, 0
      %p390 = por %p388, %p389
      %p391 = scmp.ne.s32.totalorder %s383, %s385
      %p392 = scmp.eq.s32.totalorder %s34, 1
      %p393 = por %p391, %p392
      %p394 = scmp.ne.s32.totalorder %s385, %s386
      %p395 = scmp.eq.s32.totalorder %s34, 0
      %p396 = por %p394, %p395
      %p397 = scmp.ne.s32.totalorder %s385, %s386
      %p398 = scmp.eq.s32.totalorder %s35, 1
      %p399 = por %p397, %p398
      %p401 = scmp.ne.s32.totalorder %s386, %s400
      %p402 = scmp.eq.s32.totalorder %s35, 0
      %p403 = por %p401, %p402
      %s405 = sadd.s32 %s404, 1
      %p408 = scmp.eq.s32.totalorder %s29, 1
      %p409 = scmp.ne.s32.totalorder %s404, %s406
      %p410 = scmp.eq.s32.totalorder %s29, 0
      %p411 = por %p409, %p410
      %p412 = scmp.ne.s32.totalorder %s404, %s406
      %p413 = scmp.eq.s32.totalorder %s34, 1
      %p414 = por %p412, %p413
      %p415 = scmp.ne.s32.totalorder %s406, %s407
      %p416 = scmp.eq.s32.totalorder %s34, 0
      %p417 = por %p415, %p416
      %p418 = scmp.ne.s32.totalorder %s406, %s407
      %p419 = scmp.eq.s32.totalorder %s35, 1
      %p420 = por %p418, %p419
      %p422 = scmp.ne.s32.totalorder %s407, %s421
      %p423 = scmp.eq.s32.totalorder %s35, 0
      %p424 = por %p422, %p423
      %s426 = sadd.s32 %s425, 1
      %p429 = scmp.eq.s32.totalorder %s29, 1
      %p430 = scmp.ne.s32.totalorder %s425, %s427
      %p431 = scmp.eq.s32.totalorder %s29, 0
      %p432 = por %p430, %p431
      %p433 = scmp.ne.s32.totalorder %s425, %s427
      %p434 = scmp.eq.s32.totalorder %s34, 1
      %p435 = por %p433, %p434
      %p436 = scmp.ne.s32.totalorder %s427, %s428
      %p437 = scmp.eq.s32.totalorder %s34, 0
      %p438 = por %p436, %p437
      %p439 = scmp.ne.s32.totalorder %s427, %s428
      %p440 = scmp.eq.s32.totalorder %s35, 1
      %p441 = por %p439, %p440
      %p443 = scmp.ne.s32.totalorder %s428, %s442
      %p444 = scmp.eq.s32.totalorder %s35, 0
      %p445 = por %p443, %p444
      %s447 = sadd.s32 %s446, 1
      %p450 = scmp.eq.s32.totalorder %s29, 1
      %p451 = scmp.ne.s32.totalorder %s446, %s448
      %p452 = scmp.eq.s32.totalorder %s29, 0
      %p453 = por %p451, %p452
      %p454 = scmp.ne.s32.totalorder %s446, %s448
      %p455 = scmp.eq.s32.totalorder %s34, 1
      %p456 = por %p454, %p455
      %p457 = scmp.ne.s32.totalorder %s448, %s449
      %p458 = scmp.eq.s32.totalorder %s34, 0
      %p459 = por %p457, %p458
      %p460 = scmp.ne.s32.totalorder %s448, %s449
      %p461 = scmp.eq.s32.totalorder %s35, 1
      %p462 = por %p460, %p461
      %p464 = scmp.ne.s32.totalorder %s449, %s463
      %p465 = scmp.eq.s32.totalorder %s35, 0
      %p466 = por %p464, %p465
      %s467 = ssub.s32 %s29, %s36
      %p468 = scmp.eq.s32.totalorder %s467, 0
      %s470 = sadd.s32 %s469, 1
      %s471 = scalar_select %p468, %s469, %s470
      %p474 = pneg %p468
      %p475 = scmp.eq.s32.totalorder %s29, 1
      %p476 = por %p474, %p475
      %p477 = scmp.ne.s32.totalorder %s469, %s472
      %p478 = scmp.eq.s32.totalorder %s29, 0
      %p479 = por %p477, %p478
      %p480 = scmp.ne.s32.totalorder %s469, %s472
      %p481 = scmp.eq.s32.totalorder %s34, 1
      %p482 = por %p480, %p481
      %p483 = scmp.ne.s32.totalorder %s472, %s473
      %p484 = scmp.eq.s32.totalorder %s34, 0
      %p485 = por %p483, %p484
      %p486 = scmp.ne.s32.totalorder %s472, %s473
      %p487 = scmp.eq.s32.totalorder %s35, 1
      %p488 = por %p486, %p487
      %p490 = scmp.ne.s32.totalorder %s473, %s489
      %p491 = scmp.eq.s32.totalorder %s35, 0
      %p492 = por %p490, %p491
      %p493 = scmp.le.s32.totalorder 1, %s29
      %p494 = scmp.lt.s32.totalorder %s29, 3
      %p495 = pnand %p493, %p494
      %p496 = pneg %p495
      // Predicated region
      $region9: #{transformer_seq_gen_forward.1} parent=5 // pred_check
        _
      $region10: #{transformer_seq_gen_forward.1} parent=5 // pred_check_branch
        %498 = sbr.rel (%p495) target = $region12
      $region11: #{transformer_seq_gen_forward.1} parent=5 // pred_region
        %s499 = ssub.s32 %s29, 1
        // Predicated region
        $region13: #{transformer_seq_gen_forward.1} parent=11 // pred_check
          %p500 = pneg %p102
        $region14: #{transformer_seq_gen_forward.1} parent=11 // pred_check_branch
          %502 = sbr.rel (%p500) target = $region16
        $region15: #{transformer_seq_gen_forward.1} parent=11 // pred_region
          _
        $region16: #{transformer_seq_gen_forward.1} parent=11 // pred_fallthru
          _
        // Predicated region
        $region17: #{transformer_seq_gen_forward.1} parent=11 // pred_check
          %p503 = pneg %p123
        $region18: #{transformer_seq_gen_forward.1} parent=11 // pred_check_branch
          %505 = sbr.rel (%p503) target = $region20
        $region19: #{transformer_seq_gen_forward.1} parent=11 // pred_region
          _
        $region20: #{transformer_seq_gen_forward.1} parent=11 // pred_fallthru
          _
        // Predicated region
        $region21: #{transformer_seq_gen_forward.1} parent=11 // pred_check
          %p506 = pneg %p144
        $region22: #{transformer_seq_gen_forward.1} parent=11 // pred_check_branch
          %508 = sbr.rel (%p506) target = $region24
        $region23: #{transformer_seq_gen_forward.1} parent=11 // pred_region
          _
        $region24: #{transformer_seq_gen_forward.1} parent=11 // pred_fallthru
          _
        // Predicated region
        $region25: #{transformer_seq_gen_forward.1} parent=11 // pred_check
          %p509 = pneg %p165
        $region26: #{transformer_seq_gen_forward.1} parent=11 // pred_check_branch
          %511 = sbr.rel (%p509) target = $region28
        $region27: #{transformer_seq_gen_forward.1} parent=11 // pred_region
          _
        $region28: #{transformer_seq_gen_forward.1} parent=11 // pred_fallthru
          _
        // Predicated region
        $region29: #{transformer_seq_gen_forward.1} parent=11 // pred_check
          %p512 = pneg %p186
        $region30: #{transformer_seq_gen_forward.1} parent=11 // pred_check_branch
          %514 = sbr.rel (%p512) target = $region32
        $region31: #{transformer_seq_gen_forward.1} parent=11 // pred_region
          _
        $region32: #{transformer_seq_gen_forward.1} parent=11 // pred_fallthru
          _
        // Predicated region
        $region33: #{transformer_seq_gen_forward.1} parent=11 // pred_check
          %p515 = pneg %p207
        $region34: #{transformer_seq_gen_forward.1} parent=11 // pred_check_branch
          %517 = sbr.rel (%p515) target = $region36
        $region35: #{transformer_seq_gen_forward.1} parent=11 // pred_region
          _
        $region36: #{transformer_seq_gen_forward.1} parent=11 // pred_fallthru
          _
        // Predicated region
        $region37: #{transformer_seq_gen_forward.1} parent=11 // pred_check
          %p518 = pneg %p228
        $region38: #{transformer_seq_gen_forward.1} parent=11 // pred_check_branch
          %520 = sbr.rel (%p518) target = $region40
        $region39: #{transformer_seq_gen_forward.1} parent=11 // pred_region
          _
        $region40: #{transformer_seq_gen_forward.1} parent=11 // pred_fallthru
          _
        // Predicated region
        $region41: #{transformer_seq_gen_forward.1} parent=11 // pred_check
          %p521 = pneg %p249
        $region42: #{transformer_seq_gen_forward.1} parent=11 // pred_check_branch
          %523 = sbr.rel (%p521) target = $region44
        $region43: #{transformer_seq_gen_forward.1} parent=11 // pred_region
          _
        $region44: #{transformer_seq_gen_forward.1} parent=11 // pred_fallthru
          _
        // Predicated region
        $region45: #{transformer_seq_gen_forward.1} parent=11 // pred_check
          %p524 = pneg %p270
        $region46: #{transformer_seq_gen_forward.1} parent=11 // pred_check_branch
          %526 = sbr.rel (%p524) target = $region48
        $region47: #{transformer_seq_gen_forward.1} parent=11 // pred_region
          _
        $region48: #{transformer_seq_gen_forward.1} parent=11 // pred_fallthru
          _
        // Predicated region
        $region49: #{transformer_seq_gen_forward.1} parent=11 // pred_check
          %p527 = pneg %p291
        $region50: #{transformer_seq_gen_forward.1} parent=11 // pred_check_branch
          %529 = sbr.rel (%p527) target = $region52
        $region51: #{transformer_seq_gen_forward.1} parent=11 // pred_region
          _
        $region52: #{transformer_seq_gen_forward.1} parent=11 // pred_fallthru
          _
        // Predicated region
        $region53: #{transformer_seq_gen_forward.1} parent=11 // pred_check
          %p530 = pneg %p312
        $region54: #{transformer_seq_gen_forward.1} parent=11 // pred_check_branch
          %532 = sbr.rel (%p530) target = $region56
        $region55: #{transformer_seq_gen_forward.1} parent=11 // pred_region
          _
        $region56: #{transformer_seq_gen_forward.1} parent=11 // pred_fallthru
          _
        // Predicated region
        $region57: #{transformer_seq_gen_forward.1} parent=11 // pred_check
          %p533 = pneg %p333
        $region58: #{transformer_seq_gen_forward.1} parent=11 // pred_check_branch
          %535 = sbr.rel (%p533) target = $region60
        $region59: #{transformer_seq_gen_forward.1} parent=11 // pred_region
          _
        $region60: #{transformer_seq_gen_forward.1} parent=11 // pred_fallthru
          _
        // Predicated region
        $region61: #{transformer_seq_gen_forward.1} parent=11 // pred_check
          %p536 = pneg %p354
        $region62: #{transformer_seq_gen_forward.1} parent=11 // pred_check_branch
          %538 = sbr.rel (%p536) target = $region64
        $region63: #{transformer_seq_gen_forward.1} parent=11 // pred_region
          _
        $region64: #{transformer_seq_gen_forward.1} parent=11 // pred_fallthru
          _
        // Predicated region
        $region65: #{transformer_seq_gen_forward.1} parent=11 // pred_check
          %p539 = pneg %p375
        $region66: #{transformer_seq_gen_forward.1} parent=11 // pred_check_branch
          %541 = sbr.rel (%p539) target = $region68
        $region67: #{transformer_seq_gen_forward.1} parent=11 // pred_region
          _
        $region68: #{transformer_seq_gen_forward.1} parent=11 // pred_fallthru
          _
        // Predicated region
        $region69: #{transformer_seq_gen_forward.1} parent=11 // pred_check
          %p542 = pneg %p396
        $region70: #{transformer_seq_gen_forward.1} parent=11 // pred_check_branch
          %544 = sbr.rel (%p542) target = $region72
        $region71: #{transformer_seq_gen_forward.1} parent=11 // pred_region
          _
        $region72: #{transformer_seq_gen_forward.1} parent=11 // pred_fallthru
          _
        // Predicated region
        $region73: #{transformer_seq_gen_forward.1} parent=11 // pred_check
          %p545 = pneg %p417
        $region74: #{transformer_seq_gen_forward.1} parent=11 // pred_check_branch
          %547 = sbr.rel (%p545) target = $region76
        $region75: #{transformer_seq_gen_forward.1} parent=11 // pred_region
          _
        $region76: #{transformer_seq_gen_forward.1} parent=11 // pred_fallthru
          _
        // Predicated region
        $region77: #{transformer_seq_gen_forward.1} parent=11 // pred_check
          %p548 = pneg %p438
        $region78: #{transformer_seq_gen_forward.1} parent=11 // pred_check_branch
          %550 = sbr.rel (%p548) target = $region80
        $region79: #{transformer_seq_gen_forward.1} parent=11 // pred_region
          _
        $region80: #{transformer_seq_gen_forward.1} parent=11 // pred_fallthru
          _
        // Predicated region
        $region81: #{transformer_seq_gen_forward.1} parent=11 // pred_check
          %p551 = pneg %p459
        $region82: #{transformer_seq_gen_forward.1} parent=11 // pred_check_branch
          %553 = sbr.rel (%p551) target = $region84
        $region83: #{transformer_seq_gen_forward.1} parent=11 // pred_region
          _
        $region84: #{transformer_seq_gen_forward.1} parent=11 // pred_fallthru
          _
      $region12: #{transformer_seq_gen_forward.1} parent=5 // pred_fallthru
        _
      %p554 = scmp.lt.s32.totalorder %s29, 2
      // Predicated region
      $region85: #{transformer_seq_gen_forward.1} parent=5 // pred_check
        %p555 = pneg %p554
      $region86: #{transformer_seq_gen_forward.1} parent=5 // pred_check_branch
        %557 = sbr.rel (%p555) target = $region88
      $region87: #{transformer_seq_gen_forward.1} parent=5 // pred_region
        // Predicated region
        $region89: #{transformer_seq_gen_forward.1} parent=87 // pred_check
          %p558 = pneg %p49
        $region90: #{transformer_seq_gen_forward.1} parent=87 // pred_check_branch
          %560 = sbr.rel (%p558) target = $region92
        $region91: #{transformer_seq_gen_forward.1} parent=87 // pred_region
          %p561 = scmp.lt.s32.totalorder %s29, 1
          %s562 = scalar_select %p561, %s29, 1
          %s563 = smul.addr %s562, 8
          %s564 = scalar_lea.vmem %s0, %s563
        $region92: #{transformer_seq_gen_forward.1} parent=87 // pred_fallthru
          _
        // Predicated region
        $region93: #{transformer_seq_gen_forward.1} parent=87 // pred_check
          %p565 = pneg %p75
        $region94: #{transformer_seq_gen_forward.1} parent=87 // pred_check_branch
          %567 = sbr.rel (%p565) target = $region96
        $region95: #{transformer_seq_gen_forward.1} parent=87 // pred_region
          %p568 = scmp.lt.s32.totalorder %s29, 1
          %s569 = scalar_select %p568, %s29, 1
          %s570 = smul.addr %s569, 8
          %s571 = scalar_lea.vmem %s1, %s570
        $region96: #{transformer_seq_gen_forward.1} parent=87 // pred_fallthru
          _
      $region88: #{transformer_seq_gen_forward.1} parent=5 // pred_fallthru
        _
      %p572 = scmp.le.s32.totalorder 1, %s29
      %p573 = scmp.lt.s32.totalorder %s29, 3
      %p574 = pnand %p572, %p573
      %p575 = pneg %p574
      // Predicated region
      $region97: #{transformer_seq_gen_forward.1} parent=5 // pred_check
        _
      $region98: #{transformer_seq_gen_forward.1} parent=5 // pred_check_branch
        %577 = sbr.rel (%p574) target = $region100
      $region99: #{transformer_seq_gen_forward.1} parent=5 // pred_region
        %s578 = ssub.s32 %s29, 1
        %p579 = scmp.lt.s32.totalorder %s34, 1
        %s580 = scalar_select %p579, %s34, 1
        %s581 = smul.addr %s580, 8
        %s582 = scalar_lea.vmem %s0, %s581
        %p583 = pneg %p55
        %p584 = pneg %p52
        %p585 = scmp.lt.s32.totalorder %s34, 1
        %s586 = scalar_select %p585, %s34, 1
        %s587 = smul.addr %s586, 8
        %s588 = scalar_lea.vmem %s1, %s587
        %p589 = pneg %p81
        %p590 = pneg %p78
        %p591 = pneg %p102
        %p592 = pneg %p99
        %p593 = pneg %p123
        %p594 = pneg %p120
        %p595 = pneg %p144
        %p596 = pneg %p141
        %p597 = pneg %p165
        %p598 = pneg %p162
        %p599 = pneg %p186
        %p600 = pneg %p183
        %p601 = pneg %p207
        %p602 = pneg %p204
        %p603 = pneg %p228
        %p604 = pneg %p225
        %p605 = pneg %p249
        %p606 = pneg %p246
        %p607 = pneg %p270
        %p608 = pneg %p267
        %p609 = pneg %p291
        %p610 = pneg %p288
        %p611 = pneg %p312
        %p612 = pneg %p309
        %p613 = pneg %p333
        %p614 = pneg %p330
        %p615 = pneg %p354
        %p616 = pneg %p351
        %p617 = pneg %p375
        %p618 = pneg %p372
        %p619 = pneg %p396
        %p620 = pneg %p393
        %p621 = pneg %p417
        %p622 = pneg %p414
        %p623 = pneg %p438
        %p624 = pneg %p435
        %p625 = pneg %p459
        %p626 = pneg %p456
        %p627 = pneg %p485
        %p628 = pneg %p482
        %s629 = sand.u32 %s472, 1
        %s630 = scalar_lea.sflag [#allocation3], %s629
        %s631 = sand.u32 %s472, 1
        %s632 = smul.addr %s631, 8
        %s633 = scalar_lea.vmem [#allocation2], %s632
        %p634 = scmp.lt.s32.totalorder %s34, 1
        %s635 = scalar_select %p634, %s34, 1
        %s636 = smul.addr %s635, 8
        %s637 = scalar_lea.vmem %s0, %s636
        %p638 = scmp.lt.s32.totalorder %s34, 1
        %s639 = scalar_select %p638, %s34, 1
        %s640 = smul.addr %s639, 8
        %s641 = scalar_lea.vmem %s1, %s640
        %v642 = vld [vmem:[%s637] sm:$0xff]
        %v643 = vld [vmem:[%s641] sm:$0x3f]
        %v644 = vlaneseq
        %v645 = vshrl.u32 %v644, 7
        %v646 = vlaneseq
        %v647 = vand.u32 %v646, 127
        %vm648 = vcmp.gt.s32.totalorder %v647, %v645
        %v649 = vsel %vm648, -1e+30, 0.0
        %v650 = vld [vmem:[%s16] sm:$0x7]
        %v651 = vld [vmem:[%s17] sm:$0x7]
        %v652 = vld [vmem:[%s2] sm:$0xff]
        %v653 = vld [vmem:[%s2 + $0x8] sm:$0xff]
        %v654 = vld [vmem:[%s2 + $0x10] sm:$0xff]
        %v655 = vld [vmem:[%s2 + $0x18] sm:$0xff]
        %v656 = vld [vmem:[%s3] sm:$0x1]
        %v658 = vlaneseq
        %v659 = vshrl.u32 %v658, 7
        %v660 = vsub.s32 0, %v659
        %v661 = vrot.slane %v656, %v660
        %vm663 = vcmask 261120
        %v665 = vsel %vm663, %v642, 0
        %667 = vmatprep.subr.mxu0 0.0
        %668 = vmatpush1.msra.mxu0 0.0
        %669 = vmatprep.subr.mxu0 0.0
        %670 = vmatpush1.msra.mxu0 0.0
        %671 = vmatprep.subr.mxu0 0.0
        %672 = vmatpush1.msra.mxu0 0.0
        %673 = vmatprep.subr.mxu0 0.0
        %674 = vmatpush1.msra.mxu0 0.0
        %675 = vmatprep.subr.mxu0 0.0
        %676 = vmatpush1.msra.mxu0 0.0
        %677 = vmatprep.subr.mxu0 0.0
        %678 = vmatpush1.msra.mxu0 0.0
        %679 = vmatprep.subr.mxu0 0.0
        %680 = vmatpush1.msra.mxu0 0.0
        %681 = vmatprep.subr.mxu0 0.0
        %682 = vmatpush1.msra.mxu0 0.0
        %683 = vmatprep.subr.mxu0 0.0
        %684 = vmatpush1.msra.mxu0 0.0
        %685 = vmatprep.subr.mxu0 0.0
        %686 = vmatpush1.msra.mxu0 0.0
        %687 = vmatprep.subr.mxu0 0.0
        %688 = vmatpush1.msra.mxu0 0.0
        %689 = vmatprep.subr.mxu0 0.0
        %690 = vmatpush1.msra.mxu0 0.0
        %691 = vmatprep.subr.mxu0 0.0
        %692 = vmatpush1.msra.mxu0 %v655
        %693 = vmatprep.subr.mxu0 0.0
        %694 = vmatpush1.msra.mxu0 %v654
        %695 = vmatprep.subr.mxu0 0.0
        %696 = vmatpush1.msra.mxu0 %v653
        %697 = vmatprep.subr.mxu0 0.0
        %698 = vmatpush1.msra.mxu0 %v652
        %699 = vmatprep.subr.mxu0 0.0
        %700 = vmatpush2.msra.mxu0 0.0
        %701 = vmatprep.subr.mxu0 0.0
        %702 = vmatpush2.msra.mxu0 0.0
        %703 = vmatprep.subr.mxu0 0.0
        %704 = vmatpush2.msra.mxu0 0.0
        %705 = vmatprep.subr.mxu0 0.0
        %706 = vmatpush2.msra.mxu0 0.0
        %707 = vmatprep.subr.mxu0 0.0
        %708 = vmatpush2.msra.mxu0 0.0
        %709 = vmatprep.subr.mxu0 0.0
        %710 = vmatpush2.msra.mxu0 0.0
        %711 = vmatprep.subr.mxu0 0.0
        %712 = vmatpush2.msra.mxu0 0.0
        %713 = vmatprep.subr.mxu0 0.0
        %714 = vmatpush2.msra.mxu0 0.0
        %715 = vmatprep.subr.mxu0 0.0
        %716 = vmatpush2.msra.mxu0 0.0
        %717 = vmatprep.subr.mxu0 0.0
        %718 = vmatpush2.msra.mxu0 0.0
        %719 = vmatprep.subr.mxu0 0.0
        %720 = vmatpush2.msra.mxu0 0.0
        %721 = vmatprep.subr.mxu0 0.0
        %722 = vmatpush2.msra.mxu0 0.0
        %723 = vmatprep.subr.mxu0 0.0
        %724 = vmatpush2.msra.mxu0 0.0
        %725 = vmatprep.subr.mxu0 0.0
        %726 = vmatpush2.msra.mxu0 0.0
        %727 = vmatprep.subr.mxu0 0.0
        %728 = vmatpush2.msra.mxu0 0.0
        %729 = vmatprep.subr.mxu0 0.0
        %730 = vmatpush2.msra.mxu0 0.0
        %731 = vmatprep.mubr.f32.mxu0 0.0
        %732 = vmatmul.mubr.f32.gmra.mxu0 %v665
        %v733 = vpop.f32.mrf.mxu0
        %v734 = vadd.f32 %v661, %v733
        %v735 = vpop.f32.mrf.mxu0
        %736 = vdwg.mxu0
        %v737 = vld [vmem:[%s4] sm:$0xff]
        %v738 = vld [vmem:[%s4 + $0x8] sm:$0xff]
        %v739 = vld [vmem:[%s4 + $0x10] sm:$0xff]
        %v740 = vld [vmem:[%s4 + $0x18] sm:$0xff]
        %v741 = vld [vmem:[%s5] sm:$0x1]
        %743 = vrot.lane.b32.xlu0 %v734, 96
        %v744 = vpop.permute.xlu0 %743
        %vm745 = vcmask 64512
        %v746 = vsel %vm745, %v734, 0
        %v748 = vsel %vm745, %v744, 0
        %750 = vmatprep.subr.mxu0 0.0
        %751 = vmatpush1.xpose.msra.mxu0 0.0
        %752 = vmatprep.subr.mxu0 0.0
        %753 = vmatpush1.xpose.msra.mxu0 0.0
        %754 = vmatprep.subr.mxu0 0.0
        %755 = vmatpush1.xpose.msra.mxu0 0.0
        %756 = vmatprep.subr.mxu0 0.0
        %757 = vmatpush1.xpose.msra.mxu0 0.0
        %758 = vmatprep.subr.mxu0 0.0
        %759 = vmatpush1.xpose.msra.mxu0 0.0
        %760 = vmatprep.subr.mxu0 0.0
        %761 = vmatpush1.xpose.msra.mxu0 0.0
        %762 = vmatprep.subr.mxu0 0.0
        %763 = vmatpush1.xpose.msra.mxu0 0.0
        %764 = vmatprep.subr.mxu0 0.0
        %765 = vmatpush1.xpose.msra.mxu0 0.0
        %766 = vmatprep.subr.mxu0 0.0
        %767 = vmatpush1.xpose.msra.mxu0 0.0
        %768 = vmatprep.subr.mxu0 0.0
        %769 = vmatpush1.xpose.msra.mxu0 0.0
        %770 = vmatprep.subr.mxu0 0.0
        %771 = vmatpush1.xpose.msra.mxu0 0.0
        %772 = vmatprep.subr.mxu0 0.0
        %773 = vmatpush1.xpose.msra.mxu0 0.0
        %774 = vmatprep.subr.mxu0 0.0
        %775 = vmatpush1.xpose.msra.mxu0 0.0
        %776 = vmatprep.subr.mxu0 0.0
        %777 = vmatpush1.xpose.msra.mxu0 0.0
        %778 = vmatprep.subr.mxu0 0.0
        %779 = vmatpush1.xpose.msra.mxu0 0.0
        %780 = vmatprep.subr.mxu0 0.0
        %781 = vmatpush1.xpose.msra.mxu0 %v748
        %782 = vmatprep.subr.mxu0 0.0
        %783 = vmatpush2.xpose.msra.mxu0 0.0
        %784 = vmatprep.subr.mxu0 0.0
        %785 = vmatpush2.xpose.msra.mxu0 0.0
        %786 = vmatprep.subr.mxu0 0.0
        %787 = vmatpush2.xpose.msra.mxu0 0.0
        %788 = vmatprep.subr.mxu0 0.0
        %789 = vmatpush2.xpose.msra.mxu0 0.0
        %790 = vmatprep.subr.mxu0 0.0
        %791 = vmatpush2.xpose.msra.mxu0 0.0
        %792 = vmatprep.subr.mxu0 0.0
        %793 = vmatpush2.xpose.msra.mxu0 0.0
        %794 = vmatprep.subr.mxu0 0.0
        %795 = vmatpush2.xpose.msra.mxu0 0.0
        %796 = vmatprep.subr.mxu0 0.0
        %797 = vmatpush2.xpose.msra.mxu0 0.0
        %798 = vmatprep.subr.mxu0 0.0
        %799 = vmatpush2.xpose.msra.mxu0 0.0
        %800 = vmatprep.subr.mxu0 0.0
        %801 = vmatpush2.xpose.msra.mxu0 0.0
        %802 = vmatprep.subr.mxu0 0.0
        %803 = vmatpush2.xpose.msra.mxu0 0.0
        %804 = vmatprep.subr.mxu0 0.0
        %805 = vmatpush2.xpose.msra.mxu0 0.0
        %806 = vmatprep.subr.mxu0 0.0
        %807 = vmatpush2.xpose.msra.mxu0 0.0
        %808 = vmatprep.subr.mxu0 0.0
        %809 = vmatpush2.xpose.msra.mxu0 0.0
        %810 = vmatprep.subr.mxu0 0.0
        %811 = vmatpush2.xpose.msra.mxu0 0.0
        %812 = vmatprep.subr.mxu0 0.0
        %813 = vmatpush2.xpose.msra.mxu0 0.0
        %814 = vmatprep.mubr.f32.mxu0 0.0
        %815 = vmatmul.mubr.f32.gmra.mxu0 %v746
        %v816 = vpop.f32.mrf.mxu0
        %v817 = vadd.f32 %v649, %v816
        %v818 = vpop.f32.mrf.mxu0
        %819 = vdwg.mxu0
        %v820 = vsel %vm745, %v817, -inf
        %821 = vmax.xlane.f32.xlu0 %v820
        %v822 = vpop.xlane.xlu0 %821
        %v823 = vsub.f32 %v817, %v822
        %v824 = vmul.f32 %v823, 1.442695
        %v825 = vpow.pop %v824
        %v826 = vsel %vm745, %v825, 0.0
        %827 = vadd.xlane.f32.xlu0 %v826
        %v828 = vpop.xlane.xlu0 %827
        %v829 = vrcp.pop %v828
        %v830 = vmul.f32 %v825, %v829
        %831 = vrot.lane.b32.xlu0 %v734, 64
        %v832 = vpop.permute.xlu0 %831
        %v835 = vsel %vm745, %v830, 0
        %837 = vmatprep.subr.mxu0 0.0
        %838 = vmatpush1.msra.mxu0 0.0
        %839 = vmatprep.subr.mxu0 0.0
        %840 = vmatpush1.msra.mxu0 0.0
        %841 = vmatprep.subr.mxu0 0.0
        %842 = vmatpush1.msra.mxu0 0.0
        %843 = vmatprep.subr.mxu0 0.0
        %844 = vmatpush1.msra.mxu0 0.0
        %845 = vmatprep.subr.mxu0 0.0
        %846 = vmatpush1.msra.mxu0 0.0
        %847 = vmatprep.subr.mxu0 0.0
        %848 = vmatpush1.msra.mxu0 0.0
        %849 = vmatprep.subr.mxu0 0.0
        %850 = vmatpush1.msra.mxu0 0.0
        %851 = vmatprep.subr.mxu0 0.0
        %852 = vmatpush1.msra.mxu0 0.0
        %853 = vmatprep.subr.mxu0 0.0
        %854 = vmatpush1.msra.mxu0 0.0
        %855 = vmatprep.subr.mxu0 0.0
        %856 = vmatpush1.msra.mxu0 0.0
        %857 = vmatprep.subr.mxu0 0.0
        %858 = vmatpush1.msra.mxu0 0.0
        %859 = vmatprep.subr.mxu0 0.0
        %860 = vmatpush1.msra.mxu0 0.0
        %861 = vmatprep.subr.mxu0 0.0
        %862 = vmatpush1.msra.mxu0 0.0
        %863 = vmatprep.subr.mxu0 0.0
        %864 = vmatpush1.msra.mxu0 0.0
        %865 = vmatprep.subr.mxu0 0.0
        %866 = vmatpush1.msra.mxu0 0.0
        %867 = vmatprep.subr.mxu0 0.0
        %868 = vmatpush1.msra.mxu0 %v832
        %869 = vmatprep.subr.mxu0 0.0
        %870 = vmatpush2.msra.mxu0 0.0
        %871 = vmatprep.subr.mxu0 0.0
        %872 = vmatpush2.msra.mxu0 0.0
        %873 = vmatprep.subr.mxu0 0.0
        %874 = vmatpush2.msra.mxu0 0.0
        %875 = vmatprep.subr.mxu0 0.0
        %876 = vmatpush2.msra.mxu0 0.0
        %877 = vmatprep.subr.mxu0 0.0
        %878 = vmatpush2.msra.mxu0 0.0
        %879 = vmatprep.subr.mxu0 0.0
        %880 = vmatpush2.msra.mxu0 0.0
        %881 = vmatprep.subr.mxu0 0.0
        %882 = vmatpush2.msra.mxu0 0.0
        %883 = vmatprep.subr.mxu0 0.0
        %884 = vmatpush2.msra.mxu0 0.0
        %885 = vmatprep.subr.mxu0 0.0
        %886 = vmatpush2.msra.mxu0 0.0
        %887 = vmatprep.subr.mxu0 0.0
        %888 = vmatpush2.msra.mxu0 0.0
        %889 = vmatprep.subr.mxu0 0.0
        %890 = vmatpush2.msra.mxu0 0.0
        %891 = vmatprep.subr.mxu0 0.0
        %892 = vmatpush2.msra.mxu0 0.0
        %893 = vmatprep.subr.mxu0 0.0
        %894 = vmatpush2.msra.mxu0 0.0
        %895 = vmatprep.subr.mxu0 0.0
        %896 = vmatpush2.msra.mxu0 0.0
        %897 = vmatprep.subr.mxu0 0.0
        %898 = vmatpush2.msra.mxu0 0.0
        %899 = vmatprep.subr.mxu0 0.0
        %900 = vmatpush2.msra.mxu0 0.0
        %901 = vmatprep.mubr.f32.mxu0 0.0
        %902 = vmatmul.mubr.f32.gmra.mxu0 %v835
        %v903 = vpop.f32.mrf.mxu0
        %v904 = vadd.f32 0.0, %v903
        %v905 = vpop.f32.mrf.mxu0
        %906 = vdwg.mxu0
        %907 = vrot.lane.b32.xlu0 %v734, 120
        %v908 = vpop.permute.xlu0 %907
        %909 = vrot.lane.b32.xlu0 %v734, 88
        %v910 = vpop.permute.xlu0 %909
        %v911 = vsel %vm745, %v908, 0
        %v913 = vsel %vm745, %v910, 0
        %915 = vmatprep.subr.mxu0 0.0
        %916 = vmatpush1.xpose.msra.mxu0 0.0
        %917 = vmatprep.subr.mxu0 0.0
        %918 = vmatpush1.xpose.msra.mxu0 0.0
        %919 = vmatprep.subr.mxu0 0.0
        %920 = vmatpush1.xpose.msra.mxu0 0.0
        %921 = vmatprep.subr.mxu0 0.0
        %922 = vmatpush1.xpose.msra.mxu0 0.0
        %923 = vmatprep.subr.mxu0 0.0
        %924 = vmatpush1.xpose.msra.mxu0 0.0
        %925 = vmatprep.subr.mxu0 0.0
        %926 = vmatpush1.xpose.msra.mxu0 0.0
        %927 = vmatprep.subr.mxu0 0.0
        %928 = vmatpush1.xpose.msra.mxu0 0.0
        %929 = vmatprep.subr.mxu0 0.0
        %930 = vmatpush1.xpose.msra.mxu0 0.0
        %931 = vmatprep.subr.mxu0 0.0
        %932 = vmatpush1.xpose.msra.mxu0 0.0
        %933 = vmatprep.subr.mxu0 0.0
        %934 = vmatpush1.xpose.msra.mxu0 0.0
        %935 = vmatprep.subr.mxu0 0.0
        %936 = vmatpush1.xpose.msra.mxu0 0.0
        %937 = vmatprep.subr.mxu0 0.0
        %938 = vmatpush1.xpose.msra.mxu0 0.0
        %939 = vmatprep.subr.mxu0 0.0
        %940 = vmatpush1.xpose.msra.mxu0 0.0
        %941 = vmatprep.subr.mxu0 0.0
        %942 = vmatpush1.xpose.msra.mxu0 0.0
        %943 = vmatprep.subr.mxu0 0.0
        %944 = vmatpush1.xpose.msra.mxu0 0.0
        %945 = vmatprep.subr.mxu0 0.0
        %946 = vmatpush1.xpose.msra.mxu0 %v913
        %947 = vmatprep.subr.mxu0 0.0
        %948 = vmatpush2.xpose.msra.mxu0 0.0
        %949 = vmatprep.subr.mxu0 0.0
        %950 = vmatpush2.xpose.msra.mxu0 0.0
        %951 = vmatprep.subr.mxu0 0.0
        %952 = vmatpush2.xpose.msra.mxu0 0.0
        %953 = vmatprep.subr.mxu0 0.0
        %954 = vmatpush2.xpose.msra.mxu0 0.0
        %955 = vmatprep.subr.mxu0 0.0
        %956 = vmatpush2.xpose.msra.mxu0 0.0
        %957 = vmatprep.subr.mxu0 0.0
        %958 = vmatpush2.xpose.msra.mxu0 0.0
        %959 = vmatprep.subr.mxu0 0.0
        %960 = vmatpush2.xpose.msra.mxu0 0.0
        %961 = vmatprep.subr.mxu0 0.0
        %962 = vmatpush2.xpose.msra.mxu0 0.0
        %963 = vmatprep.subr.mxu0 0.0
        %964 = vmatpush2.xpose.msra.mxu0 0.0
        %965 = vmatprep.subr.mxu0 0.0
        %966 = vmatpush2.xpose.msra.mxu0 0.0
        %967 = vmatprep.subr.mxu0 0.0
        %968 = vmatpush2.xpose.msra.mxu0 0.0
        %969 = vmatprep.subr.mxu0 0.0
        %970 = vmatpush2.xpose.msra.mxu0 0.0
        %971 = vmatprep.subr.mxu0 0.0
        %972 = vmatpush2.xpose.msra.mxu0 0.0
        %973 = vmatprep.subr.mxu0 0.0
        %974 = vmatpush2.xpose.msra.mxu0 0.0
        %975 = vmatprep.subr.mxu0 0.0
        %976 = vmatpush2.xpose.msra.mxu0 0.0
        %977 = vmatprep.subr.mxu0 0.0
        %978 = vmatpush2.xpose.msra.mxu0 0.0
        %979 = vmatprep.mubr.f32.mxu0 0.0
        %980 = vmatmul.mubr.f32.gmra.mxu0 %v911
        %v981 = vpop.f32.mrf.mxu0
        %v982 = vadd.f32 %v649, %v981
        %v983 = vpop.f32.mrf.mxu0
        %984 = vdwg.mxu0
        %v985 = vsel %vm745, %v982, -inf
        %986 = vmax.xlane.f32.xlu0 %v985
        %v987 = vpop.xlane.xlu0 %986
        %v988 = vsub.f32 %v982, %v987
        %v989 = vmul.f32 %v988, 1.442695
        %v990 = vpow.pop %v989
        %v991 = vsel %vm745, %v990, 0.0
        %992 = vadd.xlane.f32.xlu0 %v991
        %v993 = vpop.xlane.xlu0 %992
        %v994 = vrcp.pop %v993
        %v995 = vmul.f32 %v990, %v994
        %996 = vrot.lane.b32.xlu0 %v734, 56
        %v997 = vpop.permute.xlu0 %996
        %v1000 = vsel %vm745, %v995, 0
        %1002 = vmatprep.subr.mxu0 0.0
        %1003 = vmatpush1.msra.mxu0 0.0
        %1004 = vmatprep.subr.mxu0 0.0
        %1005 = vmatpush1.msra.mxu0 0.0
        %1006 = vmatprep.subr.mxu0 0.0
        %1007 = vmatpush1.msra.mxu0 0.0
        %1008 = vmatprep.subr.mxu0 0.0
        %1009 = vmatpush1.msra.mxu0 0.0
        %1010 = vmatprep.subr.mxu0 0.0
        %1011 = vmatpush1.msra.mxu0 0.0
        %1012 = vmatprep.subr.mxu0 0.0
        %1013 = vmatpush1.msra.mxu0 0.0
        %1014 = vmatprep.subr.mxu0 0.0
        %1015 = vmatpush1.msra.mxu0 0.0
        %1016 = vmatprep.subr.mxu0 0.0
        %1017 = vmatpush1.msra.mxu0 0.0
        %1018 = vmatprep.subr.mxu0 0.0
        %1019 = vmatpush1.msra.mxu0 0.0
        %1020 = vmatprep.subr.mxu0 0.0
        %1021 = vmatpush1.msra.mxu0 0.0
        %1022 = vmatprep.subr.mxu0 0.0
        %1023 = vmatpush1.msra.mxu0 0.0
        %1024 = vmatprep.subr.mxu0 0.0
        %1025 = vmatpush1.msra.mxu0 0.0
        %1026 = vmatprep.subr.mxu0 0.0
        %1027 = vmatpush1.msra.mxu0 0.0
        %1028 = vmatprep.subr.mxu0 0.0
        %1029 = vmatpush1.msra.mxu0 0.0
        %1030 = vmatprep.subr.mxu0 0.0
        %1031 = vmatpush1.msra.mxu0 0.0
        %1032 = vmatprep.subr.mxu0 0.0
        %1033 = vmatpush1.msra.mxu0 %v997
        %1034 = vmatprep.subr.mxu0 0.0
        %1035 = vmatpush2.msra.mxu0 0.0
        %1036 = vmatprep.subr.mxu0 0.0
        %1037 = vmatpush2.msra.mxu0 0.0
        %1038 = vmatprep.subr.mxu0 0.0
        %1039 = vmatpush2.msra.mxu0 0.0
        %1040 = vmatprep.subr.mxu0 0.0
        %1041 = vmatpush2.msra.mxu0 0.0
        %1042 = vmatprep.subr.mxu0 0.0
        %1043 = vmatpush2.msra.mxu0 0.0
        %1044 = vmatprep.subr.mxu0 0.0
        %1045 = vmatpush2.msra.mxu0 0.0
        %1046 = vmatprep.subr.mxu0 0.0
        %1047 = vmatpush2.msra.mxu0 0.0
        %1048 = vmatprep.subr.mxu0 0.0
        %1049 = vmatpush2.msra.mxu0 0.0
        %1050 = vmatprep.subr.mxu0 0.0
        %1051 = vmatpush2.msra.mxu0 0.0
        %1052 = vmatprep.subr.mxu0 0.0
        %1053 = vmatpush2.msra.mxu0 0.0
        %1054 = vmatprep.subr.mxu0 0.0
        %1055 = vmatpush2.msra.mxu0 0.0
        %1056 = vmatprep.subr.mxu0 0.0
        %1057 = vmatpush2.msra.mxu0 0.0
        %1058 = vmatprep.subr.mxu0 0.0
        %1059 = vmatpush2.msra.mxu0 0.0
        %1060 = vmatprep.subr.mxu0 0.0
        %1061 = vmatpush2.msra.mxu0 0.0
        %1062 = vmatprep.subr.mxu0 0.0
        %1063 = vmatpush2.msra.mxu0 0.0
        %1064 = vmatprep.subr.mxu0 0.0
        %1065 = vmatpush2.msra.mxu0 0.0
        %1066 = vmatprep.mubr.f32.mxu0 0.0
        %1067 = vmatmul.mubr.f32.gmra.mxu0 %v1000
        %v1068 = vpop.f32.mrf.mxu0
        %v1069 = vadd.f32 0.0, %v1068
        %v1070 = vpop.f32.mrf.mxu0
        %1071 = vdwg.mxu0
        %v1073 = vsel %vm745, %v1069, 0
        %1075 = vmatprep.subr.mxu0 0.0
        %1076 = vmatpush1.msra.mxu0 0.0
        %1077 = vmatprep.subr.mxu0 0.0
        %1078 = vmatpush1.msra.mxu0 0.0
        %1079 = vmatprep.subr.mxu0 0.0
        %1080 = vmatpush1.msra.mxu0 0.0
        %1081 = vmatprep.subr.mxu0 0.0
        %1082 = vmatpush1.msra.mxu0 0.0
        %1083 = vmatprep.subr.mxu0 0.0
        %1084 = vmatpush1.msra.mxu0 0.0
        %1085 = vmatprep.subr.mxu0 0.0
        %1086 = vmatpush1.msra.mxu0 0.0
        %1087 = vmatprep.subr.mxu0 0.0
        %1088 = vmatpush1.msra.mxu0 0.0
        %1089 = vmatprep.subr.mxu0 0.0
        %1090 = vmatpush1.msra.mxu0 0.0
        %1091 = vmatprep.subr.mxu0 0.0
        %1092 = vmatpush1.msra.mxu0 0.0
        %1093 = vmatprep.subr.mxu0 0.0
        %1094 = vmatpush1.msra.mxu0 0.0
        %1095 = vmatprep.subr.mxu0 0.0
        %1096 = vmatpush1.msra.mxu0 0.0
        %1097 = vmatprep.subr.mxu0 0.0
        %1098 = vmatpush1.msra.mxu0 0.0
        %1099 = vmatprep.subr.mxu0 0.0
        %1100 = vmatpush1.msra.mxu0 0.0
        %1101 = vmatprep.subr.mxu0 0.0
        %1102 = vmatpush1.msra.mxu0 0.0
        %1103 = vmatprep.subr.mxu0 0.0
        %1104 = vmatpush1.msra.mxu0 0.0
        %1105 = vmatprep.subr.mxu0 0.0
        %1106 = vmatpush1.msra.mxu0 %v738
        %1107 = vmatprep.subr.mxu0 0.0
        %1108 = vmatpush2.msra.mxu0 0.0
        %1109 = vmatprep.subr.mxu0 0.0
        %1110 = vmatpush2.msra.mxu0 0.0
        %1111 = vmatprep.subr.mxu0 0.0
        %1112 = vmatpush2.msra.mxu0 0.0
        %1113 = vmatprep.subr.mxu0 0.0
        %1114 = vmatpush2.msra.mxu0 0.0
        %1115 = vmatprep.subr.mxu0 0.0
        %1116 = vmatpush2.msra.mxu0 0.0
        %1117 = vmatprep.subr.mxu0 0.0
        %1118 = vmatpush2.msra.mxu0 0.0
        %1119 = vmatprep.subr.mxu0 0.0
        %1120 = vmatpush2.msra.mxu0 0.0
        %1121 = vmatprep.subr.mxu0 0.0
        %1122 = vmatpush2.msra.mxu0 0.0
        %1123 = vmatprep.subr.mxu0 0.0
        %1124 = vmatpush2.msra.mxu0 0.0
        %1125 = vmatprep.subr.mxu0 0.0
        %1126 = vmatpush2.msra.mxu0 0.0
        %1127 = vmatprep.subr.mxu0 0.0
        %1128 = vmatpush2.msra.mxu0 0.0
        %1129 = vmatprep.subr.mxu0 0.0
        %1130 = vmatpush2.msra.mxu0 0.0
        %1131 = vmatprep.subr.mxu0 0.0
        %1132 = vmatpush2.msra.mxu0 0.0
        %1133 = vmatprep.subr.mxu0 0.0
        %1134 = vmatpush2.msra.mxu0 0.0
        %1135 = vmatprep.subr.mxu0 0.0
        %1136 = vmatpush2.msra.mxu0 0.0
        %1137 = vmatprep.subr.mxu0 0.0
        %1138 = vmatpush2.msra.mxu0 0.0
        %1139 = vmatprep.mubr.f32.mxu0 0.0
        %1140 = vmatmul.mubr.f32.gmra.mxu0 %v1073
        %v1141 = vpop.f32.mrf.mxu0
        %v1142 = vadd.f32 0.0, %v1141
        %v1143 = vpop.f32.mrf.mxu0
        %1144 = vdwg.mxu0
        %v1146 = vsel %vm745, %v904, 0
        %1148 = vmatprep.subr.mxu0 0.0
        %1149 = vmatpush1.msra.mxu0 0.0
        %1150 = vmatprep.subr.mxu0 0.0
        %1151 = vmatpush1.msra.mxu0 0.0
        %1152 = vmatprep.subr.mxu0 0.0
        %1153 = vmatpush1.msra.mxu0 0.0
        %1154 = vmatprep.subr.mxu0 0.0
        %1155 = vmatpush1.msra.mxu0 0.0
        %1156 = vmatprep.subr.mxu0 0.0
        %1157 = vmatpush1.msra.mxu0 0.0
        %1158 = vmatprep.subr.mxu0 0.0
        %1159 = vmatpush1.msra.mxu0 0.0
        %1160 = vmatprep.subr.mxu0 0.0
        %1161 = vmatpush1.msra.mxu0 0.0
        %1162 = vmatprep.subr.mxu0 0.0
        %1163 = vmatpush1.msra.mxu0 0.0
        %1164 = vmatprep.subr.mxu0 0.0
        %1165 = vmatpush1.msra.mxu0 0.0
        %1166 = vmatprep.subr.mxu0 0.0
        %1167 = vmatpush1.msra.mxu0 0.0
        %1168 = vmatprep.subr.mxu0 0.0
        %1169 = vmatpush1.msra.mxu0 0.0
        %1170 = vmatprep.subr.mxu0 0.0
        %1171 = vmatpush1.msra.mxu0 0.0
        %1172 = vmatprep.subr.mxu0 0.0
        %1173 = vmatpush1.msra.mxu0 0.0
        %1174 = vmatprep.subr.mxu0 0.0
        %1175 = vmatpush1.msra.mxu0 0.0
        %1176 = vmatprep.subr.mxu0 0.0
        %1177 = vmatpush1.msra.mxu0 0.0
        %1178 = vmatprep.subr.mxu0 0.0
        %1179 = vmatpush1.msra.mxu0 %v737
        %1180 = vmatprep.subr.mxu0 0.0
        %1181 = vmatpush2.msra.mxu0 0.0
        %1182 = vmatprep.subr.mxu0 0.0
        %1183 = vmatpush2.msra.mxu0 0.0
        %1184 = vmatprep.subr.mxu0 0.0
        %1185 = vmatpush2.msra.mxu0 0.0
        %1186 = vmatprep.subr.mxu0 0.0
        %1187 = vmatpush2.msra.mxu0 0.0
        %1188 = vmatprep.subr.mxu0 0.0
        %1189 = vmatpush2.msra.mxu0 0.0
        %1190 = vmatprep.subr.mxu0 0.0
        %1191 = vmatpush2.msra.mxu0 0.0
        %1192 = vmatprep.subr.mxu0 0.0
        %1193 = vmatpush2.msra.mxu0 0.0
        %1194 = vmatprep.subr.mxu0 0.0
        %1195 = vmatpush2.msra.mxu0 0.0
        %1196 = vmatprep.subr.mxu0 0.0
        %1197 = vmatpush2.msra.mxu0 0.0
        %1198 = vmatprep.subr.mxu0 0.0
        %1199 = vmatpush2.msra.mxu0 0.0
        %1200 = vmatprep.subr.mxu0 0.0
        %1201 = vmatpush2.msra.mxu0 0.0
        %1202 = vmatprep.subr.mxu0 0.0
        %1203 = vmatpush2.msra.mxu0 0.0
        %1204 = vmatprep.subr.mxu0 0.0
        %1205 = vmatpush2.msra.mxu0 0.0
        %1206 = vmatprep.subr.mxu0 0.0
        %1207 = vmatpush2.msra.mxu0 0.0
        %1208 = vmatprep.subr.mxu0 0.0
        %1209 = vmatpush2.msra.mxu0 0.0
        %1210 = vmatprep.subr.mxu0 0.0
        %1211 = vmatpush2.msra.mxu0 0.0
        %1212 = vmatprep.mubr.f32.mxu0 0.0
        %1213 = vmatmul.mubr.f32.gmra.mxu0 %v1146
        %v1214 = vpop.f32.mrf.mxu0
        %v1215 = vadd.f32 %v1142, %v1214
        %v1216 = vpop.f32.mrf.mxu0
        %1217 = vdwg.mxu0
        %1218 = vrot.lane.b32.xlu0 %v734, 112
        %v1219 = vpop.permute.xlu0 %1218
        %1220 = vrot.lane.b32.xlu0 %v734, 80
        %v1221 = vpop.permute.xlu0 %1220
        %v1222 = vsel %vm745, %v1219, 0
        %v1224 = vsel %vm745, %v1221, 0
        %1226 = vmatprep.subr.mxu0 0.0
        %1227 = vmatpush1.xpose.msra.mxu0 0.0
        %1228 = vmatprep.subr.mxu0 0.0
        %1229 = vmatpush1.xpose.msra.mxu0 0.0
        %1230 = vmatprep.subr.mxu0 0.0
        %1231 = vmatpush1.xpose.msra.mxu0 0.0
        %1232 = vmatprep.subr.mxu0 0.0
        %1233 = vmatpush1.xpose.msra.mxu0 0.0
        %1234 = vmatprep.subr.mxu0 0.0
        %1235 = vmatpush1.xpose.msra.mxu0 0.0
        %1236 = vmatprep.subr.mxu0 0.0
        %1237 = vmatpush1.xpose.msra.mxu0 0.0
        %1238 = vmatprep.subr.mxu0 0.0
        %1239 = vmatpush1.xpose.msra.mxu0 0.0
        %1240 = vmatprep.subr.mxu0 0.0
        %1241 = vmatpush1.xpose.msra.mxu0 0.0
        %1242 = vmatprep.subr.mxu0 0.0
        %1243 = vmatpush1.xpose.msra.mxu0 0.0
        %1244 = vmatprep.subr.mxu0 0.0
        %1245 = vmatpush1.xpose.msra.mxu0 0.0
        %1246 = vmatprep.subr.mxu0 0.0
        %1247 = vmatpush1.xpose.msra.mxu0 0.0
        %1248 = vmatprep.subr.mxu0 0.0
        %1249 = vmatpush1.xpose.msra.mxu0 0.0
        %1250 = vmatprep.subr.mxu0 0.0
        %1251 = vmatpush1.xpose.msra.mxu0 0.0
        %1252 = vmatprep.subr.mxu0 0.0
        %1253 = vmatpush1.xpose.msra.mxu0 0.0
        %1254 = vmatprep.subr.mxu0 0.0
        %1255 = vmatpush1.xpose.msra.mxu0 0.0
        %1256 = vmatprep.subr.mxu0 0.0
        %1257 = vmatpush1.xpose.msra.mxu0 %v1224
        %1258 = vmatprep.subr.mxu0 0.0
        %1259 = vmatpush2.xpose.msra.mxu0 0.0
        %1260 = vmatprep.subr.mxu0 0.0
        %1261 = vmatpush2.xpose.msra.mxu0 0.0
        %1262 = vmatprep.subr.mxu0 0.0
        %1263 = vmatpush2.xpose.msra.mxu0 0.0
        %1264 = vmatprep.subr.mxu0 0.0
        %1265 = vmatpush2.xpose.msra.mxu0 0.0
        %1266 = vmatprep.subr.mxu0 0.0
        %1267 = vmatpush2.xpose.msra.mxu0 0.0
        %1268 = vmatprep.subr.mxu0 0.0
        %1269 = vmatpush2.xpose.msra.mxu0 0.0
        %1270 = vmatprep.subr.mxu0 0.0
        %1271 = vmatpush2.xpose.msra.mxu0 0.0
        %1272 = vmatprep.subr.mxu0 0.0
        %1273 = vmatpush2.xpose.msra.mxu0 0.0
        %1274 = vmatprep.subr.mxu0 0.0
        %1275 = vmatpush2.xpose.msra.mxu0 0.0
        %1276 = vmatprep.subr.mxu0 0.0
        %1277 = vmatpush2.xpose.msra.mxu0 0.0
        %1278 = vmatprep.subr.mxu0 0.0
        %1279 = vmatpush2.xpose.msra.mxu0 0.0
        %1280 = vmatprep.subr.mxu0 0.0
        %1281 = vmatpush2.xpose.msra.mxu0 0.0
        %1282 = vmatprep.subr.mxu0 0.0
        %1283 = vmatpush2.xpose.msra.mxu0 0.0
        %1284 = vmatprep.subr.mxu0 0.0
        %1285 = vmatpush2.xpose.msra.mxu0 0.0
        %1286 = vmatprep.subr.mxu0 0.0
        %1287 = vmatpush2.xpose.msra.mxu0 0.0
        %1288 = vmatprep.subr.mxu0 0.0
        %1289 = vmatpush2.xpose.msra.mxu0 0.0
        %1290 = vmatprep.mubr.f32.mxu0 0.0
        %1291 = vmatmul.mubr.f32.gmra.mxu0 %v1222
        %v1292 = vpop.f32.mrf.mxu0
        %v1293 = vadd.f32 %v649, %v1292
        %v1294 = vpop.f32.mrf.mxu0
        %1295 = vdwg.mxu0
        %v1296 = vsel %vm745, %v1293, -inf
        %1297 = vmax.xlane.f32.xlu0 %v1296
        %v1298 = vpop.xlane.xlu0 %1297
        %v1299 = vsub.f32 %v1293, %v1298
        %v1300 = vmul.f32 %v1299, 1.442695
        %v1301 = vpow.pop %v1300
        %v1302 = vsel %vm745, %v1301, 0.0
        %1303 = vadd.xlane.f32.xlu0 %v1302
        %v1304 = vpop.xlane.xlu0 %1303
        %v1305 = vrcp.pop %v1304
        %v1306 = vmul.f32 %v1301, %v1305
        %1307 = vrot.lane.b32.xlu0 %v734, 48
        %v1308 = vpop.permute.xlu0 %1307
        %v1311 = vsel %vm745, %v1306, 0
        %1313 = vmatprep.subr.mxu0 0.0
        %1314 = vmatpush1.msra.mxu0 0.0
        %1315 = vmatprep.subr.mxu0 0.0
        %1316 = vmatpush1.msra.mxu0 0.0
        %1317 = vmatprep.subr.mxu0 0.0
        %1318 = vmatpush1.msra.mxu0 0.0
        %1319 = vmatprep.subr.mxu0 0.0
        %1320 = vmatpush1.msra.mxu0 0.0
        %1321 = vmatprep.subr.mxu0 0.0
        %1322 = vmatpush1.msra.mxu0 0.0
        %1323 = vmatprep.subr.mxu0 0.0
        %1324 = vmatpush1.msra.mxu0 0.0
        %1325 = vmatprep.subr.mxu0 0.0
        %1326 = vmatpush1.msra.mxu0 0.0
        %1327 = vmatprep.subr.mxu0 0.0
        %1328 = vmatpush1.msra.mxu0 0.0
        %1329 = vmatprep.subr.mxu0 0.0
        %1330 = vmatpush1.msra.mxu0 0.0
        %1331 = vmatprep.subr.mxu0 0.0
        %1332 = vmatpush1.msra.mxu0 0.0
        %1333 = vmatprep.subr.mxu0 0.0
        %1334 = vmatpush1.msra.mxu0 0.0
        %1335 = vmatprep.subr.mxu0 0.0
        %1336 = vmatpush1.msra.mxu0 0.0
        %1337 = vmatprep.subr.mxu0 0.0
        %1338 = vmatpush1.msra.mxu0 0.0
        %1339 = vmatprep.subr.mxu0 0.0
        %1340 = vmatpush1.msra.mxu0 0.0
        %1341 = vmatprep.subr.mxu0 0.0
        %1342 = vmatpush1.msra.mxu0 0.0
        %1343 = vmatprep.subr.mxu0 0.0
        %1344 = vmatpush1.msra.mxu0 %v1308
        %1345 = vmatprep.subr.mxu0 0.0
        %1346 = vmatpush2.msra.mxu0 0.0
        %1347 = vmatprep.subr.mxu0 0.0
        %1348 = vmatpush2.msra.mxu0 0.0
        %1349 = vmatprep.subr.mxu0 0.0
        %1350 = vmatpush2.msra.mxu0 0.0
        %1351 = vmatprep.subr.mxu0 0.0
        %1352 = vmatpush2.msra.mxu0 0.0
        %1353 = vmatprep.subr.mxu0 0.0
        %1354 = vmatpush2.msra.mxu0 0.0
        %1355 = vmatprep.subr.mxu0 0.0
        %1356 = vmatpush2.msra.mxu0 0.0
        %1357 = vmatprep.subr.mxu0 0.0
        %1358 = vmatpush2.msra.mxu0 0.0
        %1359 = vmatprep.subr.mxu0 0.0
        %1360 = vmatpush2.msra.mxu0 0.0
        %1361 = vmatprep.subr.mxu0 0.0
        %1362 = vmatpush2.msra.mxu0 0.0
        %1363 = vmatprep.subr.mxu0 0.0
        %1364 = vmatpush2.msra.mxu0 0.0
        %1365 = vmatprep.subr.mxu0 0.0
        %1366 = vmatpush2.msra.mxu0 0.0
        %1367 = vmatprep.subr.mxu0 0.0
        %1368 = vmatpush2.msra.mxu0 0.0
        %1369 = vmatprep.subr.mxu0 0.0
        %1370 = vmatpush2.msra.mxu0 0.0
        %1371 = vmatprep.subr.mxu0 0.0
        %1372 = vmatpush2.msra.mxu0 0.0
        %1373 = vmatprep.subr.mxu0 0.0
        %1374 = vmatpush2.msra.mxu0 0.0
        %1375 = vmatprep.subr.mxu0 0.0
        %1376 = vmatpush2.msra.mxu0 0.0
        %1377 = vmatprep.mubr.f32.mxu0 0.0
        %1378 = vmatmul.mubr.f32.gmra.mxu0 %v1311
        %v1379 = vpop.f32.mrf.mxu0
        %v1380 = vadd.f32 0.0, %v1379
        %v1381 = vpop.f32.mrf.mxu0
        %1382 = vdwg.mxu0
        %v1384 = vsel %vm745, %v1380, 0
        %1386 = vmatprep.subr.mxu0 0.0
        %1387 = vmatpush1.msra.mxu0 0.0
        %1388 = vmatprep.subr.mxu0 0.0
        %1389 = vmatpush1.msra.mxu0 0.0
        %1390 = vmatprep.subr.mxu0 0.0
        %1391 = vmatpush1.msra.mxu0 0.0
        %1392 = vmatprep.subr.mxu0 0.0
        %1393 = vmatpush1.msra.mxu0 0.0
        %1394 = vmatprep.subr.mxu0 0.0
        %1395 = vmatpush1.msra.mxu0 0.0
        %1396 = vmatprep.subr.mxu0 0.0
        %1397 = vmatpush1.msra.mxu0 0.0
        %1398 = vmatprep.subr.mxu0 0.0
        %1399 = vmatpush1.msra.mxu0 0.0
        %1400 = vmatprep.subr.mxu0 0.0
        %1401 = vmatpush1.msra.mxu0 0.0
        %1402 = vmatprep.subr.mxu0 0.0
        %1403 = vmatpush1.msra.mxu0 0.0
        %1404 = vmatprep.subr.mxu0 0.0
        %1405 = vmatpush1.msra.mxu0 0.0
        %1406 = vmatprep.subr.mxu0 0.0
        %1407 = vmatpush1.msra.mxu0 0.0
        %1408 = vmatprep.subr.mxu0 0.0
        %1409 = vmatpush1.msra.mxu0 0.0
        %1410 = vmatprep.subr.mxu0 0.0
        %1411 = vmatpush1.msra.mxu0 0.0
        %1412 = vmatprep.subr.mxu0 0.0
        %1413 = vmatpush1.msra.mxu0 0.0
        %1414 = vmatprep.subr.mxu0 0.0
        %1415 = vmatpush1.msra.mxu0 0.0
        %1416 = vmatprep.subr.mxu0 0.0
        %1417 = vmatpush1.msra.mxu0 %v739
        %1418 = vmatprep.subr.mxu0 0.0
        %1419 = vmatpush2.msra.mxu0 0.0
        %1420 = vmatprep.subr.mxu0 0.0
        %1421 = vmatpush2.msra.mxu0 0.0
        %1422 = vmatprep.subr.mxu0 0.0
        %1423 = vmatpush2.msra.mxu0 0.0
        %1424 = vmatprep.subr.mxu0 0.0
        %1425 = vmatpush2.msra.mxu0 0.0
        %1426 = vmatprep.subr.mxu0 0.0
        %1427 = vmatpush2.msra.mxu0 0.0
        %1428 = vmatprep.subr.mxu0 0.0
        %1429 = vmatpush2.msra.mxu0 0.0
        %1430 = vmatprep.subr.mxu0 0.0
        %1431 = vmatpush2.msra.mxu0 0.0
        %1432 = vmatprep.subr.mxu0 0.0
        %1433 = vmatpush2.msra.mxu0 0.0
        %1434 = vmatprep.subr.mxu0 0.0
        %1435 = vmatpush2.msra.mxu0 0.0
        %1436 = vmatprep.subr.mxu0 0.0
        %1437 = vmatpush2.msra.mxu0 0.0
        %1438 = vmatprep.subr.mxu0 0.0
        %1439 = vmatpush2.msra.mxu0 0.0
        %1440 = vmatprep.subr.mxu0 0.0
        %1441 = vmatpush2.msra.mxu0 0.0
        %1442 = vmatprep.subr.mxu0 0.0
        %1443 = vmatpush2.msra.mxu0 0.0
        %1444 = vmatprep.subr.mxu0 0.0
        %1445 = vmatpush2.msra.mxu0 0.0
        %1446 = vmatprep.subr.mxu0 0.0
        %1447 = vmatpush2.msra.mxu0 0.0
        %1448 = vmatprep.subr.mxu0 0.0
        %1449 = vmatpush2.msra.mxu0 0.0
        %1450 = vmatprep.mubr.f32.mxu0 0.0
        %1451 = vmatmul.mubr.f32.gmra.mxu0 %v1384
        %v1452 = vpop.f32.mrf.mxu0
        %v1453 = vadd.f32 0.0, %v1452
        %v1454 = vpop.f32.mrf.mxu0
        %1455 = vdwg.mxu0
        %v1456 = vadd.f32 %v1215, %v1453
        %1457 = vrot.lane.b32.xlu0 %v734, 104
        %v1458 = vpop.permute.xlu0 %1457
        %1459 = vrot.lane.b32.xlu0 %v734, 72
        %v1460 = vpop.permute.xlu0 %1459
        %v1461 = vsel %vm745, %v1458, 0
        %v1463 = vsel %vm745, %v1460, 0
        %1465 = vmatprep.subr.mxu0 0.0
        %1466 = vmatpush1.xpose.msra.mxu0 0.0
        %1467 = vmatprep.subr.mxu0 0.0
        %1468 = vmatpush1.xpose.msra.mxu0 0.0
        %1469 = vmatprep.subr.mxu0 0.0
        %1470 = vmatpush1.xpose.msra.mxu0 0.0
        %1471 = vmatprep.subr.mxu0 0.0
        %1472 = vmatpush1.xpose.msra.mxu0 0.0
        %1473 = vmatprep.subr.mxu0 0.0
        %1474 = vmatpush1.xpose.msra.mxu0 0.0
        %1475 = vmatprep.subr.mxu0 0.0
        %1476 = vmatpush1.xpose.msra.mxu0 0.0
        %1477 = vmatprep.subr.mxu0 0.0
        %1478 = vmatpush1.xpose.msra.mxu0 0.0
        %1479 = vmatprep.subr.mxu0 0.0
        %1480 = vmatpush1.xpose.msra.mxu0 0.0
        %1481 = vmatprep.subr.mxu0 0.0
        %1482 = vmatpush1.xpose.msra.mxu0 0.0
        %1483 = vmatprep.subr.mxu0 0.0
        %1484 = vmatpush1.xpose.msra.mxu0 0.0
        %1485 = vmatprep.subr.mxu0 0.0
        %1486 = vmatpush1.xpose.msra.mxu0 0.0
        %1487 = vmatprep.subr.mxu0 0.0
        %1488 = vmatpush1.xpose.msra.mxu0 0.0
        %1489 = vmatprep.subr.mxu0 0.0
        %1490 = vmatpush1.xpose.msra.mxu0 0.0
        %1491 = vmatprep.subr.mxu0 0.0
        %1492 = vmatpush1.xpose.msra.mxu0 0.0
        %1493 = vmatprep.subr.mxu0 0.0
        %1494 = vmatpush1.xpose.msra.mxu0 0.0
        %1495 = vmatprep.subr.mxu0 0.0
        %1496 = vmatpush1.xpose.msra.mxu0 %v1463
        %1497 = vmatprep.subr.mxu0 0.0
        %1498 = vmatpush2.xpose.msra.mxu0 0.0
        %1499 = vmatprep.subr.mxu0 0.0
        %1500 = vmatpush2.xpose.msra.mxu0 0.0
        %1501 = vmatprep.subr.mxu0 0.0
        %1502 = vmatpush2.xpose.msra.mxu0 0.0
        %1503 = vmatprep.subr.mxu0 0.0
        %1504 = vmatpush2.xpose.msra.mxu0 0.0
        %1505 = vmatprep.subr.mxu0 0.0
        %1506 = vmatpush2.xpose.msra.mxu0 0.0
        %1507 = vmatprep.subr.mxu0 0.0
        %1508 = vmatpush2.xpose.msra.mxu0 0.0
        %1509 = vmatprep.subr.mxu0 0.0
        %1510 = vmatpush2.xpose.msra.mxu0 0.0
        %1511 = vmatprep.subr.mxu0 0.0
        %1512 = vmatpush2.xpose.msra.mxu0 0.0
        %1513 = vmatprep.subr.mxu0 0.0
        %1514 = vmatpush2.xpose.msra.mxu0 0.0
        %1515 = vmatprep.subr.mxu0 0.0
        %1516 = vmatpush2.xpose.msra.mxu0 0.0
        %1517 = vmatprep.subr.mxu0 0.0
        %1518 = vmatpush2.xpose.msra.mxu0 0.0
        %1519 = vmatprep.subr.mxu0 0.0
        %1520 = vmatpush2.xpose.msra.mxu0 0.0
        %1521 = vmatprep.subr.mxu0 0.0
        %1522 = vmatpush2.xpose.msra.mxu0 0.0
        %1523 = vmatprep.subr.mxu0 0.0
        %1524 = vmatpush2.xpose.msra.mxu0 0.0
        %1525 = vmatprep.subr.mxu0 0.0
        %1526 = vmatpush2.xpose.msra.mxu0 0.0
        %1527 = vmatprep.subr.mxu0 0.0
        %1528 = vmatpush2.xpose.msra.mxu0 0.0
        %1529 = vmatprep.mubr.f32.mxu0 0.0
        %1530 = vmatmul.mubr.f32.gmra.mxu0 %v1461
        %v1531 = vpop.f32.mrf.mxu0
        %v1532 = vadd.f32 %v649, %v1531
        %v1533 = vpop.f32.mrf.mxu0
        %1534 = vdwg.mxu0
        %v1535 = vsel %vm745, %v1532, -inf
        %1536 = vmax.xlane.f32.xlu0 %v1535
        %v1537 = vpop.xlane.xlu0 %1536
        %v1538 = vsub.f32 %v1532, %v1537
        %v1539 = vmul.f32 %v1538, 1.442695
        %v1540 = vpow.pop %v1539
        %v1541 = vsel %vm745, %v1540, 0.0
        %1542 = vadd.xlane.f32.xlu0 %v1541
        %v1543 = vpop.xlane.xlu0 %1542
        %v1544 = vrcp.pop %v1543
        %v1545 = vmul.f32 %v1540, %v1544
        %1546 = vrot.lane.b32.xlu0 %v734, 40
        %v1547 = vpop.permute.xlu0 %1546
        %v1550 = vsel %vm745, %v1545, 0
        %1552 = vmatprep.subr.mxu0 0.0
        %1553 = vmatpush1.msra.mxu0 0.0
        %1554 = vmatprep.subr.mxu0 0.0
        %1555 = vmatpush1.msra.mxu0 0.0
        %1556 = vmatprep.subr.mxu0 0.0
        %1557 = vmatpush1.msra.mxu0 0.0
        %1558 = vmatprep.subr.mxu0 0.0
        %1559 = vmatpush1.msra.mxu0 0.0
        %1560 = vmatprep.subr.mxu0 0.0
        %1561 = vmatpush1.msra.mxu0 0.0
        %1562 = vmatprep.subr.mxu0 0.0
        %1563 = vmatpush1.msra.mxu0 0.0
        %1564 = vmatprep.subr.mxu0 0.0
        %1565 = vmatpush1.msra.mxu0 0.0
        %1566 = vmatprep.subr.mxu0 0.0
        %1567 = vmatpush1.msra.mxu0 0.0
        %1568 = vmatprep.subr.mxu0 0.0
        %1569 = vmatpush1.msra.mxu0 0.0
        %1570 = vmatprep.subr.mxu0 0.0
        %1571 = vmatpush1.msra.mxu0 0.0
        %1572 = vmatprep.subr.mxu0 0.0
        %1573 = vmatpush1.msra.mxu0 0.0
        %1574 = vmatprep.subr.mxu0 0.0
        %1575 = vmatpush1.msra.mxu0 0.0
        %1576 = vmatprep.subr.mxu0 0.0
        %1577 = vmatpush1.msra.mxu0 0.0
        %1578 = vmatprep.subr.mxu0 0.0
        %1579 = vmatpush1.msra.mxu0 0.0
        %1580 = vmatprep.subr.mxu0 0.0
        %1581 = vmatpush1.msra.mxu0 0.0
        %1582 = vmatprep.subr.mxu0 0.0
        %1583 = vmatpush1.msra.mxu0 %v1547
        %1584 = vmatprep.subr.mxu0 0.0
        %1585 = vmatpush2.msra.mxu0 0.0
        %1586 = vmatprep.subr.mxu0 0.0
        %1587 = vmatpush2.msra.mxu0 0.0
        %1588 = vmatprep.subr.mxu0 0.0
        %1589 = vmatpush2.msra.mxu0 0.0
        %1590 = vmatprep.subr.mxu0 0.0
        %1591 = vmatpush2.msra.mxu0 0.0
        %1592 = vmatprep.subr.mxu0 0.0
        %1593 = vmatpush2.msra.mxu0 0.0
        %1594 = vmatprep.subr.mxu0 0.0
        %1595 = vmatpush2.msra.mxu0 0.0
        %1596 = vmatprep.subr.mxu0 0.0
        %1597 = vmatpush2.msra.mxu0 0.0
        %1598 = vmatprep.subr.mxu0 0.0
        %1599 = vmatpush2.msra.mxu0 0.0
        %1600 = vmatprep.subr.mxu0 0.0
        %1601 = vmatpush2.msra.mxu0 0.0
        %1602 = vmatprep.subr.mxu0 0.0
        %1603 = vmatpush2.msra.mxu0 0.0
        %1604 = vmatprep.subr.mxu0 0.0
        %1605 = vmatpush2.msra.mxu0 0.0
        %1606 = vmatprep.subr.mxu0 0.0
        %1607 = vmatpush2.msra.mxu0 0.0
        %1608 = vmatprep.subr.mxu0 0.0
        %1609 = vmatpush2.msra.mxu0 0.0
        %1610 = vmatprep.subr.mxu0 0.0
        %1611 = vmatpush2.msra.mxu0 0.0
        %1612 = vmatprep.subr.mxu0 0.0
        %1613 = vmatpush2.msra.mxu0 0.0
        %1614 = vmatprep.subr.mxu0 0.0
        %1615 = vmatpush2.msra.mxu0 0.0
        %1616 = vmatprep.mubr.f32.mxu0 0.0
        %1617 = vmatmul.mubr.f32.gmra.mxu0 %v1550
        %v1618 = vpop.f32.mrf.mxu0
        %v1619 = vadd.f32 0.0, %v1618
        %v1620 = vpop.f32.mrf.mxu0
        %1621 = vdwg.mxu0
        %v1623 = vsel %vm745, %v1619, 0
        %1625 = vmatprep.subr.mxu0 0.0
        %1626 = vmatpush1.msra.mxu0 0.0
        %1627 = vmatprep.subr.mxu0 0.0
        %1628 = vmatpush1.msra.mxu0 0.0
        %1629 = vmatprep.subr.mxu0 0.0
        %1630 = vmatpush1.msra.mxu0 0.0
        %1631 = vmatprep.subr.mxu0 0.0
        %1632 = vmatpush1.msra.mxu0 0.0
        %1633 = vmatprep.subr.mxu0 0.0
        %1634 = vmatpush1.msra.mxu0 0.0
        %1635 = vmatprep.subr.mxu0 0.0
        %1636 = vmatpush1.msra.mxu0 0.0
        %1637 = vmatprep.subr.mxu0 0.0
        %1638 = vmatpush1.msra.mxu0 0.0
        %1639 = vmatprep.subr.mxu0 0.0
        %1640 = vmatpush1.msra.mxu0 0.0
        %1641 = vmatprep.subr.mxu0 0.0
        %1642 = vmatpush1.msra.mxu0 0.0
        %1643 = vmatprep.subr.mxu0 0.0
        %1644 = vmatpush1.msra.mxu0 0.0
        %1645 = vmatprep.subr.mxu0 0.0
        %1646 = vmatpush1.msra.mxu0 0.0
        %1647 = vmatprep.subr.mxu0 0.0
        %1648 = vmatpush1.msra.mxu0 0.0
        %1649 = vmatprep.subr.mxu0 0.0
        %1650 = vmatpush1.msra.mxu0 0.0
        %1651 = vmatprep.subr.mxu0 0.0
        %1652 = vmatpush1.msra.mxu0 0.0
        %1653 = vmatprep.subr.mxu0 0.0
        %1654 = vmatpush1.msra.mxu0 0.0
        %1655 = vmatprep.subr.mxu0 0.0
        %1656 = vmatpush1.msra.mxu0 %v740
        %1657 = vmatprep.subr.mxu0 0.0
        %1658 = vmatpush2.msra.mxu0 0.0
        %1659 = vmatprep.subr.mxu0 0.0
        %1660 = vmatpush2.msra.mxu0 0.0
        %1661 = vmatprep.subr.mxu0 0.0
        %1662 = vmatpush2.msra.mxu0 0.0
        %1663 = vmatprep.subr.mxu0 0.0
        %1664 = vmatpush2.msra.mxu0 0.0
        %1665 = vmatprep.subr.mxu0 0.0
        %1666 = vmatpush2.msra.mxu0 0.0
        %1667 = vmatprep.subr.mxu0 0.0
        %1668 = vmatpush2.msra.mxu0 0.0
        %1669 = vmatprep.subr.mxu0 0.0
        %1670 = vmatpush2.msra.mxu0 0.0
        %1671 = vmatprep.subr.mxu0 0.0
        %1672 = vmatpush2.msra.mxu0 0.0
        %1673 = vmatprep.subr.mxu0 0.0
        %1674 = vmatpush2.msra.mxu0 0.0
        %1675 = vmatprep.subr.mxu0 0.0
        %1676 = vmatpush2.msra.mxu0 0.0
        %1677 = vmatprep.subr.mxu0 0.0
        %1678 = vmatpush2.msra.mxu0 0.0
        %1679 = vmatprep.subr.mxu0 0.0
        %1680 = vmatpush2.msra.mxu0 0.0
        %1681 = vmatprep.subr.mxu0 0.0
        %1682 = vmatpush2.msra.mxu0 0.0
        %1683 = vmatprep.subr.mxu0 0.0
        %1684 = vmatpush2.msra.mxu0 0.0
        %1685 = vmatprep.subr.mxu0 0.0
        %1686 = vmatpush2.msra.mxu0 0.0
        %1687 = vmatprep.subr.mxu0 0.0
        %1688 = vmatpush2.msra.mxu0 0.0
        %1689 = vmatprep.mubr.f32.mxu0 0.0
        %1690 = vmatmul.mubr.f32.gmra.mxu0 %v1623
        %v1691 = vpop.f32.mrf.mxu0
        %v1692 = vadd.f32 0.0, %v1691
        %v1693 = vpop.f32.mrf.mxu0
        %1694 = vdwg.mxu0
        %v1695 = vadd.f32 %v1456, %v1692
        %v1697 = vlaneseq
        %v1698 = vshrl.u32 %v1697, 7
        %v1699 = vsub.s32 0, %v1698
        %v1700 = vrot.slane %v741, %v1699
        %v1702 = vadd.f32 %v1695, %v1700
        %v1703 = vadd.f32 %v642, %v1702
        %v1704 = vsel %vm663, %v1703, 0.0
        %1705 = vadd.xlane.f32.xlu0 %v1704
        %v1706 = vpop.xlane.xlu0 %1705
        %v1707 = vrcp.pop 32.0
        %v1708 = vmul.f32 %v1706, %v1707
        %v1709 = vsub.f32 %v1703, %v1708
        %v1710 = vmul.f32 %v1709, %v1709
        %v1711 = vsel %vm663, %v1710, 0.0
        %1712 = vadd.xlane.f32.xlu0 %v1711
        %v1713 = vpop.xlane.xlu0 %1712
        %v1714 = vmul.f32 %v1713, %v1707
        %v1715 = vadd.f32 %v1714, 1e-05
        %v1716 = vrsqrt.pop %v1715
        %v1717 = vmul.f32 %v1709, %v1716
        %v1718 = vlaneseq
        %v1719 = vshrl.u32 %v1718, 7
        %v1720 = vsub.s32 0, %v1719
        %v1721 = vrot.slane %v650, %v1720
        %v1722 = vmul.f32 %v1717, %v1721
        %v1723 = vlaneseq
        %v1724 = vshrl.u32 %v1723, 7
        %v1725 = vsub.s32 0, %v1724
        %v1726 = vrot.slane %v651, %v1725
        %v1727 = vadd.f32 %v1722, %v1726
        %v1728 = vld [vmem:[%s6] sm:$0xff]
        %v1729 = vld [vmem:[%s6 + $0x8] sm:$0xff]
        %v1730 = vld [vmem:[%s6 + $0x10] sm:$0xff]
        %v1731 = vld [vmem:[%s6 + $0x18] sm:$0xff]
        %v1732 = vld [vmem:[%s7] sm:$0x1]
        %v1734 = vlaneseq
        %v1735 = vshrl.u32 %v1734, 7
        %v1736 = vsub.s32 0, %v1735
        %v1737 = vrot.slane %v1732, %v1736
        %v1740 = vsel %vm663, %v1727, 0
        %1742 = vmatprep.subr.mxu0 0.0
        %1743 = vmatpush1.msra.mxu0 0.0
        %1744 = vmatprep.subr.mxu0 0.0
        %1745 = vmatpush1.msra.mxu0 0.0
        %1746 = vmatprep.subr.mxu0 0.0
        %1747 = vmatpush1.msra.mxu0 0.0
        %1748 = vmatprep.subr.mxu0 0.0
        %1749 = vmatpush1.msra.mxu0 0.0
        %1750 = vmatprep.subr.mxu0 0.0
        %1751 = vmatpush1.msra.mxu0 0.0
        %1752 = vmatprep.subr.mxu0 0.0
        %1753 = vmatpush1.msra.mxu0 0.0
        %1754 = vmatprep.subr.mxu0 0.0
        %1755 = vmatpush1.msra.mxu0 0.0
        %1756 = vmatprep.subr.mxu0 0.0
        %1757 = vmatpush1.msra.mxu0 0.0
        %1758 = vmatprep.subr.mxu0 0.0
        %1759 = vmatpush1.msra.mxu0 0.0
        %1760 = vmatprep.subr.mxu0 0.0
        %1761 = vmatpush1.msra.mxu0 0.0
        %1762 = vmatprep.subr.mxu0 0.0
        %1763 = vmatpush1.msra.mxu0 0.0
        %1764 = vmatprep.subr.mxu0 0.0
        %1765 = vmatpush1.msra.mxu0 0.0
        %1766 = vmatprep.subr.mxu0 0.0
        %1767 = vmatpush1.msra.mxu0 %v1731
        %1768 = vmatprep.subr.mxu0 0.0
        %1769 = vmatpush1.msra.mxu0 %v1730
        %1770 = vmatprep.subr.mxu0 0.0
        %1771 = vmatpush1.msra.mxu0 %v1729
        %1772 = vmatprep.subr.mxu0 0.0
        %1773 = vmatpush1.msra.mxu0 %v1728
        %1774 = vmatprep.subr.mxu0 0.0
        %1775 = vmatpush2.msra.mxu0 0.0
        %1776 = vmatprep.subr.mxu0 0.0
        %1777 = vmatpush2.msra.mxu0 0.0
        %1778 = vmatprep.subr.mxu0 0.0
        %1779 = vmatpush2.msra.mxu0 0.0
        %1780 = vmatprep.subr.mxu0 0.0
        %1781 = vmatpush2.msra.mxu0 0.0
        %1782 = vmatprep.subr.mxu0 0.0
        %1783 = vmatpush2.msra.mxu0 0.0
        %1784 = vmatprep.subr.mxu0 0.0
        %1785 = vmatpush2.msra.mxu0 0.0
        %1786 = vmatprep.subr.mxu0 0.0
        %1787 = vmatpush2.msra.mxu0 0.0
        %1788 = vmatprep.subr.mxu0 0.0
        %1789 = vmatpush2.msra.mxu0 0.0
        %1790 = vmatprep.subr.mxu0 0.0
        %1791 = vmatpush2.msra.mxu0 0.0
        %1792 = vmatprep.subr.mxu0 0.0
        %1793 = vmatpush2.msra.mxu0 0.0
        %1794 = vmatprep.subr.mxu0 0.0
        %1795 = vmatpush2.msra.mxu0 0.0
        %1796 = vmatprep.subr.mxu0 0.0
        %1797 = vmatpush2.msra.mxu0 0.0
        %1798 = vmatprep.subr.mxu0 0.0
        %1799 = vmatpush2.msra.mxu0 0.0
        %1800 = vmatprep.subr.mxu0 0.0
        %1801 = vmatpush2.msra.mxu0 0.0
        %1802 = vmatprep.subr.mxu0 0.0
        %1803 = vmatpush2.msra.mxu0 0.0
        %1804 = vmatprep.subr.mxu0 0.0
        %1805 = vmatpush2.msra.mxu0 0.0
        %1806 = vmatprep.mubr.f32.mxu0 0.0
        %1807 = vmatmul.mubr.f32.gmra.mxu0 %v1740
        %v1808 = vpop.f32.mrf.mxu0
        %v1809 = vadd.f32 %v1737, %v1808
        %v1810 = vpop.f32.mrf.mxu0
        %1811 = vdwg.mxu0
        %v1812 = vld [vmem:[%s8] sm:$0xff]
        %v1813 = vld [vmem:[%s8 + $0x8] sm:$0xff]
        %v1814 = vld [vmem:[%s8 + $0x10] sm:$0xff]
        %v1815 = vld [vmem:[%s8 + $0x18] sm:$0xff]
        %v1816 = vld [vmem:[%s9] sm:$0x1]
        %v1818 = vlaneseq
        %v1819 = vshrl.u32 %v1818, 7
        %v1820 = vsub.s32 0, %v1819
        %v1821 = vrot.slane %v1816, %v1820
        %v1824 = vsel %vm663, %v643, 0
        %1826 = vmatprep.subr.mxu0 0.0
        %1827 = vmatpush1.msra.mxu0 0.0
        %1828 = vmatprep.subr.mxu0 0.0
        %1829 = vmatpush1.msra.mxu0 0.0
        %1830 = vmatprep.subr.mxu0 0.0
        %1831 = vmatpush1.msra.mxu0 0.0
        %1832 = vmatprep.subr.mxu0 0.0
        %1833 = vmatpush1.msra.mxu0 0.0
        %1834 = vmatprep.subr.mxu0 0.0
        %1835 = vmatpush1.msra.mxu0 0.0
        %1836 = vmatprep.subr.mxu0 0.0
        %1837 = vmatpush1.msra.mxu0 0.0
        %1838 = vmatprep.subr.mxu0 0.0
        %1839 = vmatpush1.msra.mxu0 0.0
        %1840 = vmatprep.subr.mxu0 0.0
        %1841 = vmatpush1.msra.mxu0 0.0
        %1842 = vmatprep.subr.mxu0 0.0
        %1843 = vmatpush1.msra.mxu0 0.0
        %1844 = vmatprep.subr.mxu0 0.0
        %1845 = vmatpush1.msra.mxu0 0.0
        %1846 = vmatprep.subr.mxu0 0.0
        %1847 = vmatpush1.msra.mxu0 0.0
        %1848 = vmatprep.subr.mxu0 0.0
        %1849 = vmatpush1.msra.mxu0 0.0
        %1850 = vmatprep.subr.mxu0 0.0
        %1851 = vmatpush1.msra.mxu0 %v1815
        %1852 = vmatprep.subr.mxu0 0.0
        %1853 = vmatpush1.msra.mxu0 %v1814
        %1854 = vmatprep.subr.mxu0 0.0
        %1855 = vmatpush1.msra.mxu0 %v1813
        %1856 = vmatprep.subr.mxu0 0.0
        %1857 = vmatpush1.msra.mxu0 %v1812
        %1858 = vmatprep.subr.mxu0 0.0
        %1859 = vmatpush2.msra.mxu0 0.0
        %1860 = vmatprep.subr.mxu0 0.0
        %1861 = vmatpush2.msra.mxu0 0.0
        %1862 = vmatprep.subr.mxu0 0.0
        %1863 = vmatpush2.msra.mxu0 0.0
        %1864 = vmatprep.subr.mxu0 0.0
        %1865 = vmatpush2.msra.mxu0 0.0
        %1866 = vmatprep.subr.mxu0 0.0
        %1867 = vmatpush2.msra.mxu0 0.0
        %1868 = vmatprep.subr.mxu0 0.0
        %1869 = vmatpush2.msra.mxu0 0.0
        %1870 = vmatprep.subr.mxu0 0.0
        %1871 = vmatpush2.msra.mxu0 0.0
        %1872 = vmatprep.subr.mxu0 0.0
        %1873 = vmatpush2.msra.mxu0 0.0
        %1874 = vmatprep.subr.mxu0 0.0
        %1875 = vmatpush2.msra.mxu0 0.0
        %1876 = vmatprep.subr.mxu0 0.0
        %1877 = vmatpush2.msra.mxu0 0.0
        %1878 = vmatprep.subr.mxu0 0.0
        %1879 = vmatpush2.msra.mxu0 0.0
        %1880 = vmatprep.subr.mxu0 0.0
        %1881 = vmatpush2.msra.mxu0 0.0
        %1882 = vmatprep.subr.mxu0 0.0
        %1883 = vmatpush2.msra.mxu0 0.0
        %1884 = vmatprep.subr.mxu0 0.0
        %1885 = vmatpush2.msra.mxu0 0.0
        %1886 = vmatprep.subr.mxu0 0.0
        %1887 = vmatpush2.msra.mxu0 0.0
        %1888 = vmatprep.subr.mxu0 0.0
        %1889 = vmatpush2.msra.mxu0 0.0
        %1890 = vmatprep.mubr.f32.mxu0 0.0
        %1891 = vmatmul.mubr.f32.gmra.mxu0 %v1824
        %v1892 = vpop.f32.mrf.mxu0
        %v1893 = vadd.f32 %v1821, %v1892
        %v1894 = vpop.f32.mrf.mxu0
        %1895 = vdwg.mxu0
        %v1896 = vld [vmem:[%s10] sm:$0xff]
        %v1897 = vld [vmem:[%s10 + $0x8] sm:$0xff]
        %v1898 = vld [vmem:[%s10 + $0x10] sm:$0xff]
        %v1899 = vld [vmem:[%s10 + $0x18] sm:$0xff]
        %v1900 = vld [vmem:[%s11] sm:$0x1]
        %v1902 = vsel %vm745, %v1809, 0
        %v1905 = vsel %vm745, %v1893, 0
        %1907 = vmatprep.subr.mxu0 0.0
        %1908 = vmatpush1.xpose.msra.mxu0 0.0
        %1909 = vmatprep.subr.mxu0 0.0
        %1910 = vmatpush1.xpose.msra.mxu0 0.0
        %1911 = vmatprep.subr.mxu0 0.0
        %1912 = vmatpush1.xpose.msra.mxu0 0.0
        %1913 = vmatprep.subr.mxu0 0.0
        %1914 = vmatpush1.xpose.msra.mxu0 0.0
        %1915 = vmatprep.subr.mxu0 0.0
        %1916 = vmatpush1.xpose.msra.mxu0 0.0
        %1917 = vmatprep.subr.mxu0 0.0
        %1918 = vmatpush1.xpose.msra.mxu0 0.0
        %1919 = vmatprep.subr.mxu0 0.0
        %1920 = vmatpush1.xpose.msra.mxu0 0.0
        %1921 = vmatprep.subr.mxu0 0.0
        %1922 = vmatpush1.xpose.msra.mxu0 0.0
        %1923 = vmatprep.subr.mxu0 0.0
        %1924 = vmatpush1.xpose.msra.mxu0 0.0
        %1925 = vmatprep.subr.mxu0 0.0
        %1926 = vmatpush1.xpose.msra.mxu0 0.0
        %1927 = vmatprep.subr.mxu0 0.0
        %1928 = vmatpush1.xpose.msra.mxu0 0.0
        %1929 = vmatprep.subr.mxu0 0.0
        %1930 = vmatpush1.xpose.msra.mxu0 0.0
        %1931 = vmatprep.subr.mxu0 0.0
        %1932 = vmatpush1.xpose.msra.mxu0 0.0
        %1933 = vmatprep.subr.mxu0 0.0
        %1934 = vmatpush1.xpose.msra.mxu0 0.0
        %1935 = vmatprep.subr.mxu0 0.0
        %1936 = vmatpush1.xpose.msra.mxu0 0.0
        %1937 = vmatprep.subr.mxu0 0.0
        %1938 = vmatpush1.xpose.msra.mxu0 %v1905
        %1939 = vmatprep.subr.mxu0 0.0
        %1940 = vmatpush2.xpose.msra.mxu0 0.0
        %1941 = vmatprep.subr.mxu0 0.0
        %1942 = vmatpush2.xpose.msra.mxu0 0.0
        %1943 = vmatprep.subr.mxu0 0.0
        %1944 = vmatpush2.xpose.msra.mxu0 0.0
        %1945 = vmatprep.subr.mxu0 0.0
        %1946 = vmatpush2.xpose.msra.mxu0 0.0
        %1947 = vmatprep.subr.mxu0 0.0
        %1948 = vmatpush2.xpose.msra.mxu0 0.0
        %1949 = vmatprep.subr.mxu0 0.0
        %1950 = vmatpush2.xpose.msra.mxu0 0.0
        %1951 = vmatprep.subr.mxu0 0.0
        %1952 = vmatpush2.xpose.msra.mxu0 0.0
        %1953 = vmatprep.subr.mxu0 0.0
        %1954 = vmatpush2.xpose.msra.mxu0 0.0
        %1955 = vmatprep.subr.mxu0 0.0
        %1956 = vmatpush2.xpose.msra.mxu0 0.0
        %1957 = vmatprep.subr.mxu0 0.0
        %1958 = vmatpush2.xpose.msra.mxu0 0.0
        %1959 = vmatprep.subr.mxu0 0.0
        %1960 = vmatpush2.xpose.msra.mxu0 0.0
        %1961 = vmatprep.subr.mxu0 0.0
        %1962 = vmatpush2.xpose.msra.mxu0 0.0
        %1963 = vmatprep.subr.mxu0 0.0
        %1964 = vmatpush2.xpose.msra.mxu0 0.0
        %1965 = vmatprep.subr.mxu0 0.0
        %1966 = vmatpush2.xpose.msra.mxu0 0.0
        %1967 = vmatprep.subr.mxu0 0.0
        %1968 = vmatpush2.xpose.msra.mxu0 0.0
        %1969 = vmatprep.subr.mxu0 0.0
        %1970 = vmatpush2.xpose.msra.mxu0 0.0
        %1971 = vmatprep.mubr.f32.mxu0 0.0
        %1972 = vmatmul.mubr.f32.gmra.mxu0 %v1902
        %v1973 = vpop.f32.mrf.mxu0
        %v1974 = vadd.f32 0.0, %v1973
        %v1975 = vpop.f32.mrf.mxu0
        %1976 = vdwg.mxu0
        %vm1977 = vcmask 48128
        %v1978 = vsel %vm1977, %v1974, -inf
        %1979 = vmax.xlane.f32.xlu0 %v1978
        %v1980 = vpop.xlane.xlu0 %1979
        %v1981 = vsub.f32 %v1974, %v1980
        %v1982 = vmul.f32 %v1981, 1.442695
        %v1983 = vpow.pop %v1982
        %v1984 = vsel %vm1977, %v1983, 0.0
        %1985 = vadd.xlane.f32.xlu0 %v1984
        %v1986 = vpop.xlane.xlu0 %1985
        %v1987 = vrcp.pop %v1986
        %v1988 = vmul.f32 %v1983, %v1987
        %1989 = vrot.lane.b32.xlu0 %v1893, 96
        %v1990 = vpop.permute.xlu0 %1989
        %v1992 = vsel %vm1977, %v1988, 0
        %vm1994 = vcmask 1045504
        %v1995 = vsel %vm1994, %v1990, 0
        %1997 = vmatprep.subr.mxu0 0.0
        %1998 = vmatpush1.msra.mxu0 0.0
        %1999 = vmatprep.subr.mxu0 0.0
        %2000 = vmatpush1.msra.mxu0 0.0
        %2001 = vmatprep.subr.mxu0 0.0
        %2002 = vmatpush1.msra.mxu0 0.0
        %2003 = vmatprep.subr.mxu0 0.0
        %2004 = vmatpush1.msra.mxu0 0.0
        %2005 = vmatprep.subr.mxu0 0.0
        %2006 = vmatpush1.msra.mxu0 0.0
        %2007 = vmatprep.subr.mxu0 0.0
        %2008 = vmatpush1.msra.mxu0 0.0
        %2009 = vmatprep.subr.mxu0 0.0
        %2010 = vmatpush1.msra.mxu0 0.0
        %2011 = vmatprep.subr.mxu0 0.0
        %2012 = vmatpush1.msra.mxu0 0.0
        %2013 = vmatprep.subr.mxu0 0.0
        %2014 = vmatpush1.msra.mxu0 0.0
        %2015 = vmatprep.subr.mxu0 0.0
        %2016 = vmatpush1.msra.mxu0 0.0
        %2017 = vmatprep.subr.mxu0 0.0
        %2018 = vmatpush1.msra.mxu0 0.0
        %2019 = vmatprep.subr.mxu0 0.0
        %2020 = vmatpush1.msra.mxu0 0.0
        %2021 = vmatprep.subr.mxu0 0.0
        %2022 = vmatpush1.msra.mxu0 0.0
        %2023 = vmatprep.subr.mxu0 0.0
        %2024 = vmatpush1.msra.mxu0 0.0
        %2025 = vmatprep.subr.mxu0 0.0
        %2026 = vmatpush1.msra.mxu0 0.0
        %2027 = vmatprep.subr.mxu0 0.0
        %2028 = vmatpush1.msra.mxu0 %v1995
        %2029 = vmatprep.subr.mxu0 0.0
        %2030 = vmatpush2.msra.mxu0 0.0
        %2031 = vmatprep.subr.mxu0 0.0
        %2032 = vmatpush2.msra.mxu0 0.0
        %2033 = vmatprep.subr.mxu0 0.0
        %2034 = vmatpush2.msra.mxu0 0.0
        %2035 = vmatprep.subr.mxu0 0.0
        %2036 = vmatpush2.msra.mxu0 0.0
        %2037 = vmatprep.subr.mxu0 0.0
        %2038 = vmatpush2.msra.mxu0 0.0
        %2039 = vmatprep.subr.mxu0 0.0
        %2040 = vmatpush2.msra.mxu0 0.0
        %2041 = vmatprep.subr.mxu0 0.0
        %2042 = vmatpush2.msra.mxu0 0.0
        %2043 = vmatprep.subr.mxu0 0.0
        %2044 = vmatpush2.msra.mxu0 0.0
        %2045 = vmatprep.subr.mxu0 0.0
        %2046 = vmatpush2.msra.mxu0 0.0
        %2047 = vmatprep.subr.mxu0 0.0
        %2048 = vmatpush2.msra.mxu0 0.0
        %2049 = vmatprep.subr.mxu0 0.0
        %2050 = vmatpush2.msra.mxu0 0.0
        %2051 = vmatprep.subr.mxu0 0.0
        %2052 = vmatpush2.msra.mxu0 0.0
        %2053 = vmatprep.subr.mxu0 0.0
        %2054 = vmatpush2.msra.mxu0 0.0
        %2055 = vmatprep.subr.mxu0 0.0
        %2056 = vmatpush2.msra.mxu0 0.0
        %2057 = vmatprep.subr.mxu0 0.0
        %2058 = vmatpush2.msra.mxu0 0.0
        %2059 = vmatprep.subr.mxu0 0.0
        %2060 = vmatpush2.msra.mxu0 0.0
        %2061 = vmatprep.mubr.f32.mxu0 0.0
        %2062 = vmatmul.mubr.f32.gmra.mxu0 %v1992
        %v2063 = vpop.f32.mrf.mxu0
        %v2064 = vadd.f32 0.0, %v2063
        %v2065 = vpop.f32.mrf.mxu0
        %2066 = vdwg.mxu0
        %2067 = vrot.lane.b32.xlu0 %v1809, 120
        %v2068 = vpop.permute.xlu0 %2067
        %2069 = vrot.lane.b32.xlu0 %v1893, 120
        %v2070 = vpop.permute.xlu0 %2069
        %v2071 = vsel %vm745, %v2068, 0
        %v2073 = vsel %vm745, %v2070, 0
        %2075 = vmatprep.subr.mxu0 0.0
        %2076 = vmatpush1.xpose.msra.mxu0 0.0
        %2077 = vmatprep.subr.mxu0 0.0
        %2078 = vmatpush1.xpose.msra.mxu0 0.0
        %2079 = vmatprep.subr.mxu0 0.0
        %2080 = vmatpush1.xpose.msra.mxu0 0.0
        %2081 = vmatprep.subr.mxu0 0.0
        %2082 = vmatpush1.xpose.msra.mxu0 0.0
        %2083 = vmatprep.subr.mxu0 0.0
        %2084 = vmatpush1.xpose.msra.mxu0 0.0
        %2085 = vmatprep.subr.mxu0 0.0
        %2086 = vmatpush1.xpose.msra.mxu0 0.0
        %2087 = vmatprep.subr.mxu0 0.0
        %2088 = vmatpush1.xpose.msra.mxu0 0.0
        %2089 = vmatprep.subr.mxu0 0.0
        %2090 = vmatpush1.xpose.msra.mxu0 0.0
        %2091 = vmatprep.subr.mxu0 0.0
        %2092 = vmatpush1.xpose.msra.mxu0 0.0
        %2093 = vmatprep.subr.mxu0 0.0
        %2094 = vmatpush1.xpose.msra.mxu0 0.0
        %2095 = vmatprep.subr.mxu0 0.0
        %2096 = vmatpush1.xpose.msra.mxu0 0.0
        %2097 = vmatprep.subr.mxu0 0.0
        %2098 = vmatpush1.xpose.msra.mxu0 0.0
        %2099 = vmatprep.subr.mxu0 0.0
        %2100 = vmatpush1.xpose.msra.mxu0 0.0
        %2101 = vmatprep.subr.mxu0 0.0
        %2102 = vmatpush1.xpose.msra.mxu0 0.0
        %2103 = vmatprep.subr.mxu0 0.0
        %2104 = vmatpush1.xpose.msra.mxu0 0.0
        %2105 = vmatprep.subr.mxu0 0.0
        %2106 = vmatpush1.xpose.msra.mxu0 %v2073
        %2107 = vmatprep.subr.mxu0 0.0
        %2108 = vmatpush2.xpose.msra.mxu0 0.0
        %2109 = vmatprep.subr.mxu0 0.0
        %2110 = vmatpush2.xpose.msra.mxu0 0.0
        %2111 = vmatprep.subr.mxu0 0.0
        %2112 = vmatpush2.xpose.msra.mxu0 0.0
        %2113 = vmatprep.subr.mxu0 0.0
        %2114 = vmatpush2.xpose.msra.mxu0 0.0
        %2115 = vmatprep.subr.mxu0 0.0
        %2116 = vmatpush2.xpose.msra.mxu0 0.0
        %2117 = vmatprep.subr.mxu0 0.0
        %2118 = vmatpush2.xpose.msra.mxu0 0.0
        %2119 = vmatprep.subr.mxu0 0.0
        %2120 = vmatpush2.xpose.msra.mxu0 0.0
        %2121 = vmatprep.subr.mxu0 0.0
        %2122 = vmatpush2.xpose.msra.mxu0 0.0
        %2123 = vmatprep.subr.mxu0 0.0
        %2124 = vmatpush2.xpose.msra.mxu0 0.0
        %2125 = vmatprep.subr.mxu0 0.0
        %2126 = vmatpush2.xpose.msra.mxu0 0.0
        %2127 = vmatprep.subr.mxu0 0.0
        %2128 = vmatpush2.xpose.msra.mxu0 0.0
        %2129 = vmatprep.subr.mxu0 0.0
        %2130 = vmatpush2.xpose.msra.mxu0 0.0
        %2131 = vmatprep.subr.mxu0 0.0
        %2132 = vmatpush2.xpose.msra.mxu0 0.0
        %2133 = vmatprep.subr.mxu0 0.0
        %2134 = vmatpush2.xpose.msra.mxu0 0.0
        %2135 = vmatprep.subr.mxu0 0.0
        %2136 = vmatpush2.xpose.msra.mxu0 0.0
        %2137 = vmatprep.subr.mxu0 0.0
        %2138 = vmatpush2.xpose.msra.mxu0 0.0
        %2139 = vmatprep.mubr.f32.mxu0 0.0
        %2140 = vmatmul.mubr.f32.gmra.mxu0 %v2071
        %v2141 = vpop.f32.mrf.mxu0
        %v2142 = vadd.f32 0.0, %v2141
        %v2143 = vpop.f32.mrf.mxu0
        %2144 = vdwg.mxu0
        %v2145 = vsel %vm1977, %v2142, -inf
        %2146 = vmax.xlane.f32.xlu0 %v2145
        %v2147 = vpop.xlane.xlu0 %2146
        %v2148 = vsub.f32 %v2142, %v2147
        %v2149 = vmul.f32 %v2148, 1.442695
        %v2150 = vpow.pop %v2149
        %v2151 = vsel %vm1977, %v2150, 0.0
        %2152 = vadd.xlane.f32.xlu0 %v2151
        %v2153 = vpop.xlane.xlu0 %2152
        %v2154 = vrcp.pop %v2153
        %v2155 = vmul.f32 %v2150, %v2154
        %2156 = vrot.lane.b32.xlu0 %v1893, 88
        %v2157 = vpop.permute.xlu0 %2156
        %v2159 = vsel %vm1977, %v2155, 0
        %v2161 = vsel %vm1994, %v2157, 0
        %2163 = vmatprep.subr.mxu0 0.0
        %2164 = vmatpush1.msra.mxu0 0.0
        %2165 = vmatprep.subr.mxu0 0.0
        %2166 = vmatpush1.msra.mxu0 0.0
        %2167 = vmatprep.subr.mxu0 0.0
        %2168 = vmatpush1.msra.mxu0 0.0
        %2169 = vmatprep.subr.mxu0 0.0
        %2170 = vmatpush1.msra.mxu0 0.0
        %2171 = vmatprep.subr.mxu0 0.0
        %2172 = vmatpush1.msra.mxu0 0.0
        %2173 = vmatprep.subr.mxu0 0.0
        %2174 = vmatpush1.msra.mxu0 0.0
        %2175 = vmatprep.subr.mxu0 0.0
        %2176 = vmatpush1.msra.mxu0 0.0
        %2177 = vmatprep.subr.mxu0 0.0
        %2178 = vmatpush1.msra.mxu0 0.0
        %2179 = vmatprep.subr.mxu0 0.0
        %2180 = vmatpush1.msra.mxu0 0.0
        %2181 = vmatprep.subr.mxu0 0.0
        %2182 = vmatpush1.msra.mxu0 0.0
        %2183 = vmatprep.subr.mxu0 0.0
        %2184 = vmatpush1.msra.mxu0 0.0
        %2185 = vmatprep.subr.mxu0 0.0
        %2186 = vmatpush1.msra.mxu0 0.0
        %2187 = vmatprep.subr.mxu0 0.0
        %2188 = vmatpush1.msra.mxu0 0.0
        %2189 = vmatprep.subr.mxu0 0.0
        %2190 = vmatpush1.msra.mxu0 0.0
        %2191 = vmatprep.subr.mxu0 0.0
        %2192 = vmatpush1.msra.mxu0 0.0
        %2193 = vmatprep.subr.mxu0 0.0
        %2194 = vmatpush1.msra.mxu0 %v2161
        %2195 = vmatprep.subr.mxu0 0.0
        %2196 = vmatpush2.msra.mxu0 0.0
        %2197 = vmatprep.subr.mxu0 0.0
        %2198 = vmatpush2.msra.mxu0 0.0
        %2199 = vmatprep.subr.mxu0 0.0
        %2200 = vmatpush2.msra.mxu0 0.0
        %2201 = vmatprep.subr.mxu0 0.0
        %2202 = vmatpush2.msra.mxu0 0.0
        %2203 = vmatprep.subr.mxu0 0.0
        %2204 = vmatpush2.msra.mxu0 0.0
        %2205 = vmatprep.subr.mxu0 0.0
        %2206 = vmatpush2.msra.mxu0 0.0
        %2207 = vmatprep.subr.mxu0 0.0
        %2208 = vmatpush2.msra.mxu0 0.0
        %2209 = vmatprep.subr.mxu0 0.0
        %2210 = vmatpush2.msra.mxu0 0.0
        %2211 = vmatprep.subr.mxu0 0.0
        %2212 = vmatpush2.msra.mxu0 0.0
        %2213 = vmatprep.subr.mxu0 0.0
        %2214 = vmatpush2.msra.mxu0 0.0
        %2215 = vmatprep.subr.mxu0 0.0
        %2216 = vmatpush2.msra.mxu0 0.0
        %2217 = vmatprep.subr.mxu0 0.0
        %2218 = vmatpush2.msra.mxu0 0.0
        %2219 = vmatprep.subr.mxu0 0.0
        %2220 = vmatpush2.msra.mxu0 0.0
        %2221 = vmatprep.subr.mxu0 0.0
        %2222 = vmatpush2.msra.mxu0 0.0
        %2223 = vmatprep.subr.mxu0 0.0
        %2224 = vmatpush2.msra.mxu0 0.0
        %2225 = vmatprep.subr.mxu0 0.0
        %2226 = vmatpush2.msra.mxu0 0.0
        %2227 = vmatprep.mubr.f32.mxu0 0.0
        %2228 = vmatmul.mubr.f32.gmra.mxu0 %v2159
        %v2229 = vpop.f32.mrf.mxu0
        %v2230 = vadd.f32 0.0, %v2229
        %v2231 = vpop.f32.mrf.mxu0
        %2232 = vdwg.mxu0
        %v2234 = vsel %vm745, %v2230, 0
        %2236 = vmatprep.subr.mxu0 0.0
        %2237 = vmatpush1.msra.mxu0 0.0
        %2238 = vmatprep.subr.mxu0 0.0
        %2239 = vmatpush1.msra.mxu0 0.0
        %2240 = vmatprep.subr.mxu0 0.0
        %2241 = vmatpush1.msra.mxu0 0.0
        %2242 = vmatprep.subr.mxu0 0.0
        %2243 = vmatpush1.msra.mxu0 0.0
        %2244 = vmatprep.subr.mxu0 0.0
        %2245 = vmatpush1.msra.mxu0 0.0
        %2246 = vmatprep.subr.mxu0 0.0
        %2247 = vmatpush1.msra.mxu0 0.0
        %2248 = vmatprep.subr.mxu0 0.0
        %2249 = vmatpush1.msra.mxu0 0.0
        %2250 = vmatprep.subr.mxu0 0.0
        %2251 = vmatpush1.msra.mxu0 0.0
        %2252 = vmatprep.subr.mxu0 0.0
        %2253 = vmatpush1.msra.mxu0 0.0
        %2254 = vmatprep.subr.mxu0 0.0
        %2255 = vmatpush1.msra.mxu0 0.0
        %2256 = vmatprep.subr.mxu0 0.0
        %2257 = vmatpush1.msra.mxu0 0.0
        %2258 = vmatprep.subr.mxu0 0.0
        %2259 = vmatpush1.msra.mxu0 0.0
        %2260 = vmatprep.subr.mxu0 0.0
        %2261 = vmatpush1.msra.mxu0 0.0
        %2262 = vmatprep.subr.mxu0 0.0
        %2263 = vmatpush1.msra.mxu0 0.0
        %2264 = vmatprep.subr.mxu0 0.0
        %2265 = vmatpush1.msra.mxu0 0.0
        %2266 = vmatprep.subr.mxu0 0.0
        %2267 = vmatpush1.msra.mxu0 %v1897
        %2268 = vmatprep.subr.mxu0 0.0
        %2269 = vmatpush2.msra.mxu0 0.0
        %2270 = vmatprep.subr.mxu0 0.0
        %2271 = vmatpush2.msra.mxu0 0.0
        %2272 = vmatprep.subr.mxu0 0.0
        %2273 = vmatpush2.msra.mxu0 0.0
        %2274 = vmatprep.subr.mxu0 0.0
        %2275 = vmatpush2.msra.mxu0 0.0
        %2276 = vmatprep.subr.mxu0 0.0
        %2277 = vmatpush2.msra.mxu0 0.0
        %2278 = vmatprep.subr.mxu0 0.0
        %2279 = vmatpush2.msra.mxu0 0.0
        %2280 = vmatprep.subr.mxu0 0.0
        %2281 = vmatpush2.msra.mxu0 0.0
        %2282 = vmatprep.subr.mxu0 0.0
        %2283 = vmatpush2.msra.mxu0 0.0
        %2284 = vmatprep.subr.mxu0 0.0
        %2285 = vmatpush2.msra.mxu0 0.0
        %2286 = vmatprep.subr.mxu0 0.0
        %2287 = vmatpush2.msra.mxu0 0.0
        %2288 = vmatprep.subr.mxu0 0.0
        %2289 = vmatpush2.msra.mxu0 0.0
        %2290 = vmatprep.subr.mxu0 0.0
        %2291 = vmatpush2.msra.mxu0 0.0
        %2292 = vmatprep.subr.mxu0 0.0
        %2293 = vmatpush2.msra.mxu0 0.0
        %2294 = vmatprep.subr.mxu0 0.0
        %2295 = vmatpush2.msra.mxu0 0.0
        %2296 = vmatprep.subr.mxu0 0.0
        %2297 = vmatpush2.msra.mxu0 0.0
        %2298 = vmatprep.subr.mxu0 0.0
        %2299 = vmatpush2.msra.mxu0 0.0
        %2300 = vmatprep.mubr.f32.mxu0 0.0
        %2301 = vmatmul.mubr.f32.gmra.mxu0 %v2234
        %v2302 = vpop.f32.mrf.mxu0
        %v2303 = vadd.f32 0.0, %v2302
        %v2304 = vpop.f32.mrf.mxu0
        %2305 = vdwg.mxu0
        %v2307 = vsel %vm745, %v2064, 0
        %2309 = vmatprep.subr.mxu0 0.0
        %2310 = vmatpush1.msra.mxu0 0.0
        %2311 = vmatprep.subr.mxu0 0.0
        %2312 = vmatpush1.msra.mxu0 0.0
        %2313 = vmatprep.subr.mxu0 0.0
        %2314 = vmatpush1.msra.mxu0 0.0
        %2315 = vmatprep.subr.mxu0 0.0
        %2316 = vmatpush1.msra.mxu0 0.0
        %2317 = vmatprep.subr.mxu0 0.0
        %2318 = vmatpush1.msra.mxu0 0.0
        %2319 = vmatprep.subr.mxu0 0.0
        %2320 = vmatpush1.msra.mxu0 0.0
        %2321 = vmatprep.subr.mxu0 0.0
        %2322 = vmatpush1.msra.mxu0 0.0
        %2323 = vmatprep.subr.mxu0 0.0
        %2324 = vmatpush1.msra.mxu0 0.0
        %2325 = vmatprep.subr.mxu0 0.0
        %2326 = vmatpush1.msra.mxu0 0.0
        %2327 = vmatprep.subr.mxu0 0.0
        %2328 = vmatpush1.msra.mxu0 0.0
        %2329 = vmatprep.subr.mxu0 0.0
        %2330 = vmatpush1.msra.mxu0 0.0
        %2331 = vmatprep.subr.mxu0 0.0
        %2332 = vmatpush1.msra.mxu0 0.0
        %2333 = vmatprep.subr.mxu0 0.0
        %2334 = vmatpush1.msra.mxu0 0.0
        %2335 = vmatprep.subr.mxu0 0.0
        %2336 = vmatpush1.msra.mxu0 0.0
        %2337 = vmatprep.subr.mxu0 0.0
        %2338 = vmatpush1.msra.mxu0 0.0
        %2339 = vmatprep.subr.mxu0 0.0
        %2340 = vmatpush1.msra.mxu0 %v1896
        %2341 = vmatprep.subr.mxu0 0.0
        %2342 = vmatpush2.msra.mxu0 0.0
        %2343 = vmatprep.subr.mxu0 0.0
        %2344 = vmatpush2.msra.mxu0 0.0
        %2345 = vmatprep.subr.mxu0 0.0
        %2346 = vmatpush2.msra.mxu0 0.0
        %2347 = vmatprep.subr.mxu0 0.0
        %2348 = vmatpush2.msra.mxu0 0.0
        %2349 = vmatprep.subr.mxu0 0.0
        %2350 = vmatpush2.msra.mxu0 0.0
        %2351 = vmatprep.subr.mxu0 0.0
        %2352 = vmatpush2.msra.mxu0 0.0
        %2353 = vmatprep.subr.mxu0 0.0
        %2354 = vmatpush2.msra.mxu0 0.0
        %2355 = vmatprep.subr.mxu0 0.0
        %2356 = vmatpush2.msra.mxu0 0.0
        %2357 = vmatprep.subr.mxu0 0.0
        %2358 = vmatpush2.msra.mxu0 0.0
        %2359 = vmatprep.subr.mxu0 0.0
        %2360 = vmatpush2.msra.mxu0 0.0
        %2361 = vmatprep.subr.mxu0 0.0
        %2362 = vmatpush2.msra.mxu0 0.0
        %2363 = vmatprep.subr.mxu0 0.0
        %2364 = vmatpush2.msra.mxu0 0.0
        %2365 = vmatprep.subr.mxu0 0.0
        %2366 = vmatpush2.msra.mxu0 0.0
        %2367 = vmatprep.subr.mxu0 0.0
        %2368 = vmatpush2.msra.mxu0 0.0
        %2369 = vmatprep.subr.mxu0 0.0
        %2370 = vmatpush2.msra.mxu0 0.0
        %2371 = vmatprep.subr.mxu0 0.0
        %2372 = vmatpush2.msra.mxu0 0.0
        %2373 = vmatprep.mubr.f32.mxu0 0.0
        %2374 = vmatmul.mubr.f32.gmra.mxu0 %v2307
        %v2375 = vpop.f32.mrf.mxu0
        %v2376 = vadd.f32 %v2303, %v2375
        %v2377 = vpop.f32.mrf.mxu0
        %2378 = vdwg.mxu0
        %2379 = vrot.lane.b32.xlu0 %v1809, 112
        %v2380 = vpop.permute.xlu0 %2379
        %2381 = vrot.lane.b32.xlu0 %v1893, 112
        %v2382 = vpop.permute.xlu0 %2381
        %v2383 = vsel %vm745, %v2380, 0
        %v2385 = vsel %vm745, %v2382, 0
        %2387 = vmatprep.subr.mxu0 0.0
        %2388 = vmatpush1.xpose.msra.mxu0 0.0
        %2389 = vmatprep.subr.mxu0 0.0
        %2390 = vmatpush1.xpose.msra.mxu0 0.0
        %2391 = vmatprep.subr.mxu0 0.0
        %2392 = vmatpush1.xpose.msra.mxu0 0.0
        %2393 = vmatprep.subr.mxu0 0.0
        %2394 = vmatpush1.xpose.msra.mxu0 0.0
        %2395 = vmatprep.subr.mxu0 0.0
        %2396 = vmatpush1.xpose.msra.mxu0 0.0
        %2397 = vmatprep.subr.mxu0 0.0
        %2398 = vmatpush1.xpose.msra.mxu0 0.0
        %2399 = vmatprep.subr.mxu0 0.0
        %2400 = vmatpush1.xpose.msra.mxu0 0.0
        %2401 = vmatprep.subr.mxu0 0.0
        %2402 = vmatpush1.xpose.msra.mxu0 0.0
        %2403 = vmatprep.subr.mxu0 0.0
        %2404 = vmatpush1.xpose.msra.mxu0 0.0
        %2405 = vmatprep.subr.mxu0 0.0
        %2406 = vmatpush1.xpose.msra.mxu0 0.0
        %2407 = vmatprep.subr.mxu0 0.0
        %2408 = vmatpush1.xpose.msra.mxu0 0.0
        %2409 = vmatprep.subr.mxu0 0.0
        %2410 = vmatpush1.xpose.msra.mxu0 0.0
        %2411 = vmatprep.subr.mxu0 0.0
        %2412 = vmatpush1.xpose.msra.mxu0 0.0
        %2413 = vmatprep.subr.mxu0 0.0
        %2414 = vmatpush1.xpose.msra.mxu0 0.0
        %2415 = vmatprep.subr.mxu0 0.0
        %2416 = vmatpush1.xpose.msra.mxu0 0.0
        %2417 = vmatprep.subr.mxu0 0.0
        %2418 = vmatpush1.xpose.msra.mxu0 %v2385
        %2419 = vmatprep.subr.mxu0 0.0
        %2420 = vmatpush2.xpose.msra.mxu0 0.0
        %2421 = vmatprep.subr.mxu0 0.0
        %2422 = vmatpush2.xpose.msra.mxu0 0.0
        %2423 = vmatprep.subr.mxu0 0.0
        %2424 = vmatpush2.xpose.msra.mxu0 0.0
        %2425 = vmatprep.subr.mxu0 0.0
        %2426 = vmatpush2.xpose.msra.mxu0 0.0
        %2427 = vmatprep.subr.mxu0 0.0
        %2428 = vmatpush2.xpose.msra.mxu0 0.0
        %2429 = vmatprep.subr.mxu0 0.0
        %2430 = vmatpush2.xpose.msra.mxu0 0.0
        %2431 = vmatprep.subr.mxu0 0.0
        %2432 = vmatpush2.xpose.msra.mxu0 0.0
        %2433 = vmatprep.subr.mxu0 0.0
        %2434 = vmatpush2.xpose.msra.mxu0 0.0
        %2435 = vmatprep.subr.mxu0 0.0
        %2436 = vmatpush2.xpose.msra.mxu0 0.0
        %2437 = vmatprep.subr.mxu0 0.0
        %2438 = vmatpush2.xpose.msra.mxu0 0.0
        %2439 = vmatprep.subr.mxu0 0.0
        %2440 = vmatpush2.xpose.msra.mxu0 0.0
        %2441 = vmatprep.subr.mxu0 0.0
        %2442 = vmatpush2.xpose.msra.mxu0 0.0
        %2443 = vmatprep.subr.mxu0 0.0
        %2444 = vmatpush2.xpose.msra.mxu0 0.0
        %2445 = vmatprep.subr.mxu0 0.0
        %2446 = vmatpush2.xpose.msra.mxu0 0.0
        %2447 = vmatprep.subr.mxu0 0.0
        %2448 = vmatpush2.xpose.msra.mxu0 0.0
        %2449 = vmatprep.subr.mxu0 0.0
        %2450 = vmatpush2.xpose.msra.mxu0 0.0
        %2451 = vmatprep.mubr.f32.mxu0 0.0
        %2452 = vmatmul.mubr.f32.gmra.mxu0 %v2383
        %v2453 = vpop.f32.mrf.mxu0
        %v2454 = vadd.f32 0.0, %v2453
        %v2455 = vpop.f32.mrf.mxu0
        %2456 = vdwg.mxu0
        %v2457 = vsel %vm1977, %v2454, -inf
        %2458 = vmax.xlane.f32.xlu0 %v2457
        %v2459 = vpop.xlane.xlu0 %2458
        %v2460 = vsub.f32 %v2454, %v2459
        %v2461 = vmul.f32 %v2460, 1.442695
        %v2462 = vpow.pop %v2461
        %v2463 = vsel %vm1977, %v2462, 0.0
        %2464 = vadd.xlane.f32.xlu0 %v2463
        %v2465 = vpop.xlane.xlu0 %2464
        %v2466 = vrcp.pop %v2465
        %v2467 = vmul.f32 %v2462, %v2466
        %2468 = vrot.lane.b32.xlu0 %v1893, 80
        %v2469 = vpop.permute.xlu0 %2468
        %v2471 = vsel %vm1977, %v2467, 0
        %v2473 = vsel %vm1994, %v2469, 0
        %2475 = vmatprep.subr.mxu0 0.0
        %2476 = vmatpush1.msra.mxu0 0.0
        %2477 = vmatprep.subr.mxu0 0.0
        %2478 = vmatpush1.msra.mxu0 0.0
        %2479 = vmatprep.subr.mxu0 0.0
        %2480 = vmatpush1.msra.mxu0 0.0
        %2481 = vmatprep.subr.mxu0 0.0
        %2482 = vmatpush1.msra.mxu0 0.0
        %2483 = vmatprep.subr.mxu0 0.0
        %2484 = vmatpush1.msra.mxu0 0.0
        %2485 = vmatprep.subr.mxu0 0.0
        %2486 = vmatpush1.msra.mxu0 0.0
        %2487 = vmatprep.subr.mxu0 0.0
        %2488 = vmatpush1.msra.mxu0 0.0
        %2489 = vmatprep.subr.mxu0 0.0
        %2490 = vmatpush1.msra.mxu0 0.0
        %2491 = vmatprep.subr.mxu0 0.0
        %2492 = vmatpush1.msra.mxu0 0.0
        %2493 = vmatprep.subr.mxu0 0.0
        %2494 = vmatpush1.msra.mxu0 0.0
        %2495 = vmatprep.subr.mxu0 0.0
        %2496 = vmatpush1.msra.mxu0 0.0
        %2497 = vmatprep.subr.mxu0 0.0
        %2498 = vmatpush1.msra.mxu0 0.0
        %2499 = vmatprep.subr.mxu0 0.0
        %2500 = vmatpush1.msra.mxu0 0.0
        %2501 = vmatprep.subr.mxu0 0.0
        %2502 = vmatpush1.msra.mxu0 0.0
        %2503 = vmatprep.subr.mxu0 0.0
        %2504 = vmatpush1.msra.mxu0 0.0
        %2505 = vmatprep.subr.mxu0 0.0
        %2506 = vmatpush1.msra.mxu0 %v2473
        %2507 = vmatprep.subr.mxu0 0.0
        %2508 = vmatpush2.msra.mxu0 0.0
        %2509 = vmatprep.subr.mxu0 0.0
        %2510 = vmatpush2.msra.mxu0 0.0
        %2511 = vmatprep.subr.mxu0 0.0
        %2512 = vmatpush2.msra.mxu0 0.0
        %2513 = vmatprep.subr.mxu0 0.0
        %2514 = vmatpush2.msra.mxu0 0.0
        %2515 = vmatprep.subr.mxu0 0.0
        %2516 = vmatpush2.msra.mxu0 0.0
        %2517 = vmatprep.subr.mxu0 0.0
        %2518 = vmatpush2.msra.mxu0 0.0
        %2519 = vmatprep.subr.mxu0 0.0
        %2520 = vmatpush2.msra.mxu0 0.0
        %2521 = vmatprep.subr.mxu0 0.0
        %2522 = vmatpush2.msra.mxu0 0.0
        %2523 = vmatprep.subr.mxu0 0.0
        %2524 = vmatpush2.msra.mxu0 0.0
        %2525 = vmatprep.subr.mxu0 0.0
        %2526 = vmatpush2.msra.mxu0 0.0
        %2527 = vmatprep.subr.mxu0 0.0
        %2528 = vmatpush2.msra.mxu0 0.0
        %2529 = vmatprep.subr.mxu0 0.0
        %2530 = vmatpush2.msra.mxu0 0.0
        %2531 = vmatprep.subr.mxu0 0.0
        %2532 = vmatpush2.msra.mxu0 0.0
        %2533 = vmatprep.subr.mxu0 0.0
        %2534 = vmatpush2.msra.mxu0 0.0
        %2535 = vmatprep.subr.mxu0 0.0
        %2536 = vmatpush2.msra.mxu0 0.0
        %2537 = vmatprep.subr.mxu0 0.0
        %2538 = vmatpush2.msra.mxu0 0.0
        %2539 = vmatprep.mubr.f32.mxu0 0.0
        %2540 = vmatmul.mubr.f32.gmra.mxu0 %v2471
        %v2541 = vpop.f32.mrf.mxu0
        %v2542 = vadd.f32 0.0, %v2541
        %v2543 = vpop.f32.mrf.mxu0
        %2544 = vdwg.mxu0
        %v2546 = vsel %vm745, %v2542, 0
        %2548 = vmatprep.subr.mxu0 0.0
        %2549 = vmatpush1.msra.mxu0 0.0
        %2550 = vmatprep.subr.mxu0 0.0
        %2551 = vmatpush1.msra.mxu0 0.0
        %2552 = vmatprep.subr.mxu0 0.0
        %2553 = vmatpush1.msra.mxu0 0.0
        %2554 = vmatprep.subr.mxu0 0.0
        %2555 = vmatpush1.msra.mxu0 0.0
        %2556 = vmatprep.subr.mxu0 0.0
        %2557 = vmatpush1.msra.mxu0 0.0
        %2558 = vmatprep.subr.mxu0 0.0
        %2559 = vmatpush1.msra.mxu0 0.0
        %2560 = vmatprep.subr.mxu0 0.0
        %2561 = vmatpush1.msra.mxu0 0.0
        %2562 = vmatprep.subr.mxu0 0.0
        %2563 = vmatpush1.msra.mxu0 0.0
        %2564 = vmatprep.subr.mxu0 0.0
        %2565 = vmatpush1.msra.mxu0 0.0
        %2566 = vmatprep.subr.mxu0 0.0
        %2567 = vmatpush1.msra.mxu0 0.0
        %2568 = vmatprep.subr.mxu0 0.0
        %2569 = vmatpush1.msra.mxu0 0.0
        %2570 = vmatprep.subr.mxu0 0.0
        %2571 = vmatpush1.msra.mxu0 0.0
        %2572 = vmatprep.subr.mxu0 0.0
        %2573 = vmatpush1.msra.mxu0 0.0
        %2574 = vmatprep.subr.mxu0 0.0
        %2575 = vmatpush1.msra.mxu0 0.0
        %2576 = vmatprep.subr.mxu0 0.0
        %2577 = vmatpush1.msra.mxu0 0.0
        %2578 = vmatprep.subr.mxu0 0.0
        %2579 = vmatpush1.msra.mxu0 %v1898
        %2580 = vmatprep.subr.mxu0 0.0
        %2581 = vmatpush2.msra.mxu0 0.0
        %2582 = vmatprep.subr.mxu0 0.0
        %2583 = vmatpush2.msra.mxu0 0.0
        %2584 = vmatprep.subr.mxu0 0.0
        %2585 = vmatpush2.msra.mxu0 0.0
        %2586 = vmatprep.subr.mxu0 0.0
        %2587 = vmatpush2.msra.mxu0 0.0
        %2588 = vmatprep.subr.mxu0 0.0
        %2589 = vmatpush2.msra.mxu0 0.0
        %2590 = vmatprep.subr.mxu0 0.0
        %2591 = vmatpush2.msra.mxu0 0.0
        %2592 = vmatprep.subr.mxu0 0.0
        %2593 = vmatpush2.msra.mxu0 0.0
        %2594 = vmatprep.subr.mxu0 0.0
        %2595 = vmatpush2.msra.mxu0 0.0
        %2596 = vmatprep.subr.mxu0 0.0
        %2597 = vmatpush2.msra.mxu0 0.0
        %2598 = vmatprep.subr.mxu0 0.0
        %2599 = vmatpush2.msra.mxu0 0.0
        %2600 = vmatprep.subr.mxu0 0.0
        %2601 = vmatpush2.msra.mxu0 0.0
        %2602 = vmatprep.subr.mxu0 0.0
        %2603 = vmatpush2.msra.mxu0 0.0
        %2604 = vmatprep.subr.mxu0 0.0
        %2605 = vmatpush2.msra.mxu0 0.0
        %2606 = vmatprep.subr.mxu0 0.0
        %2607 = vmatpush2.msra.mxu0 0.0
        %2608 = vmatprep.subr.mxu0 0.0
        %2609 = vmatpush2.msra.mxu0 0.0
        %2610 = vmatprep.subr.mxu0 0.0
        %2611 = vmatpush2.msra.mxu0 0.0
        %2612 = vmatprep.mubr.f32.mxu0 0.0
        %2613 = vmatmul.mubr.f32.gmra.mxu0 %v2546
        %v2614 = vpop.f32.mrf.mxu0
        %v2615 = vadd.f32 0.0, %v2614
        %v2616 = vpop.f32.mrf.mxu0
        %2617 = vdwg.mxu0
        %v2618 = vadd.f32 %v2376, %v2615
        %2619 = vrot.lane.b32.xlu0 %v1809, 104
        %v2620 = vpop.permute.xlu0 %2619
        %2621 = vrot.lane.b32.xlu0 %v1893, 104
        %v2622 = vpop.permute.xlu0 %2621
        %v2623 = vsel %vm745, %v2620, 0
        %v2625 = vsel %vm745, %v2622, 0
        %2627 = vmatprep.subr.mxu0 0.0
        %2628 = vmatpush1.xpose.msra.mxu0 0.0
        %2629 = vmatprep.subr.mxu0 0.0
        %2630 = vmatpush1.xpose.msra.mxu0 0.0
        %2631 = vmatprep.subr.mxu0 0.0
        %2632 = vmatpush1.xpose.msra.mxu0 0.0
        %2633 = vmatprep.subr.mxu0 0.0
        %2634 = vmatpush1.xpose.msra.mxu0 0.0
        %2635 = vmatprep.subr.mxu0 0.0
        %2636 = vmatpush1.xpose.msra.mxu0 0.0
        %2637 = vmatprep.subr.mxu0 0.0
        %2638 = vmatpush1.xpose.msra.mxu0 0.0
        %2639 = vmatprep.subr.mxu0 0.0
        %2640 = vmatpush1.xpose.msra.mxu0 0.0
        %2641 = vmatprep.subr.mxu0 0.0
        %2642 = vmatpush1.xpose.msra.mxu0 0.0
        %2643 = vmatprep.subr.mxu0 0.0
        %2644 = vmatpush1.xpose.msra.mxu0 0.0
        %2645 = vmatprep.subr.mxu0 0.0
        %2646 = vmatpush1.xpose.msra.mxu0 0.0
        %2647 = vmatprep.subr.mxu0 0.0
        %2648 = vmatpush1.xpose.msra.mxu0 0.0
        %2649 = vmatprep.subr.mxu0 0.0
        %2650 = vmatpush1.xpose.msra.mxu0 0.0
        %2651 = vmatprep.subr.mxu0 0.0
        %2652 = vmatpush1.xpose.msra.mxu0 0.0
        %2653 = vmatprep.subr.mxu0 0.0
        %2654 = vmatpush1.xpose.msra.mxu0 0.0
        %2655 = vmatprep.subr.mxu0 0.0
        %2656 = vmatpush1.xpose.msra.mxu0 0.0
        %2657 = vmatprep.subr.mxu0 0.0
        %2658 = vmatpush1.xpose.msra.mxu0 %v2625
        %2659 = vmatprep.subr.mxu0 0.0
        %2660 = vmatpush2.xpose.msra.mxu0 0.0
        %2661 = vmatprep.subr.mxu0 0.0
        %2662 = vmatpush2.xpose.msra.mxu0 0.0
        %2663 = vmatprep.subr.mxu0 0.0
        %2664 = vmatpush2.xpose.msra.mxu0 0.0
        %2665 = vmatprep.subr.mxu0 0.0
        %2666 = vmatpush2.xpose.msra.mxu0 0.0
        %2667 = vmatprep.subr.mxu0 0.0
        %2668 = vmatpush2.xpose.msra.mxu0 0.0
        %2669 = vmatprep.subr.mxu0 0.0
        %2670 = vmatpush2.xpose.msra.mxu0 0.0
        %2671 = vmatprep.subr.mxu0 0.0
        %2672 = vmatpush2.xpose.msra.mxu0 0.0
        %2673 = vmatprep.subr.mxu0 0.0
        %2674 = vmatpush2.xpose.msra.mxu0 0.0
        %2675 = vmatprep.subr.mxu0 0.0
        %2676 = vmatpush2.xpose.msra.mxu0 0.0
        %2677 = vmatprep.subr.mxu0 0.0
        %2678 = vmatpush2.xpose.msra.mxu0 0.0
        %2679 = vmatprep.subr.mxu0 0.0
        %2680 = vmatpush2.xpose.msra.mxu0 0.0
        %2681 = vmatprep.subr.mxu0 0.0
        %2682 = vmatpush2.xpose.msra.mxu0 0.0
        %2683 = vmatprep.subr.mxu0 0.0
        %2684 = vmatpush2.xpose.msra.mxu0 0.0
        %2685 = vmatprep.subr.mxu0 0.0
        %2686 = vmatpush2.xpose.msra.mxu0 0.0
        %2687 = vmatprep.subr.mxu0 0.0
        %2688 = vmatpush2.xpose.msra.mxu0 0.0
        %2689 = vmatprep.subr.mxu0 0.0
        %2690 = vmatpush2.xpose.msra.mxu0 0.0
        %2691 = vmatprep.mubr.f32.mxu0 0.0
        %2692 = vmatmul.mubr.f32.gmra.mxu0 %v2623
        %v2693 = vpop.f32.mrf.mxu0
        %v2694 = vadd.f32 0.0, %v2693
        %v2695 = vpop.f32.mrf.mxu0
        %2696 = vdwg.mxu0
        %v2697 = vsel %vm1977, %v2694, -inf
        %2698 = vmax.xlane.f32.xlu0 %v2697
        %v2699 = vpop.xlane.xlu0 %2698
        %v2700 = vsub.f32 %v2694, %v2699
        %v2701 = vmul.f32 %v2700, 1.442695
        %v2702 = vpow.pop %v2701
        %v2703 = vsel %vm1977, %v2702, 0.0
        %2704 = vadd.xlane.f32.xlu0 %v2703
        %v2705 = vpop.xlane.xlu0 %2704
        %v2706 = vrcp.pop %v2705
        %v2707 = vmul.f32 %v2702, %v2706
        %2708 = vrot.lane.b32.xlu0 %v1893, 72
        %v2709 = vpop.permute.xlu0 %2708
        %v2711 = vsel %vm1977, %v2707, 0
        %v2713 = vsel %vm1994, %v2709, 0
        %2715 = vmatprep.subr.mxu0 0.0
        %2716 = vmatpush1.msra.mxu0 0.0
        %2717 = vmatprep.subr.mxu0 0.0
        %2718 = vmatpush1.msra.mxu0 0.0
        %2719 = vmatprep.subr.mxu0 0.0
        %2720 = vmatpush1.msra.mxu0 0.0
        %2721 = vmatprep.subr.mxu0 0.0
        %2722 = vmatpush1.msra.mxu0 0.0
        %2723 = vmatprep.subr.mxu0 0.0
        %2724 = vmatpush1.msra.mxu0 0.0
        %2725 = vmatprep.subr.mxu0 0.0
        %2726 = vmatpush1.msra.mxu0 0.0
        %2727 = vmatprep.subr.mxu0 0.0
        %2728 = vmatpush1.msra.mxu0 0.0
        %2729 = vmatprep.subr.mxu0 0.0
        %2730 = vmatpush1.msra.mxu0 0.0
        %2731 = vmatprep.subr.mxu0 0.0
        %2732 = vmatpush1.msra.mxu0 0.0
        %2733 = vmatprep.subr.mxu0 0.0
        %2734 = vmatpush1.msra.mxu0 0.0
        %2735 = vmatprep.subr.mxu0 0.0
        %2736 = vmatpush1.msra.mxu0 0.0
        %2737 = vmatprep.subr.mxu0 0.0
        %2738 = vmatpush1.msra.mxu0 0.0
        %2739 = vmatprep.subr.mxu0 0.0
        %2740 = vmatpush1.msra.mxu0 0.0
        %2741 = vmatprep.subr.mxu0 0.0
        %2742 = vmatpush1.msra.mxu0 0.0
        %2743 = vmatprep.subr.mxu0 0.0
        %2744 = vmatpush1.msra.mxu0 0.0
        %2745 = vmatprep.subr.mxu0 0.0
        %2746 = vmatpush1.msra.mxu0 %v2713
        %2747 = vmatprep.subr.mxu0 0.0
        %2748 = vmatpush2.msra.mxu0 0.0
        %2749 = vmatprep.subr.mxu0 0.0
        %2750 = vmatpush2.msra.mxu0 0.0
        %2751 = vmatprep.subr.mxu0 0.0
        %2752 = vmatpush2.msra.mxu0 0.0
        %2753 = vmatprep.subr.mxu0 0.0
        %2754 = vmatpush2.msra.mxu0 0.0
        %2755 = vmatprep.subr.mxu0 0.0
        %2756 = vmatpush2.msra.mxu0 0.0
        %2757 = vmatprep.subr.mxu0 0.0
        %2758 = vmatpush2.msra.mxu0 0.0
        %2759 = vmatprep.subr.mxu0 0.0
        %2760 = vmatpush2.msra.mxu0 0.0
        %2761 = vmatprep.subr.mxu0 0.0
        %2762 = vmatpush2.msra.mxu0 0.0
        %2763 = vmatprep.subr.mxu0 0.0
        %2764 = vmatpush2.msra.mxu0 0.0
        %2765 = vmatprep.subr.mxu0 0.0
        %2766 = vmatpush2.msra.mxu0 0.0
        %2767 = vmatprep.subr.mxu0 0.0
        %2768 = vmatpush2.msra.mxu0 0.0
        %2769 = vmatprep.subr.mxu0 0.0
        %2770 = vmatpush2.msra.mxu0 0.0
        %2771 = vmatprep.subr.mxu0 0.0
        %2772 = vmatpush2.msra.mxu0 0.0
        %2773 = vmatprep.subr.mxu0 0.0
        %2774 = vmatpush2.msra.mxu0 0.0
        %2775 = vmatprep.subr.mxu0 0.0
        %2776 = vmatpush2.msra.mxu0 0.0
        %2777 = vmatprep.subr.mxu0 0.0
        %2778 = vmatpush2.msra.mxu0 0.0
        %2779 = vmatprep.mubr.f32.mxu0 0.0
        %2780 = vmatmul.mubr.f32.gmra.mxu0 %v2711
        %v2781 = vpop.f32.mrf.mxu0
        %v2782 = vadd.f32 0.0, %v2781
        %v2783 = vpop.f32.mrf.mxu0
        %2784 = vdwg.mxu0
        %v2786 = vsel %vm745, %v2782, 0
        %2788 = vmatprep.subr.mxu0 0.0
        %2789 = vmatpush1.msra.mxu0 0.0
        %2790 = vmatprep.subr.mxu0 0.0
        %2791 = vmatpush1.msra.mxu0 0.0
        %2792 = vmatprep.subr.mxu0 0.0
        %2793 = vmatpush1.msra.mxu0 0.0
        %2794 = vmatprep.subr.mxu0 0.0
        %2795 = vmatpush1.msra.mxu0 0.0
        %2796 = vmatprep.subr.mxu0 0.0
        %2797 = vmatpush1.msra.mxu0 0.0
        %2798 = vmatprep.subr.mxu0 0.0
        %2799 = vmatpush1.msra.mxu0 0.0
        %2800 = vmatprep.subr.mxu0 0.0
        %2801 = vmatpush1.msra.mxu0 0.0
        %2802 = vmatprep.subr.mxu0 0.0
        %2803 = vmatpush1.msra.mxu0 0.0
        %2804 = vmatprep.subr.mxu0 0.0
        %2805 = vmatpush1.msra.mxu0 0.0
        %2806 = vmatprep.subr.mxu0 0.0
        %2807 = vmatpush1.msra.mxu0 0.0
        %2808 = vmatprep.subr.mxu0 0.0
        %2809 = vmatpush1.msra.mxu0 0.0
        %2810 = vmatprep.subr.mxu0 0.0
        %2811 = vmatpush1.msra.mxu0 0.0
        %2812 = vmatprep.subr.mxu0 0.0
        %2813 = vmatpush1.msra.mxu0 0.0
        %2814 = vmatprep.subr.mxu0 0.0
        %2815 = vmatpush1.msra.mxu0 0.0
        %2816 = vmatprep.subr.mxu0 0.0
        %2817 = vmatpush1.msra.mxu0 0.0
        %2818 = vmatprep.subr.mxu0 0.0
        %2819 = vmatpush1.msra.mxu0 %v1899
        %2820 = vmatprep.subr.mxu0 0.0
        %2821 = vmatpush2.msra.mxu0 0.0
        %2822 = vmatprep.subr.mxu0 0.0
        %2823 = vmatpush2.msra.mxu0 0.0
        %2824 = vmatprep.subr.mxu0 0.0
        %2825 = vmatpush2.msra.mxu0 0.0
        %2826 = vmatprep.subr.mxu0 0.0
        %2827 = vmatpush2.msra.mxu0 0.0
        %2828 = vmatprep.subr.mxu0 0.0
        %2829 = vmatpush2.msra.mxu0 0.0
        %2830 = vmatprep.subr.mxu0 0.0
        %2831 = vmatpush2.msra.mxu0 0.0
        %2832 = vmatprep.subr.mxu0 0.0
        %2833 = vmatpush2.msra.mxu0 0.0
        %2834 = vmatprep.subr.mxu0 0.0
        %2835 = vmatpush2.msra.mxu0 0.0
        %2836 = vmatprep.subr.mxu0 0.0
        %2837 = vmatpush2.msra.mxu0 0.0
        %2838 = vmatprep.subr.mxu0 0.0
        %2839 = vmatpush2.msra.mxu0 0.0
        %2840 = vmatprep.subr.mxu0 0.0
        %2841 = vmatpush2.msra.mxu0 0.0
        %2842 = vmatprep.subr.mxu0 0.0
        %2843 = vmatpush2.msra.mxu0 0.0
        %2844 = vmatprep.subr.mxu0 0.0
        %2845 = vmatpush2.msra.mxu0 0.0
        %2846 = vmatprep.subr.mxu0 0.0
        %2847 = vmatpush2.msra.mxu0 0.0
        %2848 = vmatprep.subr.mxu0 0.0
        %2849 = vmatpush2.msra.mxu0 0.0
        %2850 = vmatprep.subr.mxu0 0.0
        %2851 = vmatpush2.msra.mxu0 0.0
        %2852 = vmatprep.mubr.f32.mxu0 0.0
        %2853 = vmatmul.mubr.f32.gmra.mxu0 %v2786
        %v2854 = vpop.f32.mrf.mxu0
        %v2855 = vadd.f32 0.0, %v2854
        %v2856 = vpop.f32.mrf.mxu0
        %2857 = vdwg.mxu0
        %v2858 = vadd.f32 %v2618, %v2855
        %v2860 = vlaneseq
        %v2861 = vshrl.u32 %v2860, 7
        %v2862 = vsub.s32 0, %v2861
        %v2863 = vrot.slane %v1900, %v2862
        %v2865 = vadd.f32 %v2858, %v2863
        %v2866 = vadd.f32 %v1727, %v2865
        %v2867 = vsel %vm663, %v2866, 0.0
        %2868 = vadd.xlane.f32.xlu0 %v2867
        %v2869 = vpop.xlane.xlu0 %2868
        %v2870 = vmul.f32 %v2869, %v1707
        %v2871 = vsub.f32 %v2866, %v2870
        %v2872 = vmul.f32 %v2871, %v2871
        %v2873 = vsel %vm663, %v2872, 0.0
        %2874 = vadd.xlane.f32.xlu0 %v2873
        %v2875 = vpop.xlane.xlu0 %2874
        %v2876 = vmul.f32 %v2875, %v1707
        %v2877 = vadd.f32 %v2876, 1e-05
        %v2878 = vrsqrt.pop %v2877
        %v2879 = vmul.f32 %v2871, %v2878
        %v2880 = vlaneseq
        %v2881 = vshrl.u32 %v2880, 7
        %v2882 = vsub.s32 1, %v2881
        %v2883 = vrot.slane %v650, %v2882
        %v2884 = vmul.f32 %v2879, %v2883
        %v2885 = vlaneseq
        %v2886 = vshrl.u32 %v2885, 7
        %v2887 = vsub.s32 1, %v2886
        %v2888 = vrot.slane %v651, %v2887
        %v2889 = vadd.f32 %v2884, %v2888
        %v2890 = vld [vmem:[%s12] sm:$0xff]
        %v2891 = vld [vmem:[%s12 + $0x8] sm:$0xff]
        %v2892 = vld [vmem:[%s12 + $0x10] sm:$0xff]
        %v2893 = vld [vmem:[%s12 + $0x18] sm:$0xff]
        %v2894 = vld [vmem:[%s13] sm:$0x1]
        %v2896 = vlaneseq
        %v2897 = vshrl.u32 %v2896, 7
        %v2898 = vsub.s32 0, %v2897
        %v2899 = vrot.slane %v2894, %v2898
        %v2902 = vsel %vm663, %v2889, 0
        %2904 = vmatprep.subr.mxu0 0.0
        %2905 = vmatpush1.msra.mxu0 0.0
        %2906 = vmatprep.subr.mxu0 0.0
        %2907 = vmatpush1.msra.mxu0 0.0
        %2908 = vmatprep.subr.mxu0 0.0
        %2909 = vmatpush1.msra.mxu0 0.0
        %2910 = vmatprep.subr.mxu0 0.0
        %2911 = vmatpush1.msra.mxu0 0.0
        %2912 = vmatprep.subr.mxu0 0.0
        %2913 = vmatpush1.msra.mxu0 0.0
        %2914 = vmatprep.subr.mxu0 0.0
        %2915 = vmatpush1.msra.mxu0 0.0
        %2916 = vmatprep.subr.mxu0 0.0
        %2917 = vmatpush1.msra.mxu0 0.0
        %2918 = vmatprep.subr.mxu0 0.0
        %2919 = vmatpush1.msra.mxu0 0.0
        %2920 = vmatprep.subr.mxu0 0.0
        %2921 = vmatpush1.msra.mxu0 0.0
        %2922 = vmatprep.subr.mxu0 0.0
        %2923 = vmatpush1.msra.mxu0 0.0
        %2924 = vmatprep.subr.mxu0 0.0
        %2925 = vmatpush1.msra.mxu0 0.0
        %2926 = vmatprep.subr.mxu0 0.0
        %2927 = vmatpush1.msra.mxu0 0.0
        %2928 = vmatprep.subr.mxu0 0.0
        %2929 = vmatpush1.msra.mxu0 %v2893
        %2930 = vmatprep.subr.mxu0 0.0
        %2931 = vmatpush1.msra.mxu0 %v2892
        %2932 = vmatprep.subr.mxu0 0.0
        %2933 = vmatpush1.msra.mxu0 %v2891
        %2934 = vmatprep.subr.mxu0 0.0
        %2935 = vmatpush1.msra.mxu0 %v2890
        %2936 = vmatprep.subr.mxu0 0.0
        %2937 = vmatpush2.msra.mxu0 0.0
        %2938 = vmatprep.subr.mxu0 0.0
        %2939 = vmatpush2.msra.mxu0 0.0
        %2940 = vmatprep.subr.mxu0 0.0
        %2941 = vmatpush2.msra.mxu0 0.0
        %2942 = vmatprep.subr.mxu0 0.0
        %2943 = vmatpush2.msra.mxu0 0.0
        %2944 = vmatprep.subr.mxu0 0.0
        %2945 = vmatpush2.msra.mxu0 0.0
        %2946 = vmatprep.subr.mxu0 0.0
        %2947 = vmatpush2.msra.mxu0 0.0
        %2948 = vmatprep.subr.mxu0 0.0
        %2949 = vmatpush2.msra.mxu0 0.0
        %2950 = vmatprep.subr.mxu0 0.0
        %2951 = vmatpush2.msra.mxu0 0.0
        %2952 = vmatprep.subr.mxu0 0.0
        %2953 = vmatpush2.msra.mxu0 0.0
        %2954 = vmatprep.subr.mxu0 0.0
        %2955 = vmatpush2.msra.mxu0 0.0
        %2956 = vmatprep.subr.mxu0 0.0
        %2957 = vmatpush2.msra.mxu0 0.0
        %2958 = vmatprep.subr.mxu0 0.0
        %2959 = vmatpush2.msra.mxu0 0.0
        %2960 = vmatprep.subr.mxu0 0.0
        %2961 = vmatpush2.msra.mxu0 0.0
        %2962 = vmatprep.subr.mxu0 0.0
        %2963 = vmatpush2.msra.mxu0 0.0
        %2964 = vmatprep.subr.mxu0 0.0
        %2965 = vmatpush2.msra.mxu0 0.0
        %2966 = vmatprep.subr.mxu0 0.0
        %2967 = vmatpush2.msra.mxu0 0.0
        %2968 = vmatprep.mubr.f32.mxu0 0.0
        %2969 = vmatmul.mubr.f32.gmra.mxu0 %v2902
        %v2970 = vpop.f32.mrf.mxu0
        %v2971 = vadd.f32 %v2899, %v2970
        %v2972 = vpop.f32.mrf.mxu0
        %2973 = vdwg.mxu0
        %v2974 = vmax.f32 %v2971, 0.0
        %v2975 = vld [vmem:[%s14] sm:$0xff]
        %v2976 = vld [vmem:[%s14 + $0x8] sm:$0xff]
        %v2977 = vld [vmem:[%s14 + $0x10] sm:$0xff]
        %v2978 = vld [vmem:[%s14 + $0x18] sm:$0xff]
        %v2979 = vld [vmem:[%s14 + $0x20] sm:$0xff]
        %v2980 = vld [vmem:[%s14 + $0x28] sm:$0xff]
        %v2981 = vld [vmem:[%s14 + $0x30] sm:$0xff]
        %v2982 = vld [vmem:[%s14 + $0x38] sm:$0xff]
        %v2983 = vld [vmem:[%s15] sm:$0x1]
        %v2985 = vlaneseq
        %v2986 = vshrl.u32 %v2985, 7
        %v2987 = vsub.s32 0, %v2986
        %v2988 = vrot.slane %v2983, %v2987
        %vm2990 = vcmask 523264
        %v2992 = vsel %vm2990, %v2974, 0
        %2994 = vmatprep.subr.mxu0 0.0
        %2995 = vmatpush1.msra.mxu0 0.0
        %2996 = vmatprep.subr.mxu0 0.0
        %2997 = vmatpush1.msra.mxu0 0.0
        %2998 = vmatprep.subr.mxu0 0.0
        %2999 = vmatpush1.msra.mxu0 0.0
        %3000 = vmatprep.subr.mxu0 0.0
        %3001 = vmatpush1.msra.mxu0 0.0
        %3002 = vmatprep.subr.mxu0 0.0
        %3003 = vmatpush1.msra.mxu0 0.0
        %3004 = vmatprep.subr.mxu0 0.0
        %3005 = vmatpush1.msra.mxu0 0.0
        %3006 = vmatprep.subr.mxu0 0.0
        %3007 = vmatpush1.msra.mxu0 0.0
        %3008 = vmatprep.subr.mxu0 0.0
        %3009 = vmatpush1.msra.mxu0 0.0
        %3010 = vmatprep.subr.mxu0 0.0
        %3011 = vmatpush1.msra.mxu0 %v2982
        %3012 = vmatprep.subr.mxu0 0.0
        %3013 = vmatpush1.msra.mxu0 %v2981
        %3014 = vmatprep.subr.mxu0 0.0
        %3015 = vmatpush1.msra.mxu0 %v2980
        %3016 = vmatprep.subr.mxu0 0.0
        %3017 = vmatpush1.msra.mxu0 %v2979
        %3018 = vmatprep.subr.mxu0 0.0
        %3019 = vmatpush1.msra.mxu0 %v2978
        %3020 = vmatprep.subr.mxu0 0.0
        %3021 = vmatpush1.msra.mxu0 %v2977
        %3022 = vmatprep.subr.mxu0 0.0
        %3023 = vmatpush1.msra.mxu0 %v2976
        %3024 = vmatprep.subr.mxu0 0.0
        %3025 = vmatpush1.msra.mxu0 %v2975
        %3026 = vmatprep.subr.mxu0 0.0
        %3027 = vmatpush2.msra.mxu0 0.0
        %3028 = vmatprep.subr.mxu0 0.0
        %3029 = vmatpush2.msra.mxu0 0.0
        %3030 = vmatprep.subr.mxu0 0.0
        %3031 = vmatpush2.msra.mxu0 0.0
        %3032 = vmatprep.subr.mxu0 0.0
        %3033 = vmatpush2.msra.mxu0 0.0
        %3034 = vmatprep.subr.mxu0 0.0
        %3035 = vmatpush2.msra.mxu0 0.0
        %3036 = vmatprep.subr.mxu0 0.0
        %3037 = vmatpush2.msra.mxu0 0.0
        %3038 = vmatprep.subr.mxu0 0.0
        %3039 = vmatpush2.msra.mxu0 0.0
        %3040 = vmatprep.subr.mxu0 0.0
        %3041 = vmatpush2.msra.mxu0 0.0
        %3042 = vmatprep.subr.mxu0 0.0
        %3043 = vmatpush2.msra.mxu0 0.0
        %3044 = vmatprep.subr.mxu0 0.0
        %3045 = vmatpush2.msra.mxu0 0.0
        %3046 = vmatprep.subr.mxu0 0.0
        %3047 = vmatpush2.msra.mxu0 0.0
        %3048 = vmatprep.subr.mxu0 0.0
        %3049 = vmatpush2.msra.mxu0 0.0
        %3050 = vmatprep.subr.mxu0 0.0
        %3051 = vmatpush2.msra.mxu0 0.0
        %3052 = vmatprep.subr.mxu0 0.0
        %3053 = vmatpush2.msra.mxu0 0.0
        %3054 = vmatprep.subr.mxu0 0.0
        %3055 = vmatpush2.msra.mxu0 0.0
        %3056 = vmatprep.subr.mxu0 0.0
        %3057 = vmatpush2.msra.mxu0 0.0
        %3058 = vmatprep.mubr.f32.mxu0 0.0
        %3059 = vmatmul.mubr.f32.gmra.mxu0 %v2992
        %v3060 = vpop.f32.mrf.mxu0
        %v3061 = vadd.f32 %v2988, %v3060
        %v3062 = vpop.f32.mrf.mxu0
        %3063 = vdwg.mxu0
        %v3064 = vadd.f32 %v2889, %v3061
        %v3065 = vsel %vm663, %v3064, 0.0
        %3066 = vadd.xlane.f32.xlu0 %v3065
        %v3067 = vpop.xlane.xlu0 %3066
        %v3068 = vmul.f32 %v3067, %v1707
        %v3069 = vsub.f32 %v3064, %v3068
        %v3070 = vmul.f32 %v3069, %v3069
        %v3071 = vsel %vm663, %v3070, 0.0
        %3072 = vadd.xlane.f32.xlu0 %v3071
        %v3073 = vpop.xlane.xlu0 %3072
        %v3074 = vmul.f32 %v3073, %v1707
        %v3075 = vadd.f32 %v3074, 1e-05
        %v3076 = vrsqrt.pop %v3075
        %v3077 = vmul.f32 %v3069, %v3076
        %v3078 = vlaneseq
        %v3079 = vshrl.u32 %v3078, 7
        %v3080 = vsub.s32 2, %v3079
        %v3081 = vrot.slane %v650, %v3080
        %v3082 = vmul.f32 %v3077, %v3081
        %v3083 = vlaneseq
        %v3084 = vshrl.u32 %v3083, 7
        %v3085 = vsub.s32 2, %v3084
        %v3086 = vrot.slane %v651, %v3085
        %v3087 = vadd.f32 %v3082, %v3086
        %s3088 = scalar_lea.vmem %s16, 4
        %v3089 = vld [vmem:[%s3088] sm:$0x7]
        %s3090 = scalar_lea.vmem %s17, 4
        %v3091 = vld [vmem:[%s3090] sm:$0x7]
        %s3092 = scalar_lea.vmem %s2, 32
        %v3093 = vld [vmem:[%s3092] sm:$0xff]
        %v3094 = vld [vmem:[%s3092 + $0x8] sm:$0xff]
        %v3095 = vld [vmem:[%s3092 + $0x10] sm:$0xff]
        %v3096 = vld [vmem:[%s3092 + $0x18] sm:$0xff]
        %s3097 = scalar_lea.vmem %s3, 1
        %v3098 = vld [vmem:[%s3097] sm:$0x1]
        %v3100 = vlaneseq
        %v3101 = vshrl.u32 %v3100, 7
        %v3102 = vsub.s32 0, %v3101
        %v3103 = vrot.slane %v3098, %v3102
        %v3106 = vsel %vm663, %v3087, 0
        %3108 = vmatprep.subr.mxu0 0.0
        %3109 = vmatpush1.msra.mxu0 0.0
        %3110 = vmatprep.subr.mxu0 0.0
        %3111 = vmatpush1.msra.mxu0 0.0
        %3112 = vmatprep.subr.mxu0 0.0
        %3113 = vmatpush1.msra.mxu0 0.0
        %3114 = vmatprep.subr.mxu0 0.0
        %3115 = vmatpush1.msra.mxu0 0.0
        %3116 = vmatprep.subr.mxu0 0.0
        %3117 = vmatpush1.msra.mxu0 0.0
        %3118 = vmatprep.subr.mxu0 0.0
        %3119 = vmatpush1.msra.mxu0 0.0
        %3120 = vmatprep.subr.mxu0 0.0
        %3121 = vmatpush1.msra.mxu0 0.0
        %3122 = vmatprep.subr.mxu0 0.0
        %3123 = vmatpush1.msra.mxu0 0.0
        %3124 = vmatprep.subr.mxu0 0.0
        %3125 = vmatpush1.msra.mxu0 0.0
        %3126 = vmatprep.subr.mxu0 0.0
        %3127 = vmatpush1.msra.mxu0 0.0
        %3128 = vmatprep.subr.mxu0 0.0
        %3129 = vmatpush1.msra.mxu0 0.0
        %3130 = vmatprep.subr.mxu0 0.0
        %3131 = vmatpush1.msra.mxu0 0.0
        %3132 = vmatprep.subr.mxu0 0.0
        %3133 = vmatpush1.msra.mxu0 %v3096
        %3134 = vmatprep.subr.mxu0 0.0
        %3135 = vmatpush1.msra.mxu0 %v3095
        %3136 = vmatprep.subr.mxu0 0.0
        %3137 = vmatpush1.msra.mxu0 %v3094
        %3138 = vmatprep.subr.mxu0 0.0
        %3139 = vmatpush1.msra.mxu0 %v3093
        %3140 = vmatprep.subr.mxu0 0.0
        %3141 = vmatpush2.msra.mxu0 0.0
        %3142 = vmatprep.subr.mxu0 0.0
        %3143 = vmatpush2.msra.mxu0 0.0
        %3144 = vmatprep.subr.mxu0 0.0
        %3145 = vmatpush2.msra.mxu0 0.0
        %3146 = vmatprep.subr.mxu0 0.0
        %3147 = vmatpush2.msra.mxu0 0.0
        %3148 = vmatprep.subr.mxu0 0.0
        %3149 = vmatpush2.msra.mxu0 0.0
        %3150 = vmatprep.subr.mxu0 0.0
        %3151 = vmatpush2.msra.mxu0 0.0
        %3152 = vmatprep.subr.mxu0 0.0
        %3153 = vmatpush2.msra.mxu0 0.0
        %3154 = vmatprep.subr.mxu0 0.0
        %3155 = vmatpush2.msra.mxu0 0.0
        %3156 = vmatprep.subr.mxu0 0.0
        %3157 = vmatpush2.msra.mxu0 0.0
        %3158 = vmatprep.subr.mxu0 0.0
        %3159 = vmatpush2.msra.mxu0 0.0
        %3160 = vmatprep.subr.mxu0 0.0
        %3161 = vmatpush2.msra.mxu0 0.0
        %3162 = vmatprep.subr.mxu0 0.0
        %3163 = vmatpush2.msra.mxu0 0.0
        %3164 = vmatprep.subr.mxu0 0.0
        %3165 = vmatpush2.msra.mxu0 0.0
        %3166 = vmatprep.subr.mxu0 0.0
        %3167 = vmatpush2.msra.mxu0 0.0
        %3168 = vmatprep.subr.mxu0 0.0
        %3169 = vmatpush2.msra.mxu0 0.0
        %3170 = vmatprep.subr.mxu0 0.0
        %3171 = vmatpush2.msra.mxu0 0.0
        %3172 = vmatprep.mubr.f32.mxu0 0.0
        %3173 = vmatmul.mubr.f32.gmra.mxu0 %v3106
        %v3174 = vpop.f32.mrf.mxu0
        %v3175 = vadd.f32 %v3103, %v3174
        %v3176 = vpop.f32.mrf.mxu0
        %3177 = vdwg.mxu0
        %s3178 = scalar_lea.vmem %s4, 32
        %v3179 = vld [vmem:[%s3178] sm:$0xff]
        %v3180 = vld [vmem:[%s3178 + $0x8] sm:$0xff]
        %v3181 = vld [vmem:[%s3178 + $0x10] sm:$0xff]
        %v3182 = vld [vmem:[%s3178 + $0x18] sm:$0xff]
        %s3183 = scalar_lea.vmem %s5, 1
        %v3184 = vld [vmem:[%s3183] sm:$0x1]
        %3186 = vrot.lane.b32.xlu0 %v3175, 96
        %v3187 = vpop.permute.xlu0 %3186
        %v3188 = vsel %vm745, %v3175, 0
        %v3190 = vsel %vm745, %v3187, 0
        %3192 = vmatprep.subr.mxu0 0.0
        %3193 = vmatpush1.xpose.msra.mxu0 0.0
        %3194 = vmatprep.subr.mxu0 0.0
        %3195 = vmatpush1.xpose.msra.mxu0 0.0
        %3196 = vmatprep.subr.mxu0 0.0
        %3197 = vmatpush1.xpose.msra.mxu0 0.0
        %3198 = vmatprep.subr.mxu0 0.0
        %3199 = vmatpush1.xpose.msra.mxu0 0.0
        %3200 = vmatprep.subr.mxu0 0.0
        %3201 = vmatpush1.xpose.msra.mxu0 0.0
        %3202 = vmatprep.subr.mxu0 0.0
        %3203 = vmatpush1.xpose.msra.mxu0 0.0
        %3204 = vmatprep.subr.mxu0 0.0
        %3205 = vmatpush1.xpose.msra.mxu0 0.0
        %3206 = vmatprep.subr.mxu0 0.0
        %3207 = vmatpush1.xpose.msra.mxu0 0.0
        %3208 = vmatprep.subr.mxu0 0.0
        %3209 = vmatpush1.xpose.msra.mxu0 0.0
        %3210 = vmatprep.subr.mxu0 0.0
        %3211 = vmatpush1.xpose.msra.mxu0 0.0
        %3212 = vmatprep.subr.mxu0 0.0
        %3213 = vmatpush1.xpose.msra.mxu0 0.0
        %3214 = vmatprep.subr.mxu0 0.0
        %3215 = vmatpush1.xpose.msra.mxu0 0.0
        %3216 = vmatprep.subr.mxu0 0.0
        %3217 = vmatpush1.xpose.msra.mxu0 0.0
        %3218 = vmatprep.subr.mxu0 0.0
        %3219 = vmatpush1.xpose.msra.mxu0 0.0
        %3220 = vmatprep.subr.mxu0 0.0
        %3221 = vmatpush1.xpose.msra.mxu0 0.0
        %3222 = vmatprep.subr.mxu0 0.0
        %3223 = vmatpush1.xpose.msra.mxu0 %v3190
        %3224 = vmatprep.subr.mxu0 0.0
        %3225 = vmatpush2.xpose.msra.mxu0 0.0
        %3226 = vmatprep.subr.mxu0 0.0
        %3227 = vmatpush2.xpose.msra.mxu0 0.0
        %3228 = vmatprep.subr.mxu0 0.0
        %3229 = vmatpush2.xpose.msra.mxu0 0.0
        %3230 = vmatprep.subr.mxu0 0.0
        %3231 = vmatpush2.xpose.msra.mxu0 0.0
        %3232 = vmatprep.subr.mxu0 0.0
        %3233 = vmatpush2.xpose.msra.mxu0 0.0
        %3234 = vmatprep.subr.mxu0 0.0
        %3235 = vmatpush2.xpose.msra.mxu0 0.0
        %3236 = vmatprep.subr.mxu0 0.0
        %3237 = vmatpush2.xpose.msra.mxu0 0.0
        %3238 = vmatprep.subr.mxu0 0.0
        %3239 = vmatpush2.xpose.msra.mxu0 0.0
        %3240 = vmatprep.subr.mxu0 0.0
        %3241 = vmatpush2.xpose.msra.mxu0 0.0
        %3242 = vmatprep.subr.mxu0 0.0
        %3243 = vmatpush2.xpose.msra.mxu0 0.0
        %3244 = vmatprep.subr.mxu0 0.0
        %3245 = vmatpush2.xpose.msra.mxu0 0.0
        %3246 = vmatprep.subr.mxu0 0.0
        %3247 = vmatpush2.xpose.msra.mxu0 0.0
        %3248 = vmatprep.subr.mxu0 0.0
        %3249 = vmatpush2.xpose.msra.mxu0 0.0
        %3250 = vmatprep.subr.mxu0 0.0
        %3251 = vmatpush2.xpose.msra.mxu0 0.0
        %3252 = vmatprep.subr.mxu0 0.0
        %3253 = vmatpush2.xpose.msra.mxu0 0.0
        %3254 = vmatprep.subr.mxu0 0.0
        %3255 = vmatpush2.xpose.msra.mxu0 0.0
        %3256 = vmatprep.mubr.f32.mxu0 0.0
        %3257 = vmatmul.mubr.f32.gmra.mxu0 %v3188
        %v3258 = vpop.f32.mrf.mxu0
        %v3259 = vadd.f32 %v649, %v3258
        %v3260 = vpop.f32.mrf.mxu0
        %3261 = vdwg.mxu0
        %v3262 = vsel %vm745, %v3259, -inf
        %3263 = vmax.xlane.f32.xlu0 %v3262
        %v3264 = vpop.xlane.xlu0 %3263
        %v3265 = vsub.f32 %v3259, %v3264
        %v3266 = vmul.f32 %v3265, 1.442695
        %v3267 = vpow.pop %v3266
        %v3268 = vsel %vm745, %v3267, 0.0
        %3269 = vadd.xlane.f32.xlu0 %v3268
        %v3270 = vpop.xlane.xlu0 %3269
        %v3271 = vrcp.pop %v3270
        %v3272 = vmul.f32 %v3267, %v3271
        %3273 = vrot.lane.b32.xlu0 %v3175, 64
        %v3274 = vpop.permute.xlu0 %3273
        %v3277 = vsel %vm745, %v3272, 0
        %3279 = vmatprep.subr.mxu0 0.0
        %3280 = vmatpush1.msra.mxu0 0.0
        %3281 = vmatprep.subr.mxu0 0.0
        %3282 = vmatpush1.msra.mxu0 0.0
        %3283 = vmatprep.subr.mxu0 0.0
        %3284 = vmatpush1.msra.mxu0 0.0
        %3285 = vmatprep.subr.mxu0 0.0
        %3286 = vmatpush1.msra.mxu0 0.0
        %3287 = vmatprep.subr.mxu0 0.0
        %3288 = vmatpush1.msra.mxu0 0.0
        %3289 = vmatprep.subr.mxu0 0.0
        %3290 = vmatpush1.msra.mxu0 0.0
        %3291 = vmatprep.subr.mxu0 0.0
        %3292 = vmatpush1.msra.mxu0 0.0
        %3293 = vmatprep.subr.mxu0 0.0
        %3294 = vmatpush1.msra.mxu0 0.0
        %3295 = vmatprep.subr.mxu0 0.0
        %3296 = vmatpush1.msra.mxu0 0.0
        %3297 = vmatprep.subr.mxu0 0.0
        %3298 = vmatpush1.msra.mxu0 0.0
        %3299 = vmatprep.subr.mxu0 0.0
        %3300 = vmatpush1.msra.mxu0 0.0
        %3301 = vmatprep.subr.mxu0 0.0
        %3302 = vmatpush1.msra.mxu0 0.0
        %3303 = vmatprep.subr.mxu0 0.0
        %3304 = vmatpush1.msra.mxu0 0.0
        %3305 = vmatprep.subr.mxu0 0.0
        %3306 = vmatpush1.msra.mxu0 0.0
        %3307 = vmatprep.subr.mxu0 0.0
        %3308 = vmatpush1.msra.mxu0 0.0
        %3309 = vmatprep.subr.mxu0 0.0
        %3310 = vmatpush1.msra.mxu0 %v3274
        %3311 = vmatprep.subr.mxu0 0.0
        %3312 = vmatpush2.msra.mxu0 0.0
        %3313 = vmatprep.subr.mxu0 0.0
        %3314 = vmatpush2.msra.mxu0 0.0
        %3315 = vmatprep.subr.mxu0 0.0
        %3316 = vmatpush2.msra.mxu0 0.0
        %3317 = vmatprep.subr.mxu0 0.0
        %3318 = vmatpush2.msra.mxu0 0.0
        %3319 = vmatprep.subr.mxu0 0.0
        %3320 = vmatpush2.msra.mxu0 0.0
        %3321 = vmatprep.subr.mxu0 0.0
        %3322 = vmatpush2.msra.mxu0 0.0
        %3323 = vmatprep.subr.mxu0 0.0
        %3324 = vmatpush2.msra.mxu0 0.0
        %3325 = vmatprep.subr.mxu0 0.0
        %3326 = vmatpush2.msra.mxu0 0.0
        %3327 = vmatprep.subr.mxu0 0.0
        %3328 = vmatpush2.msra.mxu0 0.0
        %3329 = vmatprep.subr.mxu0 0.0
        %3330 = vmatpush2.msra.mxu0 0.0
        %3331 = vmatprep.subr.mxu0 0.0
        %3332 = vmatpush2.msra.mxu0 0.0
        %3333 = vmatprep.subr.mxu0 0.0
        %3334 = vmatpush2.msra.mxu0 0.0
        %3335 = vmatprep.subr.mxu0 0.0
        %3336 = vmatpush2.msra.mxu0 0.0
        %3337 = vmatprep.subr.mxu0 0.0
        %3338 = vmatpush2.msra.mxu0 0.0
        %3339 = vmatprep.subr.mxu0 0.0
        %3340 = vmatpush2.msra.mxu0 0.0
        %3341 = vmatprep.subr.mxu0 0.0
        %3342 = vmatpush2.msra.mxu0 0.0
        %3343 = vmatprep.mubr.f32.mxu0 0.0
        %3344 = vmatmul.mubr.f32.gmra.mxu0 %v3277
        %v3345 = vpop.f32.mrf.mxu0
        %v3346 = vadd.f32 0.0, %v3345
        %v3347 = vpop.f32.mrf.mxu0
        %3348 = vdwg.mxu0
        %3349 = vrot.lane.b32.xlu0 %v3175, 120
        %v3350 = vpop.permute.xlu0 %3349
        %3351 = vrot.lane.b32.xlu0 %v3175, 88
        %v3352 = vpop.permute.xlu0 %3351
        %v3353 = vsel %vm745, %v3350, 0
        %v3355 = vsel %vm745, %v3352, 0
        %3357 = vmatprep.subr.mxu0 0.0
        %3358 = vmatpush1.xpose.msra.mxu0 0.0
        %3359 = vmatprep.subr.mxu0 0.0
        %3360 = vmatpush1.xpose.msra.mxu0 0.0
        %3361 = vmatprep.subr.mxu0 0.0
        %3362 = vmatpush1.xpose.msra.mxu0 0.0
        %3363 = vmatprep.subr.mxu0 0.0
        %3364 = vmatpush1.xpose.msra.mxu0 0.0
        %3365 = vmatprep.subr.mxu0 0.0
        %3366 = vmatpush1.xpose.msra.mxu0 0.0
        %3367 = vmatprep.subr.mxu0 0.0
        %3368 = vmatpush1.xpose.msra.mxu0 0.0
        %3369 = vmatprep.subr.mxu0 0.0
        %3370 = vmatpush1.xpose.msra.mxu0 0.0
        %3371 = vmatprep.subr.mxu0 0.0
        %3372 = vmatpush1.xpose.msra.mxu0 0.0
        %3373 = vmatprep.subr.mxu0 0.0
        %3374 = vmatpush1.xpose.msra.mxu0 0.0
        %3375 = vmatprep.subr.mxu0 0.0
        %3376 = vmatpush1.xpose.msra.mxu0 0.0
        %3377 = vmatprep.subr.mxu0 0.0
        %3378 = vmatpush1.xpose.msra.mxu0 0.0
        %3379 = vmatprep.subr.mxu0 0.0
        %3380 = vmatpush1.xpose.msra.mxu0 0.0
        %3381 = vmatprep.subr.mxu0 0.0
        %3382 = vmatpush1.xpose.msra.mxu0 0.0
        %3383 = vmatprep.subr.mxu0 0.0
        %3384 = vmatpush1.xpose.msra.mxu0 0.0
        %3385 = vmatprep.subr.mxu0 0.0
        %3386 = vmatpush1.xpose.msra.mxu0 0.0
        %3387 = vmatprep.subr.mxu0 0.0
        %3388 = vmatpush1.xpose.msra.mxu0 %v3355
        %3389 = vmatprep.subr.mxu0 0.0
        %3390 = vmatpush2.xpose.msra.mxu0 0.0
        %3391 = vmatprep.subr.mxu0 0.0
        %3392 = vmatpush2.xpose.msra.mxu0 0.0
        %3393 = vmatprep.subr.mxu0 0.0
        %3394 = vmatpush2.xpose.msra.mxu0 0.0
        %3395 = vmatprep.subr.mxu0 0.0
        %3396 = vmatpush2.xpose.msra.mxu0 0.0
        %3397 = vmatprep.subr.mxu0 0.0
        %3398 = vmatpush2.xpose.msra.mxu0 0.0
        %3399 = vmatprep.subr.mxu0 0.0
        %3400 = vmatpush2.xpose.msra.mxu0 0.0
        %3401 = vmatprep.subr.mxu0 0.0
        %3402 = vmatpush2.xpose.msra.mxu0 0.0
        %3403 = vmatprep.subr.mxu0 0.0
        %3404 = vmatpush2.xpose.msra.mxu0 0.0
        %3405 = vmatprep.subr.mxu0 0.0
        %3406 = vmatpush2.xpose.msra.mxu0 0.0
        %3407 = vmatprep.subr.mxu0 0.0
        %3408 = vmatpush2.xpose.msra.mxu0 0.0
        %3409 = vmatprep.subr.mxu0 0.0
        %3410 = vmatpush2.xpose.msra.mxu0 0.0
        %3411 = vmatprep.subr.mxu0 0.0
        %3412 = vmatpush2.xpose.msra.mxu0 0.0
        %3413 = vmatprep.subr.mxu0 0.0
        %3414 = vmatpush2.xpose.msra.mxu0 0.0
        %3415 = vmatprep.subr.mxu0 0.0
        %3416 = vmatpush2.xpose.msra.mxu0 0.0
        %3417 = vmatprep.subr.mxu0 0.0
        %3418 = vmatpush2.xpose.msra.mxu0 0.0
        %3419 = vmatprep.subr.mxu0 0.0
        %3420 = vmatpush2.xpose.msra.mxu0 0.0
        %3421 = vmatprep.mubr.f32.mxu0 0.0
        %3422 = vmatmul.mubr.f32.gmra.mxu0 %v3353
        %v3423 = vpop.f32.mrf.mxu0
        %v3424 = vadd.f32 %v649, %v3423
        %v3425 = vpop.f32.mrf.mxu0
        %3426 = vdwg.mxu0
        %v3427 = vsel %vm745, %v3424, -inf
        %3428 = vmax.xlane.f32.xlu0 %v3427
        %v3429 = vpop.xlane.xlu0 %3428
        %v3430 = vsub.f32 %v3424, %v3429
        %v3431 = vmul.f32 %v3430, 1.442695
        %v3432 = vpow.pop %v3431
        %v3433 = vsel %vm745, %v3432, 0.0
        %3434 = vadd.xlane.f32.xlu0 %v3433
        %v3435 = vpop.xlane.xlu0 %3434
        %v3436 = vrcp.pop %v3435
        %v3437 = vmul.f32 %v3432, %v3436
        %3438 = vrot.lane.b32.xlu0 %v3175, 56
        %v3439 = vpop.permute.xlu0 %3438
        %v3442 = vsel %vm745, %v3437, 0
        %3444 = vmatprep.subr.mxu0 0.0
        %3445 = vmatpush1.msra.mxu0 0.0
        %3446 = vmatprep.subr.mxu0 0.0
        %3447 = vmatpush1.msra.mxu0 0.0
        %3448 = vmatprep.subr.mxu0 0.0
        %3449 = vmatpush1.msra.mxu0 0.0
        %3450 = vmatprep.subr.mxu0 0.0
        %3451 = vmatpush1.msra.mxu0 0.0
        %3452 = vmatprep.subr.mxu0 0.0
        %3453 = vmatpush1.msra.mxu0 0.0
        %3454 = vmatprep.subr.mxu0 0.0
        %3455 = vmatpush1.msra.mxu0 0.0
        %3456 = vmatprep.subr.mxu0 0.0
        %3457 = vmatpush1.msra.mxu0 0.0
        %3458 = vmatprep.subr.mxu0 0.0
        %3459 = vmatpush1.msra.mxu0 0.0
        %3460 = vmatprep.subr.mxu0 0.0
        %3461 = vmatpush1.msra.mxu0 0.0
        %3462 = vmatprep.subr.mxu0 0.0
        %3463 = vmatpush1.msra.mxu0 0.0
        %3464 = vmatprep.subr.mxu0 0.0
        %3465 = vmatpush1.msra.mxu0 0.0
        %3466 = vmatprep.subr.mxu0 0.0
        %3467 = vmatpush1.msra.mxu0 0.0
        %3468 = vmatprep.subr.mxu0 0.0
        %3469 = vmatpush1.msra.mxu0 0.0
        %3470 = vmatprep.subr.mxu0 0.0
        %3471 = vmatpush1.msra.mxu0 0.0
        %3472 = vmatprep.subr.mxu0 0.0
        %3473 = vmatpush1.msra.mxu0 0.0
        %3474 = vmatprep.subr.mxu0 0.0
        %3475 = vmatpush1.msra.mxu0 %v3439
        %3476 = vmatprep.subr.mxu0 0.0
        %3477 = vmatpush2.msra.mxu0 0.0
        %3478 = vmatprep.subr.mxu0 0.0
        %3479 = vmatpush2.msra.mxu0 0.0
        %3480 = vmatprep.subr.mxu0 0.0
        %3481 = vmatpush2.msra.mxu0 0.0
        %3482 = vmatprep.subr.mxu0 0.0
        %3483 = vmatpush2.msra.mxu0 0.0
        %3484 = vmatprep.subr.mxu0 0.0
        %3485 = vmatpush2.msra.mxu0 0.0
        %3486 = vmatprep.subr.mxu0 0.0
        %3487 = vmatpush2.msra.mxu0 0.0
        %3488 = vmatprep.subr.mxu0 0.0
        %3489 = vmatpush2.msra.mxu0 0.0
        %3490 = vmatprep.subr.mxu0 0.0
        %3491 = vmatpush2.msra.mxu0 0.0
        %3492 = vmatprep.subr.mxu0 0.0
        %3493 = vmatpush2.msra.mxu0 0.0
        %3494 = vmatprep.subr.mxu0 0.0
        %3495 = vmatpush2.msra.mxu0 0.0
        %3496 = vmatprep.subr.mxu0 0.0
        %3497 = vmatpush2.msra.mxu0 0.0
        %3498 = vmatprep.subr.mxu0 0.0
        %3499 = vmatpush2.msra.mxu0 0.0
        %3500 = vmatprep.subr.mxu0 0.0
        %3501 = vmatpush2.msra.mxu0 0.0
        %3502 = vmatprep.subr.mxu0 0.0
        %3503 = vmatpush2.msra.mxu0 0.0
        %3504 = vmatprep.subr.mxu0 0.0
        %3505 = vmatpush2.msra.mxu0 0.0
        %3506 = vmatprep.subr.mxu0 0.0
        %3507 = vmatpush2.msra.mxu0 0.0
        %3508 = vmatprep.mubr.f32.mxu0 0.0
        %3509 = vmatmul.mubr.f32.gmra.mxu0 %v3442
        %v3510 = vpop.f32.mrf.mxu0
        %v3511 = vadd.f32 0.0, %v3510
        %v3512 = vpop.f32.mrf.mxu0
        %3513 = vdwg.mxu0
        %v3515 = vsel %vm745, %v3511, 0
        %3517 = vmatprep.subr.mxu0 0.0
        %3518 = vmatpush1.msra.mxu0 0.0
        %3519 = vmatprep.subr.mxu0 0.0
        %3520 = vmatpush1.msra.mxu0 0.0
        %3521 = vmatprep.subr.mxu0 0.0
        %3522 = vmatpush1.msra.mxu0 0.0
        %3523 = vmatprep.subr.mxu0 0.0
        %3524 = vmatpush1.msra.mxu0 0.0
        %3525 = vmatprep.subr.mxu0 0.0
        %3526 = vmatpush1.msra.mxu0 0.0
        %3527 = vmatprep.subr.mxu0 0.0
        %3528 = vmatpush1.msra.mxu0 0.0
        %3529 = vmatprep.subr.mxu0 0.0
        %3530 = vmatpush1.msra.mxu0 0.0
        %3531 = vmatprep.subr.mxu0 0.0
        %3532 = vmatpush1.msra.mxu0 0.0
        %3533 = vmatprep.subr.mxu0 0.0
        %3534 = vmatpush1.msra.mxu0 0.0
        %3535 = vmatprep.subr.mxu0 0.0
        %3536 = vmatpush1.msra.mxu0 0.0
        %3537 = vmatprep.subr.mxu0 0.0
        %3538 = vmatpush1.msra.mxu0 0.0
        %3539 = vmatprep.subr.mxu0 0.0
        %3540 = vmatpush1.msra.mxu0 0.0
        %3541 = vmatprep.subr.mxu0 0.0
        %3542 = vmatpush1.msra.mxu0 0.0
        %3543 = vmatprep.subr.mxu0 0.0
        %3544 = vmatpush1.msra.mxu0 0.0
        %3545 = vmatprep.subr.mxu0 0.0
        %3546 = vmatpush1.msra.mxu0 0.0
        %3547 = vmatprep.subr.mxu0 0.0
        %3548 = vmatpush1.msra.mxu0 %v3180
        %3549 = vmatprep.subr.mxu0 0.0
        %3550 = vmatpush2.msra.mxu0 0.0
        %3551 = vmatprep.subr.mxu0 0.0
        %3552 = vmatpush2.msra.mxu0 0.0
        %3553 = vmatprep.subr.mxu0 0.0
        %3554 = vmatpush2.msra.mxu0 0.0
        %3555 = vmatprep.subr.mxu0 0.0
        %3556 = vmatpush2.msra.mxu0 0.0
        %3557 = vmatprep.subr.mxu0 0.0
        %3558 = vmatpush2.msra.mxu0 0.0
        %3559 = vmatprep.subr.mxu0 0.0
        %3560 = vmatpush2.msra.mxu0 0.0
        %3561 = vmatprep.subr.mxu0 0.0
        %3562 = vmatpush2.msra.mxu0 0.0
        %3563 = vmatprep.subr.mxu0 0.0
        %3564 = vmatpush2.msra.mxu0 0.0
        %3565 = vmatprep.subr.mxu0 0.0
        %3566 = vmatpush2.msra.mxu0 0.0
        %3567 = vmatprep.subr.mxu0 0.0
        %3568 = vmatpush2.msra.mxu0 0.0
        %3569 = vmatprep.subr.mxu0 0.0
        %3570 = vmatpush2.msra.mxu0 0.0
        %3571 = vmatprep.subr.mxu0 0.0
        %3572 = vmatpush2.msra.mxu0 0.0
        %3573 = vmatprep.subr.mxu0 0.0
        %3574 = vmatpush2.msra.mxu0 0.0
        %3575 = vmatprep.subr.mxu0 0.0
        %3576 = vmatpush2.msra.mxu0 0.0
        %3577 = vmatprep.subr.mxu0 0.0
        %3578 = vmatpush2.msra.mxu0 0.0
        %3579 = vmatprep.subr.mxu0 0.0
        %3580 = vmatpush2.msra.mxu0 0.0
        %3581 = vmatprep.mubr.f32.mxu0 0.0
        %3582 = vmatmul.mubr.f32.gmra.mxu0 %v3515
        %v3583 = vpop.f32.mrf.mxu0
        %v3584 = vadd.f32 0.0, %v3583
        %v3585 = vpop.f32.mrf.mxu0
        %3586 = vdwg.mxu0
        %v3588 = vsel %vm745, %v3346, 0
        %3590 = vmatprep.subr.mxu0 0.0
        %3591 = vmatpush1.msra.mxu0 0.0
        %3592 = vmatprep.subr.mxu0 0.0
        %3593 = vmatpush1.msra.mxu0 0.0
        %3594 = vmatprep.subr.mxu0 0.0
        %3595 = vmatpush1.msra.mxu0 0.0
        %3596 = vmatprep.subr.mxu0 0.0
        %3597 = vmatpush1.msra.mxu0 0.0
        %3598 = vmatprep.subr.mxu0 0.0
        %3599 = vmatpush1.msra.mxu0 0.0
        %3600 = vmatprep.subr.mxu0 0.0
        %3601 = vmatpush1.msra.mxu0 0.0
        %3602 = vmatprep.subr.mxu0 0.0
        %3603 = vmatpush1.msra.mxu0 0.0
        %3604 = vmatprep.subr.mxu0 0.0
        %3605 = vmatpush1.msra.mxu0 0.0
        %3606 = vmatprep.subr.mxu0 0.0
        %3607 = vmatpush1.msra.mxu0 0.0
        %3608 = vmatprep.subr.mxu0 0.0
        %3609 = vmatpush1.msra.mxu0 0.0
        %3610 = vmatprep.subr.mxu0 0.0
        %3611 = vmatpush1.msra.mxu0 0.0
        %3612 = vmatprep.subr.mxu0 0.0
        %3613 = vmatpush1.msra.mxu0 0.0
        %3614 = vmatprep.subr.mxu0 0.0
        %3615 = vmatpush1.msra.mxu0 0.0
        %3616 = vmatprep.subr.mxu0 0.0
        %3617 = vmatpush1.msra.mxu0 0.0
        %3618 = vmatprep.subr.mxu0 0.0
        %3619 = vmatpush1.msra.mxu0 0.0
        %3620 = vmatprep.subr.mxu0 0.0
        %3621 = vmatpush1.msra.mxu0 %v3179
        %3622 = vmatprep.subr.mxu0 0.0
        %3623 = vmatpush2.msra.mxu0 0.0
        %3624 = vmatprep.subr.mxu0 0.0
        %3625 = vmatpush2.msra.mxu0 0.0
        %3626 = vmatprep.subr.mxu0 0.0
        %3627 = vmatpush2.msra.mxu0 0.0
        %3628 = vmatprep.subr.mxu0 0.0
        %3629 = vmatpush2.msra.mxu0 0.0
        %3630 = vmatprep.subr.mxu0 0.0
        %3631 = vmatpush2.msra.mxu0 0.0
        %3632 = vmatprep.subr.mxu0 0.0
        %3633 = vmatpush2.msra.mxu0 0.0
        %3634 = vmatprep.subr.mxu0 0.0
        %3635 = vmatpush2.msra.mxu0 0.0
        %3636 = vmatprep.subr.mxu0 0.0
        %3637 = vmatpush2.msra.mxu0 0.0
        %3638 = vmatprep.subr.mxu0 0.0
        %3639 = vmatpush2.msra.mxu0 0.0
        %3640 = vmatprep.subr.mxu0 0.0
        %3641 = vmatpush2.msra.mxu0 0.0
        %3642 = vmatprep.subr.mxu0 0.0
        %3643 = vmatpush2.msra.mxu0 0.0
        %3644 = vmatprep.subr.mxu0 0.0
        %3645 = vmatpush2.msra.mxu0 0.0
        %3646 = vmatprep.subr.mxu0 0.0
        %3647 = vmatpush2.msra.mxu0 0.0
        %3648 = vmatprep.subr.mxu0 0.0
        %3649 = vmatpush2.msra.mxu0 0.0
        %3650 = vmatprep.subr.mxu0 0.0
        %3651 = vmatpush2.msra.mxu0 0.0
        %3652 = vmatprep.subr.mxu0 0.0
        %3653 = vmatpush2.msra.mxu0 0.0
        %3654 = vmatprep.mubr.f32.mxu0 0.0
        %3655 = vmatmul.mubr.f32.gmra.mxu0 %v3588
        %v3656 = vpop.f32.mrf.mxu0
        %v3657 = vadd.f32 %v3584, %v3656
        %v3658 = vpop.f32.mrf.mxu0
        %3659 = vdwg.mxu0
        %3660 = vrot.lane.b32.xlu0 %v3175, 112
        %v3661 = vpop.permute.xlu0 %3660
        %3662 = vrot.lane.b32.xlu0 %v3175, 80
        %v3663 = vpop.permute.xlu0 %3662
        %v3664 = vsel %vm745, %v3661, 0
        %v3666 = vsel %vm745, %v3663, 0
        %3668 = vmatprep.subr.mxu0 0.0
        %3669 = vmatpush1.xpose.msra.mxu0 0.0
        %3670 = vmatprep.subr.mxu0 0.0
        %3671 = vmatpush1.xpose.msra.mxu0 0.0
        %3672 = vmatprep.subr.mxu0 0.0
        %3673 = vmatpush1.xpose.msra.mxu0 0.0
        %3674 = vmatprep.subr.mxu0 0.0
        %3675 = vmatpush1.xpose.msra.mxu0 0.0
        %3676 = vmatprep.subr.mxu0 0.0
        %3677 = vmatpush1.xpose.msra.mxu0 0.0
        %3678 = vmatprep.subr.mxu0 0.0
        %3679 = vmatpush1.xpose.msra.mxu0 0.0
        %3680 = vmatprep.subr.mxu0 0.0
        %3681 = vmatpush1.xpose.msra.mxu0 0.0
        %3682 = vmatprep.subr.mxu0 0.0
        %3683 = vmatpush1.xpose.msra.mxu0 0.0
        %3684 = vmatprep.subr.mxu0 0.0
        %3685 = vmatpush1.xpose.msra.mxu0 0.0
        %3686 = vmatprep.subr.mxu0 0.0
        %3687 = vmatpush1.xpose.msra.mxu0 0.0
        %3688 = vmatprep.subr.mxu0 0.0
        %3689 = vmatpush1.xpose.msra.mxu0 0.0
        %3690 = vmatprep.subr.mxu0 0.0
        %3691 = vmatpush1.xpose.msra.mxu0 0.0
        %3692 = vmatprep.subr.mxu0 0.0
        %3693 = vmatpush1.xpose.msra.mxu0 0.0
        %3694 = vmatprep.subr.mxu0 0.0
        %3695 = vmatpush1.xpose.msra.mxu0 0.0
        %3696 = vmatprep.subr.mxu0 0.0
        %3697 = vmatpush1.xpose.msra.mxu0 0.0
        %3698 = vmatprep.subr.mxu0 0.0
        %3699 = vmatpush1.xpose.msra.mxu0 %v3666
        %3700 = vmatprep.subr.mxu0 0.0
        %3701 = vmatpush2.xpose.msra.mxu0 0.0
        %3702 = vmatprep.subr.mxu0 0.0
        %3703 = vmatpush2.xpose.msra.mxu0 0.0
        %3704 = vmatprep.subr.mxu0 0.0
        %3705 = vmatpush2.xpose.msra.mxu0 0.0
        %3706 = vmatprep.subr.mxu0 0.0
        %3707 = vmatpush2.xpose.msra.mxu0 0.0
        %3708 = vmatprep.subr.mxu0 0.0
        %3709 = vmatpush2.xpose.msra.mxu0 0.0
        %3710 = vmatprep.subr.mxu0 0.0
        %3711 = vmatpush2.xpose.msra.mxu0 0.0
        %3712 = vmatprep.subr.mxu0 0.0
        %3713 = vmatpush2.xpose.msra.mxu0 0.0
        %3714 = vmatprep.subr.mxu0 0.0
        %3715 = vmatpush2.xpose.msra.mxu0 0.0
        %3716 = vmatprep.subr.mxu0 0.0
        %3717 = vmatpush2.xpose.msra.mxu0 0.0
        %3718 = vmatprep.subr.mxu0 0.0
        %3719 = vmatpush2.xpose.msra.mxu0 0.0
        %3720 = vmatprep.subr.mxu0 0.0
        %3721 = vmatpush2.xpose.msra.mxu0 0.0
        %3722 = vmatprep.subr.mxu0 0.0
        %3723 = vmatpush2.xpose.msra.mxu0 0.0
        %3724 = vmatprep.subr.mxu0 0.0
        %3725 = vmatpush2.xpose.msra.mxu0 0.0
        %3726 = vmatprep.subr.mxu0 0.0
        %3727 = vmatpush2.xpose.msra.mxu0 0.0
        %3728 = vmatprep.subr.mxu0 0.0
        %3729 = vmatpush2.xpose.msra.mxu0 0.0
        %3730 = vmatprep.subr.mxu0 0.0
        %3731 = vmatpush2.xpose.msra.mxu0 0.0
        %3732 = vmatprep.mubr.f32.mxu0 0.0
        %3733 = vmatmul.mubr.f32.gmra.mxu0 %v3664
        %v3734 = vpop.f32.mrf.mxu0
        %v3735 = vadd.f32 %v649, %v3734
        %v3736 = vpop.f32.mrf.mxu0
        %3737 = vdwg.mxu0
        %v3738 = vsel %vm745, %v3735, -inf
        %3739 = vmax.xlane.f32.xlu0 %v3738
        %v3740 = vpop.xlane.xlu0 %3739
        %v3741 = vsub.f32 %v3735, %v3740
        %v3742 = vmul.f32 %v3741, 1.442695
        %v3743 = vpow.pop %v3742
        %v3744 = vsel %vm745, %v3743, 0.0
        %3745 = vadd.xlane.f32.xlu0 %v3744
        %v3746 = vpop.xlane.xlu0 %3745
        %v3747 = vrcp.pop %v3746
        %v3748 = vmul.f32 %v3743, %v3747
        %3749 = vrot.lane.b32.xlu0 %v3175, 48
        %v3750 = vpop.permute.xlu0 %3749
        %v3753 = vsel %vm745, %v3748, 0
        %3755 = vmatprep.subr.mxu0 0.0
        %3756 = vmatpush1.msra.mxu0 0.0
        %3757 = vmatprep.subr.mxu0 0.0
        %3758 = vmatpush1.msra.mxu0 0.0
        %3759 = vmatprep.subr.mxu0 0.0
        %3760 = vmatpush1.msra.mxu0 0.0
        %3761 = vmatprep.subr.mxu0 0.0
        %3762 = vmatpush1.msra.mxu0 0.0
        %3763 = vmatprep.subr.mxu0 0.0
        %3764 = vmatpush1.msra.mxu0 0.0
        %3765 = vmatprep.subr.mxu0 0.0
        %3766 = vmatpush1.msra.mxu0 0.0
        %3767 = vmatprep.subr.mxu0 0.0
        %3768 = vmatpush1.msra.mxu0 0.0
        %3769 = vmatprep.subr.mxu0 0.0
        %3770 = vmatpush1.msra.mxu0 0.0
        %3771 = vmatprep.subr.mxu0 0.0
        %3772 = vmatpush1.msra.mxu0 0.0
        %3773 = vmatprep.subr.mxu0 0.0
        %3774 = vmatpush1.msra.mxu0 0.0
        %3775 = vmatprep.subr.mxu0 0.0
        %3776 = vmatpush1.msra.mxu0 0.0
        %3777 = vmatprep.subr.mxu0 0.0
        %3778 = vmatpush1.msra.mxu0 0.0
        %3779 = vmatprep.subr.mxu0 0.0
        %3780 = vmatpush1.msra.mxu0 0.0
        %3781 = vmatprep.subr.mxu0 0.0
        %3782 = vmatpush1.msra.mxu0 0.0
        %3783 = vmatprep.subr.mxu0 0.0
        %3784 = vmatpush1.msra.mxu0 0.0
        %3785 = vmatprep.subr.mxu0 0.0
        %3786 = vmatpush1.msra.mxu0 %v3750
        %3787 = vmatprep.subr.mxu0 0.0
        %3788 = vmatpush2.msra.mxu0 0.0
        %3789 = vmatprep.subr.mxu0 0.0
        %3790 = vmatpush2.msra.mxu0 0.0
        %3791 = vmatprep.subr.mxu0 0.0
        %3792 = vmatpush2.msra.mxu0 0.0
        %3793 = vmatprep.subr.mxu0 0.0
        %3794 = vmatpush2.msra.mxu0 0.0
        %3795 = vmatprep.subr.mxu0 0.0
        %3796 = vmatpush2.msra.mxu0 0.0
        %3797 = vmatprep.subr.mxu0 0.0
        %3798 = vmatpush2.msra.mxu0 0.0
        %3799 = vmatprep.subr.mxu0 0.0
        %3800 = vmatpush2.msra.mxu0 0.0
        %3801 = vmatprep.subr.mxu0 0.0
        %3802 = vmatpush2.msra.mxu0 0.0
        %3803 = vmatprep.subr.mxu0 0.0
        %3804 = vmatpush2.msra.mxu0 0.0
        %3805 = vmatprep.subr.mxu0 0.0
        %3806 = vmatpush2.msra.mxu0 0.0
        %3807 = vmatprep.subr.mxu0 0.0
        %3808 = vmatpush2.msra.mxu0 0.0
        %3809 = vmatprep.subr.mxu0 0.0
        %3810 = vmatpush2.msra.mxu0 0.0
        %3811 = vmatprep.subr.mxu0 0.0
        %3812 = vmatpush2.msra.mxu0 0.0
        %3813 = vmatprep.subr.mxu0 0.0
        %3814 = vmatpush2.msra.mxu0 0.0
        %3815 = vmatprep.subr.mxu0 0.0
        %3816 = vmatpush2.msra.mxu0 0.0
        %3817 = vmatprep.subr.mxu0 0.0
        %3818 = vmatpush2.msra.mxu0 0.0
        %3819 = vmatprep.mubr.f32.mxu0 0.0
        %3820 = vmatmul.mubr.f32.gmra.mxu0 %v3753
        %v3821 = vpop.f32.mrf.mxu0
        %v3822 = vadd.f32 0.0, %v3821
        %v3823 = vpop.f32.mrf.mxu0
        %3824 = vdwg.mxu0
        %v3826 = vsel %vm745, %v3822, 0
        %3828 = vmatprep.subr.mxu0 0.0
        %3829 = vmatpush1.msra.mxu0 0.0
        %3830 = vmatprep.subr.mxu0 0.0
        %3831 = vmatpush1.msra.mxu0 0.0
        %3832 = vmatprep.subr.mxu0 0.0
        %3833 = vmatpush1.msra.mxu0 0.0
        %3834 = vmatprep.subr.mxu0 0.0
        %3835 = vmatpush1.msra.mxu0 0.0
        %3836 = vmatprep.subr.mxu0 0.0
        %3837 = vmatpush1.msra.mxu0 0.0
        %3838 = vmatprep.subr.mxu0 0.0
        %3839 = vmatpush1.msra.mxu0 0.0
        %3840 = vmatprep.subr.mxu0 0.0
        %3841 = vmatpush1.msra.mxu0 0.0
        %3842 = vmatprep.subr.mxu0 0.0
        %3843 = vmatpush1.msra.mxu0 0.0
        %3844 = vmatprep.subr.mxu0 0.0
        %3845 = vmatpush1.msra.mxu0 0.0
        %3846 = vmatprep.subr.mxu0 0.0
        %3847 = vmatpush1.msra.mxu0 0.0
        %3848 = vmatprep.subr.mxu0 0.0
        %3849 = vmatpush1.msra.mxu0 0.0
        %3850 = vmatprep.subr.mxu0 0.0
        %3851 = vmatpush1.msra.mxu0 0.0
        %3852 = vmatprep.subr.mxu0 0.0
        %3853 = vmatpush1.msra.mxu0 0.0
        %3854 = vmatprep.subr.mxu0 0.0
        %3855 = vmatpush1.msra.mxu0 0.0
        %3856 = vmatprep.subr.mxu0 0.0
        %3857 = vmatpush1.msra.mxu0 0.0
        %3858 = vmatprep.subr.mxu0 0.0
        %3859 = vmatpush1.msra.mxu0 %v3181
        %3860 = vmatprep.subr.mxu0 0.0
        %3861 = vmatpush2.msra.mxu0 0.0
        %3862 = vmatprep.subr.mxu0 0.0
        %3863 = vmatpush2.msra.mxu0 0.0
        %3864 = vmatprep.subr.mxu0 0.0
        %3865 = vmatpush2.msra.mxu0 0.0
        %3866 = vmatprep.subr.mxu0 0.0
        %3867 = vmatpush2.msra.mxu0 0.0
        %3868 = vmatprep.subr.mxu0 0.0
        %3869 = vmatpush2.msra.mxu0 0.0
        %3870 = vmatprep.subr.mxu0 0.0
        %3871 = vmatpush2.msra.mxu0 0.0
        %3872 = vmatprep.subr.mxu0 0.0
        %3873 = vmatpush2.msra.mxu0 0.0
        %3874 = vmatprep.subr.mxu0 0.0
        %3875 = vmatpush2.msra.mxu0 0.0
        %3876 = vmatprep.subr.mxu0 0.0
        %3877 = vmatpush2.msra.mxu0 0.0
        %3878 = vmatprep.subr.mxu0 0.0
        %3879 = vmatpush2.msra.mxu0 0.0
        %3880 = vmatprep.subr.mxu0 0.0
        %3881 = vmatpush2.msra.mxu0 0.0
        %3882 = vmatprep.subr.mxu0 0.0
        %3883 = vmatpush2.msra.mxu0 0.0
        %3884 = vmatprep.subr.mxu0 0.0
        %3885 = vmatpush2.msra.mxu0 0.0
        %3886 = vmatprep.subr.mxu0 0.0
        %3887 = vmatpush2.msra.mxu0 0.0
        %3888 = vmatprep.subr.mxu0 0.0
        %3889 = vmatpush2.msra.mxu0 0.0
        %3890 = vmatprep.subr.mxu0 0.0
        %3891 = vmatpush2.msra.mxu0 0.0
        %3892 = vmatprep.mubr.f32.mxu0 0.0
        %3893 = vmatmul.mubr.f32.gmra.mxu0 %v3826
        %v3894 = vpop.f32.mrf.mxu0
        %v3895 = vadd.f32 0.0, %v3894
        %v3896 = vpop.f32.mrf.mxu0
        %3897 = vdwg.mxu0
        %v3898 = vadd.f32 %v3657, %v3895
        %3899 = vrot.lane.b32.xlu0 %v3175, 104
        %v3900 = vpop.permute.xlu0 %3899
        %3901 = vrot.lane.b32.xlu0 %v3175, 72
        %v3902 = vpop.permute.xlu0 %3901
        %v3903 = vsel %vm745, %v3900, 0
        %v3905 = vsel %vm745, %v3902, 0
        %3907 = vmatprep.subr.mxu0 0.0
        %3908 = vmatpush1.xpose.msra.mxu0 0.0
        %3909 = vmatprep.subr.mxu0 0.0
        %3910 = vmatpush1.xpose.msra.mxu0 0.0
        %3911 = vmatprep.subr.mxu0 0.0
        %3912 = vmatpush1.xpose.msra.mxu0 0.0
        %3913 = vmatprep.subr.mxu0 0.0
        %3914 = vmatpush1.xpose.msra.mxu0 0.0
        %3915 = vmatprep.subr.mxu0 0.0
        %3916 = vmatpush1.xpose.msra.mxu0 0.0
        %3917 = vmatprep.subr.mxu0 0.0
        %3918 = vmatpush1.xpose.msra.mxu0 0.0
        %3919 = vmatprep.subr.mxu0 0.0
        %3920 = vmatpush1.xpose.msra.mxu0 0.0
        %3921 = vmatprep.subr.mxu0 0.0
        %3922 = vmatpush1.xpose.msra.mxu0 0.0
        %3923 = vmatprep.subr.mxu0 0.0
        %3924 = vmatpush1.xpose.msra.mxu0 0.0
        %3925 = vmatprep.subr.mxu0 0.0
        %3926 = vmatpush1.xpose.msra.mxu0 0.0
        %3927 = vmatprep.subr.mxu0 0.0
        %3928 = vmatpush1.xpose.msra.mxu0 0.0
        %3929 = vmatprep.subr.mxu0 0.0
        %3930 = vmatpush1.xpose.msra.mxu0 0.0
        %3931 = vmatprep.subr.mxu0 0.0
        %3932 = vmatpush1.xpose.msra.mxu0 0.0
        %3933 = vmatprep.subr.mxu0 0.0
        %3934 = vmatpush1.xpose.msra.mxu0 0.0
        %3935 = vmatprep.subr.mxu0 0.0
        %3936 = vmatpush1.xpose.msra.mxu0 0.0
        %3937 = vmatprep.subr.mxu0 0.0
        %3938 = vmatpush1.xpose.msra.mxu0 %v3905
        %3939 = vmatprep.subr.mxu0 0.0
        %3940 = vmatpush2.xpose.msra.mxu0 0.0
        %3941 = vmatprep.subr.mxu0 0.0
        %3942 = vmatpush2.xpose.msra.mxu0 0.0
        %3943 = vmatprep.subr.mxu0 0.0
        %3944 = vmatpush2.xpose.msra.mxu0 0.0
        %3945 = vmatprep.subr.mxu0 0.0
        %3946 = vmatpush2.xpose.msra.mxu0 0.0
        %3947 = vmatprep.subr.mxu0 0.0
        %3948 = vmatpush2.xpose.msra.mxu0 0.0
        %3949 = vmatprep.subr.mxu0 0.0
        %3950 = vmatpush2.xpose.msra.mxu0 0.0
        %3951 = vmatprep.subr.mxu0 0.0
        %3952 = vmatpush2.xpose.msra.mxu0 0.0
        %3953 = vmatprep.subr.mxu0 0.0
        %3954 = vmatpush2.xpose.msra.mxu0 0.0
        %3955 = vmatprep.subr.mxu0 0.0
        %3956 = vmatpush2.xpose.msra.mxu0 0.0
        %3957 = vmatprep.subr.mxu0 0.0
        %3958 = vmatpush2.xpose.msra.mxu0 0.0
        %3959 = vmatprep.subr.mxu0 0.0
        %3960 = vmatpush2.xpose.msra.mxu0 0.0
        %3961 = vmatprep.subr.mxu0 0.0
        %3962 = vmatpush2.xpose.msra.mxu0 0.0
        %3963 = vmatprep.subr.mxu0 0.0
        %3964 = vmatpush2.xpose.msra.mxu0 0.0
        %3965 = vmatprep.subr.mxu0 0.0
        %3966 = vmatpush2.xpose.msra.mxu0 0.0
        %3967 = vmatprep.subr.mxu0 0.0
        %3968 = vmatpush2.xpose.msra.mxu0 0.0
        %3969 = vmatprep.subr.mxu0 0.0
        %3970 = vmatpush2.xpose.msra.mxu0 0.0
        %3971 = vmatprep.mubr.f32.mxu0 0.0
        %3972 = vmatmul.mubr.f32.gmra.mxu0 %v3903
        %v3973 = vpop.f32.mrf.mxu0
        %v3974 = vadd.f32 %v649, %v3973
        %v3975 = vpop.f32.mrf.mxu0
        %3976 = vdwg.mxu0
        %v3977 = vsel %vm745, %v3974, -inf
        %3978 = vmax.xlane.f32.xlu0 %v3977
        %v3979 = vpop.xlane.xlu0 %3978
        %v3980 = vsub.f32 %v3974, %v3979
        %v3981 = vmul.f32 %v3980, 1.442695
        %v3982 = vpow.pop %v3981
        %v3983 = vsel %vm745, %v3982, 0.0
        %3984 = vadd.xlane.f32.xlu0 %v3983
        %v3985 = vpop.xlane.xlu0 %3984
        %v3986 = vrcp.pop %v3985
        %v3987 = vmul.f32 %v3982, %v3986
        %3988 = vrot.lane.b32.xlu0 %v3175, 40
        %v3989 = vpop.permute.xlu0 %3988
        %v3992 = vsel %vm745, %v3987, 0
        %3994 = vmatprep.subr.mxu0 0.0
        %3995 = vmatpush1.msra.mxu0 0.0
        %3996 = vmatprep.subr.mxu0 0.0
        %3997 = vmatpush1.msra.mxu0 0.0
        %3998 = vmatprep.subr.mxu0 0.0
        %3999 = vmatpush1.msra.mxu0 0.0
        %4000 = vmatprep.subr.mxu0 0.0
        %4001 = vmatpush1.msra.mxu0 0.0
        %4002 = vmatprep.subr.mxu0 0.0
        %4003 = vmatpush1.msra.mxu0 0.0
        %4004 = vmatprep.subr.mxu0 0.0
        %4005 = vmatpush1.msra.mxu0 0.0
        %4006 = vmatprep.subr.mxu0 0.0
        %4007 = vmatpush1.msra.mxu0 0.0
        %4008 = vmatprep.subr.mxu0 0.0
        %4009 = vmatpush1.msra.mxu0 0.0
        %4010 = vmatprep.subr.mxu0 0.0
        %4011 = vmatpush1.msra.mxu0 0.0
        %4012 = vmatprep.subr.mxu0 0.0
        %4013 = vmatpush1.msra.mxu0 0.0
        %4014 = vmatprep.subr.mxu0 0.0
        %4015 = vmatpush1.msra.mxu0 0.0
        %4016 = vmatprep.subr.mxu0 0.0
        %4017 = vmatpush1.msra.mxu0 0.0
        %4018 = vmatprep.subr.mxu0 0.0
        %4019 = vmatpush1.msra.mxu0 0.0
        %4020 = vmatprep.subr.mxu0 0.0
        %4021 = vmatpush1.msra.mxu0 0.0
        %4022 = vmatprep.subr.mxu0 0.0
        %4023 = vmatpush1.msra.mxu0 0.0
        %4024 = vmatprep.subr.mxu0 0.0
        %4025 = vmatpush1.msra.mxu0 %v3989
        %4026 = vmatprep.subr.mxu0 0.0
        %4027 = vmatpush2.msra.mxu0 0.0
        %4028 = vmatprep.subr.mxu0 0.0
        %4029 = vmatpush2.msra.mxu0 0.0
        %4030 = vmatprep.subr.mxu0 0.0
        %4031 = vmatpush2.msra.mxu0 0.0
        %4032 = vmatprep.subr.mxu0 0.0
        %4033 = vmatpush2.msra.mxu0 0.0
        %4034 = vmatprep.subr.mxu0 0.0
        %4035 = vmatpush2.msra.mxu0 0.0
        %4036 = vmatprep.subr.mxu0 0.0
        %4037 = vmatpush2.msra.mxu0 0.0
        %4038 = vmatprep.subr.mxu0 0.0
        %4039 = vmatpush2.msra.mxu0 0.0
        %4040 = vmatprep.subr.mxu0 0.0
        %4041 = vmatpush2.msra.mxu0 0.0
        %4042 = vmatprep.subr.mxu0 0.0
        %4043 = vmatpush2.msra.mxu0 0.0
        %4044 = vmatprep.subr.mxu0 0.0
        %4045 = vmatpush2.msra.mxu0 0.0
        %4046 = vmatprep.subr.mxu0 0.0
        %4047 = vmatpush2.msra.mxu0 0.0
        %4048 = vmatprep.subr.mxu0 0.0
        %4049 = vmatpush2.msra.mxu0 0.0
        %4050 = vmatprep.subr.mxu0 0.0
        %4051 = vmatpush2.msra.mxu0 0.0
        %4052 = vmatprep.subr.mxu0 0.0
        %4053 = vmatpush2.msra.mxu0 0.0
        %4054 = vmatprep.subr.mxu0 0.0
        %4055 = vmatpush2.msra.mxu0 0.0
        %4056 = vmatprep.subr.mxu0 0.0
        %4057 = vmatpush2.msra.mxu0 0.0
        %4058 = vmatprep.mubr.f32.mxu0 0.0
        %4059 = vmatmul.mubr.f32.gmra.mxu0 %v3992
        %v4060 = vpop.f32.mrf.mxu0
        %v4061 = vadd.f32 0.0, %v4060
        %v4062 = vpop.f32.mrf.mxu0
        %4063 = vdwg.mxu0
        %v4065 = vsel %vm745, %v4061, 0
        %4067 = vmatprep.subr.mxu0 0.0
        %4068 = vmatpush1.msra.mxu0 0.0
        %4069 = vmatprep.subr.mxu0 0.0
        %4070 = vmatpush1.msra.mxu0 0.0
        %4071 = vmatprep.subr.mxu0 0.0
        %4072 = vmatpush1.msra.mxu0 0.0
        %4073 = vmatprep.subr.mxu0 0.0
        %4074 = vmatpush1.msra.mxu0 0.0
        %4075 = vmatprep.subr.mxu0 0.0
        %4076 = vmatpush1.msra.mxu0 0.0
        %4077 = vmatprep.subr.mxu0 0.0
        %4078 = vmatpush1.msra.mxu0 0.0
        %4079 = vmatprep.subr.mxu0 0.0
        %4080 = vmatpush1.msra.mxu0 0.0
        %4081 = vmatprep.subr.mxu0 0.0
        %4082 = vmatpush1.msra.mxu0 0.0
        %4083 = vmatprep.subr.mxu0 0.0
        %4084 = vmatpush1.msra.mxu0 0.0
        %4085 = vmatprep.subr.mxu0 0.0
        %4086 = vmatpush1.msra.mxu0 0.0
        %4087 = vmatprep.subr.mxu0 0.0
        %4088 = vmatpush1.msra.mxu0 0.0
        %4089 = vmatprep.subr.mxu0 0.0
        %4090 = vmatpush1.msra.mxu0 0.0
        %4091 = vmatprep.subr.mxu0 0.0
        %4092 = vmatpush1.msra.mxu0 0.0
        %4093 = vmatprep.subr.mxu0 0.0
        %4094 = vmatpush1.msra.mxu0 0.0
        %4095 = vmatprep.subr.mxu0 0.0
        %4096 = vmatpush1.msra.mxu0 0.0
        %4097 = vmatprep.subr.mxu0 0.0
        %4098 = vmatpush1.msra.mxu0 %v3182
        %4099 = vmatprep.subr.mxu0 0.0
        %4100 = vmatpush2.msra.mxu0 0.0
        %4101 = vmatprep.subr.mxu0 0.0
        %4102 = vmatpush2.msra.mxu0 0.0
        %4103 = vmatprep.subr.mxu0 0.0
        %4104 = vmatpush2.msra.mxu0 0.0
        %4105 = vmatprep.subr.mxu0 0.0
        %4106 = vmatpush2.msra.mxu0 0.0
        %4107 = vmatprep.subr.mxu0 0.0
        %4108 = vmatpush2.msra.mxu0 0.0
        %4109 = vmatprep.subr.mxu0 0.0
        %4110 = vmatpush2.msra.mxu0 0.0
        %4111 = vmatprep.subr.mxu0 0.0
        %4112 = vmatpush2.msra.mxu0 0.0
        %4113 = vmatprep.subr.mxu0 0.0
        %4114 = vmatpush2.msra.mxu0 0.0
        %4115 = vmatprep.subr.mxu0 0.0
        %4116 = vmatpush2.msra.mxu0 0.0
        %4117 = vmatprep.subr.mxu0 0.0
        %4118 = vmatpush2.msra.mxu0 0.0
        %4119 = vmatprep.subr.mxu0 0.0
        %4120 = vmatpush2.msra.mxu0 0.0
        %4121 = vmatprep.subr.mxu0 0.0
        %4122 = vmatpush2.msra.mxu0 0.0
        %4123 = vmatprep.subr.mxu0 0.0
        %4124 = vmatpush2.msra.mxu0 0.0
        %4125 = vmatprep.subr.mxu0 0.0
        %4126 = vmatpush2.msra.mxu0 0.0
        %4127 = vmatprep.subr.mxu0 0.0
        %4128 = vmatpush2.msra.mxu0 0.0
        %4129 = vmatprep.subr.mxu0 0.0
        %4130 = vmatpush2.msra.mxu0 0.0
        %4131 = vmatprep.mubr.f32.mxu0 0.0
        %4132 = vmatmul.mubr.f32.gmra.mxu0 %v4065
        %v4133 = vpop.f32.mrf.mxu0
        %v4134 = vadd.f32 0.0, %v4133
        %v4135 = vpop.f32.mrf.mxu0
        %4136 = vdwg.mxu0
        %v4137 = vadd.f32 %v3898, %v4134
        %v4139 = vlaneseq
        %v4140 = vshrl.u32 %v4139, 7
        %v4141 = vsub.s32 0, %v4140
        %v4142 = vrot.slane %v3184, %v4141
        %v4144 = vadd.f32 %v4137, %v4142
        %v4145 = vadd.f32 %v3087, %v4144
        %v4146 = vsel %vm663, %v4145, 0.0
        %4147 = vadd.xlane.f32.xlu0 %v4146
        %v4148 = vpop.xlane.xlu0 %4147
        %v4149 = vmul.f32 %v4148, %v1707
        %v4150 = vsub.f32 %v4145, %v4149
        %v4151 = vmul.f32 %v4150, %v4150
        %v4152 = vsel %vm663, %v4151, 0.0
        %4153 = vadd.xlane.f32.xlu0 %v4152
        %v4154 = vpop.xlane.xlu0 %4153
        %v4155 = vmul.f32 %v4154, %v1707
        %v4156 = vadd.f32 %v4155, 1e-05
        %v4157 = vrsqrt.pop %v4156
        %v4158 = vmul.f32 %v4150, %v4157
        %v4159 = vlaneseq
        %v4160 = vshrl.u32 %v4159, 7
        %v4161 = vsub.s32 0, %v4160
        %v4162 = vrot.slane %v3089, %v4161
        %v4163 = vmul.f32 %v4158, %v4162
        %v4164 = vlaneseq
        %v4165 = vshrl.u32 %v4164, 7
        %v4166 = vsub.s32 0, %v4165
        %v4167 = vrot.slane %v3091, %v4166
        %v4168 = vadd.f32 %v4163, %v4167
        %s4169 = scalar_lea.vmem %s6, 32
        %v4170 = vld [vmem:[%s4169] sm:$0xff]
        %v4171 = vld [vmem:[%s4169 + $0x8] sm:$0xff]
        %v4172 = vld [vmem:[%s4169 + $0x10] sm:$0xff]
        %v4173 = vld [vmem:[%s4169 + $0x18] sm:$0xff]
        %s4174 = scalar_lea.vmem %s7, 1
        %v4175 = vld [vmem:[%s4174] sm:$0x1]
        %v4177 = vlaneseq
        %v4178 = vshrl.u32 %v4177, 7
        %v4179 = vsub.s32 0, %v4178
        %v4180 = vrot.slane %v4175, %v4179
        %v4183 = vsel %vm663, %v4168, 0
        %4185 = vmatprep.subr.mxu0 0.0
        %4186 = vmatpush1.msra.mxu0 0.0
        %4187 = vmatprep.subr.mxu0 0.0
        %4188 = vmatpush1.msra.mxu0 0.0
        %4189 = vmatprep.subr.mxu0 0.0
        %4190 = vmatpush1.msra.mxu0 0.0
        %4191 = vmatprep.subr.mxu0 0.0
        %4192 = vmatpush1.msra.mxu0 0.0
        %4193 = vmatprep.subr.mxu0 0.0
        %4194 = vmatpush1.msra.mxu0 0.0
        %4195 = vmatprep.subr.mxu0 0.0
        %4196 = vmatpush1.msra.mxu0 0.0
        %4197 = vmatprep.subr.mxu0 0.0
        %4198 = vmatpush1.msra.mxu0 0.0
        %4199 = vmatprep.subr.mxu0 0.0
        %4200 = vmatpush1.msra.mxu0 0.0
        %4201 = vmatprep.subr.mxu0 0.0
        %4202 = vmatpush1.msra.mxu0 0.0
        %4203 = vmatprep.subr.mxu0 0.0
        %4204 = vmatpush1.msra.mxu0 0.0
        %4205 = vmatprep.subr.mxu0 0.0
        %4206 = vmatpush1.msra.mxu0 0.0
        %4207 = vmatprep.subr.mxu0 0.0
        %4208 = vmatpush1.msra.mxu0 0.0
        %4209 = vmatprep.subr.mxu0 0.0
        %4210 = vmatpush1.msra.mxu0 %v4173
        %4211 = vmatprep.subr.mxu0 0.0
        %4212 = vmatpush1.msra.mxu0 %v4172
        %4213 = vmatprep.subr.mxu0 0.0
        %4214 = vmatpush1.msra.mxu0 %v4171
        %4215 = vmatprep.subr.mxu0 0.0
        %4216 = vmatpush1.msra.mxu0 %v4170
        %4217 = vmatprep.subr.mxu0 0.0
        %4218 = vmatpush2.msra.mxu0 0.0
        %4219 = vmatprep.subr.mxu0 0.0
        %4220 = vmatpush2.msra.mxu0 0.0
        %4221 = vmatprep.subr.mxu0 0.0
        %4222 = vmatpush2.msra.mxu0 0.0
        %4223 = vmatprep.subr.mxu0 0.0
        %4224 = vmatpush2.msra.mxu0 0.0
        %4225 = vmatprep.subr.mxu0 0.0
        %4226 = vmatpush2.msra.mxu0 0.0
        %4227 = vmatprep.subr.mxu0 0.0
        %4228 = vmatpush2.msra.mxu0 0.0
        %4229 = vmatprep.subr.mxu0 0.0
        %4230 = vmatpush2.msra.mxu0 0.0
        %4231 = vmatprep.subr.mxu0 0.0
        %4232 = vmatpush2.msra.mxu0 0.0
        %4233 = vmatprep.subr.mxu0 0.0
        %4234 = vmatpush2.msra.mxu0 0.0
        %4235 = vmatprep.subr.mxu0 0.0
        %4236 = vmatpush2.msra.mxu0 0.0
        %4237 = vmatprep.subr.mxu0 0.0
        %4238 = vmatpush2.msra.mxu0 0.0
        %4239 = vmatprep.subr.mxu0 0.0
        %4240 = vmatpush2.msra.mxu0 0.0
        %4241 = vmatprep.subr.mxu0 0.0
        %4242 = vmatpush2.msra.mxu0 0.0
        %4243 = vmatprep.subr.mxu0 0.0
        %4244 = vmatpush2.msra.mxu0 0.0
        %4245 = vmatprep.subr.mxu0 0.0
        %4246 = vmatpush2.msra.mxu0 0.0
        %4247 = vmatprep.subr.mxu0 0.0
        %4248 = vmatpush2.msra.mxu0 0.0
        %4249 = vmatprep.mubr.f32.mxu0 0.0
        %4250 = vmatmul.mubr.f32.gmra.mxu0 %v4183
        %v4251 = vpop.f32.mrf.mxu0
        %v4252 = vadd.f32 %v4180, %v4251
        %v4253 = vpop.f32.mrf.mxu0
        %4254 = vdwg.mxu0
        %s4255 = scalar_lea.vmem %s8, 32
        %v4256 = vld [vmem:[%s4255] sm:$0xff]
        %v4257 = vld [vmem:[%s4255 + $0x8] sm:$0xff]
        %v4258 = vld [vmem:[%s4255 + $0x10] sm:$0xff]
        %v4259 = vld [vmem:[%s4255 + $0x18] sm:$0xff]
        %s4260 = scalar_lea.vmem %s9, 1
        %v4261 = vld [vmem:[%s4260] sm:$0x1]
        %v4263 = vlaneseq
        %v4264 = vshrl.u32 %v4263, 7
        %v4265 = vsub.s32 0, %v4264
        %v4266 = vrot.slane %v4261, %v4265
        %4268 = vmatprep.subr.mxu0 0.0
        %4269 = vmatpush1.msra.mxu0 0.0
        %4270 = vmatprep.subr.mxu0 0.0
        %4271 = vmatpush1.msra.mxu0 0.0
        %4272 = vmatprep.subr.mxu0 0.0
        %4273 = vmatpush1.msra.mxu0 0.0
        %4274 = vmatprep.subr.mxu0 0.0
        %4275 = vmatpush1.msra.mxu0 0.0
        %4276 = vmatprep.subr.mxu0 0.0
        %4277 = vmatpush1.msra.mxu0 0.0
        %4278 = vmatprep.subr.mxu0 0.0
        %4279 = vmatpush1.msra.mxu0 0.0
        %4280 = vmatprep.subr.mxu0 0.0
        %4281 = vmatpush1.msra.mxu0 0.0
        %4282 = vmatprep.subr.mxu0 0.0
        %4283 = vmatpush1.msra.mxu0 0.0
        %4284 = vmatprep.subr.mxu0 0.0
        %4285 = vmatpush1.msra.mxu0 0.0
        %4286 = vmatprep.subr.mxu0 0.0
        %4287 = vmatpush1.msra.mxu0 0.0
        %4288 = vmatprep.subr.mxu0 0.0
        %4289 = vmatpush1.msra.mxu0 0.0
        %4290 = vmatprep.subr.mxu0 0.0
        %4291 = vmatpush1.msra.mxu0 0.0
        %4292 = vmatprep.subr.mxu0 0.0
        %4293 = vmatpush1.msra.mxu0 %v4259
        %4294 = vmatprep.subr.mxu0 0.0
        %4295 = vmatpush1.msra.mxu0 %v4258
        %4296 = vmatprep.subr.mxu0 0.0
        %4297 = vmatpush1.msra.mxu0 %v4257
        %4298 = vmatprep.subr.mxu0 0.0
        %4299 = vmatpush1.msra.mxu0 %v4256
        %4300 = vmatprep.subr.mxu0 0.0
        %4301 = vmatpush2.msra.mxu0 0.0
        %4302 = vmatprep.subr.mxu0 0.0
        %4303 = vmatpush2.msra.mxu0 0.0
        %4304 = vmatprep.subr.mxu0 0.0
        %4305 = vmatpush2.msra.mxu0 0.0
        %4306 = vmatprep.subr.mxu0 0.0
        %4307 = vmatpush2.msra.mxu0 0.0
        %4308 = vmatprep.subr.mxu0 0.0
        %4309 = vmatpush2.msra.mxu0 0.0
        %4310 = vmatprep.subr.mxu0 0.0
        %4311 = vmatpush2.msra.mxu0 0.0
        %4312 = vmatprep.subr.mxu0 0.0
        %4313 = vmatpush2.msra.mxu0 0.0
        %4314 = vmatprep.subr.mxu0 0.0
        %4315 = vmatpush2.msra.mxu0 0.0
        %4316 = vmatprep.subr.mxu0 0.0
        %4317 = vmatpush2.msra.mxu0 0.0
        %4318 = vmatprep.subr.mxu0 0.0
        %4319 = vmatpush2.msra.mxu0 0.0
        %4320 = vmatprep.subr.mxu0 0.0
        %4321 = vmatpush2.msra.mxu0 0.0
        %4322 = vmatprep.subr.mxu0 0.0
        %4323 = vmatpush2.msra.mxu0 0.0
        %4324 = vmatprep.subr.mxu0 0.0
        %4325 = vmatpush2.msra.mxu0 0.0
        %4326 = vmatprep.subr.mxu0 0.0
        %4327 = vmatpush2.msra.mxu0 0.0
        %4328 = vmatprep.subr.mxu0 0.0
        %4329 = vmatpush2.msra.mxu0 0.0
        %4330 = vmatprep.subr.mxu0 0.0
        %4331 = vmatpush2.msra.mxu0 0.0
        %4332 = vmatprep.mubr.f32.mxu0 0.0
        %4333 = vmatmul.mubr.f32.gmra.mxu0 %v1824
        %v4334 = vpop.f32.mrf.mxu0
        %v4335 = vadd.f32 %v4266, %v4334
        %v4336 = vpop.f32.mrf.mxu0
        %4337 = vdwg.mxu0
        %s4338 = scalar_lea.vmem %s10, 32
        %v4339 = vld [vmem:[%s4338] sm:$0xff]
        %v4340 = vld [vmem:[%s4338 + $0x8] sm:$0xff]
        %v4341 = vld [vmem:[%s4338 + $0x10] sm:$0xff]
        %v4342 = vld [vmem:[%s4338 + $0x18] sm:$0xff]
        %s4343 = scalar_lea.vmem %s11, 1
        %v4344 = vld [vmem:[%s4343] sm:$0x1]
        %v4346 = vsel %vm745, %v4252, 0
        %v4349 = vsel %vm745, %v4335, 0
        %4351 = vmatprep.subr.mxu0 0.0
        %4352 = vmatpush1.xpose.msra.mxu0 0.0
        %4353 = vmatprep.subr.mxu0 0.0
        %4354 = vmatpush1.xpose.msra.mxu0 0.0
        %4355 = vmatprep.subr.mxu0 0.0
        %4356 = vmatpush1.xpose.msra.mxu0 0.0
        %4357 = vmatprep.subr.mxu0 0.0
        %4358 = vmatpush1.xpose.msra.mxu0 0.0
        %4359 = vmatprep.subr.mxu0 0.0
        %4360 = vmatpush1.xpose.msra.mxu0 0.0
        %4361 = vmatprep.subr.mxu0 0.0
        %4362 = vmatpush1.xpose.msra.mxu0 0.0
        %4363 = vmatprep.subr.mxu0 0.0
        %4364 = vmatpush1.xpose.msra.mxu0 0.0
        %4365 = vmatprep.subr.mxu0 0.0
        %4366 = vmatpush1.xpose.msra.mxu0 0.0
        %4367 = vmatprep.subr.mxu0 0.0
        %4368 = vmatpush1.xpose.msra.mxu0 0.0
        %4369 = vmatprep.subr.mxu0 0.0
        %4370 = vmatpush1.xpose.msra.mxu0 0.0
        %4371 = vmatprep.subr.mxu0 0.0
        %4372 = vmatpush1.xpose.msra.mxu0 0.0
        %4373 = vmatprep.subr.mxu0 0.0
        %4374 = vmatpush1.xpose.msra.mxu0 0.0
        %4375 = vmatprep.subr.mxu0 0.0
        %4376 = vmatpush1.xpose.msra.mxu0 0.0
        %4377 = vmatprep.subr.mxu0 0.0
        %4378 = vmatpush1.xpose.msra.mxu0 0.0
        %4379 = vmatprep.subr.mxu0 0.0
        %4380 = vmatpush1.xpose.msra.mxu0 0.0
        %4381 = vmatprep.subr.mxu0 0.0
        %4382 = vmatpush1.xpose.msra.mxu0 %v4349
        %4383 = vmatprep.subr.mxu0 0.0
        %4384 = vmatpush2.xpose.msra.mxu0 0.0
        %4385 = vmatprep.subr.mxu0 0.0
        %4386 = vmatpush2.xpose.msra.mxu0 0.0
        %4387 = vmatprep.subr.mxu0 0.0
        %4388 = vmatpush2.xpose.msra.mxu0 0.0
        %4389 = vmatprep.subr.mxu0 0.0
        %4390 = vmatpush2.xpose.msra.mxu0 0.0
        %4391 = vmatprep.subr.mxu0 0.0
        %4392 = vmatpush2.xpose.msra.mxu0 0.0
        %4393 = vmatprep.subr.mxu0 0.0
        %4394 = vmatpush2.xpose.msra.mxu0 0.0
        %4395 = vmatprep.subr.mxu0 0.0
        %4396 = vmatpush2.xpose.msra.mxu0 0.0
        %4397 = vmatprep.subr.mxu0 0.0
        %4398 = vmatpush2.xpose.msra.mxu0 0.0
        %4399 = vmatprep.subr.mxu0 0.0
        %4400 = vmatpush2.xpose.msra.mxu0 0.0
        %4401 = vmatprep.subr.mxu0 0.0
        %4402 = vmatpush2.xpose.msra.mxu0 0.0
        %4403 = vmatprep.subr.mxu0 0.0
        %4404 = vmatpush2.xpose.msra.mxu0 0.0
        %4405 = vmatprep.subr.mxu0 0.0
        %4406 = vmatpush2.xpose.msra.mxu0 0.0
        %4407 = vmatprep.subr.mxu0 0.0
        %4408 = vmatpush2.xpose.msra.mxu0 0.0
        %4409 = vmatprep.subr.mxu0 0.0
        %4410 = vmatpush2.xpose.msra.mxu0 0.0
        %4411 = vmatprep.subr.mxu0 0.0
        %4412 = vmatpush2.xpose.msra.mxu0 0.0
        %4413 = vmatprep.subr.mxu0 0.0
        %4414 = vmatpush2.xpose.msra.mxu0 0.0
        %4415 = vmatprep.mubr.f32.mxu0 0.0
        %4416 = vmatmul.mubr.f32.gmra.mxu0 %v4346
        %v4417 = vpop.f32.mrf.mxu0
        %v4418 = vadd.f32 0.0, %v4417
        %v4419 = vpop.f32.mrf.mxu0
        %4420 = vdwg.mxu0
        %v4421 = vsel %vm1977, %v4418, -inf
        %4422 = vmax.xlane.f32.xlu0 %v4421
        %v4423 = vpop.xlane.xlu0 %4422
        %v4424 = vsub.f32 %v4418, %v4423
        %v4425 = vmul.f32 %v4424, 1.442695
        %v4426 = vpow.pop %v4425
        %v4427 = vsel %vm1977, %v4426, 0.0
        %4428 = vadd.xlane.f32.xlu0 %v4427
        %v4429 = vpop.xlane.xlu0 %4428
        %v4430 = vrcp.pop %v4429
        %v4431 = vmul.f32 %v4426, %v4430
        %4432 = vrot.lane.b32.xlu0 %v4335, 96
        %v4433 = vpop.permute.xlu0 %4432
        %v4435 = vsel %vm1977, %v4431, 0
        %v4437 = vsel %vm1994, %v4433, 0
        %4439 = vmatprep.subr.mxu0 0.0
        %4440 = vmatpush1.msra.mxu0 0.0
        %4441 = vmatprep.subr.mxu0 0.0
        %4442 = vmatpush1.msra.mxu0 0.0
        %4443 = vmatprep.subr.mxu0 0.0
        %4444 = vmatpush1.msra.mxu0 0.0
        %4445 = vmatprep.subr.mxu0 0.0
        %4446 = vmatpush1.msra.mxu0 0.0
        %4447 = vmatprep.subr.mxu0 0.0
        %4448 = vmatpush1.msra.mxu0 0.0
        %4449 = vmatprep.subr.mxu0 0.0
        %4450 = vmatpush1.msra.mxu0 0.0
        %4451 = vmatprep.subr.mxu0 0.0
        %4452 = vmatpush1.msra.mxu0 0.0
        %4453 = vmatprep.subr.mxu0 0.0
        %4454 = vmatpush1.msra.mxu0 0.0
        %4455 = vmatprep.subr.mxu0 0.0
        %4456 = vmatpush1.msra.mxu0 0.0
        %4457 = vmatprep.subr.mxu0 0.0
        %4458 = vmatpush1.msra.mxu0 0.0
        %4459 = vmatprep.subr.mxu0 0.0
        %4460 = vmatpush1.msra.mxu0 0.0
        %4461 = vmatprep.subr.mxu0 0.0
        %4462 = vmatpush1.msra.mxu0 0.0
        %4463 = vmatprep.subr.mxu0 0.0
        %4464 = vmatpush1.msra.mxu0 0.0
        %4465 = vmatprep.subr.mxu0 0.0
        %4466 = vmatpush1.msra.mxu0 0.0
        %4467 = vmatprep.subr.mxu0 0.0
        %4468 = vmatpush1.msra.mxu0 0.0
        %4469 = vmatprep.subr.mxu0 0.0
        %4470 = vmatpush1.msra.mxu0 %v4437
        %4471 = vmatprep.subr.mxu0 0.0
        %4472 = vmatpush2.msra.mxu0 0.0
        %4473 = vmatprep.subr.mxu0 0.0
        %4474 = vmatpush2.msra.mxu0 0.0
        %4475 = vmatprep.subr.mxu0 0.0
        %4476 = vmatpush2.msra.mxu0 0.0
        %4477 = vmatprep.subr.mxu0 0.0
        %4478 = vmatpush2.msra.mxu0 0.0
        %4479 = vmatprep.subr.mxu0 0.0
        %4480 = vmatpush2.msra.mxu0 0.0
        %4481 = vmatprep.subr.mxu0 0.0
        %4482 = vmatpush2.msra.mxu0 0.0
        %4483 = vmatprep.subr.mxu0 0.0
        %4484 = vmatpush2.msra.mxu0 0.0
        %4485 = vmatprep.subr.mxu0 0.0
        %4486 = vmatpush2.msra.mxu0 0.0
        %4487 = vmatprep.subr.mxu0 0.0
        %4488 = vmatpush2.msra.mxu0 0.0
        %4489 = vmatprep.subr.mxu0 0.0
        %4490 = vmatpush2.msra.mxu0 0.0
        %4491 = vmatprep.subr.mxu0 0.0
        %4492 = vmatpush2.msra.mxu0 0.0
        %4493 = vmatprep.subr.mxu0 0.0
        %4494 = vmatpush2.msra.mxu0 0.0
        %4495 = vmatprep.subr.mxu0 0.0
        %4496 = vmatpush2.msra.mxu0 0.0
        %4497 = vmatprep.subr.mxu0 0.0
        %4498 = vmatpush2.msra.mxu0 0.0
        %4499 = vmatprep.subr.mxu0 0.0
        %4500 = vmatpush2.msra.mxu0 0.0
        %4501 = vmatprep.subr.mxu0 0.0
        %4502 = vmatpush2.msra.mxu0 0.0
        %4503 = vmatprep.mubr.f32.mxu0 0.0
        %4504 = vmatmul.mubr.f32.gmra.mxu0 %v4435
        %v4505 = vpop.f32.mrf.mxu0
        %v4506 = vadd.f32 0.0, %v4505
        %v4507 = vpop.f32.mrf.mxu0
        %4508 = vdwg.mxu0
        %4509 = vrot.lane.b32.xlu0 %v4252, 120
        %v4510 = vpop.permute.xlu0 %4509
        %4511 = vrot.lane.b32.xlu0 %v4335, 120
        %v4512 = vpop.permute.xlu0 %4511
        %v4513 = vsel %vm745, %v4510, 0
        %v4515 = vsel %vm745, %v4512, 0
        %4517 = vmatprep.subr.mxu0 0.0
        %4518 = vmatpush1.xpose.msra.mxu0 0.0
        %4519 = vmatprep.subr.mxu0 0.0
        %4520 = vmatpush1.xpose.msra.mxu0 0.0
        %4521 = vmatprep.subr.mxu0 0.0
        %4522 = vmatpush1.xpose.msra.mxu0 0.0
        %4523 = vmatprep.subr.mxu0 0.0
        %4524 = vmatpush1.xpose.msra.mxu0 0.0
        %4525 = vmatprep.subr.mxu0 0.0
        %4526 = vmatpush1.xpose.msra.mxu0 0.0
        %4527 = vmatprep.subr.mxu0 0.0
        %4528 = vmatpush1.xpose.msra.mxu0 0.0
        %4529 = vmatprep.subr.mxu0 0.0
        %4530 = vmatpush1.xpose.msra.mxu0 0.0
        %4531 = vmatprep.subr.mxu0 0.0
        %4532 = vmatpush1.xpose.msra.mxu0 0.0
        %4533 = vmatprep.subr.mxu0 0.0
        %4534 = vmatpush1.xpose.msra.mxu0 0.0
        %4535 = vmatprep.subr.mxu0 0.0
        %4536 = vmatpush1.xpose.msra.mxu0 0.0
        %4537 = vmatprep.subr.mxu0 0.0
        %4538 = vmatpush1.xpose.msra.mxu0 0.0
        %4539 = vmatprep.subr.mxu0 0.0
        %4540 = vmatpush1.xpose.msra.mxu0 0.0
        %4541 = vmatprep.subr.mxu0 0.0
        %4542 = vmatpush1.xpose.msra.mxu0 0.0
        %4543 = vmatprep.subr.mxu0 0.0
        %4544 = vmatpush1.xpose.msra.mxu0 0.0
        %4545 = vmatprep.subr.mxu0 0.0
        %4546 = vmatpush1.xpose.msra.mxu0 0.0
        %4547 = vmatprep.subr.mxu0 0.0
        %4548 = vmatpush1.xpose.msra.mxu0 %v4515
        %4549 = vmatprep.subr.mxu0 0.0
        %4550 = vmatpush2.xpose.msra.mxu0 0.0
        %4551 = vmatprep.subr.mxu0 0.0
        %4552 = vmatpush2.xpose.msra.mxu0 0.0
        %4553 = vmatprep.subr.mxu0 0.0
        %4554 = vmatpush2.xpose.msra.mxu0 0.0
        %4555 = vmatprep.subr.mxu0 0.0
        %4556 = vmatpush2.xpose.msra.mxu0 0.0
        %4557 = vmatprep.subr.mxu0 0.0
        %4558 = vmatpush2.xpose.msra.mxu0 0.0
        %4559 = vmatprep.subr.mxu0 0.0
        %4560 = vmatpush2.xpose.msra.mxu0 0.0
        %4561 = vmatprep.subr.mxu0 0.0
        %4562 = vmatpush2.xpose.msra.mxu0 0.0
        %4563 = vmatprep.subr.mxu0 0.0
        %4564 = vmatpush2.xpose.msra.mxu0 0.0
        %4565 = vmatprep.subr.mxu0 0.0
        %4566 = vmatpush2.xpose.msra.mxu0 0.0
        %4567 = vmatprep.subr.mxu0 0.0
        %4568 = vmatpush2.xpose.msra.mxu0 0.0
        %4569 = vmatprep.subr.mxu0 0.0
        %4570 = vmatpush2.xpose.msra.mxu0 0.0
        %4571 = vmatprep.subr.mxu0 0.0
        %4572 = vmatpush2.xpose.msra.mxu0 0.0
        %4573 = vmatprep.subr.mxu0 0.0
        %4574 = vmatpush2.xpose.msra.mxu0 0.0
        %4575 = vmatprep.subr.mxu0 0.0
        %4576 = vmatpush2.xpose.msra.mxu0 0.0
        %4577 = vmatprep.subr.mxu0 0.0
        %4578 = vmatpush2.xpose.msra.mxu0 0.0
        %4579 = vmatprep.subr.mxu0 0.0
        %4580 = vmatpush2.xpose.msra.mxu0 0.0
        %4581 = vmatprep.mubr.f32.mxu0 0.0
        %4582 = vmatmul.mubr.f32.gmra.mxu0 %v4513
        %v4583 = vpop.f32.mrf.mxu0
        %v4584 = vadd.f32 0.0, %v4583
        %v4585 = vpop.f32.mrf.mxu0
        %4586 = vdwg.mxu0
        %v4587 = vsel %vm1977, %v4584, -inf
        %4588 = vmax.xlane.f32.xlu0 %v4587
        %v4589 = vpop.xlane.xlu0 %4588
        %v4590 = vsub.f32 %v4584, %v4589
        %v4591 = vmul.f32 %v4590, 1.442695
        %v4592 = vpow.pop %v4591
        %v4593 = vsel %vm1977, %v4592, 0.0
        %4594 = vadd.xlane.f32.xlu0 %v4593
        %v4595 = vpop.xlane.xlu0 %4594
        %v4596 = vrcp.pop %v4595
        %v4597 = vmul.f32 %v4592, %v4596
        %4598 = vrot.lane.b32.xlu0 %v4335, 88
        %v4599 = vpop.permute.xlu0 %4598
        %v4601 = vsel %vm1977, %v4597, 0
        %v4603 = vsel %vm1994, %v4599, 0
        %4605 = vmatprep.subr.mxu0 0.0
        %4606 = vmatpush1.msra.mxu0 0.0
        %4607 = vmatprep.subr.mxu0 0.0
        %4608 = vmatpush1.msra.mxu0 0.0
        %4609 = vmatprep.subr.mxu0 0.0
        %4610 = vmatpush1.msra.mxu0 0.0
        %4611 = vmatprep.subr.mxu0 0.0
        %4612 = vmatpush1.msra.mxu0 0.0
        %4613 = vmatprep.subr.mxu0 0.0
        %4614 = vmatpush1.msra.mxu0 0.0
        %4615 = vmatprep.subr.mxu0 0.0
        %4616 = vmatpush1.msra.mxu0 0.0
        %4617 = vmatprep.subr.mxu0 0.0
        %4618 = vmatpush1.msra.mxu0 0.0
        %4619 = vmatprep.subr.mxu0 0.0
        %4620 = vmatpush1.msra.mxu0 0.0
        %4621 = vmatprep.subr.mxu0 0.0
        %4622 = vmatpush1.msra.mxu0 0.0
        %4623 = vmatprep.subr.mxu0 0.0
        %4624 = vmatpush1.msra.mxu0 0.0
        %4625 = vmatprep.subr.mxu0 0.0
        %4626 = vmatpush1.msra.mxu0 0.0
        %4627 = vmatprep.subr.mxu0 0.0
        %4628 = vmatpush1.msra.mxu0 0.0
        %4629 = vmatprep.subr.mxu0 0.0
        %4630 = vmatpush1.msra.mxu0 0.0
        %4631 = vmatprep.subr.mxu0 0.0
        %4632 = vmatpush1.msra.mxu0 0.0
        %4633 = vmatprep.subr.mxu0 0.0
        %4634 = vmatpush1.msra.mxu0 0.0
        %4635 = vmatprep.subr.mxu0 0.0
        %4636 = vmatpush1.msra.mxu0 %v4603
        %4637 = vmatprep.subr.mxu0 0.0
        %4638 = vmatpush2.msra.mxu0 0.0
        %4639 = vmatprep.subr.mxu0 0.0
        %4640 = vmatpush2.msra.mxu0 0.0
        %4641 = vmatprep.subr.mxu0 0.0
        %4642 = vmatpush2.msra.mxu0 0.0
        %4643 = vmatprep.subr.mxu0 0.0
        %4644 = vmatpush2.msra.mxu0 0.0
        %4645 = vmatprep.subr.mxu0 0.0
        %4646 = vmatpush2.msra.mxu0 0.0
        %4647 = vmatprep.subr.mxu0 0.0
        %4648 = vmatpush2.msra.mxu0 0.0
        %4649 = vmatprep.subr.mxu0 0.0
        %4650 = vmatpush2.msra.mxu0 0.0
        %4651 = vmatprep.subr.mxu0 0.0
        %4652 = vmatpush2.msra.mxu0 0.0
        %4653 = vmatprep.subr.mxu0 0.0
        %4654 = vmatpush2.msra.mxu0 0.0
        %4655 = vmatprep.subr.mxu0 0.0
        %4656 = vmatpush2.msra.mxu0 0.0
        %4657 = vmatprep.subr.mxu0 0.0
        %4658 = vmatpush2.msra.mxu0 0.0
        %4659 = vmatprep.subr.mxu0 0.0
        %4660 = vmatpush2.msra.mxu0 0.0
        %4661 = vmatprep.subr.mxu0 0.0
        %4662 = vmatpush2.msra.mxu0 0.0
        %4663 = vmatprep.subr.mxu0 0.0
        %4664 = vmatpush2.msra.mxu0 0.0
        %4665 = vmatprep.subr.mxu0 0.0
        %4666 = vmatpush2.msra.mxu0 0.0
        %4667 = vmatprep.subr.mxu0 0.0
        %4668 = vmatpush2.msra.mxu0 0.0
        %4669 = vmatprep.mubr.f32.mxu0 0.0
        %4670 = vmatmul.mubr.f32.gmra.mxu0 %v4601
        %v4671 = vpop.f32.mrf.mxu0
        %v4672 = vadd.f32 0.0, %v4671
        %v4673 = vpop.f32.mrf.mxu0
        %4674 = vdwg.mxu0
        %v4676 = vsel %vm745, %v4672, 0
        %4678 = vmatprep.subr.mxu0 0.0
        %4679 = vmatpush1.msra.mxu0 0.0
        %4680 = vmatprep.subr.mxu0 0.0
        %4681 = vmatpush1.msra.mxu0 0.0
        %4682 = vmatprep.subr.mxu0 0.0
        %4683 = vmatpush1.msra.mxu0 0.0
        %4684 = vmatprep.subr.mxu0 0.0
        %4685 = vmatpush1.msra.mxu0 0.0
        %4686 = vmatprep.subr.mxu0 0.0
        %4687 = vmatpush1.msra.mxu0 0.0
        %4688 = vmatprep.subr.mxu0 0.0
        %4689 = vmatpush1.msra.mxu0 0.0
        %4690 = vmatprep.subr.mxu0 0.0
        %4691 = vmatpush1.msra.mxu0 0.0
        %4692 = vmatprep.subr.mxu0 0.0
        %4693 = vmatpush1.msra.mxu0 0.0
        %4694 = vmatprep.subr.mxu0 0.0
        %4695 = vmatpush1.msra.mxu0 0.0
        %4696 = vmatprep.subr.mxu0 0.0
        %4697 = vmatpush1.msra.mxu0 0.0
        %4698 = vmatprep.subr.mxu0 0.0
        %4699 = vmatpush1.msra.mxu0 0.0
        %4700 = vmatprep.subr.mxu0 0.0
        %4701 = vmatpush1.msra.mxu0 0.0
        %4702 = vmatprep.subr.mxu0 0.0
        %4703 = vmatpush1.msra.mxu0 0.0
        %4704 = vmatprep.subr.mxu0 0.0
        %4705 = vmatpush1.msra.mxu0 0.0
        %4706 = vmatprep.subr.mxu0 0.0
        %4707 = vmatpush1.msra.mxu0 0.0
        %4708 = vmatprep.subr.mxu0 0.0
        %4709 = vmatpush1.msra.mxu0 %v4340
        %4710 = vmatprep.subr.mxu0 0.0
        %4711 = vmatpush2.msra.mxu0 0.0
        %4712 = vmatprep.subr.mxu0 0.0
        %4713 = vmatpush2.msra.mxu0 0.0
        %4714 = vmatprep.subr.mxu0 0.0
        %4715 = vmatpush2.msra.mxu0 0.0
        %4716 = vmatprep.subr.mxu0 0.0
        %4717 = vmatpush2.msra.mxu0 0.0
        %4718 = vmatprep.subr.mxu0 0.0
        %4719 = vmatpush2.msra.mxu0 0.0
        %4720 = vmatprep.subr.mxu0 0.0
        %4721 = vmatpush2.msra.mxu0 0.0
        %4722 = vmatprep.subr.mxu0 0.0
        %4723 = vmatpush2.msra.mxu0 0.0
        %4724 = vmatprep.subr.mxu0 0.0
        %4725 = vmatpush2.msra.mxu0 0.0
        %4726 = vmatprep.subr.mxu0 0.0
        %4727 = vmatpush2.msra.mxu0 0.0
        %4728 = vmatprep.subr.mxu0 0.0
        %4729 = vmatpush2.msra.mxu0 0.0
        %4730 = vmatprep.subr.mxu0 0.0
        %4731 = vmatpush2.msra.mxu0 0.0
        %4732 = vmatprep.subr.mxu0 0.0
        %4733 = vmatpush2.msra.mxu0 0.0
        %4734 = vmatprep.subr.mxu0 0.0
        %4735 = vmatpush2.msra.mxu0 0.0
        %4736 = vmatprep.subr.mxu0 0.0
        %4737 = vmatpush2.msra.mxu0 0.0
        %4738 = vmatprep.subr.mxu0 0.0
        %4739 = vmatpush2.msra.mxu0 0.0
        %4740 = vmatprep.subr.mxu0 0.0
        %4741 = vmatpush2.msra.mxu0 0.0
        %4742 = vmatprep.mubr.f32.mxu0 0.0
        %4743 = vmatmul.mubr.f32.gmra.mxu0 %v4676
        %v4744 = vpop.f32.mrf.mxu0
        %v4745 = vadd.f32 0.0, %v4744
        %v4746 = vpop.f32.mrf.mxu0
        %4747 = vdwg.mxu0
        %v4749 = vsel %vm745, %v4506, 0
        %4751 = vmatprep.subr.mxu0 0.0
        %4752 = vmatpush1.msra.mxu0 0.0
        %4753 = vmatprep.subr.mxu0 0.0
        %4754 = vmatpush1.msra.mxu0 0.0
        %4755 = vmatprep.subr.mxu0 0.0
        %4756 = vmatpush1.msra.mxu0 0.0
        %4757 = vmatprep.subr.mxu0 0.0
        %4758 = vmatpush1.msra.mxu0 0.0
        %4759 = vmatprep.subr.mxu0 0.0
        %4760 = vmatpush1.msra.mxu0 0.0
        %4761 = vmatprep.subr.mxu0 0.0
        %4762 = vmatpush1.msra.mxu0 0.0
        %4763 = vmatprep.subr.mxu0 0.0
        %4764 = vmatpush1.msra.mxu0 0.0
        %4765 = vmatprep.subr.mxu0 0.0
        %4766 = vmatpush1.msra.mxu0 0.0
        %4767 = vmatprep.subr.mxu0 0.0
        %4768 = vmatpush1.msra.mxu0 0.0
        %4769 = vmatprep.subr.mxu0 0.0
        %4770 = vmatpush1.msra.mxu0 0.0
        %4771 = vmatprep.subr.mxu0 0.0
        %4772 = vmatpush1.msra.mxu0 0.0
        %4773 = vmatprep.subr.mxu0 0.0
        %4774 = vmatpush1.msra.mxu0 0.0
        %4775 = vmatprep.subr.mxu0 0.0
        %4776 = vmatpush1.msra.mxu0 0.0
        %4777 = vmatprep.subr.mxu0 0.0
        %4778 = vmatpush1.msra.mxu0 0.0
        %4779 = vmatprep.subr.mxu0 0.0
        %4780 = vmatpush1.msra.mxu0 0.0
        %4781 = vmatprep.subr.mxu0 0.0
        %4782 = vmatpush1.msra.mxu0 %v4339
        %4783 = vmatprep.subr.mxu0 0.0
        %4784 = vmatpush2.msra.mxu0 0.0
        %4785 = vmatprep.subr.mxu0 0.0
        %4786 = vmatpush2.msra.mxu0 0.0
        %4787 = vmatprep.subr.mxu0 0.0
        %4788 = vmatpush2.msra.mxu0 0.0
        %4789 = vmatprep.subr.mxu0 0.0
        %4790 = vmatpush2.msra.mxu0 0.0
        %4791 = vmatprep.subr.mxu0 0.0
        %4792 = vmatpush2.msra.mxu0 0.0
        %4793 = vmatprep.subr.mxu0 0.0
        %4794 = vmatpush2.msra.mxu0 0.0
        %4795 = vmatprep.subr.mxu0 0.0
        %4796 = vmatpush2.msra.mxu0 0.0
        %4797 = vmatprep.subr.mxu0 0.0
        %4798 = vmatpush2.msra.mxu0 0.0
        %4799 = vmatprep.subr.mxu0 0.0
        %4800 = vmatpush2.msra.mxu0 0.0
        %4801 = vmatprep.subr.mxu0 0.0
        %4802 = vmatpush2.msra.mxu0 0.0
        %4803 = vmatprep.subr.mxu0 0.0
        %4804 = vmatpush2.msra.mxu0 0.0
        %4805 = vmatprep.subr.mxu0 0.0
        %4806 = vmatpush2.msra.mxu0 0.0
        %4807 = vmatprep.subr.mxu0 0.0
        %4808 = vmatpush2.msra.mxu0 0.0
        %4809 = vmatprep.subr.mxu0 0.0
        %4810 = vmatpush2.msra.mxu0 0.0
        %4811 = vmatprep.subr.mxu0 0.0
        %4812 = vmatpush2.msra.mxu0 0.0
        %4813 = vmatprep.subr.mxu0 0.0
        %4814 = vmatpush2.msra.mxu0 0.0
        %4815 = vmatprep.mubr.f32.mxu0 0.0
        %4816 = vmatmul.mubr.f32.gmra.mxu0 %v4749
        %v4817 = vpop.f32.mrf.mxu0
        %v4818 = vadd.f32 %v4745, %v4817
        %v4819 = vpop.f32.mrf.mxu0
        %4820 = vdwg.mxu0
        %4821 = vrot.lane.b32.xlu0 %v4252, 112
        %v4822 = vpop.permute.xlu0 %4821
        %4823 = vrot.lane.b32.xlu0 %v4335, 112
        %v4824 = vpop.permute.xlu0 %4823
        %v4825 = vsel %vm745, %v4822, 0
        %v4827 = vsel %vm745, %v4824, 0
        %4829 = vmatprep.subr.mxu0 0.0
        %4830 = vmatpush1.xpose.msra.mxu0 0.0
        %4831 = vmatprep.subr.mxu0 0.0
        %4832 = vmatpush1.xpose.msra.mxu0 0.0
        %4833 = vmatprep.subr.mxu0 0.0
        %4834 = vmatpush1.xpose.msra.mxu0 0.0
        %4835 = vmatprep.subr.mxu0 0.0
        %4836 = vmatpush1.xpose.msra.mxu0 0.0
        %4837 = vmatprep.subr.mxu0 0.0
        %4838 = vmatpush1.xpose.msra.mxu0 0.0
        %4839 = vmatprep.subr.mxu0 0.0
        %4840 = vmatpush1.xpose.msra.mxu0 0.0
        %4841 = vmatprep.subr.mxu0 0.0
        %4842 = vmatpush1.xpose.msra.mxu0 0.0
        %4843 = vmatprep.subr.mxu0 0.0
        %4844 = vmatpush1.xpose.msra.mxu0 0.0
        %4845 = vmatprep.subr.mxu0 0.0
        %4846 = vmatpush1.xpose.msra.mxu0 0.0
        %4847 = vmatprep.subr.mxu0 0.0
        %4848 = vmatpush1.xpose.msra.mxu0 0.0
        %4849 = vmatprep.subr.mxu0 0.0
        %4850 = vmatpush1.xpose.msra.mxu0 0.0
        %4851 = vmatprep.subr.mxu0 0.0
        %4852 = vmatpush1.xpose.msra.mxu0 0.0
        %4853 = vmatprep.subr.mxu0 0.0
        %4854 = vmatpush1.xpose.msra.mxu0 0.0
        %4855 = vmatprep.subr.mxu0 0.0
        %4856 = vmatpush1.xpose.msra.mxu0 0.0
        %4857 = vmatprep.subr.mxu0 0.0
        %4858 = vmatpush1.xpose.msra.mxu0 0.0
        %4859 = vmatprep.subr.mxu0 0.0
        %4860 = vmatpush1.xpose.msra.mxu0 %v4827
        %4861 = vmatprep.subr.mxu0 0.0
        %4862 = vmatpush2.xpose.msra.mxu0 0.0
        %4863 = vmatprep.subr.mxu0 0.0
        %4864 = vmatpush2.xpose.msra.mxu0 0.0
        %4865 = vmatprep.subr.mxu0 0.0
        %4866 = vmatpush2.xpose.msra.mxu0 0.0
        %4867 = vmatprep.subr.mxu0 0.0
        %4868 = vmatpush2.xpose.msra.mxu0 0.0
        %4869 = vmatprep.subr.mxu0 0.0
        %4870 = vmatpush2.xpose.msra.mxu0 0.0
        %4871 = vmatprep.subr.mxu0 0.0
        %4872 = vmatpush2.xpose.msra.mxu0 0.0
        %4873 = vmatprep.subr.mxu0 0.0
        %4874 = vmatpush2.xpose.msra.mxu0 0.0
        %4875 = vmatprep.subr.mxu0 0.0
        %4876 = vmatpush2.xpose.msra.mxu0 0.0
        %4877 = vmatprep.subr.mxu0 0.0
        %4878 = vmatpush2.xpose.msra.mxu0 0.0
        %4879 = vmatprep.subr.mxu0 0.0
        %4880 = vmatpush2.xpose.msra.mxu0 0.0
        %4881 = vmatprep.subr.mxu0 0.0
        %4882 = vmatpush2.xpose.msra.mxu0 0.0
        %4883 = vmatprep.subr.mxu0 0.0
        %4884 = vmatpush2.xpose.msra.mxu0 0.0
        %4885 = vmatprep.subr.mxu0 0.0
        %4886 = vmatpush2.xpose.msra.mxu0 0.0
        %4887 = vmatprep.subr.mxu0 0.0
        %4888 = vmatpush2.xpose.msra.mxu0 0.0
        %4889 = vmatprep.subr.mxu0 0.0
        %4890 = vmatpush2.xpose.msra.mxu0 0.0
        %4891 = vmatprep.subr.mxu0 0.0
        %4892 = vmatpush2.xpose.msra.mxu0 0.0
        %4893 = vmatprep.mubr.f32.mxu0 0.0
        %4894 = vmatmul.mubr.f32.gmra.mxu0 %v4825
        %v4895 = vpop.f32.mrf.mxu0
        %v4896 = vadd.f32 0.0, %v4895
        %v4897 = vpop.f32.mrf.mxu0
        %4898 = vdwg.mxu0
        %v4899 = vsel %vm1977, %v4896, -inf
        %4900 = vmax.xlane.f32.xlu0 %v4899
        %v4901 = vpop.xlane.xlu0 %4900
        %v4902 = vsub.f32 %v4896, %v4901
        %v4903 = vmul.f32 %v4902, 1.442695
        %v4904 = vpow.pop %v4903
        %v4905 = vsel %vm1977, %v4904, 0.0
        %4906 = vadd.xlane.f32.xlu0 %v4905
        %v4907 = vpop.xlane.xlu0 %4906
        %v4908 = vrcp.pop %v4907
        %v4909 = vmul.f32 %v4904, %v4908
        %4910 = vrot.lane.b32.xlu0 %v4335, 80
        %v4911 = vpop.permute.xlu0 %4910
        %v4913 = vsel %vm1977, %v4909, 0
        %v4915 = vsel %vm1994, %v4911, 0
        %4917 = vmatprep.subr.mxu0 0.0
        %4918 = vmatpush1.msra.mxu0 0.0
        %4919 = vmatprep.subr.mxu0 0.0
        %4920 = vmatpush1.msra.mxu0 0.0
        %4921 = vmatprep.subr.mxu0 0.0
        %4922 = vmatpush1.msra.mxu0 0.0
        %4923 = vmatprep.subr.mxu0 0.0
        %4924 = vmatpush1.msra.mxu0 0.0
        %4925 = vmatprep.subr.mxu0 0.0
        %4926 = vmatpush1.msra.mxu0 0.0
        %4927 = vmatprep.subr.mxu0 0.0
        %4928 = vmatpush1.msra.mxu0 0.0
        %4929 = vmatprep.subr.mxu0 0.0
        %4930 = vmatpush1.msra.mxu0 0.0
        %4931 = vmatprep.subr.mxu0 0.0
        %4932 = vmatpush1.msra.mxu0 0.0
        %4933 = vmatprep.subr.mxu0 0.0
        %4934 = vmatpush1.msra.mxu0 0.0
        %4935 = vmatprep.subr.mxu0 0.0
        %4936 = vmatpush1.msra.mxu0 0.0
        %4937 = vmatprep.subr.mxu0 0.0
        %4938 = vmatpush1.msra.mxu0 0.0
        %4939 = vmatprep.subr.mxu0 0.0
        %4940 = vmatpush1.msra.mxu0 0.0
        %4941 = vmatprep.subr.mxu0 0.0
        %4942 = vmatpush1.msra.mxu0 0.0
        %4943 = vmatprep.subr.mxu0 0.0
        %4944 = vmatpush1.msra.mxu0 0.0
        %4945 = vmatprep.subr.mxu0 0.0
        %4946 = vmatpush1.msra.mxu0 0.0
        %4947 = vmatprep.subr.mxu0 0.0
        %4948 = vmatpush1.msra.mxu0 %v4915
        %4949 = vmatprep.subr.mxu0 0.0
        %4950 = vmatpush2.msra.mxu0 0.0
        %4951 = vmatprep.subr.mxu0 0.0
        %4952 = vmatpush2.msra.mxu0 0.0
        %4953 = vmatprep.subr.mxu0 0.0
        %4954 = vmatpush2.msra.mxu0 0.0
        %4955 = vmatprep.subr.mxu0 0.0
        %4956 = vmatpush2.msra.mxu0 0.0
        %4957 = vmatprep.subr.mxu0 0.0
        %4958 = vmatpush2.msra.mxu0 0.0
        %4959 = vmatprep.subr.mxu0 0.0
        %4960 = vmatpush2.msra.mxu0 0.0
        %4961 = vmatprep.subr.mxu0 0.0
        %4962 = vmatpush2.msra.mxu0 0.0
        %4963 = vmatprep.subr.mxu0 0.0
        %4964 = vmatpush2.msra.mxu0 0.0
        %4965 = vmatprep.subr.mxu0 0.0
        %4966 = vmatpush2.msra.mxu0 0.0
        %4967 = vmatprep.subr.mxu0 0.0
        %4968 = vmatpush2.msra.mxu0 0.0
        %4969 = vmatprep.subr.mxu0 0.0
        %4970 = vmatpush2.msra.mxu0 0.0
        %4971 = vmatprep.subr.mxu0 0.0
        %4972 = vmatpush2.msra.mxu0 0.0
        %4973 = vmatprep.subr.mxu0 0.0
        %4974 = vmatpush2.msra.mxu0 0.0
        %4975 = vmatprep.subr.mxu0 0.0
        %4976 = vmatpush2.msra.mxu0 0.0
        %4977 = vmatprep.subr.mxu0 0.0
        %4978 = vmatpush2.msra.mxu0 0.0
        %4979 = vmatprep.subr.mxu0 0.0
        %4980 = vmatpush2.msra.mxu0 0.0
        %4981 = vmatprep.mubr.f32.mxu0 0.0
        %4982 = vmatmul.mubr.f32.gmra.mxu0 %v4913
        %v4983 = vpop.f32.mrf.mxu0
        %v4984 = vadd.f32 0.0, %v4983
        %v4985 = vpop.f32.mrf.mxu0
        %4986 = vdwg.mxu0
        %v4988 = vsel %vm745, %v4984, 0
        %4990 = vmatprep.subr.mxu0 0.0
        %4991 = vmatpush1.msra.mxu0 0.0
        %4992 = vmatprep.subr.mxu0 0.0
        %4993 = vmatpush1.msra.mxu0 0.0
        %4994 = vmatprep.subr.mxu0 0.0
        %4995 = vmatpush1.msra.mxu0 0.0
        %4996 = vmatprep.subr.mxu0 0.0
        %4997 = vmatpush1.msra.mxu0 0.0
        %4998 = vmatprep.subr.mxu0 0.0
        %4999 = vmatpush1.msra.mxu0 0.0
        %5000 = vmatprep.subr.mxu0 0.0
        %5001 = vmatpush1.msra.mxu0 0.0
        %5002 = vmatprep.subr.mxu0 0.0
        %5003 = vmatpush1.msra.mxu0 0.0
        %5004 = vmatprep.subr.mxu0 0.0
        %5005 = vmatpush1.msra.mxu0 0.0
        %5006 = vmatprep.subr.mxu0 0.0
        %5007 = vmatpush1.msra.mxu0 0.0
        %5008 = vmatprep.subr.mxu0 0.0
        %5009 = vmatpush1.msra.mxu0 0.0
        %5010 = vmatprep.subr.mxu0 0.0
        %5011 = vmatpush1.msra.mxu0 0.0
        %5012 = vmatprep.subr.mxu0 0.0
        %5013 = vmatpush1.msra.mxu0 0.0
        %5014 = vmatprep.subr.mxu0 0.0
        %5015 = vmatpush1.msra.mxu0 0.0
        %5016 = vmatprep.subr.mxu0 0.0
        %5017 = vmatpush1.msra.mxu0 0.0
        %5018 = vmatprep.subr.mxu0 0.0
        %5019 = vmatpush1.msra.mxu0 0.0
        %5020 = vmatprep.subr.mxu0 0.0
        %5021 = vmatpush1.msra.mxu0 %v4341
        %5022 = vmatprep.subr.mxu0 0.0
        %5023 = vmatpush2.msra.mxu0 0.0
        %5024 = vmatprep.subr.mxu0 0.0
        %5025 = vmatpush2.msra.mxu0 0.0
        %5026 = vmatprep.subr.mxu0 0.0
        %5027 = vmatpush2.msra.mxu0 0.0
        %5028 = vmatprep.subr.mxu0 0.0
        %5029 = vmatpush2.msra.mxu0 0.0
        %5030 = vmatprep.subr.mxu0 0.0
        %5031 = vmatpush2.msra.mxu0 0.0
        %5032 = vmatprep.subr.mxu0 0.0
        %5033 = vmatpush2.msra.mxu0 0.0
        %5034 = vmatprep.subr.mxu0 0.0
        %5035 = vmatpush2.msra.mxu0 0.0
        %5036 = vmatprep.subr.mxu0 0.0
        %5037 = vmatpush2.msra.mxu0 0.0
        %5038 = vmatprep.subr.mxu0 0.0
        %5039 = vmatpush2.msra.mxu0 0.0
        %5040 = vmatprep.subr.mxu0 0.0
        %5041 = vmatpush2.msra.mxu0 0.0
        %5042 = vmatprep.subr.mxu0 0.0
        %5043 = vmatpush2.msra.mxu0 0.0
        %5044 = vmatprep.subr.mxu0 0.0
        %5045 = vmatpush2.msra.mxu0 0.0
        %5046 = vmatprep.subr.mxu0 0.0
        %5047 = vmatpush2.msra.mxu0 0.0
        %5048 = vmatprep.subr.mxu0 0.0
        %5049 = vmatpush2.msra.mxu0 0.0
        %5050 = vmatprep.subr.mxu0 0.0
        %5051 = vmatpush2.msra.mxu0 0.0
        %5052 = vmatprep.subr.mxu0 0.0
        %5053 = vmatpush2.msra.mxu0 0.0
        %5054 = vmatprep.mubr.f32.mxu0 0.0
        %5055 = vmatmul.mubr.f32.gmra.mxu0 %v4988
        %v5056 = vpop.f32.mrf.mxu0
        %v5057 = vadd.f32 0.0, %v5056
        %v5058 = vpop.f32.mrf.mxu0
        %5059 = vdwg.mxu0
        %v5060 = vadd.f32 %v4818, %v5057
        %5061 = vrot.lane.b32.xlu0 %v4252, 104
        %v5062 = vpop.permute.xlu0 %5061
        %5063 = vrot.lane.b32.xlu0 %v4335, 104
        %v5064 = vpop.permute.xlu0 %5063
        %v5065 = vsel %vm745, %v5062, 0
        %v5067 = vsel %vm745, %v5064, 0
        %5069 = vmatprep.subr.mxu0 0.0
        %5070 = vmatpush1.xpose.msra.mxu0 0.0
        %5071 = vmatprep.subr.mxu0 0.0
        %5072 = vmatpush1.xpose.msra.mxu0 0.0
        %5073 = vmatprep.subr.mxu0 0.0
        %5074 = vmatpush1.xpose.msra.mxu0 0.0
        %5075 = vmatprep.subr.mxu0 0.0
        %5076 = vmatpush1.xpose.msra.mxu0 0.0
        %5077 = vmatprep.subr.mxu0 0.0
        %5078 = vmatpush1.xpose.msra.mxu0 0.0
        %5079 = vmatprep.subr.mxu0 0.0
        %5080 = vmatpush1.xpose.msra.mxu0 0.0
        %5081 = vmatprep.subr.mxu0 0.0
        %5082 = vmatpush1.xpose.msra.mxu0 0.0
        %5083 = vmatprep.subr.mxu0 0.0
        %5084 = vmatpush1.xpose.msra.mxu0 0.0
        %5085 = vmatprep.subr.mxu0 0.0
        %5086 = vmatpush1.xpose.msra.mxu0 0.0
        %5087 = vmatprep.subr.mxu0 0.0
        %5088 = vmatpush1.xpose.msra.mxu0 0.0
        %5089 = vmatprep.subr.mxu0 0.0
        %5090 = vmatpush1.xpose.msra.mxu0 0.0
        %5091 = vmatprep.subr.mxu0 0.0
        %5092 = vmatpush1.xpose.msra.mxu0 0.0
        %5093 = vmatprep.subr.mxu0 0.0
        %5094 = vmatpush1.xpose.msra.mxu0 0.0
        %5095 = vmatprep.subr.mxu0 0.0
        %5096 = vmatpush1.xpose.msra.mxu0 0.0
        %5097 = vmatprep.subr.mxu0 0.0
        %5098 = vmatpush1.xpose.msra.mxu0 0.0
        %5099 = vmatprep.subr.mxu0 0.0
        %5100 = vmatpush1.xpose.msra.mxu0 %v5067
        %5101 = vmatprep.subr.mxu0 0.0
        %5102 = vmatpush2.xpose.msra.mxu0 0.0
        %5103 = vmatprep.subr.mxu0 0.0
        %5104 = vmatpush2.xpose.msra.mxu0 0.0
        %5105 = vmatprep.subr.mxu0 0.0
        %5106 = vmatpush2.xpose.msra.mxu0 0.0
        %5107 = vmatprep.subr.mxu0 0.0
        %5108 = vmatpush2.xpose.msra.mxu0 0.0
        %5109 = vmatprep.subr.mxu0 0.0
        %5110 = vmatpush2.xpose.msra.mxu0 0.0
        %5111 = vmatprep.subr.mxu0 0.0
        %5112 = vmatpush2.xpose.msra.mxu0 0.0
        %5113 = vmatprep.subr.mxu0 0.0
        %5114 = vmatpush2.xpose.msra.mxu0 0.0
        %5115 = vmatprep.subr.mxu0 0.0
        %5116 = vmatpush2.xpose.msra.mxu0 0.0
        %5117 = vmatprep.subr.mxu0 0.0
        %5118 = vmatpush2.xpose.msra.mxu0 0.0
        %5119 = vmatprep.subr.mxu0 0.0
        %5120 = vmatpush2.xpose.msra.mxu0 0.0
        %5121 = vmatprep.subr.mxu0 0.0
        %5122 = vmatpush2.xpose.msra.mxu0 0.0
        %5123 = vmatprep.subr.mxu0 0.0
        %5124 = vmatpush2.xpose.msra.mxu0 0.0
        %5125 = vmatprep.subr.mxu0 0.0
        %5126 = vmatpush2.xpose.msra.mxu0 0.0
        %5127 = vmatprep.subr.mxu0 0.0
        %5128 = vmatpush2.xpose.msra.mxu0 0.0
        %5129 = vmatprep.subr.mxu0 0.0
        %5130 = vmatpush2.xpose.msra.mxu0 0.0
        %5131 = vmatprep.subr.mxu0 0.0
        %5132 = vmatpush2.xpose.msra.mxu0 0.0
        %5133 = vmatprep.mubr.f32.mxu0 0.0
        %5134 = vmatmul.mubr.f32.gmra.mxu0 %v5065
        %v5135 = vpop.f32.mrf.mxu0
        %v5136 = vadd.f32 0.0, %v5135
        %v5137 = vpop.f32.mrf.mxu0
        %5138 = vdwg.mxu0
        %v5139 = vsel %vm1977, %v5136, -inf
        %5140 = vmax.xlane.f32.xlu0 %v5139
        %v5141 = vpop.xlane.xlu0 %5140
        %v5142 = vsub.f32 %v5136, %v5141
        %v5143 = vmul.f32 %v5142, 1.442695
        %v5144 = vpow.pop %v5143
        %v5145 = vsel %vm1977, %v5144, 0.0
        %5146 = vadd.xlane.f32.xlu0 %v5145
        %v5147 = vpop.xlane.xlu0 %5146
        %v5148 = vrcp.pop %v5147
        %v5149 = vmul.f32 %v5144, %v5148
        %5150 = vrot.lane.b32.xlu0 %v4335, 72
        %v5151 = vpop.permute.xlu0 %5150
        %v5153 = vsel %vm1977, %v5149, 0
        %v5155 = vsel %vm1994, %v5151, 0
        %5157 = vmatprep.subr.mxu0 0.0
        %5158 = vmatpush1.msra.mxu0 0.0
        %5159 = vmatprep.subr.mxu0 0.0
        %5160 = vmatpush1.msra.mxu0 0.0
        %5161 = vmatprep.subr.mxu0 0.0
        %5162 = vmatpush1.msra.mxu0 0.0
        %5163 = vmatprep.subr.mxu0 0.0
        %5164 = vmatpush1.msra.mxu0 0.0
        %5165 = vmatprep.subr.mxu0 0.0
        %5166 = vmatpush1.msra.mxu0 0.0
        %5167 = vmatprep.subr.mxu0 0.0
        %5168 = vmatpush1.msra.mxu0 0.0
        %5169 = vmatprep.subr.mxu0 0.0
        %5170 = vmatpush1.msra.mxu0 0.0
        %5171 = vmatprep.subr.mxu0 0.0
        %5172 = vmatpush1.msra.mxu0 0.0
        %5173 = vmatprep.subr.mxu0 0.0
        %5174 = vmatpush1.msra.mxu0 0.0
        %5175 = vmatprep.subr.mxu0 0.0
        %5176 = vmatpush1.msra.mxu0 0.0
        %5177 = vmatprep.subr.mxu0 0.0
        %5178 = vmatpush1.msra.mxu0 0.0
        %5179 = vmatprep.subr.mxu0 0.0
        %5180 = vmatpush1.msra.mxu0 0.0
        %5181 = vmatprep.subr.mxu0 0.0
        %5182 = vmatpush1.msra.mxu0 0.0
        %5183 = vmatprep.subr.mxu0 0.0
        %5184 = vmatpush1.msra.mxu0 0.0
        %5185 = vmatprep.subr.mxu0 0.0
        %5186 = vmatpush1.msra.mxu0 0.0
        %5187 = vmatprep.subr.mxu0 0.0
        %5188 = vmatpush1.msra.mxu0 %v5155
        %5189 = vmatprep.subr.mxu0 0.0
        %5190 = vmatpush2.msra.mxu0 0.0
        %5191 = vmatprep.subr.mxu0 0.0
        %5192 = vmatpush2.msra.mxu0 0.0
        %5193 = vmatprep.subr.mxu0 0.0
        %5194 = vmatpush2.msra.mxu0 0.0
        %5195 = vmatprep.subr.mxu0 0.0
        %5196 = vmatpush2.msra.mxu0 0.0
        %5197 = vmatprep.subr.mxu0 0.0
        %5198 = vmatpush2.msra.mxu0 0.0
        %5199 = vmatprep.subr.mxu0 0.0
        %5200 = vmatpush2.msra.mxu0 0.0
        %5201 = vmatprep.subr.mxu0 0.0
        %5202 = vmatpush2.msra.mxu0 0.0
        %5203 = vmatprep.subr.mxu0 0.0
        %5204 = vmatpush2.msra.mxu0 0.0
        %5205 = vmatprep.subr.mxu0 0.0
        %5206 = vmatpush2.msra.mxu0 0.0
        %5207 = vmatprep.subr.mxu0 0.0
        %5208 = vmatpush2.msra.mxu0 0.0
        %5209 = vmatprep.subr.mxu0 0.0
        %5210 = vmatpush2.msra.mxu0 0.0
        %5211 = vmatprep.subr.mxu0 0.0
        %5212 = vmatpush2.msra.mxu0 0.0
        %5213 = vmatprep.subr.mxu0 0.0
        %5214 = vmatpush2.msra.mxu0 0.0
        %5215 = vmatprep.subr.mxu0 0.0
        %5216 = vmatpush2.msra.mxu0 0.0
        %5217 = vmatprep.subr.mxu0 0.0
        %5218 = vmatpush2.msra.mxu0 0.0
        %5219 = vmatprep.subr.mxu0 0.0
        %5220 = vmatpush2.msra.mxu0 0.0
        %5221 = vmatprep.mubr.f32.mxu0 0.0
        %5222 = vmatmul.mubr.f32.gmra.mxu0 %v5153
        %v5223 = vpop.f32.mrf.mxu0
        %v5224 = vadd.f32 0.0, %v5223
        %v5225 = vpop.f32.mrf.mxu0
        %5226 = vdwg.mxu0
        %v5228 = vsel %vm745, %v5224, 0
        %5230 = vmatprep.subr.mxu0 0.0
        %5231 = vmatpush1.msra.mxu0 0.0
        %5232 = vmatprep.subr.mxu0 0.0
        %5233 = vmatpush1.msra.mxu0 0.0
        %5234 = vmatprep.subr.mxu0 0.0
        %5235 = vmatpush1.msra.mxu0 0.0
        %5236 = vmatprep.subr.mxu0 0.0
        %5237 = vmatpush1.msra.mxu0 0.0
        %5238 = vmatprep.subr.mxu0 0.0
        %5239 = vmatpush1.msra.mxu0 0.0
        %5240 = vmatprep.subr.mxu0 0.0
        %5241 = vmatpush1.msra.mxu0 0.0
        %5242 = vmatprep.subr.mxu0 0.0
        %5243 = vmatpush1.msra.mxu0 0.0
        %5244 = vmatprep.subr.mxu0 0.0
        %5245 = vmatpush1.msra.mxu0 0.0
        %5246 = vmatprep.subr.mxu0 0.0
        %5247 = vmatpush1.msra.mxu0 0.0
        %5248 = vmatprep.subr.mxu0 0.0
        %5249 = vmatpush1.msra.mxu0 0.0
        %5250 = vmatprep.subr.mxu0 0.0
        %5251 = vmatpush1.msra.mxu0 0.0
        %5252 = vmatprep.subr.mxu0 0.0
        %5253 = vmatpush1.msra.mxu0 0.0
        %5254 = vmatprep.subr.mxu0 0.0
        %5255 = vmatpush1.msra.mxu0 0.0
        %5256 = vmatprep.subr.mxu0 0.0
        %5257 = vmatpush1.msra.mxu0 0.0
        %5258 = vmatprep.subr.mxu0 0.0
        %5259 = vmatpush1.msra.mxu0 0.0
        %5260 = vmatprep.subr.mxu0 0.0
        %5261 = vmatpush1.msra.mxu0 %v4342
        %5262 = vmatprep.subr.mxu0 0.0
        %5263 = vmatpush2.msra.mxu0 0.0
        %5264 = vmatprep.subr.mxu0 0.0
        %5265 = vmatpush2.msra.mxu0 0.0
        %5266 = vmatprep.subr.mxu0 0.0
        %5267 = vmatpush2.msra.mxu0 0.0
        %5268 = vmatprep.subr.mxu0 0.0
        %5269 = vmatpush2.msra.mxu0 0.0
        %5270 = vmatprep.subr.mxu0 0.0
        %5271 = vmatpush2.msra.mxu0 0.0
        %5272 = vmatprep.subr.mxu0 0.0
        %5273 = vmatpush2.msra.mxu0 0.0
        %5274 = vmatprep.subr.mxu0 0.0
        %5275 = vmatpush2.msra.mxu0 0.0
        %5276 = vmatprep.subr.mxu0 0.0
        %5277 = vmatpush2.msra.mxu0 0.0
        %5278 = vmatprep.subr.mxu0 0.0
        %5279 = vmatpush2.msra.mxu0 0.0
        %5280 = vmatprep.subr.mxu0 0.0
        %5281 = vmatpush2.msra.mxu0 0.0
        %5282 = vmatprep.subr.mxu0 0.0
        %5283 = vmatpush2.msra.mxu0 0.0
        %5284 = vmatprep.subr.mxu0 0.0
        %5285 = vmatpush2.msra.mxu0 0.0
        %5286 = vmatprep.subr.mxu0 0.0
        %5287 = vmatpush2.msra.mxu0 0.0
        %5288 = vmatprep.subr.mxu0 0.0
        %5289 = vmatpush2.msra.mxu0 0.0
        %5290 = vmatprep.subr.mxu0 0.0
        %5291 = vmatpush2.msra.mxu0 0.0
        %5292 = vmatprep.subr.mxu0 0.0
        %5293 = vmatpush2.msra.mxu0 0.0
        %5294 = vmatprep.mubr.f32.mxu0 0.0
        %5295 = vmatmul.mubr.f32.gmra.mxu0 %v5228
        %v5296 = vpop.f32.mrf.mxu0
        %v5297 = vadd.f32 0.0, %v5296
        %v5298 = vpop.f32.mrf.mxu0
        %5299 = vdwg.mxu0
        %v5300 = vadd.f32 %v5060, %v5297
        %v5302 = vlaneseq
        %v5303 = vshrl.u32 %v5302, 7
        %v5304 = vsub.s32 0, %v5303
        %v5305 = vrot.slane %v4344, %v5304
        %v5307 = vadd.f32 %v5300, %v5305
        %v5308 = vadd.f32 %v4168, %v5307
        %v5309 = vsel %vm663, %v5308, 0.0
        %5310 = vadd.xlane.f32.xlu0 %v5309
        %v5311 = vpop.xlane.xlu0 %5310
        %v5312 = vmul.f32 %v5311, %v1707
        %v5313 = vsub.f32 %v5308, %v5312
        %v5314 = vmul.f32 %v5313, %v5313
        %v5315 = vsel %vm663, %v5314, 0.0
        %5316 = vadd.xlane.f32.xlu0 %v5315
        %v5317 = vpop.xlane.xlu0 %5316
        %v5318 = vmul.f32 %v5317, %v1707
        %v5319 = vadd.f32 %v5318, 1e-05
        %v5320 = vrsqrt.pop %v5319
        %v5321 = vmul.f32 %v5313, %v5320
        %v5322 = vlaneseq
        %v5323 = vshrl.u32 %v5322, 7
        %v5324 = vsub.s32 1, %v5323
        %v5325 = vrot.slane %v3089, %v5324
        %v5326 = vmul.f32 %v5321, %v5325
        %v5327 = vlaneseq
        %v5328 = vshrl.u32 %v5327, 7
        %v5329 = vsub.s32 1, %v5328
        %v5330 = vrot.slane %v3091, %v5329
        %v5331 = vadd.f32 %v5326, %v5330
        %s5332 = scalar_lea.vmem %s12, 32
        %v5333 = vld [vmem:[%s5332] sm:$0xff]
        %v5334 = vld [vmem:[%s5332 + $0x8] sm:$0xff]
        %v5335 = vld [vmem:[%s5332 + $0x10] sm:$0xff]
        %v5336 = vld [vmem:[%s5332 + $0x18] sm:$0xff]
        %s5337 = scalar_lea.vmem %s13, 1
        %v5338 = vld [vmem:[%s5337] sm:$0x1]
        %v5340 = vlaneseq
        %v5341 = vshrl.u32 %v5340, 7
        %v5342 = vsub.s32 0, %v5341
        %v5343 = vrot.slane %v5338, %v5342
        %v5346 = vsel %vm663, %v5331, 0
        %5348 = vmatprep.subr.mxu0 0.0
        %5349 = vmatpush1.msra.mxu0 0.0
        %5350 = vmatprep.subr.mxu0 0.0
        %5351 = vmatpush1.msra.mxu0 0.0
        %5352 = vmatprep.subr.mxu0 0.0
        %5353 = vmatpush1.msra.mxu0 0.0
        %5354 = vmatprep.subr.mxu0 0.0
        %5355 = vmatpush1.msra.mxu0 0.0
        %5356 = vmatprep.subr.mxu0 0.0
        %5357 = vmatpush1.msra.mxu0 0.0
        %5358 = vmatprep.subr.mxu0 0.0
        %5359 = vmatpush1.msra.mxu0 0.0
        %5360 = vmatprep.subr.mxu0 0.0
        %5361 = vmatpush1.msra.mxu0 0.0
        %5362 = vmatprep.subr.mxu0 0.0
        %5363 = vmatpush1.msra.mxu0 0.0
        %5364 = vmatprep.subr.mxu0 0.0
        %5365 = vmatpush1.msra.mxu0 0.0
        %5366 = vmatprep.subr.mxu0 0.0
        %5367 = vmatpush1.msra.mxu0 0.0
        %5368 = vmatprep.subr.mxu0 0.0
        %5369 = vmatpush1.msra.mxu0 0.0
        %5370 = vmatprep.subr.mxu0 0.0
        %5371 = vmatpush1.msra.mxu0 0.0
        %5372 = vmatprep.subr.mxu0 0.0
        %5373 = vmatpush1.msra.mxu0 %v5336
        %5374 = vmatprep.subr.mxu0 0.0
        %5375 = vmatpush1.msra.mxu0 %v5335
        %5376 = vmatprep.subr.mxu0 0.0
        %5377 = vmatpush1.msra.mxu0 %v5334
        %5378 = vmatprep.subr.mxu0 0.0
        %5379 = vmatpush1.msra.mxu0 %v5333
        %5380 = vmatprep.subr.mxu0 0.0
        %5381 = vmatpush2.msra.mxu0 0.0
        %5382 = vmatprep.subr.mxu0 0.0
        %5383 = vmatpush2.msra.mxu0 0.0
        %5384 = vmatprep.subr.mxu0 0.0
        %5385 = vmatpush2.msra.mxu0 0.0
        %5386 = vmatprep.subr.mxu0 0.0
        %5387 = vmatpush2.msra.mxu0 0.0
        %5388 = vmatprep.subr.mxu0 0.0
        %5389 = vmatpush2.msra.mxu0 0.0
        %5390 = vmatprep.subr.mxu0 0.0
        %5391 = vmatpush2.msra.mxu0 0.0
        %5392 = vmatprep.subr.mxu0 0.0
        %5393 = vmatpush2.msra.mxu0 0.0
        %5394 = vmatprep.subr.mxu0 0.0
        %5395 = vmatpush2.msra.mxu0 0.0
        %5396 = vmatprep.subr.mxu0 0.0
        %5397 = vmatpush2.msra.mxu0 0.0
        %5398 = vmatprep.subr.mxu0 0.0
        %5399 = vmatpush2.msra.mxu0 0.0
        %5400 = vmatprep.subr.mxu0 0.0
        %5401 = vmatpush2.msra.mxu0 0.0
        %5402 = vmatprep.subr.mxu0 0.0
        %5403 = vmatpush2.msra.mxu0 0.0
        %5404 = vmatprep.subr.mxu0 0.0
        %5405 = vmatpush2.msra.mxu0 0.0
        %5406 = vmatprep.subr.mxu0 0.0
        %5407 = vmatpush2.msra.mxu0 0.0
        %5408 = vmatprep.subr.mxu0 0.0
        %5409 = vmatpush2.msra.mxu0 0.0
        %5410 = vmatprep.subr.mxu0 0.0
        %5411 = vmatpush2.msra.mxu0 0.0
        %5412 = vmatprep.mubr.f32.mxu0 0.0
        %5413 = vmatmul.mubr.f32.gmra.mxu0 %v5346
        %v5414 = vpop.f32.mrf.mxu0
        %v5415 = vadd.f32 %v5343, %v5414
        %v5416 = vpop.f32.mrf.mxu0
        %5417 = vdwg.mxu0
        %v5418 = vmax.f32 %v5415, 0.0
        %s5419 = scalar_lea.vmem %s14, 64
        %v5420 = vld [vmem:[%s5419] sm:$0xff]
        %v5421 = vld [vmem:[%s5419 + $0x8] sm:$0xff]
        %v5422 = vld [vmem:[%s5419 + $0x10] sm:$0xff]
        %v5423 = vld [vmem:[%s5419 + $0x18] sm:$0xff]
        %v5424 = vld [vmem:[%s5419 + $0x20] sm:$0xff]
        %v5425 = vld [vmem:[%s5419 + $0x28] sm:$0xff]
        %v5426 = vld [vmem:[%s5419 + $0x30] sm:$0xff]
        %v5427 = vld [vmem:[%s5419 + $0x38] sm:$0xff]
        %s5428 = scalar_lea.vmem %s15, 1
        %v5429 = vld [vmem:[%s5428] sm:$0x1]
        %v5431 = vlaneseq
        %v5432 = vshrl.u32 %v5431, 7
        %v5433 = vsub.s32 0, %v5432
        %v5434 = vrot.slane %v5429, %v5433
        %v5437 = vsel %vm2990, %v5418, 0
        %5439 = vmatprep.subr.mxu0 0.0
        %5440 = vmatpush1.msra.mxu0 0.0
        %5441 = vmatprep.subr.mxu0 0.0
        %5442 = vmatpush1.msra.mxu0 0.0
        %5443 = vmatprep.subr.mxu0 0.0
        %5444 = vmatpush1.msra.mxu0 0.0
        %5445 = vmatprep.subr.mxu0 0.0
        %5446 = vmatpush1.msra.mxu0 0.0
        %5447 = vmatprep.subr.mxu0 0.0
        %5448 = vmatpush1.msra.mxu0 0.0
        %5449 = vmatprep.subr.mxu0 0.0
        %5450 = vmatpush1.msra.mxu0 0.0
        %5451 = vmatprep.subr.mxu0 0.0
        %5452 = vmatpush1.msra.mxu0 0.0
        %5453 = vmatprep.subr.mxu0 0.0
        %5454 = vmatpush1.msra.mxu0 0.0
        %5455 = vmatprep.subr.mxu0 0.0
        %5456 = vmatpush1.msra.mxu0 %v5427
        %5457 = vmatprep.subr.mxu0 0.0
        %5458 = vmatpush1.msra.mxu0 %v5426
        %5459 = vmatprep.subr.mxu0 0.0
        %5460 = vmatpush1.msra.mxu0 %v5425
        %5461 = vmatprep.subr.mxu0 0.0
        %5462 = vmatpush1.msra.mxu0 %v5424
        %5463 = vmatprep.subr.mxu0 0.0
        %5464 = vmatpush1.msra.mxu0 %v5423
        %5465 = vmatprep.subr.mxu0 0.0
        %5466 = vmatpush1.msra.mxu0 %v5422
        %5467 = vmatprep.subr.mxu0 0.0
        %5468 = vmatpush1.msra.mxu0 %v5421
        %5469 = vmatprep.subr.mxu0 0.0
        %5470 = vmatpush1.msra.mxu0 %v5420
        %5471 = vmatprep.subr.mxu0 0.0
        %5472 = vmatpush2.msra.mxu0 0.0
        %5473 = vmatprep.subr.mxu0 0.0
        %5474 = vmatpush2.msra.mxu0 0.0
        %5475 = vmatprep.subr.mxu0 0.0
        %5476 = vmatpush2.msra.mxu0 0.0
        %5477 = vmatprep.subr.mxu0 0.0
        %5478 = vmatpush2.msra.mxu0 0.0
        %5479 = vmatprep.subr.mxu0 0.0
        %5480 = vmatpush2.msra.mxu0 0.0
        %5481 = vmatprep.subr.mxu0 0.0
        %5482 = vmatpush2.msra.mxu0 0.0
        %5483 = vmatprep.subr.mxu0 0.0
        %5484 = vmatpush2.msra.mxu0 0.0
        %5485 = vmatprep.subr.mxu0 0.0
        %5486 = vmatpush2.msra.mxu0 0.0
        %5487 = vmatprep.subr.mxu0 0.0
        %5488 = vmatpush2.msra.mxu0 0.0
        %5489 = vmatprep.subr.mxu0 0.0
        %5490 = vmatpush2.msra.mxu0 0.0
        %5491 = vmatprep.subr.mxu0 0.0
        %5492 = vmatpush2.msra.mxu0 0.0
        %5493 = vmatprep.subr.mxu0 0.0
        %5494 = vmatpush2.msra.mxu0 0.0
        %5495 = vmatprep.subr.mxu0 0.0
        %5496 = vmatpush2.msra.mxu0 0.0
        %5497 = vmatprep.subr.mxu0 0.0
        %5498 = vmatpush2.msra.mxu0 0.0
        %5499 = vmatprep.subr.mxu0 0.0
        %5500 = vmatpush2.msra.mxu0 0.0
        %5501 = vmatprep.subr.mxu0 0.0
        %5502 = vmatpush2.msra.mxu0 0.0
        %5503 = vmatprep.mubr.f32.mxu0 0.0
        %5504 = vmatmul.mubr.f32.gmra.mxu0 %v5437
        %v5505 = vpop.f32.mrf.mxu0
        %v5506 = vadd.f32 %v5434, %v5505
        %v5507 = vpop.f32.mrf.mxu0
        %5508 = vdwg.mxu0
        %v5509 = vadd.f32 %v5331, %v5506
        %v5510 = vsel %vm663, %v5509, 0.0
        %5511 = vadd.xlane.f32.xlu0 %v5510
        %v5512 = vpop.xlane.xlu0 %5511
        %v5513 = vmul.f32 %v5512, %v1707
        %v5514 = vsub.f32 %v5509, %v5513
        %v5515 = vmul.f32 %v5514, %v5514
        %v5516 = vsel %vm663, %v5515, 0.0
        %5517 = vadd.xlane.f32.xlu0 %v5516
        %v5518 = vpop.xlane.xlu0 %5517
        %v5519 = vmul.f32 %v5518, %v1707
        %v5520 = vadd.f32 %v5519, 1e-05
        %v5521 = vrsqrt.pop %v5520
        %v5522 = vmul.f32 %v5514, %v5521
        %v5523 = vlaneseq
        %v5524 = vshrl.u32 %v5523, 7
        %v5525 = vsub.s32 2, %v5524
        %v5526 = vrot.slane %v3089, %v5525
        %v5527 = vmul.f32 %v5522, %v5526
        %v5528 = vlaneseq
        %v5529 = vshrl.u32 %v5528, 7
        %v5530 = vsub.s32 2, %v5529
        %v5531 = vrot.slane %v3091, %v5530
        %v5532 = vadd.f32 %v5527, %v5531
        %v5533 = vld [vmem:[%s18] sm:$0xff]
        %v5534 = vld [vmem:[%s18 + $0x8] sm:$0xff]
        %v5535 = vld [vmem:[%s18 + $0x10] sm:$0xff]
        %v5536 = vld [vmem:[%s18 + $0x18] sm:$0xff]
        %v5537 = vld [vmem:[%s19] sm:$0x1]
        %v5539 = vlaneseq
        %v5540 = vshrl.u32 %v5539, 7
        %v5541 = vsub.s32 0, %v5540
        %v5542 = vrot.slane %v5537, %v5541
        %v5545 = vsel %vm663, %v5532, 0
        %5547 = vmatprep.subr.mxu0 0.0
        %5548 = vmatpush1.msra.mxu0 0.0
        %5549 = vmatprep.subr.mxu0 0.0
        %5550 = vmatpush1.msra.mxu0 0.0
        %5551 = vmatprep.subr.mxu0 0.0
        %5552 = vmatpush1.msra.mxu0 0.0
        %5553 = vmatprep.subr.mxu0 0.0
        %5554 = vmatpush1.msra.mxu0 0.0
        %5555 = vmatprep.subr.mxu0 0.0
        %5556 = vmatpush1.msra.mxu0 0.0
        %5557 = vmatprep.subr.mxu0 0.0
        %5558 = vmatpush1.msra.mxu0 0.0
        %5559 = vmatprep.subr.mxu0 0.0
        %5560 = vmatpush1.msra.mxu0 0.0
        %5561 = vmatprep.subr.mxu0 0.0
        %5562 = vmatpush1.msra.mxu0 0.0
        %5563 = vmatprep.subr.mxu0 0.0
        %5564 = vmatpush1.msra.mxu0 0.0
        %5565 = vmatprep.subr.mxu0 0.0
        %5566 = vmatpush1.msra.mxu0 0.0
        %5567 = vmatprep.subr.mxu0 0.0
        %5568 = vmatpush1.msra.mxu0 0.0
        %5569 = vmatprep.subr.mxu0 0.0
        %5570 = vmatpush1.msra.mxu0 0.0
        %5571 = vmatprep.subr.mxu0 0.0
        %5572 = vmatpush1.msra.mxu0 %v5536
        %5573 = vmatprep.subr.mxu0 0.0
        %5574 = vmatpush1.msra.mxu0 %v5535
        %5575 = vmatprep.subr.mxu0 0.0
        %5576 = vmatpush1.msra.mxu0 %v5534
        %5577 = vmatprep.subr.mxu0 0.0
        %5578 = vmatpush1.msra.mxu0 %v5533
        %5579 = vmatprep.subr.mxu0 0.0
        %5580 = vmatpush2.msra.mxu0 0.0
        %5581 = vmatprep.subr.mxu0 0.0
        %5582 = vmatpush2.msra.mxu0 0.0
        %5583 = vmatprep.subr.mxu0 0.0
        %5584 = vmatpush2.msra.mxu0 0.0
        %5585 = vmatprep.subr.mxu0 0.0
        %5586 = vmatpush2.msra.mxu0 0.0
        %5587 = vmatprep.subr.mxu0 0.0
        %5588 = vmatpush2.msra.mxu0 0.0
        %5589 = vmatprep.subr.mxu0 0.0
        %5590 = vmatpush2.msra.mxu0 0.0
        %5591 = vmatprep.subr.mxu0 0.0
        %5592 = vmatpush2.msra.mxu0 0.0
        %5593 = vmatprep.subr.mxu0 0.0
        %5594 = vmatpush2.msra.mxu0 0.0
        %5595 = vmatprep.subr.mxu0 0.0
        %5596 = vmatpush2.msra.mxu0 0.0
        %5597 = vmatprep.subr.mxu0 0.0
        %5598 = vmatpush2.msra.mxu0 0.0
        %5599 = vmatprep.subr.mxu0 0.0
        %5600 = vmatpush2.msra.mxu0 0.0
        %5601 = vmatprep.subr.mxu0 0.0
        %5602 = vmatpush2.msra.mxu0 0.0
        %5603 = vmatprep.subr.mxu0 0.0
        %5604 = vmatpush2.msra.mxu0 0.0
        %5605 = vmatprep.subr.mxu0 0.0
        %5606 = vmatpush2.msra.mxu0 0.0
        %5607 = vmatprep.subr.mxu0 0.0
        %5608 = vmatpush2.msra.mxu0 0.0
        %5609 = vmatprep.subr.mxu0 0.0
        %5610 = vmatpush2.msra.mxu0 0.0
        %5611 = vmatprep.mubr.f32.mxu0 0.0
        %5612 = vmatmul.mubr.f32.gmra.mxu0 %v5545
        %v5613 = vpop.f32.mrf.mxu0
        %v5614 = vadd.f32 %v5542, %v5613
        %v5615 = vpop.f32.mrf.mxu0
        %5616 = vdwg.mxu0
        %5617 = vst.msk [vmem:[%s633] sm:$0xff] %vm2990, %v5614
        %s5618 = sand.u32 %s472, 1
        %s5619 = scalar_lea.sflag [#allocation3], %s5618
        %s5620 = sand.u32 %s472, 1
        %s5621 = smul.addr %s5620, 8
        %s5622 = scalar_lea.vmem [#allocation2], %s5621
        // Predicated region
        $region101: #{transformer_seq_gen_forward.1} parent=99 // pred_check
          %p5623 = pneg %p482
        $region102: #{transformer_seq_gen_forward.1} parent=99 // pred_check_branch
          %5625 = sbr.rel (%p5623) target = $region104
        $region103: #{transformer_seq_gen_forward.1} parent=99 // pred_region
          %s5627 = ssub.s32 128, 128
          %5628 = vsyncadd %s5619, %s5627
          %s5629 = smul.addr %s34, 128
          %s5630 = scalar_lea.hbm %s20, %s5629
          %s5632 = sshll.u32 %s5622, 4
          %s5633 = int_to_ptr.vmem [resolvable:$true] %s5632
          %5635 = dma.vmem_to_hbm [thread:$0]  %s5633, 128, %s5630, %s5619
        $region104: #{transformer_seq_gen_forward.1} parent=99 // pred_fallthru
          _
      $region100: #{transformer_seq_gen_forward.1} parent=5 // pred_fallthru
        _
      %p5636 = scmp.le.s32.totalorder 2, %s29
      // Predicated region
      $region105: #{transformer_seq_gen_forward.1} parent=5 // pred_check
        %p5637 = pneg %p5636
      $region106: #{transformer_seq_gen_forward.1} parent=5 // pred_check_branch
        %5639 = sbr.rel (%p5637) target = $region108
      $region107: #{transformer_seq_gen_forward.1} parent=5 // pred_region
        %s5640 = ssub.s32 %s29, 2
        // Predicated region
        $region109: #{transformer_seq_gen_forward.1} parent=107 // pred_check
          %p5641 = pneg %p488
        $region110: #{transformer_seq_gen_forward.1} parent=107 // pred_check_branch
          %5643 = sbr.rel (%p5641) target = $region112
        $region111: #{transformer_seq_gen_forward.1} parent=107 // pred_region
          %s5644 = sand.u32 %s473, 1
          %s5645 = scalar_lea.sflag [#allocation3], %s5644
          %s5646 = sand.u32 %s473, 1
          %s5647 = smul.addr %s5646, 8
          %s5648 = scalar_lea.vmem [#allocation2], %s5647
          %5649 = dma.done %s5645, 128
        $region112: #{transformer_seq_gen_forward.1} parent=107 // pred_fallthru
          _
      $region108: #{transformer_seq_gen_forward.1} parent=5 // pred_fallthru
        _
    $region6: #{transformer_seq_gen_forward.1} parent=1 // loop_footer
      %s33 = sadd.s32 1, %s29
    $region7: #{transformer_seq_gen_forward.1} parent=1 // loop_footer_branch
      %28 = sbr.rel target = $region3
    $region8: #{transformer_seq_gen_forward.1} parent=1 // loop_exit
      _
    %5650 = vsyncpa [#allocation3], 1
    %s5651 = scalar_lea.sflag [#allocation3], 1
    %5652 = vsyncpa %s5651, 1

</llo_original>
